<compile_context>
chip_gen: v7x
topology: tpu7x:2x2x1
jax: 0.10.0
libtpu: 0.0.40
codegen_flags: <defaults>
</compile_context>

<pallas_src>
import functools
import numpy as np

import jax
import jax.numpy as jnp
from jax.experimental import pallas as pl
from jax.experimental.pallas import tpu as pltpu


_VMEM_LIMIT = 64 * 1024 * 1024  # raised scoped-VMEM cap (within physical on all gens)


def _round_up(x, m):
    return ((x + m - 1) // m) * m


def _pick_tile(dim, cap, quantum):
    """Largest tile <= cap: the full dim if it fits, else the largest divisor of
    `dim` that is a multiple of `quantum` (so no padding / tail slicing is needed).
    Returns None if no such divisor exists (caller falls back to padding)."""
    if dim <= cap:
        return dim
    start = cap - (cap % quantum)
    for d in range(start, 0, -quantum):
        if dim % d == 0:
            return d
    return None


# ----------------------------------------------------------------------------
# Optional single-buffered constant blocks (v7x VMEM headroom).  Probed once,
# eagerly, so an unsupported jax/libtpu falls back to default double buffering.
# ----------------------------------------------------------------------------

_BUFFERED1_SUPPORTED = None


def _buffered1_supported():
    global _BUFFERED1_SUPPORTED
    if _BUFFERED1_SUPPORTED is None:
        try:
            def _probe_kernel(x_ref, o_ref):
                o_ref[...] = x_ref[...] * 2.0

            spec = pl.BlockSpec((8, 128), lambda i: (0, 0),
                                pipeline_mode=pl.Buffered(1))
            y = pl.pallas_call(
                _probe_kernel,
                out_shape=jax.ShapeDtypeStruct((8, 128), jnp.float32),
                grid=(1,),
                in_specs=[spec],
                out_specs=pl.BlockSpec((8, 128), lambda i: (0, 0)),
            )(jnp.zeros((8, 128), jnp.float32))
            jax.block_until_ready(y)
            _BUFFERED1_SUPPORTED = True
        except Exception:  # noqa: BLE001  (any construction/lowering failure)
            _BUFFERED1_SUPPORTED = False
    return _BUFFERED1_SUPPORTED


def _const_spec(shape, index_map):
    """BlockSpec for an operand whose index_map is constant across the grid:
    single-buffer it when supported (halves its resident VMEM, matters on v7x)."""
    if _buffered1_supported():
        return pl.BlockSpec(shape, index_map, pipeline_mode=pl.Buffered(1))
    return pl.BlockSpec(shape, index_map)


# ----------------------------------------------------------------------------
# Pallas kernels
# ----------------------------------------------------------------------------

_SQRT_2_OVER_PI = 0.7978845608028654


def _gelu_tanh(y):
    # tanh-based GELU (EUP).  TODO(synk): torch.nn.GELU default is exact erf;
    # the tanh form differs by ~1e-3 abs.
    return 0.5 * y * (1.0 + jnp.tanh(_SQRT_2_OVER_PI * (y + 0.044715 * y * y * y)))


def _linear_kernel(x_ref, w_ref, *rest, activation, has_bias):
    if has_bias:
        b_ref, o_ref = rest
    else:
        (o_ref,) = rest
    x = x_ref[...].astype(jnp.bfloat16)
    w = w_ref[...].astype(jnp.bfloat16)
    y = jnp.dot(x, w, preferred_element_type=jnp.float32)   # bf16 MXU, f32 accumulate
    if has_bias:
        y = y + b_ref[...].astype(jnp.float32)
    if activation == "gelu":
        y = _gelu_tanh(y)
    o_ref[...] = y.astype(o_ref.dtype)


def linear(x, w, b=None, activation=None, out_dtype=jnp.bfloat16,
           tile_m=512, tile_n=2048):
    """x: (M, K), w: (K, N) bf16, b: (1, N) f32 or None -> (M, N) out_dtype.

    Rows tiled with a divisor of M when possible (no pad/slice round trip);
    optional N tiling (multiples of 128) keeps large weights from being
    whole-resident; weight/bias blocks are single-buffered constants."""
    M, K = x.shape
    N = w.shape[1]
    has_bias = b is not None

    tm = _pick_tile(M, tile_m, 8)
    pad = 0
    if tm is None:                      # fallback: pad (rare for Swin token counts)
        tm = tile_m
        pad = _round_up(M, tm) - M
        x = jnp.pad(x, ((0, pad), (0, 0)))
    Mp = x.shape[0]

    tn = _pick_tile(N, tile_n, 128)
    if tn is None:
        tn = N                          # keep whole N (block == full dim is legal)

    w_spec_cls = _const_spec if tn == N else pl.BlockSpec
    in_specs = [pl.BlockSpec((tm, K), lambda i, j: (i, 0)),
                w_spec_cls((K, tn), lambda i, j: (0, j))]
    args = [x, w]
    if has_bias:
        in_specs.append(w_spec_cls((1, tn), lambda i, j: (0, j)))
        args.append(b)

    y = pl.pallas_call(
        functools.partial(_linear_kernel, activation=activation, has_bias=has_bias),
        out_shape=jax.ShapeDtypeStruct((Mp, N), out_dtype),
        grid=(Mp // tm, N // tn),
        in_specs=in_specs,
        out_specs=pl.BlockSpec((tm, tn), lambda i, j: (i, j)),
        compiler_params=pltpu.CompilerParams(
            dimension_semantics=("parallel", "parallel"),
            vmem_limit_bytes=_VMEM_LIMIT),
    )(*args)
    if pad:
        y = y[:M]
    return y


def _layernorm_kernel(x_ref, g_ref, b_ref, o_ref, *, eps):
    x = x_ref[...].astype(jnp.float32)
    mean = jnp.mean(x, axis=-1, keepdims=True)
    var = jnp.mean(jnp.square(x - mean), axis=-1, keepdims=True)
    y = (x - mean) * jax.lax.rsqrt(var + eps)
    o_ref[...] = (y * g_ref[...] + b_ref[...]).astype(o_ref.dtype)


def layer_norm(x, g, b, eps=1e-5, tile_m=1024, out_dtype=jnp.bfloat16):
    """LayerNorm over the last dim (torch eps=1e-5, affine); row-tiled, bf16 I/O."""
    orig_shape = x.shape
    C = orig_shape[-1]
    x2 = x.reshape(-1, C)
    M = x2.shape[0]

    tm = _pick_tile(M, tile_m, 8)
    pad = 0
    if tm is None:
        tm = tile_m
        pad = _round_up(M, tm) - M
        x2 = jnp.pad(x2, ((0, pad), (0, 0)))
    Mp = x2.shape[0]

    y = pl.pallas_call(
        functools.partial(_layernorm_kernel, eps=eps),
        out_shape=jax.ShapeDtypeStruct((Mp, C), out_dtype),
        grid=(Mp // tm,),
        in_specs=[
            pl.BlockSpec((tm, C), lambda i: (i, 0)),
            _const_spec((1, C), lambda i: (0, 0)),
            _const_spec((1, C), lambda i: (0, 0)),
        ],
        out_specs=pl.BlockSpec((tm, C), lambda i: (i, 0)),
        compiler_params=pltpu.CompilerParams(
            dimension_semantics=("parallel",),
            vmem_limit_bytes=_VMEM_LIMIT),
    )(x2, g.reshape(1, C), b.reshape(1, C))
    if pad:
        y = y[:M]
    return y.reshape(orig_shape)


def _window_attn_kernel(qkv_ref, bias_ref, o_ref, *, num_heads, scale):
    # qkv_ref: (WB, N, 3C) bf16   bias_ref: (H, WBb|1, N, N) f32   o_ref: (WB, N, C) bf16
    WB, N, C3 = qkv_ref.shape
    C = C3 // 3
    D = C // num_heads

    for h in range(num_heads):                  # static unroll; per-head liveness only
        q = qkv_ref[:, :, h * D:(h + 1) * D]                    # bf16 slices, no copy
        k = qkv_ref[:, :, C + h * D:C + (h + 1) * D]
        v = qkv_ref[:, :, 2 * C + h * D:2 * C + (h + 1) * D]
        s = jnp.einsum("wnd,wmd->wnm", q, k,
                       preferred_element_type=jnp.float32) * scale
        s = s + bias_ref[h]                     # fused rel-pos bias (+ shift mask)
        s = s - jnp.max(s, axis=-1, keepdims=True)
        p = jnp.exp(s)
        p = p * pl.reciprocal(jnp.sum(p, axis=-1, keepdims=True), approx=True)
        o_h = jnp.einsum("wnm,wmd->wnd", p.astype(jnp.bfloat16), v,
                         preferred_element_type=jnp.float32)
        o_ref[:, :, h * D:(h + 1) * D] = o_h.astype(o_ref.dtype)   # direct store, no concat


def _pick_windows_per_block(nW, B):
    """All of an image's windows per grid step, but split so the 'parallel' grid
    has >= 2 steps when possible (v7x has 2 TensorCores per chip)."""
    wpb = nW
    while B * (nW // wpb) < 2 and wpb % 2 == 0 and wpb > 1:
        wpb //= 2
    return wpb


def window_attention(qkv, attn_bias, num_heads, scale, windows_per_image):
    """qkv: (B_, N, 3C) bf16 with B_ = B*nW (image-major window order);
    attn_bias: (H, nW|1, N, N) f32 (rel-pos bias, shift mask pre-fused)."""
    B_, N, C3 = qkv.shape
    C = C3 // 3
    nW = windows_per_image
    B = B_ // nW
    wpb = _pick_windows_per_block(nW, B)
    gpi = nW // wpb                                      # window-groups per image
    nWb = attn_bias.shape[1]                             # 1 (no shift) or nW (shifted)
    wb_bias = min(nWb, wpb)

    if nWb == 1 or gpi == 1:
        bias_spec = _const_spec((num_heads, wb_bias, N, N), lambda g: (0, 0, 0, 0))
    else:
        bias_spec = pl.BlockSpec((num_heads, wb_bias, N, N),
                                 lambda g: (0, g % gpi, 0, 0))

    return pl.pallas_call(
        functools.partial(_window_attn_kernel, num_heads=num_heads, scale=scale),
        out_shape=jax.ShapeDtypeStruct((B_, N, C), jnp.bfloat16),
        grid=(B_ // wpb,),
        in_specs=[pl.BlockSpec((wpb, N, C3), lambda g: (g, 0, 0)), bias_spec],
        out_specs=pl.BlockSpec((wpb, N, C), lambda g: (g, 0, 0)),
        compiler_params=pltpu.CompilerParams(
            dimension_semantics=("parallel",),
            vmem_limit_bytes=_VMEM_LIMIT),
    )(qkv, attn_bias)


def _avgpool_kernel(x_ref, o_ref):
    x = x_ref[...].astype(jnp.float32)               # (1, L, C)
    o_ref[...] = jnp.mean(x, axis=1, keepdims=True)


def seq_avgpool(x):
    """x: (B, L, C) -> (B, C); AdaptiveAvgPool1d(1) over tokens, tiled over batch."""
    B, L, C = x.shape
    y = pl.pallas_call(
        _avgpool_kernel,
        out_shape=jax.ShapeDtypeStruct((B, 1, C), jnp.float32),
        grid=(B,),
        in_specs=[pl.BlockSpec((1, L, C), lambda b: (b, 0, 0))],
        out_specs=pl.BlockSpec((1, 1, C), lambda b: (b, 0, 0)),
        compiler_params=pltpu.CompilerParams(dimension_semantics=("parallel",)),
    )(x)
    return y.reshape(B, C)


# ----------------------------------------------------------------------------
# Plain-JAX glue (window partition / roll) + constant tables (host, init-time)
# ----------------------------------------------------------------------------

def window_partition(x, ws):
    B, H, W, C = x.shape
    x = x.reshape(B, H // ws, ws, W // ws, ws, C)
    return jnp.transpose(x, (0, 1, 3, 2, 4, 5)).reshape(-1, ws, ws, C)


def window_reverse(windows, ws, H, W):
    B = windows.shape[0] // ((H // ws) * (W // ws))
    x = windows.reshape(B, H // ws, W // ws, ws, ws, -1)
    return jnp.transpose(x, (0, 1, 3, 2, 4, 5)).reshape(B, H, W, -1)


def relative_position_index(ws):
    coords = np.stack(np.meshgrid(np.arange(ws), np.arange(ws), indexing="ij"))
    coords_flat = coords.reshape(2, -1)
    rel = coords_flat[:, :, None] - coords_flat[:, None, :]
    rel = rel.transpose(1, 2, 0).astype(np.int64)
    rel[:, :, 0] += ws - 1
    rel[:, :, 1] += ws - 1
    rel[:, :, 0] *= 2 * ws - 1
    return rel.sum(-1)  # (N, N)


def compute_attn_mask(H, W, ws, shift):
    img_mask = np.zeros((1, H, W, 1), np.float32)
    slices = (slice(0, -ws), slice(-ws, -shift), slice(-shift, None))
    cnt = 0
    for hs in slices:
        for wsl in slices:
            img_mask[:, hs, wsl, :] = cnt
            cnt += 1
    m = img_mask.reshape(1, H // ws, ws, W // ws, ws, 1)
    m = m.transpose(0, 1, 3, 2, 4, 5).reshape(-1, ws * ws)
    attn_mask = m[:, None, :] - m[:, :, None]
    attn_mask = np.where(attn_mask != 0, -100.0, 0.0).astype(np.float32)
    return jnp.asarray(attn_mask)  # (nW, N, N)


def build_attn_bias(rpb_table, ws, num_heads, attn_mask=None):
    """Fused attention bias precomputed once at init, in the exact layout the
    kernel consumes: (H, nW, N, N) for shifted blocks (mask folded in), else
    (H, 1, N, N)."""
    N = ws * ws
    idx = jnp.asarray(relative_position_index(ws).reshape(-1), jnp.int32)
    rb = jnp.take(rpb_table, idx, axis=0).reshape(N, N, num_heads)
    rb = jnp.transpose(rb, (2, 0, 1)).astype(jnp.float32)        # (H, N, N)
    if attn_mask is None:
        return rb[:, None]                                       # (H, 1, N, N)
    return rb[:, None] + attn_mask[None, :]                      # (H, nW, N, N)


# ----------------------------------------------------------------------------
# Model pieces
# ----------------------------------------------------------------------------

def patch_embed_forward(x_nchw, p, patch_size):
    B, C, H, W = x_nchw.shape
    ps = patch_size
    Hp, Wp = H // ps, W // ps
    x = x_nchw.reshape(B, C, Hp, ps, Wp, ps)
    x = jnp.transpose(x, (0, 2, 4, 1, 3, 5))                  # (B, Hp, Wp, C, ps, ps)
    x = x.reshape(B * Hp * Wp, C * ps * ps)
    y = linear(x, p["proj_w"], p["proj_b"])                   # strided conv == patch matmul
    y = y.reshape(B, Hp * Wp, -1)
    y = layer_norm(y, p["norm_g"], p["norm_b"])
    return y


def swin_block_forward(x, p, H, W, num_heads, window_size, shift_size):
    B, L, C = x.shape
    N = window_size * window_size
    nW = (H // window_size) * (W // window_size)
    head_dim = C // num_heads
    scale = head_dim ** -0.5

    shortcut = x
    x = layer_norm(x, p["norm1_g"], p["norm1_b"])
    x = x.reshape(B, H, W, C)
    if shift_size > 0:
        # TODO(synk): roll + window partition/reverse are XLA copies; fold into a
        # scalar-prefetch indexed qkv BlockSpec to remove them.
        x = jnp.roll(x, shift=(-shift_size, -shift_size), axis=(1, 2))

    xw = window_partition(x, window_size).reshape(B * nW * N, C)     # image-major windows

    qkv = linear(xw, p["qkv_w"], p["qkv_b"])                         # (B_*N, 3C) bf16
    qkv = qkv.reshape(B * nW, N, 3 * C)

    out = window_attention(qkv, p["attn_bias"], num_heads, scale, nW)  # (B_, N, C) bf16

    out = linear(out.reshape(B * nW * N, C), p["proj_w"], p["proj_b"])
    out = out.reshape(B * nW, window_size, window_size, C)
    x = window_reverse(out, window_size, H, W)
    if shift_size > 0:
        x = jnp.roll(x, shift=(shift_size, shift_size), axis=(1, 2))
    x = x.reshape(B, L, C)

    x = shortcut + x                                           # drop_path is identity (eval)

    y = layer_norm(x, p["norm2_g"], p["norm2_b"])
    h = linear(y.reshape(B * L, C), p["fc1_w"], p["fc1_b"], activation="gelu")
    h = linear(h, p["fc2_w"], p["fc2_b"])
    x = x + h.reshape(B, L, C)
    return x


def patch_merging_forward(x, p, H, W):
    B, L, C = x.shape
    x = x.reshape(B, H, W, C)
    x0 = x[:, 0::2, 0::2, :]
    x1 = x[:, 1::2, 0::2, :]
    x2 = x[:, 0::2, 1::2, :]
    x3 = x[:, 1::2, 1::2, :]
    x = jnp.concatenate([x0, x1, x2, x3], axis=-1)             # (B, H/2, W/2, 4C)
    x = x.reshape(B, (H // 2) * (W // 2), 4 * C)
    x = layer_norm(x, p["norm_g"], p["norm_b"])
    y = linear(x.reshape(-1, 4 * C), p["red_w"])               # reduction Linear (bias=False)
    return y.reshape(B, (H // 2) * (W // 2), 2 * C)


def swin_forward(x_nchw, params, cfg):
    x = patch_embed_forward(x_nchw, params["patch_embed"], cfg["patch_size"])
    H0, W0 = cfg["patches_resolution"]

    for i_layer, layer_p in enumerate(params["layers"]):
        Hl, Wl = H0 // (2 ** i_layer), W0 // (2 ** i_layer)
        nh = cfg["num_heads"][i_layer]
        for blk_idx, blk_p in enumerate(layer_p["blocks"]):
            ws = cfg["window_size"]
            shift = 0 if blk_idx % 2 == 0 else ws // 2
            if min(Hl, Wl) <= ws:                              # same rule as SwinTransformerBlock
                ws = min(Hl, Wl)
                shift = 0
            x = swin_block_forward(x, blk_p, Hl, Wl, nh, ws, shift)
        if layer_p["downsample"] is not None:
            x = patch_merging_forward(x, layer_p["downsample"], Hl, Wl)

    x = layer_norm(x, params["norm_g"], params["norm_b"])
    feat = seq_avgpool(x)                                      # (B, num_features) f32
    out = linear(feat, params["head_w"], params["head_b"],
                 out_dtype=jnp.float32)                        # head weights zeroed in __init__
    half = out.shape[-1] // 2
    frequencies = out[:, :half]
    phase_shifts = out[:, half:]
    return {"latent_code": [frequencies, phase_shifts]}


# ----------------------------------------------------------------------------
# Deterministic parameter init (synthetic, mirrors the torch module's shapes)
# Matmul weights stored bf16; biases / LN params / bias tables stay f32.
# ----------------------------------------------------------------------------

def init_params(key, cfg):
    def nrm(k, shape, std=0.02, dtype=jnp.bfloat16):
        return (std * jax.random.normal(k, shape, jnp.float32)).astype(dtype)

    keys = iter(jax.random.split(key, 256))
    E = cfg["embed_dim"]
    ps = cfg["patch_size"]
    in_ch = cfg["in_chans"]
    ws = cfg["window_size"]
    num_layers = len(cfg["depths"])
    num_features = E * 2 ** (num_layers - 1)

    params = {
        "patch_embed": {
            "proj_w": nrm(next(keys), (in_ch * ps * ps, E)),
            "proj_b": nrm(next(keys), (1, E), dtype=jnp.float32),
            "norm_g": jnp.ones((E,), jnp.float32),
            "norm_b": jnp.zeros((E,), jnp.float32),
        },
        "layers": [],
        "norm_g": jnp.ones((num_features,), jnp.float32),
        "norm_b": jnp.zeros((num_features,), jnp.float32),
        # head.weight / head.bias are zero-filled in the torch __init__
        "head_w": jnp.zeros((num_features, cfg["num_classes"]), jnp.bfloat16),
        "head_b": jnp.zeros((1, cfg["num_classes"]), jnp.float32),
    }

    H0, W0 = cfg["patches_resolution"]
    for i_layer in range(num_layers):
        dim = E * 2 ** i_layer
        nh = cfg["num_heads"][i_layer]
        Hl, Wl = H0 // (2 ** i_layer), W0 // (2 ** i_layer)
        hidden = int(dim * cfg["mlp_ratio"])
        blocks = []
        for blk_idx in range(cfg["depths"][i_layer]):
            ws_eff = ws
            shift = 0 if blk_idx % 2 == 0 else ws // 2
            if min(Hl, Wl) <= ws:
                ws_eff = min(Hl, Wl)
                shift = 0
            rpb_table = nrm(next(keys), ((2 * ws_eff - 1) ** 2, nh), dtype=jnp.float32)
            mask = compute_attn_mask(Hl, Wl, ws_eff, shift) if shift > 0 else None
            blk = {
                "norm1_g": jnp.ones((dim,), jnp.float32),
                "norm1_b": jnp.zeros((dim,), jnp.float32),
                "qkv_w": nrm(next(keys), (dim, 3 * dim)),
                "qkv_b": jnp.zeros((1, 3 * dim), jnp.float32),
                "proj_w": nrm(next(keys), (dim, dim)),
                "proj_b": jnp.zeros((1, dim), jnp.float32),
                # fused rel-pos bias (+ shift mask), head-major, consumed as-is
                "attn_bias": build_attn_bias(rpb_table, ws_eff, nh, mask),
                "norm2_g": jnp.ones((dim,), jnp.float32),
                "norm2_b": jnp.zeros((dim,), jnp.float32),
                "fc1_w": nrm(next(keys), (dim, hidden)),
                "fc1_b": jnp.zeros((1, hidden), jnp.float32),
                "fc2_w": nrm(next(keys), (hidden, dim)),
                "fc2_b": jnp.zeros((1, dim), jnp.float32),
            }
            blocks.append(blk)
        downsample = None
        if i_layer < num_layers - 1:
            downsample = {
                "norm_g": jnp.ones((4 * dim,), jnp.float32),
                "norm_b": jnp.zeros((4 * dim,), jnp.float32),
                "red_w": nrm(next(keys), (4 * dim, 2 * dim)),   # bias=False in torch
            }
        params["layers"].append({"blocks": blocks, "downsample": downsample})
    return params


# ----------------------------------------------------------------------------
# Main
# ----------------------------------------------------------------------------

if __name__ == "__main__":
    cfg = {
        "img_size": 16,
        "patch_size": 4,
        "in_chans": 4,
        "num_classes": 8,
        "embed_dim": 32,
        "depths": (2, 2),
        "num_heads": (2, 4),
        "window_size": 2,
        "mlp_ratio": 4.0,
        "patches_resolution": (4, 4),
    }

    # Probe Buffered(1) support eagerly (outside jit) so spec construction is fixed.
    _buffered1_supported()

    key = jax.random.PRNGKey(0)
    pkey, xkey = jax.random.split(key)
    params = init_params(pkey, cfg)

    # layout: NCHW input (B, C, H, W), same as the PyTorch module.
    x = jax.random.normal(xkey, (2, cfg["in_chans"], cfg["img_size"], cfg["img_size"]),
                          jnp.float32)

    forward = jax.jit(lambda inp: swin_forward(inp, params, cfg))
    out = forward(x)
    freqs, phases = out["latent_code"]
    jax.block_until_ready(freqs)
    jax.block_until_ready(phases)

    assert freqs.shape == (2, cfg["num_classes"] // 2)
    assert phases.shape == (2, cfg["num_classes"] // 2)
    print("KERNEL_OK")
</pallas_src>

<mosaic_0001>
module attributes {stable_mosaic.version = 11 : i64} {
  func.func @_probe_kernel(%arg0: i32, %arg1: memref<8x128xf32, #tpu.memory_space<vmem>>, %arg2: memref<8x128xf32, #tpu.memory_space<vmem>>) attributes {dimension_semantics = [#tpu.dimension_semantics<arbitrary>], iteration_bounds = array<i64: 1>, scalar_prefetch = 0 : i64, scratch_operands = 0 : i64, tpu.core_type = #tpu.core_type<tc>, window_params = [{pipeline_mode = #tpu.pipeline_mode<synchronous>, transform_indices = @transform_0, window_bounds = array<i64: 8, 128>}, {pipeline_mode = #tpu.pipeline_mode<synchronous>, transform_indices = @transform_1, window_bounds = array<i64: 8, 128>}]} {
    %c0 = arith.constant 0 : index
    %c0_0 = arith.constant 0 : index
    %0 = vector.load %arg1[%c0, %c0_0] : memref<8x128xf32, #tpu.memory_space<vmem>>, vector<8x128xf32>
    %cst = arith.constant 2.000000e+00 : f32
    %1 = vector.broadcast %cst : f32 to vector<8x128xf32>
    %2 = arith.mulf %0, %1 : vector<8x128xf32>
    %c0_1 = arith.constant 0 : index
    %c0_2 = arith.constant 0 : index
    %3 = vector.load %arg2[%c0_1, %c0_2] : memref<8x128xf32, #tpu.memory_space<vmem>>, vector<8x128xf32>
    tpu.vector_store %arg2[%c0_1, %c0_2], %2 {strides = array<i32>} : memref<8x128xf32, #tpu.memory_space<vmem>>, vector<8x128xf32>,
    return
  }
  func.func @transform_0(%arg0: i32) -> (i32, i32) {
    %c0_i32 = arith.constant 0 : i32
    %c0_i32_0 = arith.constant 0 : i32
    %c0_i32_1 = arith.constant 0 : i32
    return %c0_i32, %c0_i32_0 : i32, i32
  }
  func.func @transform_1(%arg0: i32) -> (i32, i32) {
    %c0_i32 = arith.constant 0 : i32
    %c0_i32_0 = arith.constant 0 : i32
    %c0_i32_1 = arith.constant 0 : i32
    return %c0_i32, %c0_i32_0 : i32, i32
  }
}

module attributes {stable_mosaic.version = 11 : i64} {
  func.func @_linear_kernel(%arg0: i32, %arg1: i32, %arg2: memref<32x64xf32, #tpu.memory_space<vmem>>, %arg3: memref<64x32xbf16, #tpu.memory_space<vmem>>, %arg4: memref<1x32xf32, #tpu.memory_space<vmem>>, %arg5: memref<32x32xbf16, #tpu.memory_space<vmem>>) attributes {dimension_semantics = [#tpu.dimension_semantics<parallel>, #tpu.dimension_semantics<parallel>], iteration_bounds = array<i64: 1, 1>, scalar_prefetch = 0 : i64, scratch_operands = 0 : i64, tpu.core_type = #tpu.core_type<tc>, window_params = [{transform_indices = @transform_0, window_bounds = array<i64: 32, 64>}, {transform_indices = @transform_1, window_bounds = array<i64: 64, 32>}, {transform_indices = @transform_2, window_bounds = array<i64: 1, 32>}, {transform_indices = @transform_3, window_bounds = array<i64: 32, 32>}]} {
    %c0 = arith.constant 0 : index
    %c0_0 = arith.constant 0 : index
    %0 = vector.load %arg2[%c0, %c0_0] : memref<32x64xf32, #tpu.memory_space<vmem>>, vector<32x64xf32>
    %1 = arith.truncf %0 : vector<32x64xf32> to vector<32x64xbf16>
    %c0_1 = arith.constant 0 : index
    %c0_2 = arith.constant 0 : index
    %2 = vector.load %arg3[%c0_1, %c0_2] : memref<64x32xbf16, #tpu.memory_space<vmem>>, vector<64x32xbf16>
    %cst = arith.constant dense<0.000000e+00> : vector<32x32xf32>
    %3 = tpu.matmul %1, %2, %cst {dimension_numbers = #tpu.dot_dimension_numbers<[1], [0], [0], [1], [0, 0, 1, 1], [], []>} : vector<32x64xbf16>, vector<64x32xbf16>, vector<32x32xf32> -> vector<32x32xf32>
    %c0_3 = arith.constant 0 : index
    %c0_4 = arith.constant 0 : index
    %4 = vector.load %arg4[%c0_3, %c0_4] : memref<1x32xf32, #tpu.memory_space<vmem>>, vector<1x32xf32>
    %5 = vector.broadcast %4 : vector<1x32xf32> to vector<32x32xf32>
    %6 = arith.addf %3, %5 : vector<32x32xf32>
    %7 = arith.truncf %6 : vector<32x32xf32> to vector<32x32xbf16>
    %c0_5 = arith.constant 0 : index
    %c0_6 = arith.constant 0 : index
    %8 = vector.load %arg5[%c0_5, %c0_6] : memref<32x32xbf16, #tpu.memory_space<vmem>>, vector<32x32xbf16>
    tpu.vector_store %arg5[%c0_5, %c0_6], %7 {strides = array<i32>} : memref<32x32xbf16, #tpu.memory_space<vmem>>, vector<32x32xbf16>,
    return
  }
  func.func @transform_0(%arg0: i32, %arg1: i32) -> (i32, i32) {
    %c0_i32 = arith.constant 0 : i32
    %c0_i32_0 = arith.constant 0 : i32
    return %arg0, %c0_i32 : i32, i32
  }
  func.func @transform_1(%arg0: i32, %arg1: i32) -> (i32, i32) {
    %c0_i32 = arith.constant 0 : i32
    %c0_i32_0 = arith.constant 0 : i32
    return %c0_i32, %arg1 : i32, i32
  }
  func.func @transform_2(%arg0: i32, %arg1: i32) -> (i32, i32) {
    %c0_i32 = arith.constant 0 : i32
    %c0_i32_0 = arith.constant 0 : i32
    return %c0_i32, %arg1 : i32, i32
  }
  func.func @transform_3(%arg0: i32, %arg1: i32) -> (i32, i32) {
    %c0_i32 = arith.constant 0 : i32
    return %arg0, %arg1 : i32, i32
  }
}

module attributes {stable_mosaic.version = 11 : i64} {
  func.func @_layernorm_kernel(%arg0: i32, %arg1: memref<32x32xbf16, #tpu.memory_space<vmem>>, %arg2: memref<1x32xf32, #tpu.memory_space<vmem>>, %arg3: memref<1x32xf32, #tpu.memory_space<vmem>>, %arg4: memref<32x32xbf16, #tpu.memory_space<vmem>>) attributes {dimension_semantics = [#tpu.dimension_semantics<parallel>], iteration_bounds = array<i64: 1>, scalar_prefetch = 0 : i64, scratch_operands = 0 : i64, tpu.core_type = #tpu.core_type<tc>, window_params = [{transform_indices = @transform_0, window_bounds = array<i64: 32, 32>}, {pipeline_mode = #tpu.pipeline_mode<synchronous>, transform_indices = @transform_1, window_bounds = array<i64: 1, 32>}, {pipeline_mode = #tpu.pipeline_mode<synchronous>, transform_indices = @transform_2, window_bounds = array<i64: 1, 32>}, {transform_indices = @transform_3, window_bounds = array<i64: 32, 32>}]} {
    %c0 = arith.constant 0 : index
    %c0_0 = arith.constant 0 : index
    %0 = vector.load %arg1[%c0, %c0_0] : memref<32x32xbf16, #tpu.memory_space<vmem>>, vector<32x32xbf16>
    %1 = arith.extf %0 : vector<32x32xbf16> to vector<32x32xf32>
    %cst = arith.constant dense<0.000000e+00> : vector<32xf32>
    %2 = vector.multi_reduction <add>, %1, %cst [1] : vector<32x32xf32> to vector<32xf32>
    %3 = vector.shape_cast %2 : vector<32xf32> to vector<32x1xf32>
    %cst_1 = arith.constant 3.200000e+01 : f32
    %4 = vector.broadcast %cst_1 : f32 to vector<32x1xf32>
    %5 = arith.divf %3, %4 : vector<32x1xf32>
    %6 = vector.broadcast %5 : vector<32x1xf32> to vector<32x32xf32>
    %7 = arith.subf %1, %6 : vector<32x32xf32>
    %8 = arith.mulf %7, %7 : vector<32x32xf32>
    %cst_2 = arith.constant dense<0.000000e+00> : vector<32xf32>
    %9 = vector.multi_reduction <add>, %8, %cst_2 [1] : vector<32x32xf32> to vector<32xf32>
    %10 = vector.shape_cast %9 : vector<32xf32> to vector<32x1xf32>
    %cst_3 = arith.constant 3.200000e+01 : f32
    %11 = vector.broadcast %cst_3 : f32 to vector<32x1xf32>
    %12 = arith.divf %10, %11 : vector<32x1xf32>
    %13 = vector.broadcast %5 : vector<32x1xf32> to vector<32x32xf32>
    %14 = arith.subf %1, %13 : vector<32x32xf32>
    %cst_4 = arith.constant 9.99999974E-6 : f32
    %15 = vector.broadcast %cst_4 : f32 to vector<32x1xf32>
    %16 = arith.addf %12, %15 : vector<32x1xf32>
    %17 = math.rsqrt %16 : vector<32x1xf32>
    %18 = vector.broadcast %17 : vector<32x1xf32> to vector<32x32xf32>
    %19 = arith.mulf %14, %18 : vector<32x32xf32>
    %c0_5 = arith.constant 0 : index
    %c0_6 = arith.constant 0 : index
    %20 = vector.load %arg2[%c0_5, %c0_6] : memref<1x32xf32, #tpu.memory_space<vmem>>, vector<1x32xf32>
    %21 = vector.broadcast %20 : vector<1x32xf32> to vector<32x32xf32>
    %22 = arith.mulf %19, %21 : vector<32x32xf32>
    %c0_7 = arith.constant 0 : index
    %c0_8 = arith.constant 0 : index
    %23 = vector.load %arg3[%c0_7, %c0_8] : memref<1x32xf32, #tpu.memory_space<vmem>>, vector<1x32xf32>
    %24 = vector.broadcast %23 : vector<1x32xf32> to vector<32x32xf32>
    %25 = arith.addf %22, %24 : vector<32x32xf32>
    %26 = arith.truncf %25 : vector<32x32xf32> to vector<32x32xbf16>
    %c0_9 = arith.constant 0 : index
    %c0_10 = arith.constant 0 : index
    %27 = vector.load %arg4[%c0_9, %c0_10] : memref<32x32xbf16, #tpu.memory_space<vmem>>, vector<32x32xbf16>
    tpu.vector_store %arg4[%c0_9, %c0_10], %26 {strides = array<i32>} : memref<32x32xbf16, #tpu.memory_space<vmem>>, vector<32x32xbf16>,
    return
  }
  func.func @transform_0(%arg0: i32) -> (i32, i32) {
    %c0_i32 = arith.constant 0 : i32
    %c0_i32_0 = arith.constant 0 : i32
    return %arg0, %c0_i32 : i32, i32
  }
  func.func @transform_1(%arg0: i32) -> (i32, i32) {
    %c0_i32 = arith.constant 0 : i32
    %c0_i32_0 = arith.constant 0 : i32
    %c0_i32_1 = arith.constant 0 : i32
    return %c0_i32, %c0_i32_0 : i32, i32
  }
  func.func @transform_2(%arg0: i32) -> (i32, i32) {
    %c0_i32 = arith.constant 0 : i32
    %c0_i32_0 = arith.constant 0 : i32
    %c0_i32_1 = arith.constant 0 : i32
    return %c0_i32, %c0_i32_0 : i32, i32
  }
  func.func @transform_3(%arg0: i32) -> (i32, i32) {
    %c0_i32 = arith.constant 0 : i32
    %c0_i32_0 = arith.constant 0 : i32
    return %arg0, %c0_i32 : i32, i32
  }
}

module attributes {stable_mosaic.version = 11 : i64} {
  func.func @_linear_kernel(%arg0: i32, %arg1: i32, %arg2: memref<32x32xbf16, #tpu.memory_space<vmem>>, %arg3: memref<32x96xbf16, #tpu.memory_space<vmem>>, %arg4: memref<1x96xf32, #tpu.memory_space<vmem>>, %arg5: memref<32x96xbf16, #tpu.memory_space<vmem>>) attributes {dimension_semantics = [#tpu.dimension_semantics<parallel>, #tpu.dimension_semantics<parallel>], iteration_bounds = array<i64: 1, 1>, scalar_prefetch = 0 : i64, scratch_operands = 0 : i64, tpu.core_type = #tpu.core_type<tc>, window_params = [{transform_indices = @transform_0, window_bounds = array<i64: 32, 32>}, {transform_indices = @transform_1, window_bounds = array<i64: 32, 96>}, {transform_indices = @transform_2, window_bounds = array<i64: 1, 96>}, {transform_indices = @transform_3, window_bounds = array<i64: 32, 96>}]} {
    %c0 = arith.constant 0 : index
    %c0_0 = arith.constant 0 : index
    %0 = vector.load %arg2[%c0, %c0_0] : memref<32x32xbf16, #tpu.memory_space<vmem>>, vector<32x32xbf16>
    %c0_1 = arith.constant 0 : index
    %c0_2 = arith.constant 0 : index
    %1 = vector.load %arg3[%c0_1, %c0_2] : memref<32x96xbf16, #tpu.memory_space<vmem>>, vector<32x96xbf16>
    %cst = arith.constant dense<0.000000e+00> : vector<32x96xf32>
    %2 = tpu.matmul %0, %1, %cst {dimension_numbers = #tpu.dot_dimension_numbers<[1], [0], [0], [1], [0, 0, 1, 1], [], []>} : vector<32x32xbf16>, vector<32x96xbf16>, vector<32x96xf32> -> vector<32x96xf32>
    %c0_3 = arith.constant 0 : index
    %c0_4 = arith.constant 0 : index
    %3 = vector.load %arg4[%c0_3, %c0_4] : memref<1x96xf32, #tpu.memory_space<vmem>>, vector<1x96xf32>
    %4 = vector.broadcast %3 : vector<1x96xf32> to vector<32x96xf32>
    %5 = arith.addf %2, %4 : vector<32x96xf32>
    %6 = arith.truncf %5 : vector<32x96xf32> to vector<32x96xbf16>
    %c0_5 = arith.constant 0 : index
    %c0_6 = arith.constant 0 : index
    %7 = vector.load %arg5[%c0_5, %c0_6] : memref<32x96xbf16, #tpu.memory_space<vmem>>, vector<32x96xbf16>
    tpu.vector_store %arg5[%c0_5, %c0_6], %6 {strides = array<i32>} : memref<32x96xbf16, #tpu.memory_space<vmem>>, vector<32x96xbf16>,
    return
  }
  func.func @transform_0(%arg0: i32, %arg1: i32) -> (i32, i32) {
    %c0_i32 = arith.constant 0 : i32
    %c0_i32_0 = arith.constant 0 : i32
    return %arg0, %c0_i32 : i32, i32
  }
  func.func @transform_1(%arg0: i32, %arg1: i32) -> (i32, i32) {
    %c0_i32 = arith.constant 0 : i32
    %c0_i32_0 = arith.constant 0 : i32
    return %c0_i32, %arg1 : i32, i32
  }
  func.func @transform_2(%arg0: i32, %arg1: i32) -> (i32, i32) {
    %c0_i32 = arith.constant 0 : i32
    %c0_i32_0 = arith.constant 0 : i32
    return %c0_i32, %arg1 : i32, i32
  }
  func.func @transform_3(%arg0: i32, %arg1: i32) -> (i32, i32) {
    %c0_i32 = arith.constant 0 : i32
    return %arg0, %arg1 : i32, i32
  }
}

module attributes {stable_mosaic.version = 11 : i64} {
  func.func @_window_attn_kernel(%arg0: i32, %arg1: memref<4x4x96xbf16, #tpu.memory_space<vmem>>, %arg2: memref<2x1x4x4xf32, #tpu.memory_space<vmem>>, %arg3: memref<4x4x32xbf16, #tpu.memory_space<vmem>>) attributes {dimension_semantics = [#tpu.dimension_semantics<parallel>], iteration_bounds = array<i64: 2>, scalar_prefetch = 0 : i64, scratch_operands = 0 : i64, tpu.core_type = #tpu.core_type<tc>, window_params = [{transform_indices = @transform_0, window_bounds = array<i64: 4, 4, 96>}, {pipeline_mode = #tpu.pipeline_mode<synchronous>, transform_indices = @transform_1, window_bounds = array<i64: 2, 1, 4, 4>}, {transform_indices = @transform_2, window_bounds = array<i64: 4, 4, 32>}]} {
    %c0 = arith.constant 0 : index
    %c0_0 = arith.constant 0 : index
    %c0_1 = arith.constant 0 : index
    %0 = vector.load %arg1[%c0, %c0_0, %c0_1] : memref<4x4x96xbf16, #tpu.memory_space<vmem>>, vector<4x4x16xbf16>
    %c0_2 = arith.constant 0 : index
    %c0_3 = arith.constant 0 : index
    %c32 = arith.constant 32 : index
    %1 = vector.load %arg1[%c0_2, %c0_3, %c32] : memref<4x4x96xbf16, #tpu.memory_space<vmem>>, vector<4x4x16xbf16>
    %c0_4 = arith.constant 0 : index
    %c0_5 = arith.constant 0 : index
    %c64 = arith.constant 64 : index
    %2 = vector.load %arg1[%c0_4, %c0_5, %c64] : memref<4x4x96xbf16, #tpu.memory_space<vmem>>, vector<4x4x16xbf16>
    "tpu.trace_start"() <{level = 10 : i32, message = "wnd,wmd->wnm"}> : () -> ()
    %cst = arith.constant dense<0.000000e+00> : vector<4x4x4xf32>
    %3 = tpu.matmul %0, %1, %cst {dimension_numbers = #tpu.dot_dimension_numbers<[2], [2], [1], [1], [0, 0, 0, 1, 1, 1], [0], [0]>} : vector<4x4x16xbf16>, vector<4x4x16xbf16>, vector<4x4x4xf32> -> vector<4x4x4xf32>
    "tpu.trace_stop"() : () -> ()
    %cst_6 = arith.constant 2.500000e-01 : f32
    %4 = vector.broadcast %cst_6 : f32 to vector<4x4x4xf32>
    %5 = arith.mulf %3, %4 : vector<4x4x4xf32>
    %c0_7 = arith.constant 0 : index
    %c0_8 = arith.constant 0 : index
    %c0_9 = arith.constant 0 : index
    %c0_10 = arith.constant 0 : index
    %6 = vector.load %arg2[%c0_7, %c0_8, %c0_9, %c0_10] : memref<2x1x4x4xf32, #tpu.memory_space<vmem>>, vector<1x1x4x4xf32>
    %7 = vector.shape_cast %6 : vector<1x1x4x4xf32> to vector<1x4x4xf32>
    %8 = vector.broadcast %7 : vector<1x4x4xf32> to vector<4x4x4xf32>
    %9 = arith.addf %5, %8 : vector<4x4x4xf32>
    %cst_11 = arith.constant dense<0xFF800000> : vector<4x4xf32>
    %10 = vector.multi_reduction <maximumf>, %9, %cst_11 [2] : vector<4x4x4xf32> to vector<4x4xf32>
    %11 = vector.shape_cast %10 : vector<4x4xf32> to vector<4x4x1xf32>
    %12 = vector.broadcast %11 : vector<4x4x1xf32> to vector<4x4x4xf32>
    %13 = arith.subf %9, %12 : vector<4x4x4xf32>
    %14 = math.exp %13 : vector<4x4x4xf32>
    %cst_12 = arith.constant dense<0.000000e+00> : vector<4x4xf32>
    %15 = vector.multi_reduction <add>, %14, %cst_12 [2] : vector<4x4x4xf32> to vector<4x4xf32>
    %16 = vector.shape_cast %15 : vector<4x4xf32> to vector<4x4x1xf32>
    %17 = tpu.reciprocal %16 {approx = true} : vector<4x4x1xf32> -> vector<4x4x1xf32>
    %18 = vector.broadcast %17 : vector<4x4x1xf32> to vector<4x4x4xf32>
    %19 = arith.mulf %14, %18 : vector<4x4x4xf32>
    %20 = arith.truncf %19 : vector<4x4x4xf32> to vector<4x4x4xbf16>
    "tpu.trace_start"() <{level = 10 : i32, message = "wnm,wmd->wnd"}> : () -> ()
    %cst_13 = arith.constant dense<0.000000e+00> : vector<4x4x16xf32>
    %21 = tpu.matmul %20, %2, %cst_13 {dimension_numbers = #tpu.dot_dimension_numbers<[2], [1], [1], [2], [0, 0, 0, 1, 1, 2], [0], [0]>} : vector<4x4x4xbf16>, vector<4x4x16xbf16>, vector<4x4x16xf32> -> vector<4x4x16xf32>
    "tpu.trace_stop"() : () -> ()
    %22 = arith.truncf %21 : vector<4x4x16xf32> to vector<4x4x16xbf16>
    %c0_14 = arith.constant 0 : index
    %c0_15 = arith.constant 0 : index
    %c0_16 = arith.constant 0 : index
    %23 = vector.load %arg3[%c0_14, %c0_15, %c0_16] : memref<4x4x32xbf16, #tpu.memory_space<vmem>>, vector<4x4x16xbf16>
    tpu.vector_store %arg3[%c0_14, %c0_15, %c0_16], %22 {strides = array<i32>} : memref<4x4x32xbf16, #tpu.memory_space<vmem>>, vector<4x4x16xbf16>,
    %c0_17 = arith.constant 0 : index
    %c0_18 = arith.constant 0 : index
    %c16 = arith.constant 16 : index
    %24 = vector.load %arg1[%c0_17, %c0_18, %c16] : memref<4x4x96xbf16, #tpu.memory_space<vmem>>, vector<4x4x16xbf16>
    %c0_19 = arith.constant 0 : index
    %c0_20 = arith.constant 0 : index
    %c48 = arith.constant 48 : index
    %25 = vector.load %arg1[%c0_19, %c0_20, %c48] : memref<4x4x96xbf16, #tpu.memory_space<vmem>>, vector<4x4x16xbf16>
    %c0_21 = arith.constant 0 : index
    %c0_22 = arith.constant 0 : index
    %c80 = arith.constant 80 : index
    %26 = vector.load %arg1[%c0_21, %c0_22, %c80] : memref<4x4x96xbf16, #tpu.memory_space<vmem>>, vector<4x4x16xbf16>
    "tpu.trace_start"() <{level = 10 : i32, message = "wnd,wmd->wnm"}> : () -> ()
    %cst_23 = arith.constant dense<0.000000e+00> : vector<4x4x4xf32>
    %27 = tpu.matmul %24, %25, %cst_23 {dimension_numbers = #tpu.dot_dimension_numbers<[2], [2], [1], [1], [0, 0, 0, 1, 1, 1], [0], [0]>} : vector<4x4x16xbf16>, vector<4x4x16xbf16>, vector<4x4x4xf32> -> vector<4x4x4xf32>
    "tpu.trace_stop"() : () -> ()
    %cst_24 = arith.constant 2.500000e-01 : f32
    %28 = vector.broadcast %cst_24 : f32 to vector<4x4x4xf32>
    %29 = arith.mulf %27, %28 : vector<4x4x4xf32>
    %c1 = arith.constant 1 : index
    %c0_25 = arith.constant 0 : index
    %c0_26 = arith.constant 0 : index
    %c0_27 = arith.constant 0 : index
    %30 = vector.load %arg2[%c1, %c0_25, %c0_26, %c0_27] : memref<2x1x4x4xf32, #tpu.memory_space<vmem>>, vector<1x1x4x4xf32>
    %31 = vector.shape_cast %30 : vector<1x1x4x4xf32> to vector<1x4x4xf32>
    %32 = vector.broadcast %31 : vector<1x4x4xf32> to vector<4x4x4xf32>
    %33 = arith.addf %29, %32 : vector<4x4x4xf32>
    %cst_28 = arith.constant dense<0xFF800000> : vector<4x4xf32>
    %34 = vector.multi_reduction <maximumf>, %33, %cst_28 [2] : vector<4x4x4xf32> to vector<4x4xf32>
    %35 = vector.shape_cast %34 : vector<4x4xf32> to vector<4x4x1xf32>
    %36 = vector.broadcast %35 : vector<4x4x1xf32> to vector<4x4x4xf32>
    %37 = arith.subf %33, %36 : vector<4x4x4xf32>
    %38 = math.exp %37 : vector<4x4x4xf32>
    %cst_29 = arith.constant dense<0.000000e+00> : vector<4x4xf32>
    %39 = vector.multi_reduction <add>, %38, %cst_29 [2] : vector<4x4x4xf32> to vector<4x4xf32>
    %40 = vector.shape_cast %39 : vector<4x4xf32> to vector<4x4x1xf32>
    %41 = tpu.reciprocal %40 {approx = true} : vector<4x4x1xf32> -> vector<4x4x1xf32>
    %42 = vector.broadcast %41 : vector<4x4x1xf32> to vector<4x4x4xf32>
    %43 = arith.mulf %38, %42 : vector<4x4x4xf32>
    %44 = arith.truncf %43 : vector<4x4x4xf32> to vector<4x4x4xbf16>
    "tpu.trace_start"() <{level = 10 : i32, message = "wnm,wmd->wnd"}> : () -> ()
    %cst_30 = arith.constant dense<0.000000e+00> : vector<4x4x16xf32>
    %45 = tpu.matmul %44, %26, %cst_30 {dimension_numbers = #tpu.dot_dimension_numbers<[2], [1], [1], [2], [0, 0, 0, 1, 1, 2], [0], [0]>} : vector<4x4x4xbf16>, vector<4x4x16xbf16>, vector<4x4x16xf32> -> vector<4x4x16xf32>
    "tpu.trace_stop"() : () -> ()
    %46 = arith.truncf %45 : vector<4x4x16xf32> to vector<4x4x16xbf16>
    %c0_31 = arith.constant 0 : index
    %c0_32 = arith.constant 0 : index
    %c16_33 = arith.constant 16 : index
    %47 = vector.load %arg3[%c0_31, %c0_32, %c16_33] : memref<4x4x32xbf16, #tpu.memory_space<vmem>>, vector<4x4x16xbf16>
    tpu.vector_store %arg3[%c0_31, %c0_32, %c16_33], %46 {strides = array<i32>} : memref<4x4x32xbf16, #tpu.memory_space<vmem>>, vector<4x4x16xbf16>,
    return
  }
  func.func @transform_0(%arg0: i32) -> (i32, i32, i32) {
    %c0_i32 = arith.constant 0 : i32
    %c0_i32_0 = arith.constant 0 : i32
    %c0_i32_1 = arith.constant 0 : i32
    return %arg0, %c0_i32, %c0_i32_0 : i32, i32, i32
  }
  func.func @transform_1(%arg0: i32) -> (i32, i32, i32, i32) {
    %c0_i32 = arith.constant 0 : i32
    %c0_i32_0 = arith.constant 0 : i32
    %c0_i32_1 = arith.constant 0 : i32
    %c0_i32_2 = arith.constant 0 : i32
    %c0_i32_3 = arith.constant 0 : i32
    return %c0_i32, %c0_i32_0, %c0_i32_1, %c0_i32_2 : i32, i32, i32, i32
  }
  func.func @transform_2(%arg0: i32) -> (i32, i32, i32) {
    %c0_i32 = arith.constant 0 : i32
    %c0_i32_0 = arith.constant 0 : i32
    %c0_i32_1 = arith.constant 0 : i32
    return %arg0, %c0_i32, %c0_i32_0 : i32, i32, i32
  }
}

module attributes {stable_mosaic.version = 11 : i64} {
  func.func @_linear_kernel(%arg0: i32, %arg1: i32, %arg2: memref<32x32xbf16, #tpu.memory_space<vmem>>, %arg3: memref<32x32xbf16, #tpu.memory_space<vmem>>, %arg4: memref<1x32xf32, #tpu.memory_space<vmem>>, %arg5: memref<32x32xbf16, #tpu.memory_space<vmem>>) attributes {dimension_semantics = [#tpu.dimension_semantics<parallel>, #tpu.dimension_semantics<parallel>], iteration_bounds = array<i64: 1, 1>, scalar_prefetch = 0 : i64, scratch_operands = 0 : i64, tpu.core_type = #tpu.core_type<tc>, window_params = [{transform_indices = @transform_0, window_bounds = array<i64: 32, 32>}, {transform_indices = @transform_1, window_bounds = array<i64: 32, 32>}, {transform_indices = @transform_2, window_bounds = array<i64: 1, 32>}, {transform_indices = @transform_3, window_bounds = array<i64: 32, 32>}]} {
    %c0 = arith.constant 0 : index
    %c0_0 = arith.constant 0 : index
    %0 = vector.load %arg2[%c0, %c0_0] : memref<32x32xbf16, #tpu.memory_space<vmem>>, vector<32x32xbf16>
    %c0_1 = arith.constant 0 : index
    %c0_2 = arith.constant 0 : index
    %1 = vector.load %arg3[%c0_1, %c0_2] : memref<32x32xbf16, #tpu.memory_space<vmem>>, vector<32x32xbf16>
    %cst = arith.constant dense<0.000000e+00> : vector<32x32xf32>
    %2 = tpu.matmul %0, %1, %cst {dimension_numbers = #tpu.dot_dimension_numbers<[1], [0], [0], [1], [0, 0, 1, 1], [], []>} : vector<32x32xbf16>, vector<32x32xbf16>, vector<32x32xf32> -> vector<32x32xf32>
    %c0_3 = arith.constant 0 : index
    %c0_4 = arith.constant 0 : index
    %3 = vector.load %arg4[%c0_3, %c0_4] : memref<1x32xf32, #tpu.memory_space<vmem>>, vector<1x32xf32>
    %4 = vector.broadcast %3 : vector<1x32xf32> to vector<32x32xf32>
    %5 = arith.addf %2, %4 : vector<32x32xf32>
    %6 = arith.truncf %5 : vector<32x32xf32> to vector<32x32xbf16>
    %c0_5 = arith.constant 0 : index
    %c0_6 = arith.constant 0 : index
    %7 = vector.load %arg5[%c0_5, %c0_6] : memref<32x32xbf16, #tpu.memory_space<vmem>>, vector<32x32xbf16>
    tpu.vector_store %arg5[%c0_5, %c0_6], %6 {strides = array<i32>} : memref<32x32xbf16, #tpu.memory_space<vmem>>, vector<32x32xbf16>,
    return
  }
  func.func @transform_0(%arg0: i32, %arg1: i32) -> (i32, i32) {
    %c0_i32 = arith.constant 0 : i32
    %c0_i32_0 = arith.constant 0 : i32
    return %arg0, %c0_i32 : i32, i32
  }
  func.func @transform_1(%arg0: i32, %arg1: i32) -> (i32, i32) {
    %c0_i32 = arith.constant 0 : i32
    %c0_i32_0 = arith.constant 0 : i32
    return %c0_i32, %arg1 : i32, i32
  }
  func.func @transform_2(%arg0: i32, %arg1: i32) -> (i32, i32) {
    %c0_i32 = arith.constant 0 : i32
    %c0_i32_0 = arith.constant 0 : i32
    return %c0_i32, %arg1 : i32, i32
  }
  func.func @transform_3(%arg0: i32, %arg1: i32) -> (i32, i32) {
    %c0_i32 = arith.constant 0 : i32
    return %arg0, %arg1 : i32, i32
  }
}

module attributes {stable_mosaic.version = 11 : i64} {
  func.func @_linear_kernel(%arg0: i32, %arg1: i32, %arg2: memref<32x32xbf16, #tpu.memory_space<vmem>>, %arg3: memref<32x128xbf16, #tpu.memory_space<vmem>>, %arg4: memref<1x128xf32, #tpu.memory_space<vmem>>, %arg5: memref<32x128xbf16, #tpu.memory_space<vmem>>) attributes {dimension_semantics = [#tpu.dimension_semantics<parallel>, #tpu.dimension_semantics<parallel>], iteration_bounds = array<i64: 1, 1>, scalar_prefetch = 0 : i64, scratch_operands = 0 : i64, tpu.core_type = #tpu.core_type<tc>, window_params = [{transform_indices = @transform_0, window_bounds = array<i64: 32, 32>}, {transform_indices = @transform_1, window_bounds = array<i64: 32, 128>}, {transform_indices = @transform_2, window_bounds = array<i64: 1, 128>}, {transform_indices = @transform_3, window_bounds = array<i64: 32, 128>}]} {
    %c0 = arith.constant 0 : index
    %c0_0 = arith.constant 0 : index
    %0 = vector.load %arg2[%c0, %c0_0] : memref<32x32xbf16, #tpu.memory_space<vmem>>, vector<32x32xbf16>
    %c0_1 = arith.constant 0 : index
    %c0_2 = arith.constant 0 : index
    %1 = vector.load %arg3[%c0_1, %c0_2] : memref<32x128xbf16, #tpu.memory_space<vmem>>, vector<32x128xbf16>
    %cst = arith.constant dense<0.000000e+00> : vector<32x128xf32>
    %2 = tpu.matmul %0, %1, %cst {dimension_numbers = #tpu.dot_dimension_numbers<[1], [0], [0], [1], [0, 0, 1, 1], [], []>} : vector<32x32xbf16>, vector<32x128xbf16>, vector<32x128xf32> -> vector<32x128xf32>
    %c0_3 = arith.constant 0 : index
    %c0_4 = arith.constant 0 : index
    %3 = vector.load %arg4[%c0_3, %c0_4] : memref<1x128xf32, #tpu.memory_space<vmem>>, vector<1x128xf32>
    %4 = vector.broadcast %3 : vector<1x128xf32> to vector<32x128xf32>
    %5 = arith.addf %2, %4 : vector<32x128xf32>
    %cst_5 = arith.constant 5.000000e-01 : f32
    %6 = vector.broadcast %cst_5 : f32 to vector<32x128xf32>
    %7 = arith.mulf %6, %5 : vector<32x128xf32>
    %cst_6 = arith.constant 4.471500e-02 : f32
    %8 = vector.broadcast %cst_6 : f32 to vector<32x128xf32>
    %9 = arith.mulf %8, %5 : vector<32x128xf32>
    %10 = arith.mulf %9, %5 : vector<32x128xf32>
    %11 = arith.mulf %10, %5 : vector<32x128xf32>
    %12 = arith.addf %5, %11 : vector<32x128xf32>
    %cst_7 = arith.constant 0.797884583 : f32
    %13 = vector.broadcast %cst_7 : f32 to vector<32x128xf32>
    %14 = arith.mulf %13, %12 : vector<32x128xf32>
    %15 = math.tanh %14 : vector<32x128xf32>
    %cst_8 = arith.constant 1.000000e+00 : f32
    %16 = vector.broadcast %cst_8 : f32 to vector<32x128xf32>
    %17 = arith.addf %16, %15 : vector<32x128xf32>
    %18 = arith.mulf %7, %17 : vector<32x128xf32>
    %19 = arith.truncf %18 : vector<32x128xf32> to vector<32x128xbf16>
    %c0_9 = arith.constant 0 : index
    %c0_10 = arith.constant 0 : index
    %20 = vector.load %arg5[%c0_9, %c0_10] : memref<32x128xbf16, #tpu.memory_space<vmem>>, vector<32x128xbf16>
    tpu.vector_store %arg5[%c0_9, %c0_10], %19 {strides = array<i32>} : memref<32x128xbf16, #tpu.memory_space<vmem>>, vector<32x128xbf16>,
    return
  }
  func.func @transform_0(%arg0: i32, %arg1: i32) -> (i32, i32) {
    %c0_i32 = arith.constant 0 : i32
    %c0_i32_0 = arith.constant 0 : i32
    return %arg0, %c0_i32 : i32, i32
  }
  func.func @transform_1(%arg0: i32, %arg1: i32) -> (i32, i32) {
    %c0_i32 = arith.constant 0 : i32
    %c0_i32_0 = arith.constant 0 : i32
    return %c0_i32, %arg1 : i32, i32
  }
  func.func @transform_2(%arg0: i32, %arg1: i32) -> (i32, i32) {
    %c0_i32 = arith.constant 0 : i32
    %c0_i32_0 = arith.constant 0 : i32
    return %c0_i32, %arg1 : i32, i32
  }
  func.func @transform_3(%arg0: i32, %arg1: i32) -> (i32, i32) {
    %c0_i32 = arith.constant 0 : i32
    return %arg0, %arg1 : i32, i32
  }
}

module attributes {stable_mosaic.version = 11 : i64} {
  func.func @_linear_kernel(%arg0: i32, %arg1: i32, %arg2: memref<32x128xbf16, #tpu.memory_space<vmem>>, %arg3: memref<128x32xbf16, #tpu.memory_space<vmem>>, %arg4: memref<1x32xf32, #tpu.memory_space<vmem>>, %arg5: memref<32x32xbf16, #tpu.memory_space<vmem>>) attributes {dimension_semantics = [#tpu.dimension_semantics<parallel>, #tpu.dimension_semantics<parallel>], iteration_bounds = array<i64: 1, 1>, scalar_prefetch = 0 : i64, scratch_operands = 0 : i64, tpu.core_type = #tpu.core_type<tc>, window_params = [{transform_indices = @transform_0, window_bounds = array<i64: 32, 128>}, {transform_indices = @transform_1, window_bounds = array<i64: 128, 32>}, {transform_indices = @transform_2, window_bounds = array<i64: 1, 32>}, {transform_indices = @transform_3, window_bounds = array<i64: 32, 32>}]} {
    %c0 = arith.constant 0 : index
    %c0_0 = arith.constant 0 : index
    %0 = vector.load %arg2[%c0, %c0_0] : memref<32x128xbf16, #tpu.memory_space<vmem>>, vector<32x128xbf16>
    %c0_1 = arith.constant 0 : index
    %c0_2 = arith.constant 0 : index
    %1 = vector.load %arg3[%c0_1, %c0_2] : memref<128x32xbf16, #tpu.memory_space<vmem>>, vector<128x32xbf16>
    %cst = arith.constant dense<0.000000e+00> : vector<32x32xf32>
    %2 = tpu.matmul %0, %1, %cst {dimension_numbers = #tpu.dot_dimension_numbers<[1], [0], [0], [1], [0, 0, 1, 1], [], []>} : vector<32x128xbf16>, vector<128x32xbf16>, vector<32x32xf32> -> vector<32x32xf32>
    %c0_3 = arith.constant 0 : index
    %c0_4 = arith.constant 0 : index
    %3 = vector.load %arg4[%c0_3, %c0_4] : memref<1x32xf32, #tpu.memory_space<vmem>>, vector<1x32xf32>
    %4 = vector.broadcast %3 : vector<1x32xf32> to vector<32x32xf32>
    %5 = arith.addf %2, %4 : vector<32x32xf32>
    %6 = arith.truncf %5 : vector<32x32xf32> to vector<32x32xbf16>
    %c0_5 = arith.constant 0 : index
    %c0_6 = arith.constant 0 : index
    %7 = vector.load %arg5[%c0_5, %c0_6] : memref<32x32xbf16, #tpu.memory_space<vmem>>, vector<32x32xbf16>
    tpu.vector_store %arg5[%c0_5, %c0_6], %6 {strides = array<i32>} : memref<32x32xbf16, #tpu.memory_space<vmem>>, vector<32x32xbf16>,
    return
  }
  func.func @transform_0(%arg0: i32, %arg1: i32) -> (i32, i32) {
    %c0_i32 = arith.constant 0 : i32
    %c0_i32_0 = arith.constant 0 : i32
    return %arg0, %c0_i32 : i32, i32
  }
  func.func @transform_1(%arg0: i32, %arg1: i32) -> (i32, i32) {
    %c0_i32 = arith.constant 0 : i32
    %c0_i32_0 = arith.constant 0 : i32
    return %c0_i32, %arg1 : i32, i32
  }
  func.func @transform_2(%arg0: i32, %arg1: i32) -> (i32, i32) {
    %c0_i32 = arith.constant 0 : i32
    %c0_i32_0 = arith.constant 0 : i32
    return %c0_i32, %arg1 : i32, i32
  }
  func.func @transform_3(%arg0: i32, %arg1: i32) -> (i32, i32) {
    %c0_i32 = arith.constant 0 : i32
    return %arg0, %arg1 : i32, i32
  }
}

module attributes {stable_mosaic.version = 11 : i64} {
  func.func @_layernorm_kernel(%arg0: i32, %arg1: memref<8x128xbf16, #tpu.memory_space<vmem>>, %arg2: memref<1x128xf32, #tpu.memory_space<vmem>>, %arg3: memref<1x128xf32, #tpu.memory_space<vmem>>, %arg4: memref<8x128xbf16, #tpu.memory_space<vmem>>) attributes {dimension_semantics = [#tpu.dimension_semantics<parallel>], iteration_bounds = array<i64: 1>, scalar_prefetch = 0 : i64, scratch_operands = 0 : i64, tpu.core_type = #tpu.core_type<tc>, window_params = [{transform_indices = @transform_0, window_bounds = array<i64: 8, 128>}, {pipeline_mode = #tpu.pipeline_mode<synchronous>, transform_indices = @transform_1, window_bounds = array<i64: 1, 128>}, {pipeline_mode = #tpu.pipeline_mode<synchronous>, transform_indices = @transform_2, window_bounds = array<i64: 1, 128>}, {transform_indices = @transform_3, window_bounds = array<i64: 8, 128>}]} {
    %c0 = arith.constant 0 : index
    %c0_0 = arith.constant 0 : index
    %0 = vector.load %arg1[%c0, %c0_0] : memref<8x128xbf16, #tpu.memory_space<vmem>>, vector<8x128xbf16>
    %1 = arith.extf %0 : vector<8x128xbf16> to vector<8x128xf32>
    %cst = arith.constant dense<0.000000e+00> : vector<8xf32>
    %2 = vector.multi_reduction <add>, %1, %cst [1] : vector<8x128xf32> to vector<8xf32>
    %3 = vector.shape_cast %2 : vector<8xf32> to vector<8x1xf32>
    %cst_1 = arith.constant 1.280000e+02 : f32
    %4 = vector.broadcast %cst_1 : f32 to vector<8x1xf32>
    %5 = arith.divf %3, %4 : vector<8x1xf32>
    %6 = vector.broadcast %5 : vector<8x1xf32> to vector<8x128xf32>
    %7 = arith.subf %1, %6 : vector<8x128xf32>
    %8 = arith.mulf %7, %7 : vector<8x128xf32>
    %cst_2 = arith.constant dense<0.000000e+00> : vector<8xf32>
    %9 = vector.multi_reduction <add>, %8, %cst_2 [1] : vector<8x128xf32> to vector<8xf32>
    %10 = vector.shape_cast %9 : vector<8xf32> to vector<8x1xf32>
    %cst_3 = arith.constant 1.280000e+02 : f32
    %11 = vector.broadcast %cst_3 : f32 to vector<8x1xf32>
    %12 = arith.divf %10, %11 : vector<8x1xf32>
    %13 = vector.broadcast %5 : vector<8x1xf32> to vector<8x128xf32>
    %14 = arith.subf %1, %13 : vector<8x128xf32>
    %cst_4 = arith.constant 9.99999974E-6 : f32
    %15 = vector.broadcast %cst_4 : f32 to vector<8x1xf32>
    %16 = arith.addf %12, %15 : vector<8x1xf32>
    %17 = math.rsqrt %16 : vector<8x1xf32>
    %18 = vector.broadcast %17 : vector<8x1xf32> to vector<8x128xf32>
    %19 = arith.mulf %14, %18 : vector<8x128xf32>
    %c0_5 = arith.constant 0 : index
    %c0_6 = arith.constant 0 : index
    %20 = vector.load %arg2[%c0_5, %c0_6] : memref<1x128xf32, #tpu.memory_space<vmem>>, vector<1x128xf32>
    %21 = vector.broadcast %20 : vector<1x128xf32> to vector<8x128xf32>
    %22 = arith.mulf %19, %21 : vector<8x128xf32>
    %c0_7 = arith.constant 0 : index
    %c0_8 = arith.constant 0 : index
    %23 = vector.load %arg3[%c0_7, %c0_8] : memref<1x128xf32, #tpu.memory_space<vmem>>, vector<1x128xf32>
    %24 = vector.broadcast %23 : vector<1x128xf32> to vector<8x128xf32>
    %25 = arith.addf %22, %24 : vector<8x128xf32>
    %26 = arith.truncf %25 : vector<8x128xf32> to vector<8x128xbf16>
    %c0_9 = arith.constant 0 : index
    %c0_10 = arith.constant 0 : index
    %27 = vector.load %arg4[%c0_9, %c0_10] : memref<8x128xbf16, #tpu.memory_space<vmem>>, vector<8x128xbf16>
    tpu.vector_store %arg4[%c0_9, %c0_10], %26 {strides = array<i32>} : memref<8x128xbf16, #tpu.memory_space<vmem>>, vector<8x128xbf16>,
    return
  }
  func.func @transform_0(%arg0: i32) -> (i32, i32) {
    %c0_i32 = arith.constant 0 : i32
    %c0_i32_0 = arith.constant 0 : i32
    return %arg0, %c0_i32 : i32, i32
  }
  func.func @transform_1(%arg0: i32) -> (i32, i32) {
    %c0_i32 = arith.constant 0 : i32
    %c0_i32_0 = arith.constant 0 : i32
    %c0_i32_1 = arith.constant 0 : i32
    return %c0_i32, %c0_i32_0 : i32, i32
  }
  func.func @transform_2(%arg0: i32) -> (i32, i32) {
    %c0_i32 = arith.constant 0 : i32
    %c0_i32_0 = arith.constant 0 : i32
    %c0_i32_1 = arith.constant 0 : i32
    return %c0_i32, %c0_i32_0 : i32, i32
  }
  func.func @transform_3(%arg0: i32) -> (i32, i32) {
    %c0_i32 = arith.constant 0 : i32
    %c0_i32_0 = arith.constant 0 : i32
    return %arg0, %c0_i32 : i32, i32
  }
}

module attributes {stable_mosaic.version = 11 : i64} {
  func.func @_window_attn_kernel(%arg0: i32, %arg1: memref<4x4x96xbf16, #tpu.memory_space<vmem>>, %arg2: memref<2x4x4x4xf32, #tpu.memory_space<vmem>>, %arg3: memref<4x4x32xbf16, #tpu.memory_space<vmem>>) attributes {dimension_semantics = [#tpu.dimension_semantics<parallel>], iteration_bounds = array<i64: 2>, scalar_prefetch = 0 : i64, scratch_operands = 0 : i64, tpu.core_type = #tpu.core_type<tc>, window_params = [{transform_indices = @transform_0, window_bounds = array<i64: 4, 4, 96>}, {pipeline_mode = #tpu.pipeline_mode<synchronous>, transform_indices = @transform_1, window_bounds = array<i64: 2, 4, 4, 4>}, {transform_indices = @transform_2, window_bounds = array<i64: 4, 4, 32>}]} {
    %c0 = arith.constant 0 : index
    %c0_0 = arith.constant 0 : index
    %c0_1 = arith.constant 0 : index
    %0 = vector.load %arg1[%c0, %c0_0, %c0_1] : memref<4x4x96xbf16, #tpu.memory_space<vmem>>, vector<4x4x16xbf16>
    %c0_2 = arith.constant 0 : index
    %c0_3 = arith.constant 0 : index
    %c32 = arith.constant 32 : index
    %1 = vector.load %arg1[%c0_2, %c0_3, %c32] : memref<4x4x96xbf16, #tpu.memory_space<vmem>>, vector<4x4x16xbf16>
    %c0_4 = arith.constant 0 : index
    %c0_5 = arith.constant 0 : index
    %c64 = arith.constant 64 : index
    %2 = vector.load %arg1[%c0_4, %c0_5, %c64] : memref<4x4x96xbf16, #tpu.memory_space<vmem>>, vector<4x4x16xbf16>
    "tpu.trace_start"() <{level = 10 : i32, message = "wnd,wmd->wnm"}> : () -> ()
    %cst = arith.constant dense<0.000000e+00> : vector<4x4x4xf32>
    %3 = tpu.matmul %0, %1, %cst {dimension_numbers = #tpu.dot_dimension_numbers<[2], [2], [1], [1], [0, 0, 0, 1, 1, 1], [0], [0]>} : vector<4x4x16xbf16>, vector<4x4x16xbf16>, vector<4x4x4xf32> -> vector<4x4x4xf32>
    "tpu.trace_stop"() : () -> ()
    %cst_6 = arith.constant 2.500000e-01 : f32
    %4 = vector.broadcast %cst_6 : f32 to vector<4x4x4xf32>
    %5 = arith.mulf %3, %4 : vector<4x4x4xf32>
    %c0_7 = arith.constant 0 : index
    %c0_8 = arith.constant 0 : index
    %c0_9 = arith.constant 0 : index
    %c0_10 = arith.constant 0 : index
    %6 = vector.load %arg2[%c0_7, %c0_8, %c0_9, %c0_10] : memref<2x4x4x4xf32, #tpu.memory_space<vmem>>, vector<1x4x4x4xf32>
    %7 = vector.shape_cast %6 : vector<1x4x4x4xf32> to vector<4x4x4xf32>
    %8 = arith.addf %5, %7 : vector<4x4x4xf32>
    %cst_11 = arith.constant dense<0xFF800000> : vector<4x4xf32>
    %9 = vector.multi_reduction <maximumf>, %8, %cst_11 [2] : vector<4x4x4xf32> to vector<4x4xf32>
    %10 = vector.shape_cast %9 : vector<4x4xf32> to vector<4x4x1xf32>
    %11 = vector.broadcast %10 : vector<4x4x1xf32> to vector<4x4x4xf32>
    %12 = arith.subf %8, %11 : vector<4x4x4xf32>
    %13 = math.exp %12 : vector<4x4x4xf32>
    %cst_12 = arith.constant dense<0.000000e+00> : vector<4x4xf32>
    %14 = vector.multi_reduction <add>, %13, %cst_12 [2] : vector<4x4x4xf32> to vector<4x4xf32>
    %15 = vector.shape_cast %14 : vector<4x4xf32> to vector<4x4x1xf32>
    %16 = tpu.reciprocal %15 {approx = true} : vector<4x4x1xf32> -> vector<4x4x1xf32>
    %17 = vector.broadcast %16 : vector<4x4x1xf32> to vector<4x4x4xf32>
    %18 = arith.mulf %13, %17 : vector<4x4x4xf32>
    %19 = arith.truncf %18 : vector<4x4x4xf32> to vector<4x4x4xbf16>
    "tpu.trace_start"() <{level = 10 : i32, message = "wnm,wmd->wnd"}> : () -> ()
    %cst_13 = arith.constant dense<0.000000e+00> : vector<4x4x16xf32>
    %20 = tpu.matmul %19, %2, %cst_13 {dimension_numbers = #tpu.dot_dimension_numbers<[2], [1], [1], [2], [0, 0, 0, 1, 1, 2], [0], [0]>} : vector<4x4x4xbf16>, vector<4x4x16xbf16>, vector<4x4x16xf32> -> vector<4x4x16xf32>
    "tpu.trace_stop"() : () -> ()
    %21 = arith.truncf %20 : vector<4x4x16xf32> to vector<4x4x16xbf16>
    %c0_14 = arith.constant 0 : index
    %c0_15 = arith.constant 0 : index
    %c0_16 = arith.constant 0 : index
    %22 = vector.load %arg3[%c0_14, %c0_15, %c0_16] : memref<4x4x32xbf16, #tpu.memory_space<vmem>>, vector<4x4x16xbf16>
    tpu.vector_store %arg3[%c0_14, %c0_15, %c0_16], %21 {strides = array<i32>} : memref<4x4x32xbf16, #tpu.memory_space<vmem>>, vector<4x4x16xbf16>,
    %c0_17 = arith.constant 0 : index
    %c0_18 = arith.constant 0 : index
    %c16 = arith.constant 16 : index
    %23 = vector.load %arg1[%c0_17, %c0_18, %c16] : memref<4x4x96xbf16, #tpu.memory_space<vmem>>, vector<4x4x16xbf16>
    %c0_19 = arith.constant 0 : index
    %c0_20 = arith.constant 0 : index
    %c48 = arith.constant 48 : index
    %24 = vector.load %arg1[%c0_19, %c0_20, %c48] : memref<4x4x96xbf16, #tpu.memory_space<vmem>>, vector<4x4x16xbf16>
    %c0_21 = arith.constant 0 : index
    %c0_22 = arith.constant 0 : index
    %c80 = arith.constant 80 : index
    %25 = vector.load %arg1[%c0_21, %c0_22, %c80] : memref<4x4x96xbf16, #tpu.memory_space<vmem>>, vector<4x4x16xbf16>
    "tpu.trace_start"() <{level = 10 : i32, message = "wnd,wmd->wnm"}> : () -> ()
    %cst_23 = arith.constant dense<0.000000e+00> : vector<4x4x4xf32>
    %26 = tpu.matmul %23, %24, %cst_23 {dimension_numbers = #tpu.dot_dimension_numbers<[2], [2], [1], [1], [0, 0, 0, 1, 1, 1], [0], [0]>} : vector<4x4x16xbf16>, vector<4x4x16xbf16>, vector<4x4x4xf32> -> vector<4x4x4xf32>
    "tpu.trace_stop"() : () -> ()
    %cst_24 = arith.constant 2.500000e-01 : f32
    %27 = vector.broadcast %cst_24 : f32 to vector<4x4x4xf32>
    %28 = arith.mulf %26, %27 : vector<4x4x4xf32>
    %c1 = arith.constant 1 : index
    %c0_25 = arith.constant 0 : index
    %c0_26 = arith.constant 0 : index
    %c0_27 = arith.constant 0 : index
    %29 = vector.load %arg2[%c1, %c0_25, %c0_26, %c0_27] : memref<2x4x4x4xf32, #tpu.memory_space<vmem>>, vector<1x4x4x4xf32>
    %30 = vector.shape_cast %29 : vector<1x4x4x4xf32> to vector<4x4x4xf32>
    %31 = arith.addf %28, %30 : vector<4x4x4xf32>
    %cst_28 = arith.constant dense<0xFF800000> : vector<4x4xf32>
    %32 = vector.multi_reduction <maximumf>, %31, %cst_28 [2] : vector<4x4x4xf32> to vector<4x4xf32>
    %33 = vector.shape_cast %32 : vector<4x4xf32> to vector<4x4x1xf32>
    %34 = vector.broadcast %33 : vector<4x4x1xf32> to vector<4x4x4xf32>
    %35 = arith.subf %31, %34 : vector<4x4x4xf32>
    %36 = math.exp %35 : vector<4x4x4xf32>
    %cst_29 = arith.constant dense<0.000000e+00> : vector<4x4xf32>
    %37 = vector.multi_reduction <add>, %36, %cst_29 [2] : vector<4x4x4xf32> to vector<4x4xf32>
    %38 = vector.shape_cast %37 : vector<4x4xf32> to vector<4x4x1xf32>
    %39 = tpu.reciprocal %38 {approx = true} : vector<4x4x1xf32> -> vector<4x4x1xf32>
    %40 = vector.broadcast %39 : vector<4x4x1xf32> to vector<4x4x4xf32>
    %41 = arith.mulf %36, %40 : vector<4x4x4xf32>
    %42 = arith.truncf %41 : vector<4x4x4xf32> to vector<4x4x4xbf16>
    "tpu.trace_start"() <{level = 10 : i32, message = "wnm,wmd->wnd"}> : () -> ()
    %cst_30 = arith.constant dense<0.000000e+00> : vector<4x4x16xf32>
    %43 = tpu.matmul %42, %25, %cst_30 {dimension_numbers = #tpu.dot_dimension_numbers<[2], [1], [1], [2], [0, 0, 0, 1, 1, 2], [0], [0]>} : vector<4x4x4xbf16>, vector<4x4x16xbf16>, vector<4x4x16xf32> -> vector<4x4x16xf32>
    "tpu.trace_stop"() : () -> ()
    %44 = arith.truncf %43 : vector<4x4x16xf32> to vector<4x4x16xbf16>
    %c0_31 = arith.constant 0 : index
    %c0_32 = arith.constant 0 : index
    %c16_33 = arith.constant 16 : index
    %45 = vector.load %arg3[%c0_31, %c0_32, %c16_33] : memref<4x4x32xbf16, #tpu.memory_space<vmem>>, vector<4x4x16xbf16>
    tpu.vector_store %arg3[%c0_31, %c0_32, %c16_33], %44 {strides = array<i32>} : memref<4x4x32xbf16, #tpu.memory_space<vmem>>, vector<4x4x16xbf16>,
    return
  }
  func.func @transform_0(%arg0: i32) -> (i32, i32, i32) {
    %c0_i32 = arith.constant 0 : i32
    %c0_i32_0 = arith.constant 0 : i32
    %c0_i32_1 = arith.constant 0 : i32
    return %arg0, %c0_i32, %c0_i32_0 : i32, i32, i32
  }
  func.func @transform_1(%arg0: i32) -> (i32, i32, i32, i32) {
    %c0_i32 = arith.constant 0 : i32
    %c0_i32_0 = arith.constant 0 : i32
    %c0_i32_1 = arith.constant 0 : i32
    %c0_i32_2 = arith.constant 0 : i32
    %c0_i32_3 = arith.constant 0 : i32
    return %c0_i32, %c0_i32_0, %c0_i32_1, %c0_i32_2 : i32, i32, i32, i32
  }
  func.func @transform_2(%arg0: i32) -> (i32, i32, i32) {
    %c0_i32 = arith.constant 0 : i32
    %c0_i32_0 = arith.constant 0 : i32
    %c0_i32_1 = arith.constant 0 : i32
    return %arg0, %c0_i32, %c0_i32_0 : i32, i32, i32
  }
}

module attributes {stable_mosaic.version = 11 : i64} {
  func.func @_linear_kernel(%arg0: i32, %arg1: i32, %arg2: memref<8x128xbf16, #tpu.memory_space<vmem>>, %arg3: memref<128x64xbf16, #tpu.memory_space<vmem>>, %arg4: memref<8x64xbf16, #tpu.memory_space<vmem>>) attributes {dimension_semantics = [#tpu.dimension_semantics<parallel>, #tpu.dimension_semantics<parallel>], iteration_bounds = array<i64: 1, 1>, scalar_prefetch = 0 : i64, scratch_operands = 0 : i64, tpu.core_type = #tpu.core_type<tc>, window_params = [{transform_indices = @transform_0, window_bounds = array<i64: 8, 128>}, {transform_indices = @transform_1, window_bounds = array<i64: 128, 64>}, {transform_indices = @transform_2, window_bounds = array<i64: 8, 64>}]} {
    %c0 = arith.constant 0 : index
    %c0_0 = arith.constant 0 : index
    %0 = vector.load %arg2[%c0, %c0_0] : memref<8x128xbf16, #tpu.memory_space<vmem>>, vector<8x128xbf16>
    %c0_1 = arith.constant 0 : index
    %c0_2 = arith.constant 0 : index
    %1 = vector.load %arg3[%c0_1, %c0_2] : memref<128x64xbf16, #tpu.memory_space<vmem>>, vector<128x64xbf16>
    %cst = arith.constant dense<0.000000e+00> : vector<8x64xf32>
    %2 = tpu.matmul %0, %1, %cst {dimension_numbers = #tpu.dot_dimension_numbers<[1], [0], [0], [1], [0, 0, 1, 1], [], []>} : vector<8x128xbf16>, vector<128x64xbf16>, vector<8x64xf32> -> vector<8x64xf32>
    %3 = arith.truncf %2 : vector<8x64xf32> to vector<8x64xbf16>
    %c0_3 = arith.constant 0 : index
    %c0_4 = arith.constant 0 : index
    %4 = vector.load %arg4[%c0_3, %c0_4] : memref<8x64xbf16, #tpu.memory_space<vmem>>, vector<8x64xbf16>
    tpu.vector_store %arg4[%c0_3, %c0_4], %3 {strides = array<i32>} : memref<8x64xbf16, #tpu.memory_space<vmem>>, vector<8x64xbf16>,
    return
  }
  func.func @transform_0(%arg0: i32, %arg1: i32) -> (i32, i32) {
    %c0_i32 = arith.constant 0 : i32
    %c0_i32_0 = arith.constant 0 : i32
    return %arg0, %c0_i32 : i32, i32
  }
  func.func @transform_1(%arg0: i32, %arg1: i32) -> (i32, i32) {
    %c0_i32 = arith.constant 0 : i32
    %c0_i32_0 = arith.constant 0 : i32
    return %c0_i32, %arg1 : i32, i32
  }
  func.func @transform_2(%arg0: i32, %arg1: i32) -> (i32, i32) {
    %c0_i32 = arith.constant 0 : i32
    return %arg0, %arg1 : i32, i32
  }
}

module attributes {stable_mosaic.version = 11 : i64} {
  func.func @_layernorm_kernel(%arg0: i32, %arg1: memref<8x64xbf16, #tpu.memory_space<vmem>>, %arg2: memref<1x64xf32, #tpu.memory_space<vmem>>, %arg3: memref<1x64xf32, #tpu.memory_space<vmem>>, %arg4: memref<8x64xbf16, #tpu.memory_space<vmem>>) attributes {dimension_semantics = [#tpu.dimension_semantics<parallel>], iteration_bounds = array<i64: 1>, scalar_prefetch = 0 : i64, scratch_operands = 0 : i64, tpu.core_type = #tpu.core_type<tc>, window_params = [{transform_indices = @transform_0, window_bounds = array<i64: 8, 64>}, {pipeline_mode = #tpu.pipeline_mode<synchronous>, transform_indices = @transform_1, window_bounds = array<i64: 1, 64>}, {pipeline_mode = #tpu.pipeline_mode<synchronous>, transform_indices = @transform_2, window_bounds = array<i64: 1, 64>}, {transform_indices = @transform_3, window_bounds = array<i64: 8, 64>}]} {
    %c0 = arith.constant 0 : index
    %c0_0 = arith.constant 0 : index
    %0 = vector.load %arg1[%c0, %c0_0] : memref<8x64xbf16, #tpu.memory_space<vmem>>, vector<8x64xbf16>
    %1 = arith.extf %0 : vector<8x64xbf16> to vector<8x64xf32>
    %cst = arith.constant dense<0.000000e+00> : vector<8xf32>
    %2 = vector.multi_reduction <add>, %1, %cst [1] : vector<8x64xf32> to vector<8xf32>
    %3 = vector.shape_cast %2 : vector<8xf32> to vector<8x1xf32>
    %cst_1 = arith.constant 6.400000e+01 : f32
    %4 = vector.broadcast %cst_1 : f32 to vector<8x1xf32>
    %5 = arith.divf %3, %4 : vector<8x1xf32>
    %6 = vector.broadcast %5 : vector<8x1xf32> to vector<8x64xf32>
    %7 = arith.subf %1, %6 : vector<8x64xf32>
    %8 = arith.mulf %7, %7 : vector<8x64xf32>
    %cst_2 = arith.constant dense<0.000000e+00> : vector<8xf32>
    %9 = vector.multi_reduction <add>, %8, %cst_2 [1] : vector<8x64xf32> to vector<8xf32>
    %10 = vector.shape_cast %9 : vector<8xf32> to vector<8x1xf32>
    %cst_3 = arith.constant 6.400000e+01 : f32
    %11 = vector.broadcast %cst_3 : f32 to vector<8x1xf32>
    %12 = arith.divf %10, %11 : vector<8x1xf32>
    %13 = vector.broadcast %5 : vector<8x1xf32> to vector<8x64xf32>
    %14 = arith.subf %1, %13 : vector<8x64xf32>
    %cst_4 = arith.constant 9.99999974E-6 : f32
    %15 = vector.broadcast %cst_4 : f32 to vector<8x1xf32>
    %16 = arith.addf %12, %15 : vector<8x1xf32>
    %17 = math.rsqrt %16 : vector<8x1xf32>
    %18 = vector.broadcast %17 : vector<8x1xf32> to vector<8x64xf32>
    %19 = arith.mulf %14, %18 : vector<8x64xf32>
    %c0_5 = arith.constant 0 : index
    %c0_6 = arith.constant 0 : index
    %20 = vector.load %arg2[%c0_5, %c0_6] : memref<1x64xf32, #tpu.memory_space<vmem>>, vector<1x64xf32>
    %21 = vector.broadcast %20 : vector<1x64xf32> to vector<8x64xf32>
    %22 = arith.mulf %19, %21 : vector<8x64xf32>
    %c0_7 = arith.constant 0 : index
    %c0_8 = arith.constant 0 : index
    %23 = vector.load %arg3[%c0_7, %c0_8] : memref<1x64xf32, #tpu.memory_space<vmem>>, vector<1x64xf32>
    %24 = vector.broadcast %23 : vector<1x64xf32> to vector<8x64xf32>
    %25 = arith.addf %22, %24 : vector<8x64xf32>
    %26 = arith.truncf %25 : vector<8x64xf32> to vector<8x64xbf16>
    %c0_9 = arith.constant 0 : index
    %c0_10 = arith.constant 0 : index
    %27 = vector.load %arg4[%c0_9, %c0_10] : memref<8x64xbf16, #tpu.memory_space<vmem>>, vector<8x64xbf16>
    tpu.vector_store %arg4[%c0_9, %c0_10], %26 {strides = array<i32>} : memref<8x64xbf16, #tpu.memory_space<vmem>>, vector<8x64xbf16>,
    return
  }
  func.func @transform_0(%arg0: i32) -> (i32, i32) {
    %c0_i32 = arith.constant 0 : i32
    %c0_i32_0 = arith.constant 0 : i32
    return %arg0, %c0_i32 : i32, i32
  }
  func.func @transform_1(%arg0: i32) -> (i32, i32) {
    %c0_i32 = arith.constant 0 : i32
    %c0_i32_0 = arith.constant 0 : i32
    %c0_i32_1 = arith.constant 0 : i32
    return %c0_i32, %c0_i32_0 : i32, i32
  }
  func.func @transform_2(%arg0: i32) -> (i32, i32) {
    %c0_i32 = arith.constant 0 : i32
    %c0_i32_0 = arith.constant 0 : i32
    %c0_i32_1 = arith.constant 0 : i32
    return %c0_i32, %c0_i32_0 : i32, i32
  }
  func.func @transform_3(%arg0: i32) -> (i32, i32) {
    %c0_i32 = arith.constant 0 : i32
    %c0_i32_0 = arith.constant 0 : i32
    return %arg0, %c0_i32 : i32, i32
  }
}

module attributes {stable_mosaic.version = 11 : i64} {
  func.func @_linear_kernel(%arg0: i32, %arg1: i32, %arg2: memref<8x64xbf16, #tpu.memory_space<vmem>>, %arg3: memref<64x192xbf16, #tpu.memory_space<vmem>>, %arg4: memref<1x192xf32, #tpu.memory_space<vmem>>, %arg5: memref<8x192xbf16, #tpu.memory_space<vmem>>) attributes {dimension_semantics = [#tpu.dimension_semantics<parallel>, #tpu.dimension_semantics<parallel>], iteration_bounds = array<i64: 1, 1>, scalar_prefetch = 0 : i64, scratch_operands = 0 : i64, tpu.core_type = #tpu.core_type<tc>, window_params = [{transform_indices = @transform_0, window_bounds = array<i64: 8, 64>}, {transform_indices = @transform_1, window_bounds = array<i64: 64, 192>}, {transform_indices = @transform_2, window_bounds = array<i64: 1, 192>}, {transform_indices = @transform_3, window_bounds = array<i64: 8, 192>}]} {
    %c0 = arith.constant 0 : index
    %c0_0 = arith.constant 0 : index
    %0 = vector.load %arg2[%c0, %c0_0] : memref<8x64xbf16, #tpu.memory_space<vmem>>, vector<8x64xbf16>
    %c0_1 = arith.constant 0 : index
    %c0_2 = arith.constant 0 : index
    %1 = vector.load %arg3[%c0_1, %c0_2] : memref<64x192xbf16, #tpu.memory_space<vmem>>, vector<64x192xbf16>
    %cst = arith.constant dense<0.000000e+00> : vector<8x192xf32>
    %2 = tpu.matmul %0, %1, %cst {dimension_numbers = #tpu.dot_dimension_numbers<[1], [0], [0], [1], [0, 0, 1, 1], [], []>} : vector<8x64xbf16>, vector<64x192xbf16>, vector<8x192xf32> -> vector<8x192xf32>
    %c0_3 = arith.constant 0 : index
    %c0_4 = arith.constant 0 : index
    %3 = vector.load %arg4[%c0_3, %c0_4] : memref<1x192xf32, #tpu.memory_space<vmem>>, vector<1x192xf32>
    %4 = vector.broadcast %3 : vector<1x192xf32> to vector<8x192xf32>
    %5 = arith.addf %2, %4 : vector<8x192xf32>
    %6 = arith.truncf %5 : vector<8x192xf32> to vector<8x192xbf16>
    %c0_5 = arith.constant 0 : index
    %c0_6 = arith.constant 0 : index
    %7 = vector.load %arg5[%c0_5, %c0_6] : memref<8x192xbf16, #tpu.memory_space<vmem>>, vector<8x192xbf16>
    tpu.vector_store %arg5[%c0_5, %c0_6], %6 {strides = array<i32>} : memref<8x192xbf16, #tpu.memory_space<vmem>>, vector<8x192xbf16>,
    return
  }
  func.func @transform_0(%arg0: i32, %arg1: i32) -> (i32, i32) {
    %c0_i32 = arith.constant 0 : i32
    %c0_i32_0 = arith.constant 0 : i32
    return %arg0, %c0_i32 : i32, i32
  }
  func.func @transform_1(%arg0: i32, %arg1: i32) -> (i32, i32) {
    %c0_i32 = arith.constant 0 : i32
    %c0_i32_0 = arith.constant 0 : i32
    return %c0_i32, %arg1 : i32, i32
  }
  func.func @transform_2(%arg0: i32, %arg1: i32) -> (i32, i32) {
    %c0_i32 = arith.constant 0 : i32
    %c0_i32_0 = arith.constant 0 : i32
    return %c0_i32, %arg1 : i32, i32
  }
  func.func @transform_3(%arg0: i32, %arg1: i32) -> (i32, i32) {
    %c0_i32 = arith.constant 0 : i32
    return %arg0, %arg1 : i32, i32
  }
}

module attributes {stable_mosaic.version = 11 : i64} {
  func.func @_window_attn_kernel(%arg0: i32, %arg1: memref<1x4x192xbf16, #tpu.memory_space<vmem>>, %arg2: memref<4x1x4x4xf32, #tpu.memory_space<vmem>>, %arg3: memref<1x4x64xbf16, #tpu.memory_space<vmem>>) attributes {dimension_semantics = [#tpu.dimension_semantics<parallel>], iteration_bounds = array<i64: 2>, scalar_prefetch = 0 : i64, scratch_operands = 0 : i64, tpu.core_type = #tpu.core_type<tc>, window_params = [{transform_indices = @transform_0, window_bounds = array<i64: 1, 4, 192>}, {pipeline_mode = #tpu.pipeline_mode<synchronous>, transform_indices = @transform_1, window_bounds = array<i64: 4, 1, 4, 4>}, {transform_indices = @transform_2, window_bounds = array<i64: 1, 4, 64>}]} {
    %c0 = arith.constant 0 : index
    %c0_0 = arith.constant 0 : index
    %c0_1 = arith.constant 0 : index
    %0 = vector.load %arg1[%c0, %c0_0, %c0_1] : memref<1x4x192xbf16, #tpu.memory_space<vmem>>, vector<1x4x16xbf16>
    %c0_2 = arith.constant 0 : index
    %c0_3 = arith.constant 0 : index
    %c64 = arith.constant 64 : index
    %1 = vector.load %arg1[%c0_2, %c0_3, %c64] : memref<1x4x192xbf16, #tpu.memory_space<vmem>>, vector<1x4x16xbf16>
    %c0_4 = arith.constant 0 : index
    %c0_5 = arith.constant 0 : index
    %c128 = arith.constant 128 : index
    %2 = vector.load %arg1[%c0_4, %c0_5, %c128] : memref<1x4x192xbf16, #tpu.memory_space<vmem>>, vector<1x4x16xbf16>
    "tpu.trace_start"() <{level = 10 : i32, message = "wnd,wmd->wnm"}> : () -> ()
    %cst = arith.constant dense<0.000000e+00> : vector<1x4x4xf32>
    %3 = tpu.matmul %0, %1, %cst {dimension_numbers = #tpu.dot_dimension_numbers<[2], [2], [1], [1], [0, 0, 0, 1, 1, 1], [0], [0]>} : vector<1x4x16xbf16>, vector<1x4x16xbf16>, vector<1x4x4xf32> -> vector<1x4x4xf32>
    "tpu.trace_stop"() : () -> ()
    %cst_6 = arith.constant 2.500000e-01 : f32
    %4 = vector.broadcast %cst_6 : f32 to vector<1x4x4xf32>
    %5 = arith.mulf %3, %4 : vector<1x4x4xf32>
    %c0_7 = arith.constant 0 : index
    %c0_8 = arith.constant 0 : index
    %c0_9 = arith.constant 0 : index
    %c0_10 = arith.constant 0 : index
    %6 = vector.load %arg2[%c0_7, %c0_8, %c0_9, %c0_10] : memref<4x1x4x4xf32, #tpu.memory_space<vmem>>, vector<1x1x4x4xf32>
    %7 = vector.shape_cast %6 : vector<1x1x4x4xf32> to vector<1x4x4xf32>
    %8 = arith.addf %5, %7 : vector<1x4x4xf32>
    %cst_11 = arith.constant dense<0xFF800000> : vector<1x4xf32>
    %9 = vector.multi_reduction <maximumf>, %8, %cst_11 [2] : vector<1x4x4xf32> to vector<1x4xf32>
    %10 = vector.shape_cast %9 : vector<1x4xf32> to vector<1x4x1xf32>
    %11 = vector.broadcast %10 : vector<1x4x1xf32> to vector<1x4x4xf32>
    %12 = arith.subf %8, %11 : vector<1x4x4xf32>
    %13 = math.exp %12 : vector<1x4x4xf32>
    %cst_12 = arith.constant dense<0.000000e+00> : vector<1x4xf32>
    %14 = vector.multi_reduction <add>, %13, %cst_12 [2] : vector<1x4x4xf32> to vector<1x4xf32>
    %15 = vector.shape_cast %14 : vector<1x4xf32> to vector<1x4x1xf32>
    %16 = tpu.reciprocal %15 {approx = true} : vector<1x4x1xf32> -> vector<1x4x1xf32>
    %17 = vector.broadcast %16 : vector<1x4x1xf32> to vector<1x4x4xf32>
    %18 = arith.mulf %13, %17 : vector<1x4x4xf32>
    %19 = arith.truncf %18 : vector<1x4x4xf32> to vector<1x4x4xbf16>
    "tpu.trace_start"() <{level = 10 : i32, message = "wnm,wmd->wnd"}> : () -> ()
    %cst_13 = arith.constant dense<0.000000e+00> : vector<1x4x16xf32>
    %20 = tpu.matmul %19, %2, %cst_13 {dimension_numbers = #tpu.dot_dimension_numbers<[2], [1], [1], [2], [0, 0, 0, 1, 1, 2], [0], [0]>} : vector<1x4x4xbf16>, vector<1x4x16xbf16>, vector<1x4x16xf32> -> vector<1x4x16xf32>
    "tpu.trace_stop"() : () -> ()
    %21 = arith.truncf %20 : vector<1x4x16xf32> to vector<1x4x16xbf16>
    %c0_14 = arith.constant 0 : index
    %c0_15 = arith.constant 0 : index
    %c0_16 = arith.constant 0 : index
    %22 = vector.load %arg3[%c0_14, %c0_15, %c0_16] : memref<1x4x64xbf16, #tpu.memory_space<vmem>>, vector<1x4x16xbf16>
    tpu.vector_store %arg3[%c0_14, %c0_15, %c0_16], %21 {strides = array<i32>} : memref<1x4x64xbf16, #tpu.memory_space<vmem>>, vector<1x4x16xbf16>,
    %c0_17 = arith.constant 0 : index
    %c0_18 = arith.constant 0 : index
    %c16 = arith.constant 16 : index
    %23 = vector.load %arg1[%c0_17, %c0_18, %c16] : memref<1x4x192xbf16, #tpu.memory_space<vmem>>, vector<1x4x16xbf16>
    %c0_19 = arith.constant 0 : index
    %c0_20 = arith.constant 0 : index
    %c80 = arith.constant 80 : index
    %24 = vector.load %arg1[%c0_19, %c0_20, %c80] : memref<1x4x192xbf16, #tpu.memory_space<vmem>>, vector<1x4x16xbf16>
    %c0_21 = arith.constant 0 : index
    %c0_22 = arith.constant 0 : index
    %c144 = arith.constant 144 : index
    %25 = vector.load %arg1[%c0_21, %c0_22, %c144] : memref<1x4x192xbf16, #tpu.memory_space<vmem>>, vector<1x4x16xbf16>
    "tpu.trace_start"() <{level = 10 : i32, message = "wnd,wmd->wnm"}> : () -> ()
    %cst_23 = arith.constant dense<0.000000e+00> : vector<1x4x4xf32>
    %26 = tpu.matmul %23, %24, %cst_23 {dimension_numbers = #tpu.dot_dimension_numbers<[2], [2], [1], [1], [0, 0, 0, 1, 1, 1], [0], [0]>} : vector<1x4x16xbf16>, vector<1x4x16xbf16>, vector<1x4x4xf32> -> vector<1x4x4xf32>
    "tpu.trace_stop"() : () -> ()
    %cst_24 = arith.constant 2.500000e-01 : f32
    %27 = vector.broadcast %cst_24 : f32 to vector<1x4x4xf32>
    %28 = arith.mulf %26, %27 : vector<1x4x4xf32>
    %c1 = arith.constant 1 : index
    %c0_25 = arith.constant 0 : index
    %c0_26 = arith.constant 0 : index
    %c0_27 = arith.constant 0 : index
    %29 = vector.load %arg2[%c1, %c0_25, %c0_26, %c0_27] : memref<4x1x4x4xf32, #tpu.memory_space<vmem>>, vector<1x1x4x4xf32>
    %30 = vector.shape_cast %29 : vector<1x1x4x4xf32> to vector<1x4x4xf32>
    %31 = arith.addf %28, %30 : vector<1x4x4xf32>
    %cst_28 = arith.constant dense<0xFF800000> : vector<1x4xf32>
    %32 = vector.multi_reduction <maximumf>, %31, %cst_28 [2] : vector<1x4x4xf32> to vector<1x4xf32>
    %33 = vector.shape_cast %32 : vector<1x4xf32> to vector<1x4x1xf32>
    %34 = vector.broadcast %33 : vector<1x4x1xf32> to vector<1x4x4xf32>
    %35 = arith.subf %31, %34 : vector<1x4x4xf32>
    %36 = math.exp %35 : vector<1x4x4xf32>
    %cst_29 = arith.constant dense<0.000000e+00> : vector<1x4xf32>
    %37 = vector.multi_reduction <add>, %36, %cst_29 [2] : vector<1x4x4xf32> to vector<1x4xf32>
    %38 = vector.shape_cast %37 : vector<1x4xf32> to vector<1x4x1xf32>
    %39 = tpu.reciprocal %38 {approx = true} : vector<1x4x1xf32> -> vector<1x4x1xf32>
    %40 = vector.broadcast %39 : vector<1x4x1xf32> to vector<1x4x4xf32>
    %41 = arith.mulf %36, %40 : vector<1x4x4xf32>
    %42 = arith.truncf %41 : vector<1x4x4xf32> to vector<1x4x4xbf16>
    "tpu.trace_start"() <{level = 10 : i32, message = "wnm,wmd->wnd"}> : () -> ()
    %cst_30 = arith.constant dense<0.000000e+00> : vector<1x4x16xf32>
    %43 = tpu.matmul %42, %25, %cst_30 {dimension_numbers = #tpu.dot_dimension_numbers<[2], [1], [1], [2], [0, 0, 0, 1, 1, 2], [0], [0]>} : vector<1x4x4xbf16>, vector<1x4x16xbf16>, vector<1x4x16xf32> -> vector<1x4x16xf32>
    "tpu.trace_stop"() : () -> ()
    %44 = arith.truncf %43 : vector<1x4x16xf32> to vector<1x4x16xbf16>
    %c0_31 = arith.constant 0 : index
    %c0_32 = arith.constant 0 : index
    %c16_33 = arith.constant 16 : index
    %45 = vector.load %arg3[%c0_31, %c0_32, %c16_33] : memref<1x4x64xbf16, #tpu.memory_space<vmem>>, vector<1x4x16xbf16>
    tpu.vector_store %arg3[%c0_31, %c0_32, %c16_33], %44 {strides = array<i32>} : memref<1x4x64xbf16, #tpu.memory_space<vmem>>, vector<1x4x16xbf16>,
    %c0_34 = arith.constant 0 : index
    %c0_35 = arith.constant 0 : index
    %c32 = arith.constant 32 : index
    %46 = vector.load %arg1[%c0_34, %c0_35, %c32] : memref<1x4x192xbf16, #tpu.memory_space<vmem>>, vector<1x4x16xbf16>
    %c0_36 = arith.constant 0 : index
    %c0_37 = arith.constant 0 : index
    %c96 = arith.constant 96 : index
    %47 = vector.load %arg1[%c0_36, %c0_37, %c96] : memref<1x4x192xbf16, #tpu.memory_space<vmem>>, vector<1x4x16xbf16>
    %c0_38 = arith.constant 0 : index
    %c0_39 = arith.constant 0 : index
    %c160 = arith.constant 160 : index
    %48 = vector.load %arg1[%c0_38, %c0_39, %c160] : memref<1x4x192xbf16, #tpu.memory_space<vmem>>, vector<1x4x16xbf16>
    "tpu.trace_start"() <{level = 10 : i32, message = "wnd,wmd->wnm"}> : () -> ()
    %cst_40 = arith.constant dense<0.000000e+00> : vector<1x4x4xf32>
    %49 = tpu.matmul %46, %47, %cst_40 {dimension_numbers = #tpu.dot_dimension_numbers<[2], [2], [1], [1], [0, 0, 0, 1, 1, 1], [0], [0]>} : vector<1x4x16xbf16>, vector<1x4x16xbf16>, vector<1x4x4xf32> -> vector<1x4x4xf32>
    "tpu.trace_stop"() : () -> ()
    %cst_41 = arith.constant 2.500000e-01 : f32
    %50 = vector.broadcast %cst_41 : f32 to vector<1x4x4xf32>
    %51 = arith.mulf %49, %50 : vector<1x4x4xf32>
    %c2 = arith.constant 2 : index
    %c0_42 = arith.constant 0 : index
    %c0_43 = arith.constant 0 : index
    %c0_44 = arith.constant 0 : index
    %52 = vector.load %arg2[%c2, %c0_42, %c0_43, %c0_44] : memref<4x1x4x4xf32, #tpu.memory_space<vmem>>, vector<1x1x4x4xf32>
    %53 = vector.shape_cast %52 : vector<1x1x4x4xf32> to vector<1x4x4xf32>
    %54 = arith.addf %51, %53 : vector<1x4x4xf32>
    %cst_45 = arith.constant dense<0xFF800000> : vector<1x4xf32>
    %55 = vector.multi_reduction <maximumf>, %54, %cst_45 [2] : vector<1x4x4xf32> to vector<1x4xf32>
    %56 = vector.shape_cast %55 : vector<1x4xf32> to vector<1x4x1xf32>
    %57 = vector.broadcast %56 : vector<1x4x1xf32> to vector<1x4x4xf32>
    %58 = arith.subf %54, %57 : vector<1x4x4xf32>
    %59 = math.exp %58 : vector<1x4x4xf32>
    %cst_46 = arith.constant dense<0.000000e+00> : vector<1x4xf32>
    %60 = vector.multi_reduction <add>, %59, %cst_46 [2] : vector<1x4x4xf32> to vector<1x4xf32>
    %61 = vector.shape_cast %60 : vector<1x4xf32> to vector<1x4x1xf32>
    %62 = tpu.reciprocal %61 {approx = true} : vector<1x4x1xf32> -> vector<1x4x1xf32>
    %63 = vector.broadcast %62 : vector<1x4x1xf32> to vector<1x4x4xf32>
    %64 = arith.mulf %59, %63 : vector<1x4x4xf32>
    %65 = arith.truncf %64 : vector<1x4x4xf32> to vector<1x4x4xbf16>
    "tpu.trace_start"() <{level = 10 : i32, message = "wnm,wmd->wnd"}> : () -> ()
    %cst_47 = arith.constant dense<0.000000e+00> : vector<1x4x16xf32>
    %66 = tpu.matmul %65, %48, %cst_47 {dimension_numbers = #tpu.dot_dimension_numbers<[2], [1], [1], [2], [0, 0, 0, 1, 1, 2], [0], [0]>} : vector<1x4x4xbf16>, vector<1x4x16xbf16>, vector<1x4x16xf32> -> vector<1x4x16xf32>
    "tpu.trace_stop"() : () -> ()
    %67 = arith.truncf %66 : vector<1x4x16xf32> to vector<1x4x16xbf16>
    %c0_48 = arith.constant 0 : index
    %c0_49 = arith.constant 0 : index
    %c32_50 = arith.constant 32 : index
    %68 = vector.load %arg3[%c0_48, %c0_49, %c32_50] : memref<1x4x64xbf16, #tpu.memory_space<vmem>>, vector<1x4x16xbf16>
    tpu.vector_store %arg3[%c0_48, %c0_49, %c32_50], %67 {strides = array<i32>} : memref<1x4x64xbf16, #tpu.memory_space<vmem>>, vector<1x4x16xbf16>,
    %c0_51 = arith.constant 0 : index
    %c0_52 = arith.constant 0 : index
    %c48 = arith.constant 48 : index
    %69 = vector.load %arg1[%c0_51, %c0_52, %c48] : memref<1x4x192xbf16, #tpu.memory_space<vmem>>, vector<1x4x16xbf16>
    %c0_53 = arith.constant 0 : index
    %c0_54 = arith.constant 0 : index
    %c112 = arith.constant 112 : index
    %70 = vector.load %arg1[%c0_53, %c0_54, %c112] : memref<1x4x192xbf16, #tpu.memory_space<vmem>>, vector<1x4x16xbf16>
    %c0_55 = arith.constant 0 : index
    %c0_56 = arith.constant 0 : index
    %c176 = arith.constant 176 : index
    %71 = vector.load %arg1[%c0_55, %c0_56, %c176] : memref<1x4x192xbf16, #tpu.memory_space<vmem>>, vector<1x4x16xbf16>
    "tpu.trace_start"() <{level = 10 : i32, message = "wnd,wmd->wnm"}> : () -> ()
    %cst_57 = arith.constant dense<0.000000e+00> : vector<1x4x4xf32>
    %72 = tpu.matmul %69, %70, %cst_57 {dimension_numbers = #tpu.dot_dimension_numbers<[2], [2], [1], [1], [0, 0, 0, 1, 1, 1], [0], [0]>} : vector<1x4x16xbf16>, vector<1x4x16xbf16>, vector<1x4x4xf32> -> vector<1x4x4xf32>
    "tpu.trace_stop"() : () -> ()
    %cst_58 = arith.constant 2.500000e-01 : f32
    %73 = vector.broadcast %cst_58 : f32 to vector<1x4x4xf32>
    %74 = arith.mulf %72, %73 : vector<1x4x4xf32>
    %c3 = arith.constant 3 : index
    %c0_59 = arith.constant 0 : index
    %c0_60 = arith.constant 0 : index
    %c0_61 = arith.constant 0 : index
    %75 = vector.load %arg2[%c3, %c0_59, %c0_60, %c0_61] : memref<4x1x4x4xf32, #tpu.memory_space<vmem>>, vector<1x1x4x4xf32>
    %76 = vector.shape_cast %75 : vector<1x1x4x4xf32> to vector<1x4x4xf32>
    %77 = arith.addf %74, %76 : vector<1x4x4xf32>
    %cst_62 = arith.constant dense<0xFF800000> : vector<1x4xf32>
    %78 = vector.multi_reduction <maximumf>, %77, %cst_62 [2] : vector<1x4x4xf32> to vector<1x4xf32>
    %79 = vector.shape_cast %78 : vector<1x4xf32> to vector<1x4x1xf32>
    %80 = vector.broadcast %79 : vector<1x4x1xf32> to vector<1x4x4xf32>
    %81 = arith.subf %77, %80 : vector<1x4x4xf32>
    %82 = math.exp %81 : vector<1x4x4xf32>
    %cst_63 = arith.constant dense<0.000000e+00> : vector<1x4xf32>
    %83 = vector.multi_reduction <add>, %82, %cst_63 [2] : vector<1x4x4xf32> to vector<1x4xf32>
    %84 = vector.shape_cast %83 : vector<1x4xf32> to vector<1x4x1xf32>
    %85 = tpu.reciprocal %84 {approx = true} : vector<1x4x1xf32> -> vector<1x4x1xf32>
    %86 = vector.broadcast %85 : vector<1x4x1xf32> to vector<1x4x4xf32>
    %87 = arith.mulf %82, %86 : vector<1x4x4xf32>
    %88 = arith.truncf %87 : vector<1x4x4xf32> to vector<1x4x4xbf16>
    "tpu.trace_start"() <{level = 10 : i32, message = "wnm,wmd->wnd"}> : () -> ()
    %cst_64 = arith.constant dense<0.000000e+00> : vector<1x4x16xf32>
    %89 = tpu.matmul %88, %71, %cst_64 {dimension_numbers = #tpu.dot_dimension_numbers<[2], [1], [1], [2], [0, 0, 0, 1, 1, 2], [0], [0]>} : vector<1x4x4xbf16>, vector<1x4x16xbf16>, vector<1x4x16xf32> -> vector<1x4x16xf32>
    "tpu.trace_stop"() : () -> ()
    %90 = arith.truncf %89 : vector<1x4x16xf32> to vector<1x4x16xbf16>
    %c0_65 = arith.constant 0 : index
    %c0_66 = arith.constant 0 : index
    %c48_67 = arith.constant 48 : index
    %91 = vector.load %arg3[%c0_65, %c0_66, %c48_67] : memref<1x4x64xbf16, #tpu.memory_space<vmem>>, vector<1x4x16xbf16>
    tpu.vector_store %arg3[%c0_65, %c0_66, %c48_67], %90 {strides = array<i32>} : memref<1x4x64xbf16, #tpu.memory_space<vmem>>, vector<1x4x16xbf16>,
    return
  }
  func.func @transform_0(%arg0: i32) -> (i32, i32, i32) {
    %c0_i32 = arith.constant 0 : i32
    %c0_i32_0 = arith.constant 0 : i32
    %c0_i32_1 = arith.constant 0 : i32
    return %arg0, %c0_i32, %c0_i32_0 : i32, i32, i32
  }
  func.func @transform_1(%arg0: i32) -> (i32, i32, i32, i32) {
    %c0_i32 = arith.constant 0 : i32
    %c0_i32_0 = arith.constant 0 : i32
    %c0_i32_1 = arith.constant 0 : i32
    %c0_i32_2 = arith.constant 0 : i32
    %c0_i32_3 = arith.constant 0 : i32
    return %c0_i32, %c0_i32_0, %c0_i32_1, %c0_i32_2 : i32, i32, i32, i32
  }
  func.func @transform_2(%arg0: i32) -> (i32, i32, i32) {
    %c0_i32 = arith.constant 0 : i32
    %c0_i32_0 = arith.constant 0 : i32
    %c0_i32_1 = arith.constant 0 : i32
    return %arg0, %c0_i32, %c0_i32_0 : i32, i32, i32
  }
}

module attributes {stable_mosaic.version = 11 : i64} {
  func.func @_linear_kernel(%arg0: i32, %arg1: i32, %arg2: memref<8x64xbf16, #tpu.memory_space<vmem>>, %arg3: memref<64x64xbf16, #tpu.memory_space<vmem>>, %arg4: memref<1x64xf32, #tpu.memory_space<vmem>>, %arg5: memref<8x64xbf16, #tpu.memory_space<vmem>>) attributes {dimension_semantics = [#tpu.dimension_semantics<parallel>, #tpu.dimension_semantics<parallel>], iteration_bounds = array<i64: 1, 1>, scalar_prefetch = 0 : i64, scratch_operands = 0 : i64, tpu.core_type = #tpu.core_type<tc>, window_params = [{transform_indices = @transform_0, window_bounds = array<i64: 8, 64>}, {transform_indices = @transform_1, window_bounds = array<i64: 64, 64>}, {transform_indices = @transform_2, window_bounds = array<i64: 1, 64>}, {transform_indices = @transform_3, window_bounds = array<i64: 8, 64>}]} {
    %c0 = arith.constant 0 : index
    %c0_0 = arith.constant 0 : index
    %0 = vector.load %arg2[%c0, %c0_0] : memref<8x64xbf16, #tpu.memory_space<vmem>>, vector<8x64xbf16>
    %c0_1 = arith.constant 0 : index
    %c0_2 = arith.constant 0 : index
    %1 = vector.load %arg3[%c0_1, %c0_2] : memref<64x64xbf16, #tpu.memory_space<vmem>>, vector<64x64xbf16>
    %cst = arith.constant dense<0.000000e+00> : vector<8x64xf32>
    %2 = tpu.matmul %0, %1, %cst {dimension_numbers = #tpu.dot_dimension_numbers<[1], [0], [0], [1], [0, 0, 1, 1], [], []>} : vector<8x64xbf16>, vector<64x64xbf16>, vector<8x64xf32> -> vector<8x64xf32>
    %c0_3 = arith.constant 0 : index
    %c0_4 = arith.constant 0 : index
    %3 = vector.load %arg4[%c0_3, %c0_4] : memref<1x64xf32, #tpu.memory_space<vmem>>, vector<1x64xf32>
    %4 = vector.broadcast %3 : vector<1x64xf32> to vector<8x64xf32>
    %5 = arith.addf %2, %4 : vector<8x64xf32>
    %6 = arith.truncf %5 : vector<8x64xf32> to vector<8x64xbf16>
    %c0_5 = arith.constant 0 : index
    %c0_6 = arith.constant 0 : index
    %7 = vector.load %arg5[%c0_5, %c0_6] : memref<8x64xbf16, #tpu.memory_space<vmem>>, vector<8x64xbf16>
    tpu.vector_store %arg5[%c0_5, %c0_6], %6 {strides = array<i32>} : memref<8x64xbf16, #tpu.memory_space<vmem>>, vector<8x64xbf16>,
    return
  }
  func.func @transform_0(%arg0: i32, %arg1: i32) -> (i32, i32) {
    %c0_i32 = arith.constant 0 : i32
    %c0_i32_0 = arith.constant 0 : i32
    return %arg0, %c0_i32 : i32, i32
  }
  func.func @transform_1(%arg0: i32, %arg1: i32) -> (i32, i32) {
    %c0_i32 = arith.constant 0 : i32
    %c0_i32_0 = arith.constant 0 : i32
    return %c0_i32, %arg1 : i32, i32
  }
  func.func @transform_2(%arg0: i32, %arg1: i32) -> (i32, i32) {
    %c0_i32 = arith.constant 0 : i32
    %c0_i32_0 = arith.constant 0 : i32
    return %c0_i32, %arg1 : i32, i32
  }
  func.func @transform_3(%arg0: i32, %arg1: i32) -> (i32, i32) {
    %c0_i32 = arith.constant 0 : i32
    return %arg0, %arg1 : i32, i32
  }
}

module attributes {stable_mosaic.version = 11 : i64} {
  func.func @_linear_kernel(%arg0: i32, %arg1: i32, %arg2: memref<8x256xbf16, #tpu.memory_space<vmem>>, %arg3: memref<256x64xbf16, #tpu.memory_space<vmem>>, %arg4: memref<1x64xf32, #tpu.memory_space<vmem>>, %arg5: memref<8x64xbf16, #tpu.memory_space<vmem>>) attributes {dimension_semantics = [#tpu.dimension_semantics<parallel>, #tpu.dimension_semantics<parallel>], iteration_bounds = array<i64: 1, 1>, scalar_prefetch = 0 : i64, scratch_operands = 0 : i64, tpu.core_type = #tpu.core_type<tc>, window_params = [{transform_indices = @transform_0, window_bounds = array<i64: 8, 256>}, {transform_indices = @transform_1, window_bounds = array<i64: 256, 64>}, {transform_indices = @transform_2, window_bounds = array<i64: 1, 64>}, {transform_indices = @transform_3, window_bounds = array<i64: 8, 64>}]} {
    %c0 = arith.constant 0 : index
    %c0_0 = arith.constant 0 : index
    %0 = vector.load %arg2[%c0, %c0_0] : memref<8x256xbf16, #tpu.memory_space<vmem>>, vector<8x256xbf16>
    %c0_1 = arith.constant 0 : index
    %c0_2 = arith.constant 0 : index
    %1 = vector.load %arg3[%c0_1, %c0_2] : memref<256x64xbf16, #tpu.memory_space<vmem>>, vector<256x64xbf16>
    %cst = arith.constant dense<0.000000e+00> : vector<8x64xf32>
    %2 = tpu.matmul %0, %1, %cst {dimension_numbers = #tpu.dot_dimension_numbers<[1], [0], [0], [1], [0, 0, 1, 1], [], []>} : vector<8x256xbf16>, vector<256x64xbf16>, vector<8x64xf32> -> vector<8x64xf32>
    %c0_3 = arith.constant 0 : index
    %c0_4 = arith.constant 0 : index
    %3 = vector.load %arg4[%c0_3, %c0_4] : memref<1x64xf32, #tpu.memory_space<vmem>>, vector<1x64xf32>
    %4 = vector.broadcast %3 : vector<1x64xf32> to vector<8x64xf32>
    %5 = arith.addf %2, %4 : vector<8x64xf32>
    %6 = arith.truncf %5 : vector<8x64xf32> to vector<8x64xbf16>
    %c0_5 = arith.constant 0 : index
    %c0_6 = arith.constant 0 : index
    %7 = vector.load %arg5[%c0_5, %c0_6] : memref<8x64xbf16, #tpu.memory_space<vmem>>, vector<8x64xbf16>
    tpu.vector_store %arg5[%c0_5, %c0_6], %6 {strides = array<i32>} : memref<8x64xbf16, #tpu.memory_space<vmem>>, vector<8x64xbf16>,
    return
  }
  func.func @transform_0(%arg0: i32, %arg1: i32) -> (i32, i32) {
    %c0_i32 = arith.constant 0 : i32
    %c0_i32_0 = arith.constant 0 : i32
    return %arg0, %c0_i32 : i32, i32
  }
  func.func @transform_1(%arg0: i32, %arg1: i32) -> (i32, i32) {
    %c0_i32 = arith.constant 0 : i32
    %c0_i32_0 = arith.constant 0 : i32
    return %c0_i32, %arg1 : i32, i32
  }
  func.func @transform_2(%arg0: i32, %arg1: i32) -> (i32, i32) {
    %c0_i32 = arith.constant 0 : i32
    %c0_i32_0 = arith.constant 0 : i32
    return %c0_i32, %arg1 : i32, i32
  }
  func.func @transform_3(%arg0: i32, %arg1: i32) -> (i32, i32) {
    %c0_i32 = arith.constant 0 : i32
    return %arg0, %arg1 : i32, i32
  }
}

module attributes {stable_mosaic.version = 11 : i64} {
  func.func @_linear_kernel(%arg0: i32, %arg1: i32, %arg2: memref<8x64xbf16, #tpu.memory_space<vmem>>, %arg3: memref<64x256xbf16, #tpu.memory_space<vmem>>, %arg4: memref<1x256xf32, #tpu.memory_space<vmem>>, %arg5: memref<8x256xbf16, #tpu.memory_space<vmem>>) attributes {dimension_semantics = [#tpu.dimension_semantics<parallel>, #tpu.dimension_semantics<parallel>], iteration_bounds = array<i64: 1, 1>, scalar_prefetch = 0 : i64, scratch_operands = 0 : i64, tpu.core_type = #tpu.core_type<tc>, window_params = [{transform_indices = @transform_0, window_bounds = array<i64: 8, 64>}, {transform_indices = @transform_1, window_bounds = array<i64: 64, 256>}, {transform_indices = @transform_2, window_bounds = array<i64: 1, 256>}, {transform_indices = @transform_3, window_bounds = array<i64: 8, 256>}]} {
    %c0 = arith.constant 0 : index
    %c0_0 = arith.constant 0 : index
    %0 = vector.load %arg2[%c0, %c0_0] : memref<8x64xbf16, #tpu.memory_space<vmem>>, vector<8x64xbf16>
    %c0_1 = arith.constant 0 : index
    %c0_2 = arith.constant 0 : index
    %1 = vector.load %arg3[%c0_1, %c0_2] : memref<64x256xbf16, #tpu.memory_space<vmem>>, vector<64x256xbf16>
    %cst = arith.constant dense<0.000000e+00> : vector<8x256xf32>
    %2 = tpu.matmul %0, %1, %cst {dimension_numbers = #tpu.dot_dimension_numbers<[1], [0], [0], [1], [0, 0, 1, 1], [], []>} : vector<8x64xbf16>, vector<64x256xbf16>, vector<8x256xf32> -> vector<8x256xf32>
    %c0_3 = arith.constant 0 : index
    %c0_4 = arith.constant 0 : index
    %3 = vector.load %arg4[%c0_3, %c0_4] : memref<1x256xf32, #tpu.memory_space<vmem>>, vector<1x256xf32>
    %4 = vector.broadcast %3 : vector<1x256xf32> to vector<8x256xf32>
    %5 = arith.addf %2, %4 : vector<8x256xf32>
    %cst_5 = arith.constant 5.000000e-01 : f32
    %6 = vector.broadcast %cst_5 : f32 to vector<8x256xf32>
    %7 = arith.mulf %6, %5 : vector<8x256xf32>
    %cst_6 = arith.constant 4.471500e-02 : f32
    %8 = vector.broadcast %cst_6 : f32 to vector<8x256xf32>
    %9 = arith.mulf %8, %5 : vector<8x256xf32>
    %10 = arith.mulf %9, %5 : vector<8x256xf32>
    %11 = arith.mulf %10, %5 : vector<8x256xf32>
    %12 = arith.addf %5, %11 : vector<8x256xf32>
    %cst_7 = arith.constant 0.797884583 : f32
    %13 = vector.broadcast %cst_7 : f32 to vector<8x256xf32>
    %14 = arith.mulf %13, %12 : vector<8x256xf32>
    %15 = math.tanh %14 : vector<8x256xf32>
    %cst_8 = arith.constant 1.000000e+00 : f32
    %16 = vector.broadcast %cst_8 : f32 to vector<8x256xf32>
    %17 = arith.addf %16, %15 : vector<8x256xf32>
    %18 = arith.mulf %7, %17 : vector<8x256xf32>
    %19 = arith.truncf %18 : vector<8x256xf32> to vector<8x256xbf16>
    %c0_9 = arith.constant 0 : index
    %c0_10 = arith.constant 0 : index
    %20 = vector.load %arg5[%c0_9, %c0_10] : memref<8x256xbf16, #tpu.memory_space<vmem>>, vector<8x256xbf16>
    tpu.vector_store %arg5[%c0_9, %c0_10], %19 {strides = array<i32>} : memref<8x256xbf16, #tpu.memory_space<vmem>>, vector<8x256xbf16>,
    return
  }
  func.func @transform_0(%arg0: i32, %arg1: i32) -> (i32, i32) {
    %c0_i32 = arith.constant 0 : i32
    %c0_i32_0 = arith.constant 0 : i32
    return %arg0, %c0_i32 : i32, i32
  }
  func.func @transform_1(%arg0: i32, %arg1: i32) -> (i32, i32) {
    %c0_i32 = arith.constant 0 : i32
    %c0_i32_0 = arith.constant 0 : i32
    return %c0_i32, %arg1 : i32, i32
  }
  func.func @transform_2(%arg0: i32, %arg1: i32) -> (i32, i32) {
    %c0_i32 = arith.constant 0 : i32
    %c0_i32_0 = arith.constant 0 : i32
    return %c0_i32, %arg1 : i32, i32
  }
  func.func @transform_3(%arg0: i32, %arg1: i32) -> (i32, i32) {
    %c0_i32 = arith.constant 0 : i32
    return %arg0, %arg1 : i32, i32
  }
}

module attributes {stable_mosaic.version = 11 : i64} {
  func.func @_avgpool_kernel(%arg0: i32, %arg1: memref<1x4x64xbf16, #tpu.memory_space<vmem>>, %arg2: memref<1x1x64xf32, #tpu.memory_space<vmem>>) attributes {dimension_semantics = [#tpu.dimension_semantics<parallel>], iteration_bounds = array<i64: 2>, scalar_prefetch = 0 : i64, scratch_operands = 0 : i64, tpu.core_type = #tpu.core_type<tc>, window_params = [{transform_indices = @transform_0, window_bounds = array<i64: 1, 4, 64>}, {transform_indices = @transform_1, window_bounds = array<i64: 1, 1, 64>}]} {
    %c0 = arith.constant 0 : index
    %c0_0 = arith.constant 0 : index
    %c0_1 = arith.constant 0 : index
    %0 = vector.load %arg1[%c0, %c0_0, %c0_1] : memref<1x4x64xbf16, #tpu.memory_space<vmem>>, vector<1x4x64xbf16>
    %1 = arith.extf %0 : vector<1x4x64xbf16> to vector<1x4x64xf32>
    %cst = arith.constant dense<0.000000e+00> : vector<1x64xf32>
    %2 = vector.multi_reduction <add>, %1, %cst [1] : vector<1x4x64xf32> to vector<1x64xf32>
    %3 = vector.shape_cast %2 : vector<1x64xf32> to vector<1x1x64xf32>
    %cst_2 = arith.constant 4.000000e+00 : f32
    %4 = vector.broadcast %cst_2 : f32 to vector<1x1x64xf32>
    %5 = arith.divf %3, %4 : vector<1x1x64xf32>
    %c0_3 = arith.constant 0 : index
    %c0_4 = arith.constant 0 : index
    %c0_5 = arith.constant 0 : index
    %6 = vector.load %arg2[%c0_3, %c0_4, %c0_5] : memref<1x1x64xf32, #tpu.memory_space<vmem>>, vector<1x1x64xf32>
    tpu.vector_store %arg2[%c0_3, %c0_4, %c0_5], %5 {strides = array<i32>} : memref<1x1x64xf32, #tpu.memory_space<vmem>>, vector<1x1x64xf32>,
    return
  }
  func.func @transform_0(%arg0: i32) -> (i32, i32, i32) {
    %c0_i32 = arith.constant 0 : i32
    %c0_i32_0 = arith.constant 0 : i32
    %c0_i32_1 = arith.constant 0 : i32
    return %arg0, %c0_i32, %c0_i32_0 : i32, i32, i32
  }
  func.func @transform_1(%arg0: i32) -> (i32, i32, i32) {
    %c0_i32 = arith.constant 0 : i32
    %c0_i32_0 = arith.constant 0 : i32
    %c0_i32_1 = arith.constant 0 : i32
    return %arg0, %c0_i32, %c0_i32_0 : i32, i32, i32
  }
}

module attributes {stable_mosaic.version = 11 : i64} {
  func.func @_linear_kernel(%arg0: i32, %arg1: i32, %arg2: memref<2x64xf32, #tpu.memory_space<vmem>>, %arg3: memref<64x8xbf16, #tpu.memory_space<vmem>>, %arg4: memref<1x8xf32, #tpu.memory_space<vmem>>, %arg5: memref<2x8xf32, #tpu.memory_space<vmem>>) attributes {dimension_semantics = [#tpu.dimension_semantics<parallel>, #tpu.dimension_semantics<parallel>], iteration_bounds = array<i64: 1, 1>, scalar_prefetch = 0 : i64, scratch_operands = 0 : i64, tpu.core_type = #tpu.core_type<tc>, window_params = [{transform_indices = @transform_0, window_bounds = array<i64: 2, 64>}, {transform_indices = @transform_1, window_bounds = array<i64: 64, 8>}, {transform_indices = @transform_2, window_bounds = array<i64: 1, 8>}, {transform_indices = @transform_3, window_bounds = array<i64: 2, 8>}]} {
    %c0 = arith.constant 0 : index
    %c0_0 = arith.constant 0 : index
    %0 = vector.load %arg2[%c0, %c0_0] : memref<2x64xf32, #tpu.memory_space<vmem>>, vector<2x64xf32>
    %1 = arith.truncf %0 : vector<2x64xf32> to vector<2x64xbf16>
    %c0_1 = arith.constant 0 : index
    %c0_2 = arith.constant 0 : index
    %2 = vector.load %arg3[%c0_1, %c0_2] : memref<64x8xbf16, #tpu.memory_space<vmem>>, vector<64x8xbf16>
    %cst = arith.constant dense<0.000000e+00> : vector<2x8xf32>
    %3 = tpu.matmul %1, %2, %cst {dimension_numbers = #tpu.dot_dimension_numbers<[1], [0], [0], [1], [0, 0, 1, 1], [], []>} : vector<2x64xbf16>, vector<64x8xbf16>, vector<2x8xf32> -> vector<2x8xf32>
    %c0_3 = arith.constant 0 : index
    %c0_4 = arith.constant 0 : index
    %4 = vector.load %arg4[%c0_3, %c0_4] : memref<1x8xf32, #tpu.memory_space<vmem>>, vector<1x8xf32>
    %5 = vector.broadcast %4 : vector<1x8xf32> to vector<2x8xf32>
    %6 = arith.addf %3, %5 : vector<2x8xf32>
    %c0_5 = arith.constant 0 : index
    %c0_6 = arith.constant 0 : index
    %7 = vector.load %arg5[%c0_5, %c0_6] : memref<2x8xf32, #tpu.memory_space<vmem>>, vector<2x8xf32>
    tpu.vector_store %arg5[%c0_5, %c0_6], %6 {strides = array<i32>} : memref<2x8xf32, #tpu.memory_space<vmem>>, vector<2x8xf32>,
    return
  }
  func.func @transform_0(%arg0: i32, %arg1: i32) -> (i32, i32) {
    %c0_i32 = arith.constant 0 : i32
    %c0_i32_0 = arith.constant 0 : i32
    return %arg0, %c0_i32 : i32, i32
  }
  func.func @transform_1(%arg0: i32, %arg1: i32) -> (i32, i32) {
    %c0_i32 = arith.constant 0 : i32
    %c0_i32_0 = arith.constant 0 : i32
    return %c0_i32, %arg1 : i32, i32
  }
  func.func @transform_2(%arg0: i32, %arg1: i32) -> (i32, i32) {
    %c0_i32 = arith.constant 0 : i32
    %c0_i32_0 = arith.constant 0 : i32
    return %c0_i32, %arg1 : i32, i32
  }
  func.func @transform_3(%arg0: i32, %arg1: i32) -> (i32, i32) {
    %c0_i32 = arith.constant 0 : i32
    return %arg0, %arg1 : i32, i32
  }
}

</mosaic_0001>

<llo_original>
// kernel: tpu_custom_call.1
$region0: #{tpu_custom_call.1}
  #allocation0 [shape = 'u32[]', space=smem, size = 0x4, offset = 0x4, fixed_abs, tag = 'smem constant byte address 0x4 - core index']
  #allocation1 [shape = 'u32[144,128]{1,0:T(1,128)}', space=vmem, size = 0x12000, scoped, tag = 'internal scratch']
  %s0 = inlined_call_operand.hbm [shape: f32[8,128], index: 0, kind: input, shape index: {}]
  %s1 = inlined_call_operand.hbm [shape: f32[8,128], index: 1, kind: output, shape index: {}]
  %s2 = sld [smem:[#allocation0]]
  $region18: #{tpu_custom_call.1} parent=0
    _
  %s4 = ssub.s32 1, %s2
  %s5 = scalar_select 0, %s4, %s2
  $region1: #{tpu_custom_call.1} parent=0
    #allocation2 [shape = 'u8[4096]{0}', space=vmem, size = 0x1000, scoped, tag = 'input window, operand 0, single buffered']
    #allocation3 [shape = 's32[1]{0}', space=sflag, size = 0x4, scoped, tag = 'scoped memory for tpu_custom_call.1']
    #allocation4 [shape = 's32[1]{0}', space=sflag, size = 0x4, scoped, tag = 'scoped memory for tpu_custom_call.1']
    #allocation5 [shape = 'u8[4096]{0}', space=vmem, size = 0x1000, scoped, tag = 'output window, operand 0, single buffered']
    %6 = vsyncpa [#allocation3], 0
    %7 = vsyncpa [#allocation4], 0
    // Predicated region
    $region2: #{tpu_custom_call.1} parent=1 // pred_check
      _
    $region3: #{tpu_custom_call.1} parent=1 // pred_check_branch
      %9 = sbr.rel (0) target = $region5
    $region4: #{tpu_custom_call.1} parent=1 // pred_region
      %s11 = ssub.s32 128, 128
      %12 = vsyncadd [#allocation3], %s11
      %s14 = sshll.u32 [#allocation2], 4
      %s15 = int_to_ptr.vmem [resolvable:$true] %s14
      %17 = dma.hbm_to_vmem [thread:$0]  %s0, 128, %s15, [#allocation3]
    $region5: #{tpu_custom_call.1} parent=1 // pred_fallthru
      _
    // Predicated region
    $region6: #{tpu_custom_call.1} parent=1 // pred_check
      _
    $region7: #{tpu_custom_call.1} parent=1 // pred_check_branch
      %19 = sbr.rel (0) target = $region9
    $region8: #{tpu_custom_call.1} parent=1 // pred_region
      %20 = dma.done [#allocation3], 128
    $region9: #{tpu_custom_call.1} parent=1 // pred_fallthru
      _
    %v21 = vld [vmem:[#allocation2] sm:$0xff]
    %v22 = vmul.f32 %v21, 2.0
    %23 = vst [vmem:[#allocation5] sm:$0xff] %v22
    // Predicated region
    $region10: #{tpu_custom_call.1} parent=1 // pred_check
      _
    $region11: #{tpu_custom_call.1} parent=1 // pred_check_branch
      %25 = sbr.rel (0) target = $region13
    $region12: #{tpu_custom_call.1} parent=1 // pred_region
      %s27 = ssub.s32 128, 128
      %28 = vsyncadd [#allocation4], %s27
      %s30 = sshll.u32 [#allocation5], 4
      %s31 = int_to_ptr.vmem [resolvable:$true] %s30
      %33 = dma.vmem_to_hbm [thread:$0]  %s31, 128, %s1, [#allocation4]
    $region13: #{tpu_custom_call.1} parent=1 // pred_fallthru
      _
    // Predicated region
    $region14: #{tpu_custom_call.1} parent=1 // pred_check
      _
    $region15: #{tpu_custom_call.1} parent=1 // pred_check_branch
      %35 = sbr.rel (0) target = $region17
    $region16: #{tpu_custom_call.1} parent=1 // pred_region
      %36 = dma.done [#allocation4], 128
    $region17: #{tpu_custom_call.1} parent=1 // pred_fallthru
      _
    %37 = vsyncpa [#allocation3], 1
    %38 = vsyncpa [#allocation4], 1

// kernel: _lambda_.35
$region0: #{_lambda_.35}
  #allocation0 [shape = 'u32[]', space=smem, size = 0x4, offset = 0x4, fixed_abs, tag = 'smem constant byte address 0x4 - core index']
  #allocation1 [shape = 'u32[144,128]{1,0:T(1,128)}', space=vmem, size = 0x12000, scoped, tag = 'internal scratch']
  %s0 = inlined_call_operand.hbm [shape: f32[32,64], index: 0, kind: input, shape index: {}]
  %s1 = inlined_call_operand.hbm [shape: bf16[64,32], index: 1, kind: input, shape index: {}]
  %s2 = inlined_call_operand.hbm [shape: f32[1,32], index: 2, kind: input, shape index: {}]
  %s3 = inlined_call_operand.hbm [shape: bf16[32,32], index: 3, kind: output, shape index: {}]
  %s4 = sld [smem:[#allocation0]]
  $region34: #{_lambda_.35} parent=0
    _
  %s6 = ssub.s32 1, %s4
  %s7 = scalar_select 0, %s6, %s4
  $region1: #{_lambda_.35} parent=0
    #allocation2 [shape = 'u8[16384]{0}', space=vmem, size = 0x4000, scoped, tag = 'input window, operand 0, single buffered']
    #allocation3 [shape = 's32[1]{0}', space=sflag, size = 0x4, scoped, tag = 'scoped memory for _lambda_.35']
    #allocation4 [shape = 's32[1]{0}', space=sflag, size = 0x4, scoped, tag = 'scoped memory for _lambda_.35']
    #allocation5 [shape = 'u8[16384]{0}', space=vmem, size = 0x4000, scoped, tag = 'input window, operand 1, single buffered']
    #allocation6 [shape = 's32[1]{0}', space=sflag, size = 0x4, scoped, tag = 'scoped memory for _lambda_.35']
    #allocation7 [shape = 'u8[512]{0}', space=vmem, size = 0x400, scoped, tag = 'input window, operand 2, single buffered']
    #allocation8 [shape = 'u8[8192]{0}', space=vmem, size = 0x2000, scoped, tag = 'output window, operand 0, single buffered']
    %8 = vsyncpa [#allocation3], 0
    %9 = vsyncpa [#allocation6], 0
    %10 = vsyncpa [#allocation4], 0
    // Predicated region
    $region2: #{_lambda_.35} parent=1 // pred_check
      _
    $region3: #{_lambda_.35} parent=1 // pred_check_branch
      %12 = sbr.rel (0) target = $region5
    $region4: #{_lambda_.35} parent=1 // pred_region
      %s14 = ssub.s32 512, 512
      %15 = vsyncadd [#allocation3], %s14
      %s16 = sshll.u32 [#allocation2], 4
      %s17 = int_to_ptr.vmem [resolvable:$true] %s16
      %22 = dma.hbm_to_vmem [thread:$0]  %s0, 512, %s17, [#allocation3], 128, 128, 8
    $region5: #{_lambda_.35} parent=1 // pred_fallthru
      _
    // Predicated region
    $region6: #{_lambda_.35} parent=1 // pred_check
      _
    $region7: #{_lambda_.35} parent=1 // pred_check_branch
      %24 = sbr.rel (0) target = $region9
    $region8: #{_lambda_.35} parent=1 // pred_region
      %s26 = ssub.s32 512, 512
      %27 = vsyncadd [#allocation6], %s26
      %s28 = sshll.u32 [#allocation5], 4
      %s29 = int_to_ptr.vmem [resolvable:$true] %s28
      %34 = dma.hbm_to_vmem [thread:$0]  %s1, 512, %s29, [#allocation6], 64, 64, 4
    $region9: #{_lambda_.35} parent=1 // pred_fallthru
      _
    // Predicated region
    $region10: #{_lambda_.35} parent=1 // pred_check
      _
    $region11: #{_lambda_.35} parent=1 // pred_check_branch
      %36 = sbr.rel (0) target = $region13
    $region12: #{_lambda_.35} parent=1 // pred_region
      %s38 = ssub.s32 16, 16
      %39 = vsyncadd [#allocation6], %s38
      %s41 = sshll.u32 [#allocation7], 4
      %s42 = int_to_ptr.vmem [resolvable:$true] %s41
      %44 = dma.hbm_to_vmem [thread:$0]  %s2, 16, %s42, [#allocation6]
    $region13: #{_lambda_.35} parent=1 // pred_fallthru
      _
    // Predicated region
    $region14: #{_lambda_.35} parent=1 // pred_check
      _
    $region15: #{_lambda_.35} parent=1 // pred_check_branch
      %46 = sbr.rel (0) target = $region17
    $region16: #{_lambda_.35} parent=1 // pred_region
      %47 = dma.done [#allocation3], 512
    $region17: #{_lambda_.35} parent=1 // pred_fallthru
      _
    // Predicated region
    $region18: #{_lambda_.35} parent=1 // pred_check
      _
    $region19: #{_lambda_.35} parent=1 // pred_check_branch
      %49 = sbr.rel (0) target = $region21
    $region20: #{_lambda_.35} parent=1 // pred_region
      %50 = dma.done [#allocation6], 512
    $region21: #{_lambda_.35} parent=1 // pred_fallthru
      _
    // Predicated region
    $region22: #{_lambda_.35} parent=1 // pred_check
      _
    $region23: #{_lambda_.35} parent=1 // pred_check_branch
      %52 = sbr.rel (0) target = $region25
    $region24: #{_lambda_.35} parent=1 // pred_region
      %53 = dma.done [#allocation6], 16
    $region25: #{_lambda_.35} parent=1 // pred_fallthru
      _
    %v55 = vld [vmem:[#allocation2] sm:$0xff]
    %v56 = vld [vmem:[#allocation2 + $0x8] sm:$0xff]
    %v57 = vld [vmem:[#allocation2 + $0x10] sm:$0xff]
    %v58 = vld [vmem:[#allocation2 + $0x18] sm:$0xff]
    %v59 = vpack.c.bf16 %v56, %v55
    %v60 = vpack.c.bf16 %v58, %v57
    %v61 = vld [vmem:[#allocation5] sm:$0xf]
    %v62 = vld [vmem:[#allocation5 + $0x4] sm:$0xf]
    %v63 = vld [vmem:[#allocation5 + $0x8] sm:$0xf]
    %v64 = vld [vmem:[#allocation5 + $0xc] sm:$0xf]
    %v65 = vld [vmem:[#allocation5 + $0x10] sm:$0xf]
    %v66 = vld [vmem:[#allocation5 + $0x14] sm:$0xf]
    %v67 = vld [vmem:[#allocation5 + $0x18] sm:$0xf]
    %v68 = vld [vmem:[#allocation5 + $0x1c] sm:$0xf]
    %v69 = vld [vmem:[#allocation7] sm:$0x1]
    %v71 = vlaneseq
    %v72 = vshrl.u32 %v71, 7
    %v73 = vsub.s32 0, %v72
    %v74 = vrot.slane %v69, %v73
    %v84 = vunpack.c.l.b16 %v61
    %v85 = vunpack.c.l.b16 %v62
    %v86 = vunpack.c.l.b16 %v63
    %v87 = vunpack.c.l.b16 %v64
    %v88 = vunpack.c.l.b16 %v65
    %v89 = vunpack.c.l.b16 %v66
    %v90 = vunpack.c.l.b16 %v67
    %v91 = vunpack.c.l.b16 %v68
    %v92 = vpack.c.b16 %v85, %v84
    %v93 = vpack.c.b16 %v87, %v86
    %v94 = vpack.c.b16 %v89, %v88
    %v95 = vpack.c.b16 %v91, %v90
    %vm100 = vcmask 523264
    %v102 = vsel %vm100, %v59, 0
    %v105 = vsel %vm100, %v60, 0
    %107 = vmatprep.subr.bf16.mxu0 0
    %108 = vmatpush1.bf16.msra.mxu0 %v92
    %109 = vmatprep.subr.bf16.mxu0 0
    %110 = vmatpush1.bf16.msra.mxu0 %v93
    %111 = vmatprep.subr.bf16.mxu0 0
    %112 = vmatpush1.bf16.msra.mxu0 %v94
    %113 = vmatprep.subr.bf16.mxu0 0
    %114 = vmatpush1.bf16.msra.mxu0 %v95
    %115 = vmatprep.subr.bf16.mxu0 0
    %116 = vmatpush1.bf16.msra.mxu0 0
    %117 = vmatprep.subr.bf16.mxu0 0
    %118 = vmatpush1.bf16.msra.mxu0 0
    %119 = vmatprep.subr.bf16.mxu0 0
    %120 = vmatpush1.bf16.msra.mxu0 0
    %121 = vmatprep.subr.bf16.mxu0 0
    %122 = vmatpush1.bf16.msra.mxu0 0
    %123 = vmatprep.subr.bf16.mxu0 0
    %124 = vmatpush1.bf16.msra.mxu0 0
    %125 = vmatprep.subr.bf16.mxu0 0
    %126 = vmatpush1.bf16.msra.mxu0 0
    %127 = vmatprep.subr.bf16.mxu0 0
    %128 = vmatpush1.bf16.msra.mxu0 0
    %129 = vmatprep.subr.bf16.mxu0 0
    %130 = vmatpush1.bf16.msra.mxu0 0
    %131 = vmatprep.subr.bf16.mxu0 0
    %132 = vmatpush1.bf16.msra.mxu0 0
    %133 = vmatprep.subr.bf16.mxu0 0
    %134 = vmatpush1.bf16.msra.mxu0 0
    %135 = vmatprep.subr.bf16.mxu0 0
    %136 = vmatpush1.bf16.msra.mxu0 0
    %137 = vmatprep.subr.bf16.mxu0 0
    %138 = vmatpush1.bf16.msra.mxu0 0
    %139 = vmatprep.mubr.bf16.mxu0 0
    %140 = vmatmul.mubr.bf16.gmra.mrb[0].mxu0 %v102
    %v141 = vpop.f32.mrb[0].mxu0
    %v142 = vadd.f32 %v74, %v141
    %v143 = vpop.f32.mrb[0].mxu0
    %v144 = vpop.f32.mrb[0].mxu0
    %v145 = vadd.f32 %v74, %v144
    %v146 = vpop.f32.mrb[0].mxu0
    %147 = vmatprep.mubr.bf16.mxu0 0
    %148 = vmatmul.mubr.bf16.gmra.mrb[0].mxu0 %v105
    %v149 = vpop.f32.mrb[0].mxu0
    %v150 = vadd.f32 %v74, %v149
    %v151 = vpop.f32.mrb[0].mxu0
    %v152 = vpop.f32.mrb[0].mxu0
    %v153 = vadd.f32 %v74, %v152
    %v154 = vpop.f32.mrb[0].mxu0
    %155 = vdwg.mxu0
    %v156 = vpack.c.bf16 %v145, %v142
    %v157 = vpack.c.bf16 %v153, %v150
    %v160 = vunpack.c.l.b16 %v156
    %v161 = vunpack.c.h.b16 %v156
    %v162 = vunpack.c.l.b16 %v157
    %v163 = vunpack.c.h.b16 %v157
    %v164 = vpack.c.b16 %v160, %v160
    %v165 = vpack.c.b16 %v161, %v161
    %v166 = vpack.c.b16 %v162, %v162
    %v167 = vpack.c.b16 %v163, %v163
    %vm172 = vcmask 257024
    %173 = vst.msk [vmem:[#allocation8] sm:$0xf] %vm172, %v164
    %174 = vst.msk [vmem:[#allocation8 + $0x4] sm:$0xf] %vm172, %v165
    %175 = vst.msk [vmem:[#allocation8 + $0x8] sm:$0xf] %vm172, %v166
    %176 = vst.msk [vmem:[#allocation8 + $0xc] sm:$0xf] %vm172, %v167
    // Predicated region
    $region26: #{_lambda_.35} parent=1 // pred_check
      _
    $region27: #{_lambda_.35} parent=1 // pred_check_branch
      %178 = sbr.rel (0) target = $region29
    $region28: #{_lambda_.35} parent=1 // pred_region
      %s180 = ssub.s32 256, 256
      %181 = vsyncadd [#allocation4], %s180
      %s182 = sshll.u32 [#allocation8], 4
      %s183 = int_to_ptr.vmem [resolvable:$true] %s182
      %188 = dma.vmem_to_hbm [thread:$0]  %s183, 256, %s3, [#allocation4], 64, 64, 4
    $region29: #{_lambda_.35} parent=1 // pred_fallthru
      _
    // Predicated region
    $region30: #{_lambda_.35} parent=1 // pred_check
      _
    $region31: #{_lambda_.35} parent=1 // pred_check_branch
      %190 = sbr.rel (0) target = $region33
    $region32: #{_lambda_.35} parent=1 // pred_region
      %191 = dma.done [#allocation4], 256
    $region33: #{_lambda_.35} parent=1 // pred_fallthru
      _
    %192 = vsyncpa [#allocation3], 1
    %193 = vsyncpa [#allocation6], 1
    %194 = vsyncpa [#allocation4], 1

// kernel: _lambda_.38
$region0: #{_lambda_.38}
  #allocation0 [shape = 'u32[]', space=smem, size = 0x4, offset = 0x4, fixed_abs, tag = 'smem constant byte address 0x4 - core index']
  #allocation1 [shape = 'u32[144,128]{1,0:T(1,128)}', space=vmem, size = 0x12000, scoped, tag = 'internal scratch']
  %s0 = inlined_call_operand.hbm [shape: bf16[32,32], index: 0, kind: input, shape index: {}]
  %s1 = inlined_call_operand.hbm [shape: bf16[32,96], index: 1, kind: input, shape index: {}]
  %s2 = inlined_call_operand.hbm [shape: f32[1,96], index: 2, kind: input, shape index: {}]
  %s3 = inlined_call_operand.hbm [shape: bf16[32,96], index: 3, kind: output, shape index: {}]
  %s4 = sld [smem:[#allocation0]]
  $region34: #{_lambda_.38} parent=0
    _
  %s6 = ssub.s32 1, %s4
  %s7 = scalar_select 0, %s6, %s4
  $region1: #{_lambda_.38} parent=0
    #allocation2 [shape = 'u8[8192]{0}', space=vmem, size = 0x2000, scoped, tag = 'input window, operand 0, single buffered']
    #allocation3 [shape = 's32[1]{0}', space=sflag, size = 0x4, scoped, tag = 'scoped memory for _lambda_.38']
    #allocation4 [shape = 's32[1]{0}', space=sflag, size = 0x4, scoped, tag = 'scoped memory for _lambda_.38']
    #allocation5 [shape = 'u8[8192]{0}', space=vmem, size = 0x2000, scoped, tag = 'input window, operand 1, single buffered']
    #allocation6 [shape = 's32[1]{0}', space=sflag, size = 0x4, scoped, tag = 'scoped memory for _lambda_.38']
    #allocation7 [shape = 'u8[512]{0}', space=vmem, size = 0x400, scoped, tag = 'input window, operand 2, single buffered']
    #allocation8 [shape = 'u8[8192]{0}', space=vmem, size = 0x2000, scoped, tag = 'output window, operand 0, single buffered']
    %8 = vsyncpa [#allocation3], 0
    %9 = vsyncpa [#allocation6], 0
    %10 = vsyncpa [#allocation4], 0
    // Predicated region
    $region2: #{_lambda_.38} parent=1 // pred_check
      _
    $region3: #{_lambda_.38} parent=1 // pred_check_branch
      %12 = sbr.rel (0) target = $region5
    $region4: #{_lambda_.38} parent=1 // pred_region
      %s14 = ssub.s32 256, 256
      %15 = vsyncadd [#allocation3], %s14
      %s16 = sshll.u32 [#allocation2], 4
      %s17 = int_to_ptr.vmem [resolvable:$true] %s16
      %22 = dma.hbm_to_vmem [thread:$0]  %s0, 256, %s17, [#allocation3], 64, 64, 4
    $region5: #{_lambda_.38} parent=1 // pred_fallthru
      _
    // Predicated region
    $region6: #{_lambda_.38} parent=1 // pred_check
      _
    $region7: #{_lambda_.38} parent=1 // pred_check_branch
      %24 = sbr.rel (0) target = $region9
    $region8: #{_lambda_.38} parent=1 // pred_region
      %s26 = ssub.s32 256, 256
      %27 = vsyncadd [#allocation6], %s26
      %s28 = sshll.u32 [#allocation5], 4
      %s29 = int_to_ptr.vmem [resolvable:$true] %s28
      %34 = dma.hbm_to_vmem [thread:$0]  %s1, 256, %s29, [#allocation6], 64, 64, 4
    $region9: #{_lambda_.38} parent=1 // pred_fallthru
      _
    // Predicated region
    $region10: #{_lambda_.38} parent=1 // pred_check
      _
    $region11: #{_lambda_.38} parent=1 // pred_check_branch
      %36 = sbr.rel (0) target = $region13
    $region12: #{_lambda_.38} parent=1 // pred_region
      %s38 = ssub.s32 16, 16
      %39 = vsyncadd [#allocation6], %s38
      %s41 = sshll.u32 [#allocation7], 4
      %s42 = int_to_ptr.vmem [resolvable:$true] %s41
      %44 = dma.hbm_to_vmem [thread:$0]  %s2, 16, %s42, [#allocation6]
    $region13: #{_lambda_.38} parent=1 // pred_fallthru
      _
    // Predicated region
    $region14: #{_lambda_.38} parent=1 // pred_check
      _
    $region15: #{_lambda_.38} parent=1 // pred_check_branch
      %46 = sbr.rel (0) target = $region17
    $region16: #{_lambda_.38} parent=1 // pred_region
      %47 = dma.done [#allocation3], 256
    $region17: #{_lambda_.38} parent=1 // pred_fallthru
      _
    // Predicated region
    $region18: #{_lambda_.38} parent=1 // pred_check
      _
    $region19: #{_lambda_.38} parent=1 // pred_check_branch
      %49 = sbr.rel (0) target = $region21
    $region20: #{_lambda_.38} parent=1 // pred_region
      %50 = dma.done [#allocation6], 256
    $region21: #{_lambda_.38} parent=1 // pred_fallthru
      _
    // Predicated region
    $region22: #{_lambda_.38} parent=1 // pred_check
      _
    $region23: #{_lambda_.38} parent=1 // pred_check_branch
      %52 = sbr.rel (0) target = $region25
    $region24: #{_lambda_.38} parent=1 // pred_region
      %53 = dma.done [#allocation6], 16
    $region25: #{_lambda_.38} parent=1 // pred_fallthru
      _
    %v55 = vld [vmem:[#allocation2] sm:$0xf]
    %v56 = vld [vmem:[#allocation2 + $0x4] sm:$0xf]
    %v57 = vld [vmem:[#allocation2 + $0x8] sm:$0xf]
    %v58 = vld [vmem:[#allocation2 + $0xc] sm:$0xf]
    %v59 = vld [vmem:[#allocation5] sm:$0xf]
    %v60 = vld [vmem:[#allocation5 + $0x4] sm:$0xf]
    %v61 = vld [vmem:[#allocation5 + $0x8] sm:$0xf]
    %v62 = vld [vmem:[#allocation5 + $0xc] sm:$0xf]
    %v63 = vld [vmem:[#allocation7] sm:$0x1]
    %v65 = vlaneseq
    %v66 = vshrl.u32 %v65, 7
    %v67 = vsub.s32 0, %v66
    %v68 = vrot.slane %v63, %v67
    %v74 = vunpack.c.l.b16 %v55
    %v75 = vunpack.c.l.b16 %v56
    %v76 = vunpack.c.l.b16 %v57
    %v77 = vunpack.c.l.b16 %v58
    %v78 = vpack.c.b16 %v75, %v74
    %v79 = vpack.c.b16 %v77, %v76
    %v84 = vunpack.c.l.b16 %v59
    %v85 = vunpack.c.l.b16 %v60
    %v86 = vunpack.c.l.b16 %v61
    %v87 = vunpack.c.l.b16 %v62
    %v88 = vpack.c.b16 %v85, %v84
    %v89 = vpack.c.b16 %v87, %v86
    %vm92 = vcmask 261120
    %v94 = vsel %vm92, %v78, 0
    %v97 = vsel %vm92, %v79, 0
    %99 = vmatprep.subr.bf16.mxu0 0
    %100 = vmatpush1.bf16.msra.mxu0 %v88
    %101 = vmatprep.subr.bf16.mxu0 0
    %102 = vmatpush1.bf16.msra.mxu0 %v89
    %103 = vmatprep.subr.bf16.mxu0 0
    %104 = vmatpush1.bf16.msra.mxu0 0
    %105 = vmatprep.subr.bf16.mxu0 0
    %106 = vmatpush1.bf16.msra.mxu0 0
    %107 = vmatprep.subr.bf16.mxu0 0
    %108 = vmatpush1.bf16.msra.mxu0 0
    %109 = vmatprep.subr.bf16.mxu0 0
    %110 = vmatpush1.bf16.msra.mxu0 0
    %111 = vmatprep.subr.bf16.mxu0 0
    %112 = vmatpush1.bf16.msra.mxu0 0
    %113 = vmatprep.subr.bf16.mxu0 0
    %114 = vmatpush1.bf16.msra.mxu0 0
    %115 = vmatprep.subr.bf16.mxu0 0
    %116 = vmatpush1.bf16.msra.mxu0 0
    %117 = vmatprep.subr.bf16.mxu0 0
    %118 = vmatpush1.bf16.msra.mxu0 0
    %119 = vmatprep.subr.bf16.mxu0 0
    %120 = vmatpush1.bf16.msra.mxu0 0
    %121 = vmatprep.subr.bf16.mxu0 0
    %122 = vmatpush1.bf16.msra.mxu0 0
    %123 = vmatprep.subr.bf16.mxu0 0
    %124 = vmatpush1.bf16.msra.mxu0 0
    %125 = vmatprep.subr.bf16.mxu0 0
    %126 = vmatpush1.bf16.msra.mxu0 0
    %127 = vmatprep.subr.bf16.mxu0 0
    %128 = vmatpush1.bf16.msra.mxu0 0
    %129 = vmatprep.subr.bf16.mxu0 0
    %130 = vmatpush1.bf16.msra.mxu0 0
    %131 = vmatprep.mubr.bf16.mxu0 0
    %132 = vmatmul.mubr.bf16.gmra.mrb[0].mxu0 %v94
    %v133 = vpop.f32.mrb[0].mxu0
    %v134 = vadd.f32 %v68, %v133
    %v135 = vpop.f32.mrb[0].mxu0
    %v136 = vpop.f32.mrb[0].mxu0
    %v137 = vadd.f32 %v68, %v136
    %v138 = vpop.f32.mrb[0].mxu0
    %139 = vmatprep.mubr.bf16.mxu0 0
    %140 = vmatmul.mubr.bf16.gmra.mrb[0].mxu0 %v97
    %v141 = vpop.f32.mrb[0].mxu0
    %v142 = vadd.f32 %v68, %v141
    %v143 = vpop.f32.mrb[0].mxu0
    %v144 = vpop.f32.mrb[0].mxu0
    %v145 = vadd.f32 %v68, %v144
    %v146 = vpop.f32.mrb[0].mxu0
    %147 = vdwg.mxu0
    %v148 = vpack.c.bf16 %v137, %v134
    %v149 = vpack.c.bf16 %v145, %v142
    %v152 = vunpack.c.l.b16 %v148
    %v153 = vunpack.c.h.b16 %v148
    %v154 = vunpack.c.l.b16 %v149
    %v155 = vunpack.c.h.b16 %v149
    %v156 = vpack.c.b16 %v152, %v152
    %v157 = vpack.c.b16 %v153, %v153
    %v158 = vpack.c.b16 %v154, %v154
    %v159 = vpack.c.b16 %v155, %v155
    %vm164 = vcmask 781312
    %165 = vst.msk [vmem:[#allocation8] sm:$0xf] %vm164, %v156
    %166 = vst.msk [vmem:[#allocation8 + $0x4] sm:$0xf] %vm164, %v157
    %167 = vst.msk [vmem:[#allocation8 + $0x8] sm:$0xf] %vm164, %v158
    %168 = vst.msk [vmem:[#allocation8 + $0xc] sm:$0xf] %vm164, %v159
    // Predicated region
    $region26: #{_lambda_.38} parent=1 // pred_check
      _
    $region27: #{_lambda_.38} parent=1 // pred_check_branch
      %170 = sbr.rel (0) target = $region29
    $region28: #{_lambda_.38} parent=1 // pred_region
      %s172 = ssub.s32 256, 256
      %173 = vsyncadd [#allocation4], %s172
      %s174 = sshll.u32 [#allocation8], 4
      %s175 = int_to_ptr.vmem [resolvable:$true] %s174
      %180 = dma.vmem_to_hbm [thread:$0]  %s175, 256, %s3, [#allocation4], 64, 64, 4
    $region29: #{_lambda_.38} parent=1 // pred_fallthru
      _
    // Predicated region
    $region30: #{_lambda_.38} parent=1 // pred_check
      _
    $region31: #{_lambda_.38} parent=1 // pred_check_branch
      %182 = sbr.rel (0) target = $region33
    $region32: #{_lambda_.38} parent=1 // pred_region
      %183 = dma.done [#allocation4], 256
    $region33: #{_lambda_.38} parent=1 // pred_fallthru
      _
    %184 = vsyncpa [#allocation3], 1
    %185 = vsyncpa [#allocation6], 1
    %186 = vsyncpa [#allocation4], 1

// kernel: _lambda_.36
$region0: #{_lambda_.36}
  #allocation0 [shape = 'u32[]', space=smem, size = 0x4, offset = 0x4, fixed_abs, tag = 'smem constant byte address 0x4 - core index']
  #allocation1 [shape = 'u32[144,128]{1,0:T(1,128)}', space=vmem, size = 0x12000, scoped, tag = 'internal scratch']
  %s0 = inlined_call_operand.hbm [shape: bf16[32,32], index: 0, kind: input, shape index: {}]
  %s1 = inlined_call_operand.hbm [shape: f32[1,32], index: 1, kind: input, shape index: {}]
  %s2 = inlined_call_operand.hbm [shape: f32[1,32], index: 2, kind: input, shape index: {}]
  %s3 = inlined_call_operand.hbm [shape: bf16[32,32], index: 3, kind: output, shape index: {}]
  %s4 = sld [smem:[#allocation0]]
  $region34: #{_lambda_.36} parent=0
    _
  %s6 = ssub.s32 1, %s4
  %s7 = scalar_select 0, %s6, %s4
  $region1: #{_lambda_.36} parent=0
    #allocation2 [shape = 'u8[8192]{0}', space=vmem, size = 0x2000, scoped, tag = 'input window, operand 0, single buffered']
    #allocation3 [shape = 's32[1]{0}', space=sflag, size = 0x4, scoped, tag = 'scoped memory for _lambda_.36']
    #allocation4 [shape = 's32[1]{0}', space=sflag, size = 0x4, scoped, tag = 'scoped memory for _lambda_.36']
    #allocation5 [shape = 'u8[512]{0}', space=vmem, size = 0x400, scoped, tag = 'input window, operand 1, single buffered']
    #allocation6 [shape = 's32[1]{0}', space=sflag, size = 0x4, scoped, tag = 'scoped memory for _lambda_.36']
    #allocation7 [shape = 'u8[512]{0}', space=vmem, size = 0x400, scoped, tag = 'input window, operand 2, single buffered']
    #allocation8 [shape = 'u8[8192]{0}', space=vmem, size = 0x2000, scoped, tag = 'output window, operand 0, single buffered']
    %8 = vsyncpa [#allocation3], 0
    %9 = vsyncpa [#allocation6], 0
    %10 = vsyncpa [#allocation4], 0
    // Predicated region
    $region2: #{_lambda_.36} parent=1 // pred_check
      _
    $region3: #{_lambda_.36} parent=1 // pred_check_branch
      %12 = sbr.rel (0) target = $region5
    $region4: #{_lambda_.36} parent=1 // pred_region
      %s14 = ssub.s32 256, 256
      %15 = vsyncadd [#allocation3], %s14
      %s16 = sshll.u32 [#allocation2], 4
      %s17 = int_to_ptr.vmem [resolvable:$true] %s16
      %22 = dma.hbm_to_vmem [thread:$0]  %s0, 256, %s17, [#allocation3], 64, 64, 4
    $region5: #{_lambda_.36} parent=1 // pred_fallthru
      _
    // Predicated region
    $region6: #{_lambda_.36} parent=1 // pred_check
      _
    $region7: #{_lambda_.36} parent=1 // pred_check_branch
      %24 = sbr.rel (0) target = $region9
    $region8: #{_lambda_.36} parent=1 // pred_region
      %s26 = ssub.s32 16, 16
      %27 = vsyncadd [#allocation6], %s26
      %s29 = sshll.u32 [#allocation5], 4
      %s30 = int_to_ptr.vmem [resolvable:$true] %s29
      %32 = dma.hbm_to_vmem [thread:$0]  %s1, 16, %s30, [#allocation6]
    $region9: #{_lambda_.36} parent=1 // pred_fallthru
      _
    // Predicated region
    $region10: #{_lambda_.36} parent=1 // pred_check
      _
    $region11: #{_lambda_.36} parent=1 // pred_check_branch
      %34 = sbr.rel (0) target = $region13
    $region12: #{_lambda_.36} parent=1 // pred_region
      %s36 = ssub.s32 16, 16
      %37 = vsyncadd [#allocation6], %s36
      %s39 = sshll.u32 [#allocation7], 4
      %s40 = int_to_ptr.vmem [resolvable:$true] %s39
      %42 = dma.hbm_to_vmem [thread:$0]  %s2, 16, %s40, [#allocation6]
    $region13: #{_lambda_.36} parent=1 // pred_fallthru
      _
    // Predicated region
    $region14: #{_lambda_.36} parent=1 // pred_check
      _
    $region15: #{_lambda_.36} parent=1 // pred_check_branch
      %44 = sbr.rel (0) target = $region17
    $region16: #{_lambda_.36} parent=1 // pred_region
      %45 = dma.done [#allocation3], 256
    $region17: #{_lambda_.36} parent=1 // pred_fallthru
      _
    // Predicated region
    $region18: #{_lambda_.36} parent=1 // pred_check
      _
    $region19: #{_lambda_.36} parent=1 // pred_check_branch
      %47 = sbr.rel (0) target = $region21
    $region20: #{_lambda_.36} parent=1 // pred_region
      %48 = dma.done [#allocation6], 16
    $region21: #{_lambda_.36} parent=1 // pred_fallthru
      _
    // Predicated region
    $region22: #{_lambda_.36} parent=1 // pred_check
      _
    $region23: #{_lambda_.36} parent=1 // pred_check_branch
      %50 = sbr.rel (0) target = $region25
    $region24: #{_lambda_.36} parent=1 // pred_region
      %51 = dma.done [#allocation6], 16
    $region25: #{_lambda_.36} parent=1 // pred_fallthru
      _
    %v52 = vld [vmem:[#allocation2] sm:$0xf]
    %v53 = vld [vmem:[#allocation2 + $0x4] sm:$0xf]
    %v54 = vld [vmem:[#allocation2 + $0x8] sm:$0xf]
    %v55 = vld [vmem:[#allocation2 + $0xc] sm:$0xf]
    %v56 = vunpack.c.l.bf16 %v52
    %v57 = vunpack.c.l.bf16 %v53
    %v58 = vunpack.c.l.bf16 %v54
    %v59 = vunpack.c.l.bf16 %v55
    %vm60 = vcmask 261120
    %v61 = vsel %vm60, %v56, 0.0
    %62 = vadd.xlane.f32.xlu0 %v61
    %v63 = vpop.xlane.xlu0 %62
    %v64 = vsel %vm60, %v57, 0.0
    %65 = vadd.xlane.f32.xlu0 %v64
    %v66 = vpop.xlane.xlu0 %65
    %v67 = vsel %vm60, %v58, 0.0
    %68 = vadd.xlane.f32.xlu0 %v67
    %v69 = vpop.xlane.xlu0 %68
    %v70 = vsel %vm60, %v59, 0.0
    %71 = vadd.xlane.f32.xlu0 %v70
    %v72 = vpop.xlane.xlu0 %71
    %v73 = vrcp.pop 32.0
    %v74 = vmul.f32 %v63, %v73
    %v75 = vmul.f32 %v66, %v73
    %v76 = vmul.f32 %v69, %v73
    %v77 = vmul.f32 %v72, %v73
    %v78 = vsub.f32 %v56, %v74
    %v79 = vsub.f32 %v57, %v75
    %v80 = vsub.f32 %v58, %v76
    %v81 = vsub.f32 %v59, %v77
    %v82 = vmul.f32 %v78, %v78
    %v83 = vmul.f32 %v79, %v79
    %v84 = vmul.f32 %v80, %v80
    %v85 = vmul.f32 %v81, %v81
    %v86 = vsel %vm60, %v82, 0.0
    %87 = vadd.xlane.f32.xlu0 %v86
    %v88 = vpop.xlane.xlu0 %87
    %v89 = vsel %vm60, %v83, 0.0
    %90 = vadd.xlane.f32.xlu0 %v89
    %v91 = vpop.xlane.xlu0 %90
    %v92 = vsel %vm60, %v84, 0.0
    %93 = vadd.xlane.f32.xlu0 %v92
    %v94 = vpop.xlane.xlu0 %93
    %v95 = vsel %vm60, %v85, 0.0
    %96 = vadd.xlane.f32.xlu0 %v95
    %v97 = vpop.xlane.xlu0 %96
    %v98 = vmul.f32 %v88, %v73
    %v99 = vmul.f32 %v91, %v73
    %v100 = vmul.f32 %v94, %v73
    %v101 = vmul.f32 %v97, %v73
    %v102 = vadd.f32 %v98, 1e-05
    %v103 = vadd.f32 %v99, 1e-05
    %v104 = vadd.f32 %v100, 1e-05
    %v105 = vadd.f32 %v101, 1e-05
    %v106 = vrsqrt.pop %v102
    %v107 = vrsqrt.pop %v103
    %v108 = vrsqrt.pop %v104
    %v109 = vrsqrt.pop %v105
    %v110 = vmul.f32 %v78, %v106
    %v111 = vmul.f32 %v79, %v107
    %v112 = vmul.f32 %v80, %v108
    %v113 = vmul.f32 %v81, %v109
    %v114 = vld [vmem:[#allocation5] sm:$0x1]
    %v116 = vlaneseq
    %v117 = vshrl.u32 %v116, 7
    %v118 = vsub.s32 0, %v117
    %v119 = vrot.slane %v114, %v118
    %v121 = vmul.f32 %v110, %v119
    %v122 = vmul.f32 %v111, %v119
    %v123 = vmul.f32 %v112, %v119
    %v124 = vmul.f32 %v113, %v119
    %v125 = vld [vmem:[#allocation7] sm:$0x1]
    %v127 = vlaneseq
    %v128 = vshrl.u32 %v127, 7
    %v129 = vsub.s32 0, %v128
    %v130 = vrot.slane %v125, %v129
    %v132 = vadd.f32 %v121, %v130
    %v133 = vadd.f32 %v122, %v130
    %v134 = vadd.f32 %v123, %v130
    %v135 = vadd.f32 %v124, %v130
    %v136 = vpack.c.bf16 %v133, %v132
    %v137 = vpack.c.bf16 %v135, %v134
    %v140 = vunpack.c.l.b16 %v136
    %v141 = vunpack.c.h.b16 %v136
    %v142 = vunpack.c.l.b16 %v137
    %v143 = vunpack.c.h.b16 %v137
    %v144 = vpack.c.b16 %v140, %v140
    %v145 = vpack.c.b16 %v141, %v141
    %v146 = vpack.c.b16 %v142, %v142
    %v147 = vpack.c.b16 %v143, %v143
    %vm152 = vcmask 257024
    %153 = vst.msk [vmem:[#allocation8] sm:$0xf] %vm152, %v144
    %154 = vst.msk [vmem:[#allocation8 + $0x4] sm:$0xf] %vm152, %v145
    %155 = vst.msk [vmem:[#allocation8 + $0x8] sm:$0xf] %vm152, %v146
    %156 = vst.msk [vmem:[#allocation8 + $0xc] sm:$0xf] %vm152, %v147
    // Predicated region
    $region26: #{_lambda_.36} parent=1 // pred_check
      _
    $region27: #{_lambda_.36} parent=1 // pred_check_branch
      %158 = sbr.rel (0) target = $region29
    $region28: #{_lambda_.36} parent=1 // pred_region
      %s160 = ssub.s32 256, 256
      %161 = vsyncadd [#allocation4], %s160
      %s162 = sshll.u32 [#allocation8], 4
      %s163 = int_to_ptr.vmem [resolvable:$true] %s162
      %168 = dma.vmem_to_hbm [thread:$0]  %s163, 256, %s3, [#allocation4], 64, 64, 4
    $region29: #{_lambda_.36} parent=1 // pred_fallthru
      _
    // Predicated region
    $region30: #{_lambda_.36} parent=1 // pred_check
      _
    $region31: #{_lambda_.36} parent=1 // pred_check_branch
      %170 = sbr.rel (0) target = $region33
    $region32: #{_lambda_.36} parent=1 // pred_region
      %171 = dma.done [#allocation4], 256
    $region33: #{_lambda_.36} parent=1 // pred_fallthru
      _
    %172 = vsyncpa [#allocation3], 1
    %173 = vsyncpa [#allocation6], 1
    %174 = vsyncpa [#allocation4], 1

// kernel: _lambda_.40
$region0: #{_lambda_.40}
  #allocation0 [shape = 'u32[]', space=smem, size = 0x4, offset = 0x4, fixed_abs, tag = 'smem constant byte address 0x4 - core index']
  #allocation1 [shape = 'u32[144,128]{1,0:T(1,128)}', space=vmem, size = 0x12000, scoped, tag = 'internal scratch']
  %s0 = inlined_call_operand.hbm [shape: bf16[32,32], index: 0, kind: input, shape index: {}]
  %s1 = inlined_call_operand.hbm [shape: bf16[32,32], index: 1, kind: input, shape index: {}]
  %s2 = inlined_call_operand.hbm [shape: f32[1,32], index: 2, kind: input, shape index: {}]
  %s3 = inlined_call_operand.hbm [shape: bf16[32,32], index: 3, kind: output, shape index: {}]
  %s4 = sld [smem:[#allocation0]]
  $region34: #{_lambda_.40} parent=0
    _
  %s6 = ssub.s32 1, %s4
  %s7 = scalar_select 0, %s6, %s4
  $region1: #{_lambda_.40} parent=0
    #allocation2 [shape = 'u8[8192]{0}', space=vmem, size = 0x2000, scoped, tag = 'input window, operand 0, single buffered']
    #allocation3 [shape = 's32[1]{0}', space=sflag, size = 0x4, scoped, tag = 'scoped memory for _lambda_.40']
    #allocation4 [shape = 's32[1]{0}', space=sflag, size = 0x4, scoped, tag = 'scoped memory for _lambda_.40']
    #allocation5 [shape = 'u8[8192]{0}', space=vmem, size = 0x2000, scoped, tag = 'input window, operand 1, single buffered']
    #allocation6 [shape = 's32[1]{0}', space=sflag, size = 0x4, scoped, tag = 'scoped memory for _lambda_.40']
    #allocation7 [shape = 'u8[512]{0}', space=vmem, size = 0x400, scoped, tag = 'input window, operand 2, single buffered']
    #allocation8 [shape = 'u8[8192]{0}', space=vmem, size = 0x2000, scoped, tag = 'output window, operand 0, single buffered']
    %8 = vsyncpa [#allocation3], 0
    %9 = vsyncpa [#allocation6], 0
    %10 = vsyncpa [#allocation4], 0
    // Predicated region
    $region2: #{_lambda_.40} parent=1 // pred_check
      _
    $region3: #{_lambda_.40} parent=1 // pred_check_branch
      %12 = sbr.rel (0) target = $region5
    $region4: #{_lambda_.40} parent=1 // pred_region
      %s14 = ssub.s32 256, 256
      %15 = vsyncadd [#allocation3], %s14
      %s16 = sshll.u32 [#allocation2], 4
      %s17 = int_to_ptr.vmem [resolvable:$true] %s16
      %22 = dma.hbm_to_vmem [thread:$0]  %s0, 256, %s17, [#allocation3], 64, 64, 4
    $region5: #{_lambda_.40} parent=1 // pred_fallthru
      _
    // Predicated region
    $region6: #{_lambda_.40} parent=1 // pred_check
      _
    $region7: #{_lambda_.40} parent=1 // pred_check_branch
      %24 = sbr.rel (0) target = $region9
    $region8: #{_lambda_.40} parent=1 // pred_region
      %s26 = ssub.s32 256, 256
      %27 = vsyncadd [#allocation6], %s26
      %s28 = sshll.u32 [#allocation5], 4
      %s29 = int_to_ptr.vmem [resolvable:$true] %s28
      %34 = dma.hbm_to_vmem [thread:$0]  %s1, 256, %s29, [#allocation6], 64, 64, 4
    $region9: #{_lambda_.40} parent=1 // pred_fallthru
      _
    // Predicated region
    $region10: #{_lambda_.40} parent=1 // pred_check
      _
    $region11: #{_lambda_.40} parent=1 // pred_check_branch
      %36 = sbr.rel (0) target = $region13
    $region12: #{_lambda_.40} parent=1 // pred_region
      %s38 = ssub.s32 16, 16
      %39 = vsyncadd [#allocation6], %s38
      %s41 = sshll.u32 [#allocation7], 4
      %s42 = int_to_ptr.vmem [resolvable:$true] %s41
      %44 = dma.hbm_to_vmem [thread:$0]  %s2, 16, %s42, [#allocation6]
    $region13: #{_lambda_.40} parent=1 // pred_fallthru
      _
    // Predicated region
    $region14: #{_lambda_.40} parent=1 // pred_check
      _
    $region15: #{_lambda_.40} parent=1 // pred_check_branch
      %46 = sbr.rel (0) target = $region17
    $region16: #{_lambda_.40} parent=1 // pred_region
      %47 = dma.done [#allocation3], 256
    $region17: #{_lambda_.40} parent=1 // pred_fallthru
      _
    // Predicated region
    $region18: #{_lambda_.40} parent=1 // pred_check
      _
    $region19: #{_lambda_.40} parent=1 // pred_check_branch
      %49 = sbr.rel (0) target = $region21
    $region20: #{_lambda_.40} parent=1 // pred_region
      %50 = dma.done [#allocation6], 256
    $region21: #{_lambda_.40} parent=1 // pred_fallthru
      _
    // Predicated region
    $region22: #{_lambda_.40} parent=1 // pred_check
      _
    $region23: #{_lambda_.40} parent=1 // pred_check_branch
      %52 = sbr.rel (0) target = $region25
    $region24: #{_lambda_.40} parent=1 // pred_region
      %53 = dma.done [#allocation6], 16
    $region25: #{_lambda_.40} parent=1 // pred_fallthru
      _
    %v55 = vld [vmem:[#allocation2] sm:$0xf]
    %v56 = vld [vmem:[#allocation2 + $0x4] sm:$0xf]
    %v57 = vld [vmem:[#allocation2 + $0x8] sm:$0xf]
    %v58 = vld [vmem:[#allocation2 + $0xc] sm:$0xf]
    %v59 = vld [vmem:[#allocation5] sm:$0xf]
    %v60 = vld [vmem:[#allocation5 + $0x4] sm:$0xf]
    %v61 = vld [vmem:[#allocation5 + $0x8] sm:$0xf]
    %v62 = vld [vmem:[#allocation5 + $0xc] sm:$0xf]
    %v63 = vld [vmem:[#allocation7] sm:$0x1]
    %v65 = vlaneseq
    %v66 = vshrl.u32 %v65, 7
    %v67 = vsub.s32 0, %v66
    %v68 = vrot.slane %v63, %v67
    %v74 = vunpack.c.l.b16 %v55
    %v75 = vunpack.c.l.b16 %v56
    %v76 = vunpack.c.l.b16 %v57
    %v77 = vunpack.c.l.b16 %v58
    %v78 = vpack.c.b16 %v75, %v74
    %v79 = vpack.c.b16 %v77, %v76
    %v84 = vunpack.c.l.b16 %v59
    %v85 = vunpack.c.l.b16 %v60
    %v86 = vunpack.c.l.b16 %v61
    %v87 = vunpack.c.l.b16 %v62
    %v88 = vpack.c.b16 %v85, %v84
    %v89 = vpack.c.b16 %v87, %v86
    %vm92 = vcmask 261120
    %v94 = vsel %vm92, %v78, 0
    %v97 = vsel %vm92, %v79, 0
    %99 = vmatprep.subr.bf16.mxu0 0
    %100 = vmatpush1.bf16.msra.mxu0 %v88
    %101 = vmatprep.subr.bf16.mxu0 0
    %102 = vmatpush1.bf16.msra.mxu0 %v89
    %103 = vmatprep.subr.bf16.mxu0 0
    %104 = vmatpush1.bf16.msra.mxu0 0
    %105 = vmatprep.subr.bf16.mxu0 0
    %106 = vmatpush1.bf16.msra.mxu0 0
    %107 = vmatprep.subr.bf16.mxu0 0
    %108 = vmatpush1.bf16.msra.mxu0 0
    %109 = vmatprep.subr.bf16.mxu0 0
    %110 = vmatpush1.bf16.msra.mxu0 0
    %111 = vmatprep.subr.bf16.mxu0 0
    %112 = vmatpush1.bf16.msra.mxu0 0
    %113 = vmatprep.subr.bf16.mxu0 0
    %114 = vmatpush1.bf16.msra.mxu0 0
    %115 = vmatprep.subr.bf16.mxu0 0
    %116 = vmatpush1.bf16.msra.mxu0 0
    %117 = vmatprep.subr.bf16.mxu0 0
    %118 = vmatpush1.bf16.msra.mxu0 0
    %119 = vmatprep.subr.bf16.mxu0 0
    %120 = vmatpush1.bf16.msra.mxu0 0
    %121 = vmatprep.subr.bf16.mxu0 0
    %122 = vmatpush1.bf16.msra.mxu0 0
    %123 = vmatprep.subr.bf16.mxu0 0
    %124 = vmatpush1.bf16.msra.mxu0 0
    %125 = vmatprep.subr.bf16.mxu0 0
    %126 = vmatpush1.bf16.msra.mxu0 0
    %127 = vmatprep.subr.bf16.mxu0 0
    %128 = vmatpush1.bf16.msra.mxu0 0
    %129 = vmatprep.subr.bf16.mxu0 0
    %130 = vmatpush1.bf16.msra.mxu0 0
    %131 = vmatprep.mubr.bf16.mxu0 0
    %132 = vmatmul.mubr.bf16.gmra.mrb[0].mxu0 %v94
    %v133 = vpop.f32.mrb[0].mxu0
    %v134 = vadd.f32 %v68, %v133
    %v135 = vpop.f32.mrb[0].mxu0
    %v136 = vpop.f32.mrb[0].mxu0
    %v137 = vadd.f32 %v68, %v136
    %v138 = vpop.f32.mrb[0].mxu0
    %139 = vmatprep.mubr.bf16.mxu0 0
    %140 = vmatmul.mubr.bf16.gmra.mrb[0].mxu0 %v97
    %v141 = vpop.f32.mrb[0].mxu0
    %v142 = vadd.f32 %v68, %v141
    %v143 = vpop.f32.mrb[0].mxu0
    %v144 = vpop.f32.mrb[0].mxu0
    %v145 = vadd.f32 %v68, %v144
    %v146 = vpop.f32.mrb[0].mxu0
    %147 = vdwg.mxu0
    %v148 = vpack.c.bf16 %v137, %v134
    %v149 = vpack.c.bf16 %v145, %v142
    %v152 = vunpack.c.l.b16 %v148
    %v153 = vunpack.c.h.b16 %v148
    %v154 = vunpack.c.l.b16 %v149
    %v155 = vunpack.c.h.b16 %v149
    %v156 = vpack.c.b16 %v152, %v152
    %v157 = vpack.c.b16 %v153, %v153
    %v158 = vpack.c.b16 %v154, %v154
    %v159 = vpack.c.b16 %v155, %v155
    %vm164 = vcmask 257024
    %165 = vst.msk [vmem:[#allocation8] sm:$0xf] %vm164, %v156
    %166 = vst.msk [vmem:[#allocation8 + $0x4] sm:$0xf] %vm164, %v157
    %167 = vst.msk [vmem:[#allocation8 + $0x8] sm:$0xf] %vm164, %v158
    %168 = vst.msk [vmem:[#allocation8 + $0xc] sm:$0xf] %vm164, %v159
    // Predicated region
    $region26: #{_lambda_.40} parent=1 // pred_check
      _
    $region27: #{_lambda_.40} parent=1 // pred_check_branch
      %170 = sbr.rel (0) target = $region29
    $region28: #{_lambda_.40} parent=1 // pred_region
      %s172 = ssub.s32 256, 256
      %173 = vsyncadd [#allocation4], %s172
      %s174 = sshll.u32 [#allocation8], 4
      %s175 = int_to_ptr.vmem [resolvable:$true] %s174
      %180 = dma.vmem_to_hbm [thread:$0]  %s175, 256, %s3, [#allocation4], 64, 64, 4
    $region29: #{_lambda_.40} parent=1 // pred_fallthru
      _
    // Predicated region
    $region30: #{_lambda_.40} parent=1 // pred_check
      _
    $region31: #{_lambda_.40} parent=1 // pred_check_branch
      %182 = sbr.rel (0) target = $region33
    $region32: #{_lambda_.40} parent=1 // pred_region
      %183 = dma.done [#allocation4], 256
    $region33: #{_lambda_.40} parent=1 // pred_fallthru
      _
    %184 = vsyncpa [#allocation3], 1
    %185 = vsyncpa [#allocation6], 1
    %186 = vsyncpa [#allocation4], 1

// kernel: _lambda_.42
$region0: #{_lambda_.42}
  #allocation0 [shape = 'u32[]', space=smem, size = 0x4, offset = 0x4, fixed_abs, tag = 'smem constant byte address 0x4 - core index']
  #allocation1 [shape = 'u32[144,128]{1,0:T(1,128)}', space=vmem, size = 0x12000, scoped, tag = 'internal scratch']
  %s0 = inlined_call_operand.hbm [shape: bf16[32,32], index: 0, kind: input, shape index: {}]
  %s1 = inlined_call_operand.hbm [shape: bf16[32,128], index: 1, kind: input, shape index: {}]
  %s2 = inlined_call_operand.hbm [shape: f32[1,128], index: 2, kind: input, shape index: {}]
  %s3 = inlined_call_operand.hbm [shape: bf16[32,128], index: 3, kind: output, shape index: {}]
  %s4 = sld [smem:[#allocation0]]
  $region34: #{_lambda_.42} parent=0
    _
  %s6 = ssub.s32 1, %s4
  %s7 = scalar_select 0, %s6, %s4
  $region1: #{_lambda_.42} parent=0
    #allocation2 [shape = 'u8[8192]{0}', space=vmem, size = 0x2000, scoped, tag = 'input window, operand 0, single buffered']
    #allocation3 [shape = 's32[1]{0}', space=sflag, size = 0x4, scoped, tag = 'scoped memory for _lambda_.42']
    #allocation4 [shape = 's32[1]{0}', space=sflag, size = 0x4, scoped, tag = 'scoped memory for _lambda_.42']
    #allocation5 [shape = 'u8[8192]{0}', space=vmem, size = 0x2000, scoped, tag = 'input window, operand 1, single buffered']
    #allocation6 [shape = 's32[1]{0}', space=sflag, size = 0x4, scoped, tag = 'scoped memory for _lambda_.42']
    #allocation7 [shape = 'u8[512]{0}', space=vmem, size = 0x400, scoped, tag = 'input window, operand 2, single buffered']
    #allocation8 [shape = 'u8[8192]{0}', space=vmem, size = 0x2000, scoped, tag = 'output window, operand 0, single buffered']
    %8 = vsyncpa [#allocation3], 0
    %9 = vsyncpa [#allocation6], 0
    %10 = vsyncpa [#allocation4], 0
    // Predicated region
    $region2: #{_lambda_.42} parent=1 // pred_check
      _
    $region3: #{_lambda_.42} parent=1 // pred_check_branch
      %12 = sbr.rel (0) target = $region5
    $region4: #{_lambda_.42} parent=1 // pred_region
      %s14 = ssub.s32 256, 256
      %15 = vsyncadd [#allocation3], %s14
      %s16 = sshll.u32 [#allocation2], 4
      %s17 = int_to_ptr.vmem [resolvable:$true] %s16
      %22 = dma.hbm_to_vmem [thread:$0]  %s0, 256, %s17, [#allocation3], 64, 64, 4
    $region5: #{_lambda_.42} parent=1 // pred_fallthru
      _
    // Predicated region
    $region6: #{_lambda_.42} parent=1 // pred_check
      _
    $region7: #{_lambda_.42} parent=1 // pred_check_branch
      %24 = sbr.rel (0) target = $region9
    $region8: #{_lambda_.42} parent=1 // pred_region
      %s26 = ssub.s32 256, 256
      %27 = vsyncadd [#allocation6], %s26
      %s28 = sshll.u32 [#allocation5], 4
      %s29 = int_to_ptr.vmem [resolvable:$true] %s28
      %34 = dma.hbm_to_vmem [thread:$0]  %s1, 256, %s29, [#allocation6], 64, 64, 4
    $region9: #{_lambda_.42} parent=1 // pred_fallthru
      _
    // Predicated region
    $region10: #{_lambda_.42} parent=1 // pred_check
      _
    $region11: #{_lambda_.42} parent=1 // pred_check_branch
      %36 = sbr.rel (0) target = $region13
    $region12: #{_lambda_.42} parent=1 // pred_region
      %s38 = ssub.s32 16, 16
      %39 = vsyncadd [#allocation6], %s38
      %s41 = sshll.u32 [#allocation7], 4
      %s42 = int_to_ptr.vmem [resolvable:$true] %s41
      %44 = dma.hbm_to_vmem [thread:$0]  %s2, 16, %s42, [#allocation6]
    $region13: #{_lambda_.42} parent=1 // pred_fallthru
      _
    // Predicated region
    $region14: #{_lambda_.42} parent=1 // pred_check
      _
    $region15: #{_lambda_.42} parent=1 // pred_check_branch
      %46 = sbr.rel (0) target = $region17
    $region16: #{_lambda_.42} parent=1 // pred_region
      %47 = dma.done [#allocation3], 256
    $region17: #{_lambda_.42} parent=1 // pred_fallthru
      _
    // Predicated region
    $region18: #{_lambda_.42} parent=1 // pred_check
      _
    $region19: #{_lambda_.42} parent=1 // pred_check_branch
      %49 = sbr.rel (0) target = $region21
    $region20: #{_lambda_.42} parent=1 // pred_region
      %50 = dma.done [#allocation6], 256
    $region21: #{_lambda_.42} parent=1 // pred_fallthru
      _
    // Predicated region
    $region22: #{_lambda_.42} parent=1 // pred_check
      _
    $region23: #{_lambda_.42} parent=1 // pred_check_branch
      %52 = sbr.rel (0) target = $region25
    $region24: #{_lambda_.42} parent=1 // pred_region
      %53 = dma.done [#allocation6], 16
    $region25: #{_lambda_.42} parent=1 // pred_fallthru
      _
    %v55 = vld [vmem:[#allocation2] sm:$0xf]
    %v56 = vld [vmem:[#allocation2 + $0x4] sm:$0xf]
    %v57 = vld [vmem:[#allocation2 + $0x8] sm:$0xf]
    %v58 = vld [vmem:[#allocation2 + $0xc] sm:$0xf]
    %v59 = vld [vmem:[#allocation5] sm:$0xf]
    %v60 = vld [vmem:[#allocation5 + $0x4] sm:$0xf]
    %v61 = vld [vmem:[#allocation5 + $0x8] sm:$0xf]
    %v62 = vld [vmem:[#allocation5 + $0xc] sm:$0xf]
    %v63 = vld [vmem:[#allocation7] sm:$0x1]
    %v65 = vlaneseq
    %v66 = vshrl.u32 %v65, 7
    %v67 = vsub.s32 0, %v66
    %v68 = vrot.slane %v63, %v67
    %v74 = vunpack.c.l.b16 %v55
    %v75 = vunpack.c.l.b16 %v56
    %v76 = vunpack.c.l.b16 %v57
    %v77 = vunpack.c.l.b16 %v58
    %v78 = vpack.c.b16 %v75, %v74
    %v79 = vpack.c.b16 %v77, %v76
    %v84 = vunpack.c.l.b16 %v59
    %v85 = vunpack.c.l.b16 %v60
    %v86 = vunpack.c.l.b16 %v61
    %v87 = vunpack.c.l.b16 %v62
    %v88 = vpack.c.b16 %v85, %v84
    %v89 = vpack.c.b16 %v87, %v86
    %vm92 = vcmask 261120
    %v94 = vsel %vm92, %v78, 0
    %v97 = vsel %vm92, %v79, 0
    %99 = vmatprep.subr.bf16.mxu0 0
    %100 = vmatpush1.bf16.msra.mxu0 %v88
    %101 = vmatprep.subr.bf16.mxu0 0
    %102 = vmatpush1.bf16.msra.mxu0 %v89
    %103 = vmatprep.subr.bf16.mxu0 0
    %104 = vmatpush1.bf16.msra.mxu0 0
    %105 = vmatprep.subr.bf16.mxu0 0
    %106 = vmatpush1.bf16.msra.mxu0 0
    %107 = vmatprep.subr.bf16.mxu0 0
    %108 = vmatpush1.bf16.msra.mxu0 0
    %109 = vmatprep.subr.bf16.mxu0 0
    %110 = vmatpush1.bf16.msra.mxu0 0
    %111 = vmatprep.subr.bf16.mxu0 0
    %112 = vmatpush1.bf16.msra.mxu0 0
    %113 = vmatprep.subr.bf16.mxu0 0
    %114 = vmatpush1.bf16.msra.mxu0 0
    %115 = vmatprep.subr.bf16.mxu0 0
    %116 = vmatpush1.bf16.msra.mxu0 0
    %117 = vmatprep.subr.bf16.mxu0 0
    %118 = vmatpush1.bf16.msra.mxu0 0
    %119 = vmatprep.subr.bf16.mxu0 0
    %120 = vmatpush1.bf16.msra.mxu0 0
    %121 = vmatprep.subr.bf16.mxu0 0
    %122 = vmatpush1.bf16.msra.mxu0 0
    %123 = vmatprep.subr.bf16.mxu0 0
    %124 = vmatpush1.bf16.msra.mxu0 0
    %125 = vmatprep.subr.bf16.mxu0 0
    %126 = vmatpush1.bf16.msra.mxu0 0
    %127 = vmatprep.subr.bf16.mxu0 0
    %128 = vmatpush1.bf16.msra.mxu0 0
    %129 = vmatprep.subr.bf16.mxu0 0
    %130 = vmatpush1.bf16.msra.mxu0 0
    %131 = vmatprep.mubr.bf16.mxu0 0
    %132 = vmatmul.mubr.bf16.gmra.mrb[0].mxu0 %v94
    %v133 = vpop.f32.mrb[0].mxu0
    %v134 = vadd.f32 %v68, %v133
    %v135 = vpop.f32.mrb[0].mxu0
    %v136 = vpop.f32.mrb[0].mxu0
    %v137 = vadd.f32 %v68, %v136
    %v138 = vpop.f32.mrb[0].mxu0
    %139 = vmatprep.mubr.bf16.mxu0 0
    %140 = vmatmul.mubr.bf16.gmra.mrb[0].mxu0 %v97
    %v141 = vpop.f32.mrb[0].mxu0
    %v142 = vadd.f32 %v68, %v141
    %v143 = vpop.f32.mrb[0].mxu0
    %v144 = vpop.f32.mrb[0].mxu0
    %v145 = vadd.f32 %v68, %v144
    %v146 = vpop.f32.mrb[0].mxu0
    %147 = vdwg.mxu0
    %v148 = vmul.f32 %v134, 0.5
    %v149 = vmul.f32 %v137, 0.5
    %v150 = vmul.f32 %v142, 0.5
    %v151 = vmul.f32 %v145, 0.5
    %v152 = vmul.f32 %v134, 0.044715
    %v153 = vmul.f32 %v137, 0.044715
    %v154 = vmul.f32 %v142, 0.044715
    %v155 = vmul.f32 %v145, 0.044715
    %v156 = vmul.f32 %v152, %v134
    %v157 = vmul.f32 %v153, %v137
    %v158 = vmul.f32 %v154, %v142
    %v159 = vmul.f32 %v155, %v145
    %v160 = vmul.f32 %v156, %v134
    %v161 = vmul.f32 %v157, %v137
    %v162 = vmul.f32 %v158, %v142
    %v163 = vmul.f32 %v159, %v145
    %v164 = vadd.f32 %v134, %v160
    %v165 = vadd.f32 %v137, %v161
    %v166 = vadd.f32 %v142, %v162
    %v167 = vadd.f32 %v145, %v163
    %v168 = vmul.f32 %v164, 0.7978846
    %v169 = vmul.f32 %v165, 0.7978846
    %v170 = vmul.f32 %v166, 0.7978846
    %v171 = vmul.f32 %v167, 0.7978846
    %v172 = vtanh.pop %v168
    %v173 = vtanh.pop %v169
    %v174 = vtanh.pop %v170
    %v175 = vtanh.pop %v171
    %v176 = vadd.f32 %v172, 1.0
    %v177 = vadd.f32 %v173, 1.0
    %v178 = vadd.f32 %v174, 1.0
    %v179 = vadd.f32 %v175, 1.0
    %v180 = vmul.f32 %v148, %v176
    %v181 = vmul.f32 %v149, %v177
    %v182 = vmul.f32 %v150, %v178
    %v183 = vmul.f32 %v151, %v179
    %v184 = vpack.c.bf16 %v181, %v180
    %v185 = vpack.c.bf16 %v183, %v182
    %v188 = vunpack.c.l.b16 %v184
    %v189 = vunpack.c.h.b16 %v184
    %v190 = vunpack.c.l.b16 %v185
    %v191 = vunpack.c.h.b16 %v185
    %v192 = vpack.c.b16 %v188, %v188
    %v193 = vpack.c.b16 %v189, %v189
    %v194 = vpack.c.b16 %v190, %v190
    %v195 = vpack.c.b16 %v191, %v191
    %200 = vst [vmem:[#allocation8] sm:$0xf] %v192
    %201 = vst [vmem:[#allocation8 + $0x4] sm:$0xf] %v193
    %202 = vst [vmem:[#allocation8 + $0x8] sm:$0xf] %v194
    %203 = vst [vmem:[#allocation8 + $0xc] sm:$0xf] %v195
    // Predicated region
    $region26: #{_lambda_.42} parent=1 // pred_check
      _
    $region27: #{_lambda_.42} parent=1 // pred_check_branch
      %205 = sbr.rel (0) target = $region29
    $region28: #{_lambda_.42} parent=1 // pred_region
      %s207 = ssub.s32 256, 256
      %208 = vsyncadd [#allocation4], %s207
      %s209 = sshll.u32 [#allocation8], 4
      %s210 = int_to_ptr.vmem [resolvable:$true] %s209
      %215 = dma.vmem_to_hbm [thread:$0]  %s210, 256, %s3, [#allocation4], 64, 64, 4
    $region29: #{_lambda_.42} parent=1 // pred_fallthru
      _
    // Predicated region
    $region30: #{_lambda_.42} parent=1 // pred_check
      _
    $region31: #{_lambda_.42} parent=1 // pred_check_branch
      %217 = sbr.rel (0) target = $region33
    $region32: #{_lambda_.42} parent=1 // pred_region
      %218 = dma.done [#allocation4], 256
    $region33: #{_lambda_.42} parent=1 // pred_fallthru
      _
    %219 = vsyncpa [#allocation3], 1
    %220 = vsyncpa [#allocation6], 1
    %221 = vsyncpa [#allocation4], 1

// kernel: _lambda_.39
$region0: #{_lambda_.39}
  #allocation0 [shape = 'u32[]', space=smem, size = 0x4, offset = 0x4, fixed_abs, tag = 'smem constant byte address 0x4 - core index']
  #allocation1 [shape = 'u32[144,128]{1,0:T(1,128)}', space=vmem, size = 0x12000, scoped, tag = 'internal scratch']
  %s0 = inlined_call_operand.hbm [shape: bf16[8,4,96], index: 0, kind: input, shape index: {}]
  %s1 = inlined_call_operand.hbm [shape: f32[2,1,4,4], index: 1, kind: input, shape index: {}]
  %s2 = inlined_call_operand.hbm [shape: bf16[8,4,32], index: 2, kind: output, shape index: {}]
  %s3 = sld [smem:[#allocation0]]
  $region49: #{_lambda_.39} parent=0
    _
  %s5 = ssub.s32 1, %s3
  %s6 = scalar_select 0, %s5, %s3
  $region1: #{_lambda_.39} parent=0
    #allocation2 [shape = 'u8[8192]{0}', space=vmem, size = 0x2000, scoped, tag = 'input window, operand 0']
    #allocation3 [shape = 's32[2]{0}', space=sflag, size = 0x8, scoped, tag = 'scoped memory for _lambda_.39']
    #allocation4 [shape = 's32[2]{0}', space=sflag, size = 0x8, scoped, tag = 'scoped memory for _lambda_.39']
    #allocation5 [shape = 'u8[4096]{0}', space=vmem, size = 0x1000, scoped, tag = 'input window, operand 1, single buffered']
    #allocation6 [shape = 's32[1]{0}', space=sflag, size = 0x4, scoped, tag = 'scoped memory for _lambda_.39']
    #allocation7 [shape = 'u8[8192]{0}', space=vmem, size = 0x2000, scoped, tag = 'output window, operand 0']
    %7 = vsyncpa [#allocation3], 0
    %s8 = scalar_lea.sflag [#allocation3], 1
    %9 = vsyncpa %s8, 0
    %10 = vsyncpa [#allocation6], 0
    %11 = vsyncpa [#allocation4], 0
    %s12 = scalar_lea.sflag [#allocation4], 1
    %13 = vsyncpa %s12, 0
    loop: start=0, step=1, limit=4
    $region2: #{_lambda_.39} parent=1 // loop_pre_header
      _
    $region3: #{_lambda_.39} parent=1 // loop_header
      %s15 = sphi 0, %s19
      %p16 = scmp.ge.s32.totalorder %s15, 4
      %s25 = sphi 0, %s27
      %s28 = sphi 0, %s25
      %s29 = sphi 0, %s28
      %s45 = sphi 0, %s29
      %s49 = sphi 0, %s49
      %s51 = sphi 0, %s49
      %s52 = sphi 0, %s51
      %s66 = sphi 0, %s52
      %s72 = sphi 0, %s74
      %s75 = sphi 0, %s72
      %s76 = sphi 0, %s75
      %s92 = sphi 0, %s76
    $region4: #{_lambda_.39} parent=1 // loop_header_branch
      %18 = sbr.rel (%p16) target = $region8
    $region5: #{_lambda_.39} parent=1 // loop_body
      %s20 = ssub.s32 %s15, 1
      %s21 = ssub.s32 %s15, 2
      %s22 = sadd.s32 %s15, 1
      %s23 = ssub.s32 %s15, %s22
      %p24 = scmp.eq.s32.totalorder %s23, 0
      %s26 = sadd.s32 %s25, 1
      %s27 = scalar_select %p24, %s25, %s26
      %p30 = pneg %p24
      %p31 = scmp.eq.s32.totalorder %s15, 1
      %p32 = por %p30, %p31
      %p33 = scmp.ne.s32.totalorder %s25, %s28
      %p34 = scmp.eq.s32.totalorder %s15, 0
      %p35 = por %p33, %p34
      %p36 = scmp.ne.s32.totalorder %s25, %s28
      %p37 = scmp.eq.s32.totalorder %s20, 1
      %p38 = por %p36, %p37
      %p39 = scmp.ne.s32.totalorder %s28, %s29
      %p40 = scmp.eq.s32.totalorder %s20, 0
      %p41 = por %p39, %p40
      %p42 = scmp.ne.s32.totalorder %s28, %s29
      %p43 = scmp.eq.s32.totalorder %s21, 1
      %p44 = por %p42, %p43
      %p46 = scmp.ne.s32.totalorder %s29, %s45
      %p47 = scmp.eq.s32.totalorder %s21, 0
      %p48 = por %p46, %p47
      %s50 = sadd.s32 %s49, 1
      %p53 = scmp.eq.s32.totalorder %s15, 1
      %p54 = scmp.ne.s32.totalorder %s49, %s51
      %p55 = scmp.eq.s32.totalorder %s15, 0
      %p56 = por %p54, %p55
      %p57 = scmp.ne.s32.totalorder %s49, %s51
      %p58 = scmp.eq.s32.totalorder %s20, 1
      %p59 = por %p57, %p58
      %p60 = scmp.ne.s32.totalorder %s51, %s52
      %p61 = scmp.eq.s32.totalorder %s20, 0
      %p62 = por %p60, %p61
      %p63 = scmp.ne.s32.totalorder %s51, %s52
      %p64 = scmp.eq.s32.totalorder %s21, 1
      %p65 = por %p63, %p64
      %p67 = scmp.ne.s32.totalorder %s52, %s66
      %p68 = scmp.eq.s32.totalorder %s21, 0
      %p69 = por %p67, %p68
      %s70 = ssub.s32 %s15, %s22
      %p71 = scmp.eq.s32.totalorder %s70, 0
      %s73 = sadd.s32 %s72, 1
      %s74 = scalar_select %p71, %s72, %s73
      %p77 = pneg %p71
      %p78 = scmp.eq.s32.totalorder %s15, 1
      %p79 = por %p77, %p78
      %p80 = scmp.ne.s32.totalorder %s72, %s75
      %p81 = scmp.eq.s32.totalorder %s15, 0
      %p82 = por %p80, %p81
      %p83 = scmp.ne.s32.totalorder %s72, %s75
      %p84 = scmp.eq.s32.totalorder %s20, 1
      %p85 = por %p83, %p84
      %p86 = scmp.ne.s32.totalorder %s75, %s76
      %p87 = scmp.eq.s32.totalorder %s20, 0
      %p88 = por %p86, %p87
      %p89 = scmp.ne.s32.totalorder %s75, %s76
      %p90 = scmp.eq.s32.totalorder %s21, 1
      %p91 = por %p89, %p90
      %p93 = scmp.ne.s32.totalorder %s76, %s92
      %p94 = scmp.eq.s32.totalorder %s21, 0
      %p95 = por %p93, %p94
      %p96 = scmp.le.s32.totalorder 1, %s15
      %p97 = scmp.lt.s32.totalorder %s15, 3
      %p98 = pnand %p96, %p97
      %p99 = pneg %p98
      // Predicated region
      $region9: #{_lambda_.39} parent=5 // pred_check
        _
      $region10: #{_lambda_.39} parent=5 // pred_check_branch
        %101 = sbr.rel (%p98) target = $region12
      $region11: #{_lambda_.39} parent=5 // pred_region
        %s102 = ssub.s32 %s15, 1
        // Predicated region
        $region13: #{_lambda_.39} parent=11 // pred_check
          %p103 = pneg %p62
        $region14: #{_lambda_.39} parent=11 // pred_check_branch
          %105 = sbr.rel (%p103) target = $region16
        $region15: #{_lambda_.39} parent=11 // pred_region
          %s107 = ssub.s32 128, 128
          %108 = vsyncadd [#allocation6], %s107
          %s109 = sshll.u32 [#allocation5], 4
          %s110 = int_to_ptr.vmem [resolvable:$true] %s109
          %115 = dma.hbm_to_vmem [thread:$0]  %s1, 128, %s110, [#allocation6], 64, 64, 4
        $region16: #{_lambda_.39} parent=11 // pred_fallthru
          _
      $region12: #{_lambda_.39} parent=5 // pred_fallthru
        _
      %p116 = scmp.lt.s32.totalorder %s15, 2
      // Predicated region
      $region17: #{_lambda_.39} parent=5 // pred_check
        %p117 = pneg %p116
      $region18: #{_lambda_.39} parent=5 // pred_check_branch
        %119 = sbr.rel (%p117) target = $region20
      $region19: #{_lambda_.39} parent=5 // pred_region
        // Predicated region
        $region21: #{_lambda_.39} parent=19 // pred_check
          %p120 = pneg %p35
        $region22: #{_lambda_.39} parent=19 // pred_check_branch
          %122 = sbr.rel (%p120) target = $region24
        $region23: #{_lambda_.39} parent=19 // pred_region
          %s123 = sand.u32 %s25, 1
          %s124 = scalar_lea.sflag [#allocation3], %s123
          %s125 = sand.u32 %s25, 1
          %s126 = smul.addr %s125, 8
          %s127 = scalar_lea.vmem [#allocation2], %s126
          %s128 = smul.u32 4, %s15
          %s130 = ssub.s32 128, 128
          %131 = vsyncadd %s124, %s130
          %s132 = smul.addr %s128, 32
          %s133 = scalar_lea.hbm %s0, %s132
          %s134 = sshll.u32 %s127, 4
          %s135 = int_to_ptr.vmem [resolvable:$true] %s134
          %140 = dma.hbm_to_vmem [thread:$0]  %s133, 128, %s135, %s124, 32, 32, 2
        $region24: #{_lambda_.39} parent=19 // pred_fallthru
          _
      $region20: #{_lambda_.39} parent=5 // pred_fallthru
        _
      %p141 = scmp.le.s32.totalorder 1, %s15
      %p142 = scmp.lt.s32.totalorder %s15, 3
      %p143 = pnand %p141, %p142
      %p144 = pneg %p143
      // Predicated region
      $region25: #{_lambda_.39} parent=5 // pred_check
        _
      $region26: #{_lambda_.39} parent=5 // pred_check_branch
        %146 = sbr.rel (%p143) target = $region28
      $region27: #{_lambda_.39} parent=5 // pred_region
        %s147 = ssub.s32 %s15, 1
        %s148 = sand.u32 %s28, 1
        %s149 = scalar_lea.sflag [#allocation3], %s148
        %s150 = sand.u32 %s28, 1
        %s151 = smul.addr %s150, 8
        %s152 = scalar_lea.vmem [#allocation2], %s151
        // Predicated region
        $region29: #{_lambda_.39} parent=27 // pred_check
          %p153 = pneg %p41
        $region30: #{_lambda_.39} parent=27 // pred_check_branch
          %155 = sbr.rel (%p153) target = $region32
        $region31: #{_lambda_.39} parent=27 // pred_region
          %156 = dma.done %s149, 128
        $region32: #{_lambda_.39} parent=27 // pred_fallthru
          _
        // Predicated region
        $region33: #{_lambda_.39} parent=27 // pred_check
          %p157 = pneg %p62
        $region34: #{_lambda_.39} parent=27 // pred_check_branch
          %159 = sbr.rel (%p157) target = $region36
        $region35: #{_lambda_.39} parent=27 // pred_region
          %160 = dma.done [#allocation6], 128
        $region36: #{_lambda_.39} parent=27 // pred_fallthru
          _
        %s161 = sand.u32 %s28, 1
        %s162 = scalar_lea.sflag [#allocation3], %s161
        %s163 = sand.u32 %s28, 1
        %s164 = smul.addr %s163, 8
        %s165 = scalar_lea.vmem [#allocation2], %s164
        %p166 = pneg %p41
        %p167 = pneg %p38
        %p168 = pneg %p62
        %p169 = pneg %p59
        %p170 = pneg %p88
        %p171 = pneg %p85
        %s172 = sand.u32 %s75, 1
        %s173 = scalar_lea.sflag [#allocation4], %s172
        %s174 = sand.u32 %s75, 1
        %s175 = smul.addr %s174, 8
        %s176 = scalar_lea.vmem [#allocation7], %s175
        %s177 = smul.u32 4, %s20
        %s178 = smul.u32 4, %s20
        %v180 = vld [vmem:[%s152] sm:$0x3]
        %v181 = vld [vmem:[%s152 + $0x2] sm:$0x3]
        %v182 = vld [vmem:[%s152 + $0x4] sm:$0x3]
        %v183 = vld [vmem:[%s152 + $0x6] sm:$0x3]
        %v186 = vunpack.c.l.s4 1983009808
        %v187 = vunpack.c.0.s8 %v186
        %v188 = vlaneseq
        %v189 = vshrl.u32 %v188, 7
        %v190 = vsub.s32 %v187, %v189
        %v191 = vrot.slane %v180, %v190
        %192 = vrot.lane.b32.xlu0 %v191, 96
        %v193 = vpop.permute.xlu0 %192
        %vm194 = vcmask 130048
        %v196 = vsel %vm194, %v180, 0
        %v199 = vsel %vm194, %v193, 0
        %201 = vmatprep.subr.bf16.mxu0 0
        %202 = vmatpush1.bf16.xpose.msra.mxu0 %v199
        %203 = vmatprep.subr.bf16.mxu0 0
        %204 = vmatpush1.bf16.xpose.msra.mxu0 0
        %205 = vmatprep.subr.bf16.mxu0 0
        %206 = vmatpush1.bf16.xpose.msra.mxu0 0
        %207 = vmatprep.subr.bf16.mxu0 0
        %208 = vmatpush1.bf16.xpose.msra.mxu0 0
        %209 = vmatprep.subr.bf16.mxu0 0
        %210 = vmatpush1.bf16.xpose.msra.mxu0 0
        %211 = vmatprep.subr.bf16.mxu0 0
        %212 = vmatpush1.bf16.xpose.msra.mxu0 0
        %213 = vmatprep.subr.bf16.mxu0 0
        %214 = vmatpush1.bf16.xpose.msra.mxu0 0
        %215 = vmatprep.subr.bf16.mxu0 0
        %216 = vmatpush1.bf16.xpose.msra.mxu0 0
        %217 = vmatprep.subr.bf16.mxu0 0
        %218 = vmatpush1.bf16.xpose.msra.mxu0 0
        %219 = vmatprep.subr.bf16.mxu0 0
        %220 = vmatpush1.bf16.xpose.msra.mxu0 0
        %221 = vmatprep.subr.bf16.mxu0 0
        %222 = vmatpush1.bf16.xpose.msra.mxu0 0
        %223 = vmatprep.subr.bf16.mxu0 0
        %224 = vmatpush1.bf16.xpose.msra.mxu0 0
        %225 = vmatprep.subr.bf16.mxu0 0
        %226 = vmatpush1.bf16.xpose.msra.mxu0 0
        %227 = vmatprep.subr.bf16.mxu0 0
        %228 = vmatpush1.bf16.xpose.msra.mxu0 0
        %229 = vmatprep.subr.bf16.mxu0 0
        %230 = vmatpush1.bf16.xpose.msra.mxu0 0
        %231 = vmatprep.subr.bf16.mxu0 0
        %232 = vmatpush1.bf16.xpose.msra.mxu0 0
        %233 = vmatprep.mubr.bf16.mxu0 0
        %234 = vmatmul.mubr.bf16.gmra.mrb[0].mxu0 %v196
        %v235 = vpop.f32.mrb[0].mxu0
        %v236 = vadd.f32 0.0, %v235
        %v237 = vpop.f32.mrb[0].mxu0
        %v238 = vpop.f32.mrb[0].mxu0
        %v239 = vpop.f32.mrb[0].mxu0
        %240 = vdwg.mxu0
        %v243 = vunpack.c.l.s4 1983009808
        %v244 = vunpack.c.0.s8 %v243
        %v245 = vlaneseq
        %v246 = vshrl.u32 %v245, 7
        %v247 = vsub.s32 %v244, %v246
        %v248 = vrot.slane %v181, %v247
        %249 = vrot.lane.b32.xlu0 %v248, 96
        %v250 = vpop.permute.xlu0 %249
        %v252 = vsel %vm194, %v181, 0
        %v255 = vsel %vm194, %v250, 0
        %257 = vmatprep.subr.bf16.mxu0 0
        %258 = vmatpush1.bf16.xpose.msra.mxu0 %v255
        %259 = vmatprep.subr.bf16.mxu0 0
        %260 = vmatpush1.bf16.xpose.msra.mxu0 0
        %261 = vmatprep.subr.bf16.mxu0 0
        %262 = vmatpush1.bf16.xpose.msra.mxu0 0
        %263 = vmatprep.subr.bf16.mxu0 0
        %264 = vmatpush1.bf16.xpose.msra.mxu0 0
        %265 = vmatprep.subr.bf16.mxu0 0
        %266 = vmatpush1.bf16.xpose.msra.mxu0 0
        %267 = vmatprep.subr.bf16.mxu0 0
        %268 = vmatpush1.bf16.xpose.msra.mxu0 0
        %269 = vmatprep.subr.bf16.mxu0 0
        %270 = vmatpush1.bf16.xpose.msra.mxu0 0
        %271 = vmatprep.subr.bf16.mxu0 0
        %272 = vmatpush1.bf16.xpose.msra.mxu0 0
        %273 = vmatprep.subr.bf16.mxu0 0
        %274 = vmatpush1.bf16.xpose.msra.mxu0 0
        %275 = vmatprep.subr.bf16.mxu0 0
        %276 = vmatpush1.bf16.xpose.msra.mxu0 0
        %277 = vmatprep.subr.bf16.mxu0 0
        %278 = vmatpush1.bf16.xpose.msra.mxu0 0
        %279 = vmatprep.subr.bf16.mxu0 0
        %280 = vmatpush1.bf16.xpose.msra.mxu0 0
        %281 = vmatprep.subr.bf16.mxu0 0
        %282 = vmatpush1.bf16.xpose.msra.mxu0 0
        %283 = vmatprep.subr.bf16.mxu0 0
        %284 = vmatpush1.bf16.xpose.msra.mxu0 0
        %285 = vmatprep.subr.bf16.mxu0 0
        %286 = vmatpush1.bf16.xpose.msra.mxu0 0
        %287 = vmatprep.subr.bf16.mxu0 0
        %288 = vmatpush1.bf16.xpose.msra.mxu0 0
        %289 = vmatprep.mubr.bf16.mxu0 0
        %290 = vmatmul.mubr.bf16.gmra.mrb[0].mxu0 %v252
        %v291 = vpop.f32.mrb[0].mxu0
        %v292 = vadd.f32 0.0, %v291
        %v293 = vpop.f32.mrb[0].mxu0
        %v294 = vpop.f32.mrb[0].mxu0
        %v295 = vpop.f32.mrb[0].mxu0
        %296 = vdwg.mxu0
        %v299 = vunpack.c.l.s4 1983009808
        %v300 = vunpack.c.0.s8 %v299
        %v301 = vlaneseq
        %v302 = vshrl.u32 %v301, 7
        %v303 = vsub.s32 %v300, %v302
        %v304 = vrot.slane %v182, %v303
        %305 = vrot.lane.b32.xlu0 %v304, 96
        %v306 = vpop.permute.xlu0 %305
        %v308 = vsel %vm194, %v182, 0
        %v311 = vsel %vm194, %v306, 0
        %313 = vmatprep.subr.bf16.mxu0 0
        %314 = vmatpush1.bf16.xpose.msra.mxu0 %v311
        %315 = vmatprep.subr.bf16.mxu0 0
        %316 = vmatpush1.bf16.xpose.msra.mxu0 0
        %317 = vmatprep.subr.bf16.mxu0 0
        %318 = vmatpush1.bf16.xpose.msra.mxu0 0
        %319 = vmatprep.subr.bf16.mxu0 0
        %320 = vmatpush1.bf16.xpose.msra.mxu0 0
        %321 = vmatprep.subr.bf16.mxu0 0
        %322 = vmatpush1.bf16.xpose.msra.mxu0 0
        %323 = vmatprep.subr.bf16.mxu0 0
        %324 = vmatpush1.bf16.xpose.msra.mxu0 0
        %325 = vmatprep.subr.bf16.mxu0 0
        %326 = vmatpush1.bf16.xpose.msra.mxu0 0
        %327 = vmatprep.subr.bf16.mxu0 0
        %328 = vmatpush1.bf16.xpose.msra.mxu0 0
        %329 = vmatprep.subr.bf16.mxu0 0
        %330 = vmatpush1.bf16.xpose.msra.mxu0 0
        %331 = vmatprep.subr.bf16.mxu0 0
        %332 = vmatpush1.bf16.xpose.msra.mxu0 0
        %333 = vmatprep.subr.bf16.mxu0 0
        %334 = vmatpush1.bf16.xpose.msra.mxu0 0
        %335 = vmatprep.subr.bf16.mxu0 0
        %336 = vmatpush1.bf16.xpose.msra.mxu0 0
        %337 = vmatprep.subr.bf16.mxu0 0
        %338 = vmatpush1.bf16.xpose.msra.mxu0 0
        %339 = vmatprep.subr.bf16.mxu0 0
        %340 = vmatpush1.bf16.xpose.msra.mxu0 0
        %341 = vmatprep.subr.bf16.mxu0 0
        %342 = vmatpush1.bf16.xpose.msra.mxu0 0
        %343 = vmatprep.subr.bf16.mxu0 0
        %344 = vmatpush1.bf16.xpose.msra.mxu0 0
        %345 = vmatprep.mubr.bf16.mxu0 0
        %346 = vmatmul.mubr.bf16.gmra.mrb[0].mxu0 %v308
        %v347 = vpop.f32.mrb[0].mxu0
        %v348 = vadd.f32 0.0, %v347
        %v349 = vpop.f32.mrb[0].mxu0
        %v350 = vpop.f32.mrb[0].mxu0
        %v351 = vpop.f32.mrb[0].mxu0
        %352 = vdwg.mxu0
        %v355 = vunpack.c.l.s4 1983009808
        %v356 = vunpack.c.0.s8 %v355
        %v357 = vlaneseq
        %v358 = vshrl.u32 %v357, 7
        %v359 = vsub.s32 %v356, %v358
        %v360 = vrot.slane %v183, %v359
        %361 = vrot.lane.b32.xlu0 %v360, 96
        %v362 = vpop.permute.xlu0 %361
        %v364 = vsel %vm194, %v183, 0
        %v367 = vsel %vm194, %v362, 0
        %369 = vmatprep.subr.bf16.mxu0 0
        %370 = vmatpush1.bf16.xpose.msra.mxu0 %v367
        %371 = vmatprep.subr.bf16.mxu0 0
        %372 = vmatpush1.bf16.xpose.msra.mxu0 0
        %373 = vmatprep.subr.bf16.mxu0 0
        %374 = vmatpush1.bf16.xpose.msra.mxu0 0
        %375 = vmatprep.subr.bf16.mxu0 0
        %376 = vmatpush1.bf16.xpose.msra.mxu0 0
        %377 = vmatprep.subr.bf16.mxu0 0
        %378 = vmatpush1.bf16.xpose.msra.mxu0 0
        %379 = vmatprep.subr.bf16.mxu0 0
        %380 = vmatpush1.bf16.xpose.msra.mxu0 0
        %381 = vmatprep.subr.bf16.mxu0 0
        %382 = vmatpush1.bf16.xpose.msra.mxu0 0
        %383 = vmatprep.subr.bf16.mxu0 0
        %384 = vmatpush1.bf16.xpose.msra.mxu0 0
        %385 = vmatprep.subr.bf16.mxu0 0
        %386 = vmatpush1.bf16.xpose.msra.mxu0 0
        %387 = vmatprep.subr.bf16.mxu0 0
        %388 = vmatpush1.bf16.xpose.msra.mxu0 0
        %389 = vmatprep.subr.bf16.mxu0 0
        %390 = vmatpush1.bf16.xpose.msra.mxu0 0
        %391 = vmatprep.subr.bf16.mxu0 0
        %392 = vmatpush1.bf16.xpose.msra.mxu0 0
        %393 = vmatprep.subr.bf16.mxu0 0
        %394 = vmatpush1.bf16.xpose.msra.mxu0 0
        %395 = vmatprep.subr.bf16.mxu0 0
        %396 = vmatpush1.bf16.xpose.msra.mxu0 0
        %397 = vmatprep.subr.bf16.mxu0 0
        %398 = vmatpush1.bf16.xpose.msra.mxu0 0
        %399 = vmatprep.subr.bf16.mxu0 0
        %400 = vmatpush1.bf16.xpose.msra.mxu0 0
        %401 = vmatprep.mubr.bf16.mxu0 0
        %402 = vmatmul.mubr.bf16.gmra.mrb[0].mxu0 %v364
        %v403 = vpop.f32.mrb[0].mxu0
        %v404 = vadd.f32 0.0, %v403
        %v405 = vpop.f32.mrb[0].mxu0
        %v406 = vpop.f32.mrb[0].mxu0
        %v407 = vpop.f32.mrb[0].mxu0
        %408 = vdwg.mxu0
        %v409 = vmul.f32 %v236, 0.25
        %v410 = vmul.f32 %v292, 0.25
        %v411 = vmul.f32 %v348, 0.25
        %v412 = vmul.f32 %v404, 0.25
        %v413 = vld [vmem:[#allocation5] sm:$0xf]
        %v414 = vadd.f32 %v409, %v413
        %v415 = vadd.f32 %v410, %v413
        %v416 = vadd.f32 %v411, %v413
        %v417 = vadd.f32 %v412, %v413
        %vm418 = vcmask 27648
        %v419 = vsel %vm418, %v414, -inf
        %420 = vmax.xlane.f32.xlu0 %v419
        %v421 = vpop.xlane.xlu0 %420
        %v422 = vsel %vm418, %v415, -inf
        %423 = vmax.xlane.f32.xlu0 %v422
        %v424 = vpop.xlane.xlu0 %423
        %v425 = vsel %vm418, %v416, -inf
        %426 = vmax.xlane.f32.xlu0 %v425
        %v427 = vpop.xlane.xlu0 %426
        %v428 = vsel %vm418, %v417, -inf
        %429 = vmax.xlane.f32.xlu0 %v428
        %v430 = vpop.xlane.xlu0 %429
        %v431 = vsub.f32 %v414, %v421
        %v432 = vsub.f32 %v415, %v424
        %v433 = vsub.f32 %v416, %v427
        %v434 = vsub.f32 %v417, %v430
        %v435 = vmul.f32 %v431, 1.442695
        %v436 = vpow.pop %v435
        %v437 = vmul.f32 %v432, 1.442695
        %v438 = vpow.pop %v437
        %v439 = vmul.f32 %v433, 1.442695
        %v440 = vpow.pop %v439
        %v441 = vmul.f32 %v434, 1.442695
        %v442 = vpow.pop %v441
        %v443 = vsel %vm418, %v436, 0.0
        %444 = vadd.xlane.f32.xlu0 %v443
        %v445 = vpop.xlane.xlu0 %444
        %v446 = vsel %vm418, %v438, 0.0
        %447 = vadd.xlane.f32.xlu0 %v446
        %v448 = vpop.xlane.xlu0 %447
        %v449 = vsel %vm418, %v440, 0.0
        %450 = vadd.xlane.f32.xlu0 %v449
        %v451 = vpop.xlane.xlu0 %450
        %v452 = vsel %vm418, %v442, 0.0
        %453 = vadd.xlane.f32.xlu0 %v452
        %v454 = vpop.xlane.xlu0 %453
        %v455 = vrcp.pop %v445
        %v456 = vrcp.pop %v448
        %v457 = vrcp.pop %v451
        %v458 = vrcp.pop %v454
        %v459 = vmul.f32 %v436, %v455
        %v460 = vmul.f32 %v438, %v456
        %v461 = vmul.f32 %v440, %v457
        %v462 = vmul.f32 %v442, %v458
        %v463 = vpack.c.bf16 %v459, %v459
        %v464 = vpack.c.bf16 %v460, %v460
        %v465 = vpack.c.bf16 %v461, %v461
        %v466 = vpack.c.bf16 %v462, %v462
        %467 = vrot.lane.b32.xlu0 %v191, 64
        %v468 = vpop.permute.xlu0 %467
        %vm469 = vcmask 31744
        %v471 = vsel %vm469, %v463, 0
        %vm473 = vcmask 1041408
        %v475 = vsel %vm473, %v468, 0
        %477 = vmatprep.subr.bf16.mxu0 0
        %478 = vmatpush1.bf16.msra.mxu0 %v475
        %479 = vmatprep.subr.bf16.mxu0 0
        %480 = vmatpush1.bf16.msra.mxu0 0
        %481 = vmatprep.subr.bf16.mxu0 0
        %482 = vmatpush1.bf16.msra.mxu0 0
        %483 = vmatprep.subr.bf16.mxu0 0
        %484 = vmatpush1.bf16.msra.mxu0 0
        %485 = vmatprep.subr.bf16.mxu0 0
        %486 = vmatpush1.bf16.msra.mxu0 0
        %487 = vmatprep.subr.bf16.mxu0 0
        %488 = vmatpush1.bf16.msra.mxu0 0
        %489 = vmatprep.subr.bf16.mxu0 0
        %490 = vmatpush1.bf16.msra.mxu0 0
        %491 = vmatprep.subr.bf16.mxu0 0
        %492 = vmatpush1.bf16.msra.mxu0 0
        %493 = vmatprep.subr.bf16.mxu0 0
        %494 = vmatpush1.bf16.msra.mxu0 0
        %495 = vmatprep.subr.bf16.mxu0 0
        %496 = vmatpush1.bf16.msra.mxu0 0
        %497 = vmatprep.subr.bf16.mxu0 0
        %498 = vmatpush1.bf16.msra.mxu0 0
        %499 = vmatprep.subr.bf16.mxu0 0
        %500 = vmatpush1.bf16.msra.mxu0 0
        %501 = vmatprep.subr.bf16.mxu0 0
        %502 = vmatpush1.bf16.msra.mxu0 0
        %503 = vmatprep.subr.bf16.mxu0 0
        %504 = vmatpush1.bf16.msra.mxu0 0
        %505 = vmatprep.subr.bf16.mxu0 0
        %506 = vmatpush1.bf16.msra.mxu0 0
        %507 = vmatprep.subr.bf16.mxu0 0
        %508 = vmatpush1.bf16.msra.mxu0 0
        %509 = vmatprep.mubr.bf16.mxu0 0
        %510 = vmatmul.mubr.bf16.gmra.mrb[0].mxu0 %v471
        %v511 = vpop.f32.mrb[0].mxu0
        %v512 = vadd.f32 0.0, %v511
        %v513 = vpop.f32.mrb[0].mxu0
        %v514 = vpop.f32.mrb[0].mxu0
        %v515 = vpop.f32.mrb[0].mxu0
        %516 = vdwg.mxu0
        %517 = vrot.lane.b32.xlu0 %v248, 64
        %v518 = vpop.permute.xlu0 %517
        %v520 = vsel %vm469, %v464, 0
        %v523 = vsel %vm473, %v518, 0
        %525 = vmatprep.subr.bf16.mxu0 0
        %526 = vmatpush1.bf16.msra.mxu0 %v523
        %527 = vmatprep.subr.bf16.mxu0 0
        %528 = vmatpush1.bf16.msra.mxu0 0
        %529 = vmatprep.subr.bf16.mxu0 0
        %530 = vmatpush1.bf16.msra.mxu0 0
        %531 = vmatprep.subr.bf16.mxu0 0
        %532 = vmatpush1.bf16.msra.mxu0 0
        %533 = vmatprep.subr.bf16.mxu0 0
        %534 = vmatpush1.bf16.msra.mxu0 0
        %535 = vmatprep.subr.bf16.mxu0 0
        %536 = vmatpush1.bf16.msra.mxu0 0
        %537 = vmatprep.subr.bf16.mxu0 0
        %538 = vmatpush1.bf16.msra.mxu0 0
        %539 = vmatprep.subr.bf16.mxu0 0
        %540 = vmatpush1.bf16.msra.mxu0 0
        %541 = vmatprep.subr.bf16.mxu0 0
        %542 = vmatpush1.bf16.msra.mxu0 0
        %543 = vmatprep.subr.bf16.mxu0 0
        %544 = vmatpush1.bf16.msra.mxu0 0
        %545 = vmatprep.subr.bf16.mxu0 0
        %546 = vmatpush1.bf16.msra.mxu0 0
        %547 = vmatprep.subr.bf16.mxu0 0
        %548 = vmatpush1.bf16.msra.mxu0 0
        %549 = vmatprep.subr.bf16.mxu0 0
        %550 = vmatpush1.bf16.msra.mxu0 0
        %551 = vmatprep.subr.bf16.mxu0 0
        %552 = vmatpush1.bf16.msra.mxu0 0
        %553 = vmatprep.subr.bf16.mxu0 0
        %554 = vmatpush1.bf16.msra.mxu0 0
        %555 = vmatprep.subr.bf16.mxu0 0
        %556 = vmatpush1.bf16.msra.mxu0 0
        %557 = vmatprep.mubr.bf16.mxu0 0
        %558 = vmatmul.mubr.bf16.gmra.mrb[0].mxu0 %v520
        %v559 = vpop.f32.mrb[0].mxu0
        %v560 = vadd.f32 0.0, %v559
        %v561 = vpop.f32.mrb[0].mxu0
        %v562 = vpop.f32.mrb[0].mxu0
        %v563 = vpop.f32.mrb[0].mxu0
        %564 = vdwg.mxu0
        %565 = vrot.lane.b32.xlu0 %v304, 64
        %v566 = vpop.permute.xlu0 %565
        %v568 = vsel %vm469, %v465, 0
        %v571 = vsel %vm473, %v566, 0
        %573 = vmatprep.subr.bf16.mxu0 0
        %574 = vmatpush1.bf16.msra.mxu0 %v571
        %575 = vmatprep.subr.bf16.mxu0 0
        %576 = vmatpush1.bf16.msra.mxu0 0
        %577 = vmatprep.subr.bf16.mxu0 0
        %578 = vmatpush1.bf16.msra.mxu0 0
        %579 = vmatprep.subr.bf16.mxu0 0
        %580 = vmatpush1.bf16.msra.mxu0 0
        %581 = vmatprep.subr.bf16.mxu0 0
        %582 = vmatpush1.bf16.msra.mxu0 0
        %583 = vmatprep.subr.bf16.mxu0 0
        %584 = vmatpush1.bf16.msra.mxu0 0
        %585 = vmatprep.subr.bf16.mxu0 0
        %586 = vmatpush1.bf16.msra.mxu0 0
        %587 = vmatprep.subr.bf16.mxu0 0
        %588 = vmatpush1.bf16.msra.mxu0 0
        %589 = vmatprep.subr.bf16.mxu0 0
        %590 = vmatpush1.bf16.msra.mxu0 0
        %591 = vmatprep.subr.bf16.mxu0 0
        %592 = vmatpush1.bf16.msra.mxu0 0
        %593 = vmatprep.subr.bf16.mxu0 0
        %594 = vmatpush1.bf16.msra.mxu0 0
        %595 = vmatprep.subr.bf16.mxu0 0
        %596 = vmatpush1.bf16.msra.mxu0 0
        %597 = vmatprep.subr.bf16.mxu0 0
        %598 = vmatpush1.bf16.msra.mxu0 0
        %599 = vmatprep.subr.bf16.mxu0 0
        %600 = vmatpush1.bf16.msra.mxu0 0
        %601 = vmatprep.subr.bf16.mxu0 0
        %602 = vmatpush1.bf16.msra.mxu0 0
        %603 = vmatprep.subr.bf16.mxu0 0
        %604 = vmatpush1.bf16.msra.mxu0 0
        %605 = vmatprep.mubr.bf16.mxu0 0
        %606 = vmatmul.mubr.bf16.gmra.mrb[0].mxu0 %v568
        %v607 = vpop.f32.mrb[0].mxu0
        %v608 = vadd.f32 0.0, %v607
        %v609 = vpop.f32.mrb[0].mxu0
        %v610 = vpop.f32.mrb[0].mxu0
        %v611 = vpop.f32.mrb[0].mxu0
        %612 = vdwg.mxu0
        %613 = vrot.lane.b32.xlu0 %v360, 64
        %v614 = vpop.permute.xlu0 %613
        %v616 = vsel %vm469, %v466, 0
        %v619 = vsel %vm473, %v614, 0
        %621 = vmatprep.subr.bf16.mxu0 0
        %622 = vmatpush1.bf16.msra.mxu0 %v619
        %623 = vmatprep.subr.bf16.mxu0 0
        %624 = vmatpush1.bf16.msra.mxu0 0
        %625 = vmatprep.subr.bf16.mxu0 0
        %626 = vmatpush1.bf16.msra.mxu0 0
        %627 = vmatprep.subr.bf16.mxu0 0
        %628 = vmatpush1.bf16.msra.mxu0 0
        %629 = vmatprep.subr.bf16.mxu0 0
        %630 = vmatpush1.bf16.msra.mxu0 0
        %631 = vmatprep.subr.bf16.mxu0 0
        %632 = vmatpush1.bf16.msra.mxu0 0
        %633 = vmatprep.subr.bf16.mxu0 0
        %634 = vmatpush1.bf16.msra.mxu0 0
        %635 = vmatprep.subr.bf16.mxu0 0
        %636 = vmatpush1.bf16.msra.mxu0 0
        %637 = vmatprep.subr.bf16.mxu0 0
        %638 = vmatpush1.bf16.msra.mxu0 0
        %639 = vmatprep.subr.bf16.mxu0 0
        %640 = vmatpush1.bf16.msra.mxu0 0
        %641 = vmatprep.subr.bf16.mxu0 0
        %642 = vmatpush1.bf16.msra.mxu0 0
        %643 = vmatprep.subr.bf16.mxu0 0
        %644 = vmatpush1.bf16.msra.mxu0 0
        %645 = vmatprep.subr.bf16.mxu0 0
        %646 = vmatpush1.bf16.msra.mxu0 0
        %647 = vmatprep.subr.bf16.mxu0 0
        %648 = vmatpush1.bf16.msra.mxu0 0
        %649 = vmatprep.subr.bf16.mxu0 0
        %650 = vmatpush1.bf16.msra.mxu0 0
        %651 = vmatprep.subr.bf16.mxu0 0
        %652 = vmatpush1.bf16.msra.mxu0 0
        %653 = vmatprep.mubr.bf16.mxu0 0
        %654 = vmatmul.mubr.bf16.gmra.mrb[0].mxu0 %v616
        %v655 = vpop.f32.mrb[0].mxu0
        %v656 = vadd.f32 0.0, %v655
        %v657 = vpop.f32.mrb[0].mxu0
        %v658 = vpop.f32.mrb[0].mxu0
        %v659 = vpop.f32.mrb[0].mxu0
        %660 = vdwg.mxu0
        %v661 = vpack.c.bf16 %v512, %v512
        %v662 = vpack.c.bf16 %v560, %v560
        %v663 = vpack.c.bf16 %v608, %v608
        %v664 = vpack.c.bf16 %v656, %v656
        %vm665 = vcmask 123904
        %666 = vst.msk [vmem:[%s176] sm:$0x3] %vm665, %v661
        %667 = vst.msk [vmem:[%s176 + $0x2] sm:$0x3] %vm665, %v662
        %668 = vst.msk [vmem:[%s176 + $0x4] sm:$0x3] %vm665, %v663
        %669 = vst.msk [vmem:[%s176 + $0x6] sm:$0x3] %vm665, %v664
        %v670 = vld [vmem:[%s152] sm:$0x3]
        %v671 = vld [vmem:[%s152 + $0x2] sm:$0x3]
        %v672 = vld [vmem:[%s152 + $0x4] sm:$0x3]
        %v673 = vld [vmem:[%s152 + $0x6] sm:$0x3]
        %v676 = vunpack.c.l.s4 1983009808
        %v677 = vunpack.c.0.s8 %v676
        %v678 = vlaneseq
        %v679 = vshrl.u32 %v678, 7
        %v680 = vsub.s32 %v677, %v679
        %v681 = vrot.slane %v670, %v680
        %682 = vrot.lane.b32.xlu0 %v681, 112
        %v683 = vpop.permute.xlu0 %682
        %684 = vrot.lane.b32.xlu0 %v681, 80
        %v685 = vpop.permute.xlu0 %684
        %v687 = vsel %vm194, %v683, 0
        %v690 = vsel %vm194, %v685, 0
        %692 = vmatprep.subr.bf16.mxu0 0
        %693 = vmatpush1.bf16.xpose.msra.mxu0 %v690
        %694 = vmatprep.subr.bf16.mxu0 0
        %695 = vmatpush1.bf16.xpose.msra.mxu0 0
        %696 = vmatprep.subr.bf16.mxu0 0
        %697 = vmatpush1.bf16.xpose.msra.mxu0 0
        %698 = vmatprep.subr.bf16.mxu0 0
        %699 = vmatpush1.bf16.xpose.msra.mxu0 0
        %700 = vmatprep.subr.bf16.mxu0 0
        %701 = vmatpush1.bf16.xpose.msra.mxu0 0
        %702 = vmatprep.subr.bf16.mxu0 0
        %703 = vmatpush1.bf16.xpose.msra.mxu0 0
        %704 = vmatprep.subr.bf16.mxu0 0
        %705 = vmatpush1.bf16.xpose.msra.mxu0 0
        %706 = vmatprep.subr.bf16.mxu0 0
        %707 = vmatpush1.bf16.xpose.msra.mxu0 0
        %708 = vmatprep.subr.bf16.mxu0 0
        %709 = vmatpush1.bf16.xpose.msra.mxu0 0
        %710 = vmatprep.subr.bf16.mxu0 0
        %711 = vmatpush1.bf16.xpose.msra.mxu0 0
        %712 = vmatprep.subr.bf16.mxu0 0
        %713 = vmatpush1.bf16.xpose.msra.mxu0 0
        %714 = vmatprep.subr.bf16.mxu0 0
        %715 = vmatpush1.bf16.xpose.msra.mxu0 0
        %716 = vmatprep.subr.bf16.mxu0 0
        %717 = vmatpush1.bf16.xpose.msra.mxu0 0
        %718 = vmatprep.subr.bf16.mxu0 0
        %719 = vmatpush1.bf16.xpose.msra.mxu0 0
        %720 = vmatprep.subr.bf16.mxu0 0
        %721 = vmatpush1.bf16.xpose.msra.mxu0 0
        %722 = vmatprep.subr.bf16.mxu0 0
        %723 = vmatpush1.bf16.xpose.msra.mxu0 0
        %724 = vmatprep.mubr.bf16.mxu0 0
        %725 = vmatmul.mubr.bf16.gmra.mrb[0].mxu0 %v687
        %v726 = vpop.f32.mrb[0].mxu0
        %v727 = vadd.f32 0.0, %v726
        %v728 = vpop.f32.mrb[0].mxu0
        %v729 = vpop.f32.mrb[0].mxu0
        %v730 = vpop.f32.mrb[0].mxu0
        %731 = vdwg.mxu0
        %v734 = vunpack.c.l.s4 1983009808
        %v735 = vunpack.c.0.s8 %v734
        %v736 = vlaneseq
        %v737 = vshrl.u32 %v736, 7
        %v738 = vsub.s32 %v735, %v737
        %v739 = vrot.slane %v671, %v738
        %740 = vrot.lane.b32.xlu0 %v739, 112
        %v741 = vpop.permute.xlu0 %740
        %742 = vrot.lane.b32.xlu0 %v739, 80
        %v743 = vpop.permute.xlu0 %742
        %v745 = vsel %vm194, %v741, 0
        %v748 = vsel %vm194, %v743, 0
        %750 = vmatprep.subr.bf16.mxu0 0
        %751 = vmatpush1.bf16.xpose.msra.mxu0 %v748
        %752 = vmatprep.subr.bf16.mxu0 0
        %753 = vmatpush1.bf16.xpose.msra.mxu0 0
        %754 = vmatprep.subr.bf16.mxu0 0
        %755 = vmatpush1.bf16.xpose.msra.mxu0 0
        %756 = vmatprep.subr.bf16.mxu0 0
        %757 = vmatpush1.bf16.xpose.msra.mxu0 0
        %758 = vmatprep.subr.bf16.mxu0 0
        %759 = vmatpush1.bf16.xpose.msra.mxu0 0
        %760 = vmatprep.subr.bf16.mxu0 0
        %761 = vmatpush1.bf16.xpose.msra.mxu0 0
        %762 = vmatprep.subr.bf16.mxu0 0
        %763 = vmatpush1.bf16.xpose.msra.mxu0 0
        %764 = vmatprep.subr.bf16.mxu0 0
        %765 = vmatpush1.bf16.xpose.msra.mxu0 0
        %766 = vmatprep.subr.bf16.mxu0 0
        %767 = vmatpush1.bf16.xpose.msra.mxu0 0
        %768 = vmatprep.subr.bf16.mxu0 0
        %769 = vmatpush1.bf16.xpose.msra.mxu0 0
        %770 = vmatprep.subr.bf16.mxu0 0
        %771 = vmatpush1.bf16.xpose.msra.mxu0 0
        %772 = vmatprep.subr.bf16.mxu0 0
        %773 = vmatpush1.bf16.xpose.msra.mxu0 0
        %774 = vmatprep.subr.bf16.mxu0 0
        %775 = vmatpush1.bf16.xpose.msra.mxu0 0
        %776 = vmatprep.subr.bf16.mxu0 0
        %777 = vmatpush1.bf16.xpose.msra.mxu0 0
        %778 = vmatprep.subr.bf16.mxu0 0
        %779 = vmatpush1.bf16.xpose.msra.mxu0 0
        %780 = vmatprep.subr.bf16.mxu0 0
        %781 = vmatpush1.bf16.xpose.msra.mxu0 0
        %782 = vmatprep.mubr.bf16.mxu0 0
        %783 = vmatmul.mubr.bf16.gmra.mrb[0].mxu0 %v745
        %v784 = vpop.f32.mrb[0].mxu0
        %v785 = vadd.f32 0.0, %v784
        %v786 = vpop.f32.mrb[0].mxu0
        %v787 = vpop.f32.mrb[0].mxu0
        %v788 = vpop.f32.mrb[0].mxu0
        %789 = vdwg.mxu0
        %v792 = vunpack.c.l.s4 1983009808
        %v793 = vunpack.c.0.s8 %v792
        %v794 = vlaneseq
        %v795 = vshrl.u32 %v794, 7
        %v796 = vsub.s32 %v793, %v795
        %v797 = vrot.slane %v672, %v796
        %798 = vrot.lane.b32.xlu0 %v797, 112
        %v799 = vpop.permute.xlu0 %798
        %800 = vrot.lane.b32.xlu0 %v797, 80
        %v801 = vpop.permute.xlu0 %800
        %v803 = vsel %vm194, %v799, 0
        %v806 = vsel %vm194, %v801, 0
        %808 = vmatprep.subr.bf16.mxu0 0
        %809 = vmatpush1.bf16.xpose.msra.mxu0 %v806
        %810 = vmatprep.subr.bf16.mxu0 0
        %811 = vmatpush1.bf16.xpose.msra.mxu0 0
        %812 = vmatprep.subr.bf16.mxu0 0
        %813 = vmatpush1.bf16.xpose.msra.mxu0 0
        %814 = vmatprep.subr.bf16.mxu0 0
        %815 = vmatpush1.bf16.xpose.msra.mxu0 0
        %816 = vmatprep.subr.bf16.mxu0 0
        %817 = vmatpush1.bf16.xpose.msra.mxu0 0
        %818 = vmatprep.subr.bf16.mxu0 0
        %819 = vmatpush1.bf16.xpose.msra.mxu0 0
        %820 = vmatprep.subr.bf16.mxu0 0
        %821 = vmatpush1.bf16.xpose.msra.mxu0 0
        %822 = vmatprep.subr.bf16.mxu0 0
        %823 = vmatpush1.bf16.xpose.msra.mxu0 0
        %824 = vmatprep.subr.bf16.mxu0 0
        %825 = vmatpush1.bf16.xpose.msra.mxu0 0
        %826 = vmatprep.subr.bf16.mxu0 0
        %827 = vmatpush1.bf16.xpose.msra.mxu0 0
        %828 = vmatprep.subr.bf16.mxu0 0
        %829 = vmatpush1.bf16.xpose.msra.mxu0 0
        %830 = vmatprep.subr.bf16.mxu0 0
        %831 = vmatpush1.bf16.xpose.msra.mxu0 0
        %832 = vmatprep.subr.bf16.mxu0 0
        %833 = vmatpush1.bf16.xpose.msra.mxu0 0
        %834 = vmatprep.subr.bf16.mxu0 0
        %835 = vmatpush1.bf16.xpose.msra.mxu0 0
        %836 = vmatprep.subr.bf16.mxu0 0
        %837 = vmatpush1.bf16.xpose.msra.mxu0 0
        %838 = vmatprep.subr.bf16.mxu0 0
        %839 = vmatpush1.bf16.xpose.msra.mxu0 0
        %840 = vmatprep.mubr.bf16.mxu0 0
        %841 = vmatmul.mubr.bf16.gmra.mrb[0].mxu0 %v803
        %v842 = vpop.f32.mrb[0].mxu0
        %v843 = vadd.f32 0.0, %v842
        %v844 = vpop.f32.mrb[0].mxu0
        %v845 = vpop.f32.mrb[0].mxu0
        %v846 = vpop.f32.mrb[0].mxu0
        %847 = vdwg.mxu0
        %v850 = vunpack.c.l.s4 1983009808
        %v851 = vunpack.c.0.s8 %v850
        %v852 = vlaneseq
        %v853 = vshrl.u32 %v852, 7
        %v854 = vsub.s32 %v851, %v853
        %v855 = vrot.slane %v673, %v854
        %856 = vrot.lane.b32.xlu0 %v855, 112
        %v857 = vpop.permute.xlu0 %856
        %858 = vrot.lane.b32.xlu0 %v855, 80
        %v859 = vpop.permute.xlu0 %858
        %v861 = vsel %vm194, %v857, 0
        %v864 = vsel %vm194, %v859, 0
        %866 = vmatprep.subr.bf16.mxu0 0
        %867 = vmatpush1.bf16.xpose.msra.mxu0 %v864
        %868 = vmatprep.subr.bf16.mxu0 0
        %869 = vmatpush1.bf16.xpose.msra.mxu0 0
        %870 = vmatprep.subr.bf16.mxu0 0
        %871 = vmatpush1.bf16.xpose.msra.mxu0 0
        %872 = vmatprep.subr.bf16.mxu0 0
        %873 = vmatpush1.bf16.xpose.msra.mxu0 0
        %874 = vmatprep.subr.bf16.mxu0 0
        %875 = vmatpush1.bf16.xpose.msra.mxu0 0
        %876 = vmatprep.subr.bf16.mxu0 0
        %877 = vmatpush1.bf16.xpose.msra.mxu0 0
        %878 = vmatprep.subr.bf16.mxu0 0
        %879 = vmatpush1.bf16.xpose.msra.mxu0 0
        %880 = vmatprep.subr.bf16.mxu0 0
        %881 = vmatpush1.bf16.xpose.msra.mxu0 0
        %882 = vmatprep.subr.bf16.mxu0 0
        %883 = vmatpush1.bf16.xpose.msra.mxu0 0
        %884 = vmatprep.subr.bf16.mxu0 0
        %885 = vmatpush1.bf16.xpose.msra.mxu0 0
        %886 = vmatprep.subr.bf16.mxu0 0
        %887 = vmatpush1.bf16.xpose.msra.mxu0 0
        %888 = vmatprep.subr.bf16.mxu0 0
        %889 = vmatpush1.bf16.xpose.msra.mxu0 0
        %890 = vmatprep.subr.bf16.mxu0 0
        %891 = vmatpush1.bf16.xpose.msra.mxu0 0
        %892 = vmatprep.subr.bf16.mxu0 0
        %893 = vmatpush1.bf16.xpose.msra.mxu0 0
        %894 = vmatprep.subr.bf16.mxu0 0
        %895 = vmatpush1.bf16.xpose.msra.mxu0 0
        %896 = vmatprep.subr.bf16.mxu0 0
        %897 = vmatpush1.bf16.xpose.msra.mxu0 0
        %898 = vmatprep.mubr.bf16.mxu0 0
        %899 = vmatmul.mubr.bf16.gmra.mrb[0].mxu0 %v861
        %v900 = vpop.f32.mrb[0].mxu0
        %v901 = vadd.f32 0.0, %v900
        %v902 = vpop.f32.mrb[0].mxu0
        %v903 = vpop.f32.mrb[0].mxu0
        %v904 = vpop.f32.mrb[0].mxu0
        %905 = vdwg.mxu0
        %v906 = vmul.f32 %v727, 0.25
        %v907 = vmul.f32 %v785, 0.25
        %v908 = vmul.f32 %v843, 0.25
        %v909 = vmul.f32 %v901, 0.25
        %s910 = scalar_lea.vmem [#allocation5], 4
        %v911 = vld [vmem:[%s910] sm:$0xf]
        %v912 = vadd.f32 %v906, %v911
        %v913 = vadd.f32 %v907, %v911
        %v914 = vadd.f32 %v908, %v911
        %v915 = vadd.f32 %v909, %v911
        %v916 = vsel %vm418, %v912, -inf
        %917 = vmax.xlane.f32.xlu0 %v916
        %v918 = vpop.xlane.xlu0 %917
        %v919 = vsel %vm418, %v913, -inf
        %920 = vmax.xlane.f32.xlu0 %v919
        %v921 = vpop.xlane.xlu0 %920
        %v922 = vsel %vm418, %v914, -inf
        %923 = vmax.xlane.f32.xlu0 %v922
        %v924 = vpop.xlane.xlu0 %923
        %v925 = vsel %vm418, %v915, -inf
        %926 = vmax.xlane.f32.xlu0 %v925
        %v927 = vpop.xlane.xlu0 %926
        %v928 = vsub.f32 %v912, %v918
        %v929 = vsub.f32 %v913, %v921
        %v930 = vsub.f32 %v914, %v924
        %v931 = vsub.f32 %v915, %v927
        %v932 = vmul.f32 %v928, 1.442695
        %v933 = vpow.pop %v932
        %v934 = vmul.f32 %v929, 1.442695
        %v935 = vpow.pop %v934
        %v936 = vmul.f32 %v930, 1.442695
        %v937 = vpow.pop %v936
        %v938 = vmul.f32 %v931, 1.442695
        %v939 = vpow.pop %v938
        %v940 = vsel %vm418, %v933, 0.0
        %941 = vadd.xlane.f32.xlu0 %v940
        %v942 = vpop.xlane.xlu0 %941
        %v943 = vsel %vm418, %v935, 0.0
        %944 = vadd.xlane.f32.xlu0 %v943
        %v945 = vpop.xlane.xlu0 %944
        %v946 = vsel %vm418, %v937, 0.0
        %947 = vadd.xlane.f32.xlu0 %v946
        %v948 = vpop.xlane.xlu0 %947
        %v949 = vsel %vm418, %v939, 0.0
        %950 = vadd.xlane.f32.xlu0 %v949
        %v951 = vpop.xlane.xlu0 %950
        %v952 = vrcp.pop %v942
        %v953 = vrcp.pop %v945
        %v954 = vrcp.pop %v948
        %v955 = vrcp.pop %v951
        %v956 = vmul.f32 %v933, %v952
        %v957 = vmul.f32 %v935, %v953
        %v958 = vmul.f32 %v937, %v954
        %v959 = vmul.f32 %v939, %v955
        %v960 = vpack.c.bf16 %v956, %v956
        %v961 = vpack.c.bf16 %v957, %v957
        %v962 = vpack.c.bf16 %v958, %v958
        %v963 = vpack.c.bf16 %v959, %v959
        %964 = vrot.lane.b32.xlu0 %v681, 48
        %v965 = vpop.permute.xlu0 %964
        %v967 = vsel %vm469, %v960, 0
        %v970 = vsel %vm473, %v965, 0
        %972 = vmatprep.subr.bf16.mxu0 0
        %973 = vmatpush1.bf16.msra.mxu0 %v970
        %974 = vmatprep.subr.bf16.mxu0 0
        %975 = vmatpush1.bf16.msra.mxu0 0
        %976 = vmatprep.subr.bf16.mxu0 0
        %977 = vmatpush1.bf16.msra.mxu0 0
        %978 = vmatprep.subr.bf16.mxu0 0
        %979 = vmatpush1.bf16.msra.mxu0 0
        %980 = vmatprep.subr.bf16.mxu0 0
        %981 = vmatpush1.bf16.msra.mxu0 0
        %982 = vmatprep.subr.bf16.mxu0 0
        %983 = vmatpush1.bf16.msra.mxu0 0
        %984 = vmatprep.subr.bf16.mxu0 0
        %985 = vmatpush1.bf16.msra.mxu0 0
        %986 = vmatprep.subr.bf16.mxu0 0
        %987 = vmatpush1.bf16.msra.mxu0 0
        %988 = vmatprep.subr.bf16.mxu0 0
        %989 = vmatpush1.bf16.msra.mxu0 0
        %990 = vmatprep.subr.bf16.mxu0 0
        %991 = vmatpush1.bf16.msra.mxu0 0
        %992 = vmatprep.subr.bf16.mxu0 0
        %993 = vmatpush1.bf16.msra.mxu0 0
        %994 = vmatprep.subr.bf16.mxu0 0
        %995 = vmatpush1.bf16.msra.mxu0 0
        %996 = vmatprep.subr.bf16.mxu0 0
        %997 = vmatpush1.bf16.msra.mxu0 0
        %998 = vmatprep.subr.bf16.mxu0 0
        %999 = vmatpush1.bf16.msra.mxu0 0
        %1000 = vmatprep.subr.bf16.mxu0 0
        %1001 = vmatpush1.bf16.msra.mxu0 0
        %1002 = vmatprep.subr.bf16.mxu0 0
        %1003 = vmatpush1.bf16.msra.mxu0 0
        %1004 = vmatprep.mubr.bf16.mxu0 0
        %1005 = vmatmul.mubr.bf16.gmra.mrb[0].mxu0 %v967
        %v1006 = vpop.f32.mrb[0].mxu0
        %v1007 = vadd.f32 0.0, %v1006
        %v1008 = vpop.f32.mrb[0].mxu0
        %v1009 = vpop.f32.mrb[0].mxu0
        %v1010 = vpop.f32.mrb[0].mxu0
        %1011 = vdwg.mxu0
        %1012 = vrot.lane.b32.xlu0 %v739, 48
        %v1013 = vpop.permute.xlu0 %1012
        %v1015 = vsel %vm469, %v961, 0
        %v1018 = vsel %vm473, %v1013, 0
        %1020 = vmatprep.subr.bf16.mxu0 0
        %1021 = vmatpush1.bf16.msra.mxu0 %v1018
        %1022 = vmatprep.subr.bf16.mxu0 0
        %1023 = vmatpush1.bf16.msra.mxu0 0
        %1024 = vmatprep.subr.bf16.mxu0 0
        %1025 = vmatpush1.bf16.msra.mxu0 0
        %1026 = vmatprep.subr.bf16.mxu0 0
        %1027 = vmatpush1.bf16.msra.mxu0 0
        %1028 = vmatprep.subr.bf16.mxu0 0
        %1029 = vmatpush1.bf16.msra.mxu0 0
        %1030 = vmatprep.subr.bf16.mxu0 0
        %1031 = vmatpush1.bf16.msra.mxu0 0
        %1032 = vmatprep.subr.bf16.mxu0 0
        %1033 = vmatpush1.bf16.msra.mxu0 0
        %1034 = vmatprep.subr.bf16.mxu0 0
        %1035 = vmatpush1.bf16.msra.mxu0 0
        %1036 = vmatprep.subr.bf16.mxu0 0
        %1037 = vmatpush1.bf16.msra.mxu0 0
        %1038 = vmatprep.subr.bf16.mxu0 0
        %1039 = vmatpush1.bf16.msra.mxu0 0
        %1040 = vmatprep.subr.bf16.mxu0 0
        %1041 = vmatpush1.bf16.msra.mxu0 0
        %1042 = vmatprep.subr.bf16.mxu0 0
        %1043 = vmatpush1.bf16.msra.mxu0 0
        %1044 = vmatprep.subr.bf16.mxu0 0
        %1045 = vmatpush1.bf16.msra.mxu0 0
        %1046 = vmatprep.subr.bf16.mxu0 0
        %1047 = vmatpush1.bf16.msra.mxu0 0
        %1048 = vmatprep.subr.bf16.mxu0 0
        %1049 = vmatpush1.bf16.msra.mxu0 0
        %1050 = vmatprep.subr.bf16.mxu0 0
        %1051 = vmatpush1.bf16.msra.mxu0 0
        %1052 = vmatprep.mubr.bf16.mxu0 0
        %1053 = vmatmul.mubr.bf16.gmra.mrb[0].mxu0 %v1015
        %v1054 = vpop.f32.mrb[0].mxu0
        %v1055 = vadd.f32 0.0, %v1054
        %v1056 = vpop.f32.mrb[0].mxu0
        %v1057 = vpop.f32.mrb[0].mxu0
        %v1058 = vpop.f32.mrb[0].mxu0
        %1059 = vdwg.mxu0
        %1060 = vrot.lane.b32.xlu0 %v797, 48
        %v1061 = vpop.permute.xlu0 %1060
        %v1063 = vsel %vm469, %v962, 0
        %v1066 = vsel %vm473, %v1061, 0
        %1068 = vmatprep.subr.bf16.mxu0 0
        %1069 = vmatpush1.bf16.msra.mxu0 %v1066
        %1070 = vmatprep.subr.bf16.mxu0 0
        %1071 = vmatpush1.bf16.msra.mxu0 0
        %1072 = vmatprep.subr.bf16.mxu0 0
        %1073 = vmatpush1.bf16.msra.mxu0 0
        %1074 = vmatprep.subr.bf16.mxu0 0
        %1075 = vmatpush1.bf16.msra.mxu0 0
        %1076 = vmatprep.subr.bf16.mxu0 0
        %1077 = vmatpush1.bf16.msra.mxu0 0
        %1078 = vmatprep.subr.bf16.mxu0 0
        %1079 = vmatpush1.bf16.msra.mxu0 0
        %1080 = vmatprep.subr.bf16.mxu0 0
        %1081 = vmatpush1.bf16.msra.mxu0 0
        %1082 = vmatprep.subr.bf16.mxu0 0
        %1083 = vmatpush1.bf16.msra.mxu0 0
        %1084 = vmatprep.subr.bf16.mxu0 0
        %1085 = vmatpush1.bf16.msra.mxu0 0
        %1086 = vmatprep.subr.bf16.mxu0 0
        %1087 = vmatpush1.bf16.msra.mxu0 0
        %1088 = vmatprep.subr.bf16.mxu0 0
        %1089 = vmatpush1.bf16.msra.mxu0 0
        %1090 = vmatprep.subr.bf16.mxu0 0
        %1091 = vmatpush1.bf16.msra.mxu0 0
        %1092 = vmatprep.subr.bf16.mxu0 0
        %1093 = vmatpush1.bf16.msra.mxu0 0
        %1094 = vmatprep.subr.bf16.mxu0 0
        %1095 = vmatpush1.bf16.msra.mxu0 0
        %1096 = vmatprep.subr.bf16.mxu0 0
        %1097 = vmatpush1.bf16.msra.mxu0 0
        %1098 = vmatprep.subr.bf16.mxu0 0
        %1099 = vmatpush1.bf16.msra.mxu0 0
        %1100 = vmatprep.mubr.bf16.mxu0 0
        %1101 = vmatmul.mubr.bf16.gmra.mrb[0].mxu0 %v1063
        %v1102 = vpop.f32.mrb[0].mxu0
        %v1103 = vadd.f32 0.0, %v1102
        %v1104 = vpop.f32.mrb[0].mxu0
        %v1105 = vpop.f32.mrb[0].mxu0
        %v1106 = vpop.f32.mrb[0].mxu0
        %1107 = vdwg.mxu0
        %1108 = vrot.lane.b32.xlu0 %v855, 48
        %v1109 = vpop.permute.xlu0 %1108
        %v1111 = vsel %vm469, %v963, 0
        %v1114 = vsel %vm473, %v1109, 0
        %1116 = vmatprep.subr.bf16.mxu0 0
        %1117 = vmatpush1.bf16.msra.mxu0 %v1114
        %1118 = vmatprep.subr.bf16.mxu0 0
        %1119 = vmatpush1.bf16.msra.mxu0 0
        %1120 = vmatprep.subr.bf16.mxu0 0
        %1121 = vmatpush1.bf16.msra.mxu0 0
        %1122 = vmatprep.subr.bf16.mxu0 0
        %1123 = vmatpush1.bf16.msra.mxu0 0
        %1124 = vmatprep.subr.bf16.mxu0 0
        %1125 = vmatpush1.bf16.msra.mxu0 0
        %1126 = vmatprep.subr.bf16.mxu0 0
        %1127 = vmatpush1.bf16.msra.mxu0 0
        %1128 = vmatprep.subr.bf16.mxu0 0
        %1129 = vmatpush1.bf16.msra.mxu0 0
        %1130 = vmatprep.subr.bf16.mxu0 0
        %1131 = vmatpush1.bf16.msra.mxu0 0
        %1132 = vmatprep.subr.bf16.mxu0 0
        %1133 = vmatpush1.bf16.msra.mxu0 0
        %1134 = vmatprep.subr.bf16.mxu0 0
        %1135 = vmatpush1.bf16.msra.mxu0 0
        %1136 = vmatprep.subr.bf16.mxu0 0
        %1137 = vmatpush1.bf16.msra.mxu0 0
        %1138 = vmatprep.subr.bf16.mxu0 0
        %1139 = vmatpush1.bf16.msra.mxu0 0
        %1140 = vmatprep.subr.bf16.mxu0 0
        %1141 = vmatpush1.bf16.msra.mxu0 0
        %1142 = vmatprep.subr.bf16.mxu0 0
        %1143 = vmatpush1.bf16.msra.mxu0 0
        %1144 = vmatprep.subr.bf16.mxu0 0
        %1145 = vmatpush1.bf16.msra.mxu0 0
        %1146 = vmatprep.subr.bf16.mxu0 0
        %1147 = vmatpush1.bf16.msra.mxu0 0
        %1148 = vmatprep.mubr.bf16.mxu0 0
        %1149 = vmatmul.mubr.bf16.gmra.mrb[0].mxu0 %v1111
        %v1150 = vpop.f32.mrb[0].mxu0
        %v1151 = vadd.f32 0.0, %v1150
        %v1152 = vpop.f32.mrb[0].mxu0
        %v1153 = vpop.f32.mrb[0].mxu0
        %v1154 = vpop.f32.mrb[0].mxu0
        %1155 = vdwg.mxu0
        %v1156 = vpack.c.bf16 %v1007, %v1007
        %v1157 = vpack.c.bf16 %v1055, %v1055
        %v1158 = vpack.c.bf16 %v1103, %v1103
        %v1159 = vpack.c.bf16 %v1151, %v1151
        %v1165 = vunpack.c.l.s4 1983009808
        %v1166 = vunpack.c.0.s8 %v1165
        %v1167 = vlaneseq
        %v1168 = vshrl.u32 %v1167, 7
        %v1169 = vsub.s32 %v1166, %v1168
        %v1170 = vrot.slane %v1156, %v1169
        %v1172 = vunpack.c.l.s4 1983009808
        %v1173 = vunpack.c.0.s8 %v1172
        %v1174 = vlaneseq
        %v1175 = vshrl.u32 %v1174, 7
        %v1176 = vsub.s32 %v1173, %v1175
        %v1177 = vrot.slane %v1157, %v1176
        %v1179 = vunpack.c.l.s4 1983009808
        %v1180 = vunpack.c.0.s8 %v1179
        %v1181 = vlaneseq
        %v1182 = vshrl.u32 %v1181, 7
        %v1183 = vsub.s32 %v1180, %v1182
        %v1184 = vrot.slane %v1158, %v1183
        %v1186 = vunpack.c.l.s4 1983009808
        %v1187 = vunpack.c.0.s8 %v1186
        %v1188 = vlaneseq
        %v1189 = vshrl.u32 %v1188, 7
        %v1190 = vsub.s32 %v1187, %v1189
        %v1191 = vrot.slane %v1159, %v1190
        %1192 = vrot.lane.b32.xlu0 %v1170, 16
        %v1193 = vpop.permute.xlu0 %1192
        %1194 = vrot.lane.b32.xlu0 %v1177, 16
        %v1195 = vpop.permute.xlu0 %1194
        %1196 = vrot.lane.b32.xlu0 %v1184, 16
        %v1197 = vpop.permute.xlu0 %1196
        %1198 = vrot.lane.b32.xlu0 %v1191, 16
        %v1199 = vpop.permute.xlu0 %1198
        %vm1204 = vcmask 255104
        %1205 = vst.msk [vmem:[%s176] sm:$0x3] %vm1204, %v1193
        %1206 = vst.msk [vmem:[%s176 + $0x2] sm:$0x3] %vm1204, %v1195
        %1207 = vst.msk [vmem:[%s176 + $0x4] sm:$0x3] %vm1204, %v1197
        %1208 = vst.msk [vmem:[%s176 + $0x6] sm:$0x3] %vm1204, %v1199
        %s1209 = sand.u32 %s75, 1
        %s1210 = scalar_lea.sflag [#allocation4], %s1209
        %s1211 = sand.u32 %s75, 1
        %s1212 = smul.addr %s1211, 8
        %s1213 = scalar_lea.vmem [#allocation7], %s1212
        // Predicated region
        $region37: #{_lambda_.39} parent=27 // pred_check
          %p1214 = pneg %p85
        $region38: #{_lambda_.39} parent=27 // pred_check_branch
          %1216 = sbr.rel (%p1214) target = $region40
        $region39: #{_lambda_.39} parent=27 // pred_region
          %s1217 = smul.u32 4, %s20
          %s1219 = ssub.s32 128, 128
          %1220 = vsyncadd %s1210, %s1219
          %s1221 = smul.addr %s1217, 32
          %s1222 = scalar_lea.hbm %s2, %s1221
          %s1223 = sshll.u32 %s1213, 4
          %s1224 = int_to_ptr.vmem [resolvable:$true] %s1223
          %1229 = dma.vmem_to_hbm [thread:$0]  %s1224, 128, %s1222, %s1210, 32, 32, 2
        $region40: #{_lambda_.39} parent=27 // pred_fallthru
          _
      $region28: #{_lambda_.39} parent=5 // pred_fallthru
        _
      %p1230 = scmp.le.s32.totalorder 2, %s15
      // Predicated region
      $region41: #{_lambda_.39} parent=5 // pred_check
        %p1231 = pneg %p1230
      $region42: #{_lambda_.39} parent=5 // pred_check_branch
        %1233 = sbr.rel (%p1231) target = $region44
      $region43: #{_lambda_.39} parent=5 // pred_region
        %s1234 = ssub.s32 %s15, 2
        // Predicated region
        $region45: #{_lambda_.39} parent=43 // pred_check
          %p1235 = pneg %p91
        $region46: #{_lambda_.39} parent=43 // pred_check_branch
          %1237 = sbr.rel (%p1235) target = $region48
        $region47: #{_lambda_.39} parent=43 // pred_region
          %s1238 = sand.u32 %s76, 1
          %s1239 = scalar_lea.sflag [#allocation4], %s1238
          %s1240 = sand.u32 %s76, 1
          %s1241 = smul.addr %s1240, 8
          %s1242 = scalar_lea.vmem [#allocation7], %s1241
          %1243 = dma.done %s1239, 128
        $region48: #{_lambda_.39} parent=43 // pred_fallthru
          _
      $region44: #{_lambda_.39} parent=5 // pred_fallthru
        _
    $region6: #{_lambda_.39} parent=1 // loop_footer
      %s19 = sadd.s32 1, %s15
    $region7: #{_lambda_.39} parent=1 // loop_footer_branch
      %14 = sbr.rel target = $region3
    $region8: #{_lambda_.39} parent=1 // loop_exit
      _
    %1244 = vsyncpa [#allocation3], 1
    %s1245 = scalar_lea.sflag [#allocation3], 1
    %1246 = vsyncpa %s1245, 1
    %1247 = vsyncpa [#allocation6], 1
    %1248 = vsyncpa [#allocation4], 1
    %s1249 = scalar_lea.sflag [#allocation4], 1
    %1250 = vsyncpa %s1249, 1

// kernel: _lambda_.43
$region0: #{_lambda_.43}
  #allocation0 [shape = 'u32[]', space=smem, size = 0x4, offset = 0x4, fixed_abs, tag = 'smem constant byte address 0x4 - core index']
  #allocation1 [shape = 'u32[144,128]{1,0:T(1,128)}', space=vmem, size = 0x12000, scoped, tag = 'internal scratch']
  %s0 = inlined_call_operand.hbm [shape: bf16[32,128], index: 0, kind: input, shape index: {}]
  %s1 = inlined_call_operand.hbm [shape: bf16[128,32], index: 1, kind: input, shape index: {}]
  %s2 = inlined_call_operand.hbm [shape: f32[1,32], index: 2, kind: input, shape index: {}]
  %s3 = inlined_call_operand.hbm [shape: bf16[32,32], index: 3, kind: output, shape index: {}]
  %s4 = sld [smem:[#allocation0]]
  $region34: #{_lambda_.43} parent=0
    _
  %s6 = ssub.s32 1, %s4
  %s7 = scalar_select 0, %s6, %s4
  $region1: #{_lambda_.43} parent=0
    #allocation2 [shape = 'u8[8192]{0}', space=vmem, size = 0x2000, scoped, tag = 'input window, operand 0, single buffered']
    #allocation3 [shape = 's32[1]{0}', space=sflag, size = 0x4, scoped, tag = 'scoped memory for _lambda_.43']
    #allocation4 [shape = 's32[1]{0}', space=sflag, size = 0x4, scoped, tag = 'scoped memory for _lambda_.43']
    #allocation5 [shape = 'u8[32768]{0}', space=vmem, size = 0x8000, scoped, tag = 'input window, operand 1, single buffered']
    #allocation6 [shape = 's32[1]{0}', space=sflag, size = 0x4, scoped, tag = 'scoped memory for _lambda_.43']
    #allocation7 [shape = 'u8[512]{0}', space=vmem, size = 0x400, scoped, tag = 'input window, operand 2, single buffered']
    #allocation8 [shape = 'u8[8192]{0}', space=vmem, size = 0x2000, scoped, tag = 'output window, operand 0, single buffered']
    %8 = vsyncpa [#allocation3], 0
    %9 = vsyncpa [#allocation6], 0
    %10 = vsyncpa [#allocation4], 0
    // Predicated region
    $region2: #{_lambda_.43} parent=1 // pred_check
      _
    $region3: #{_lambda_.43} parent=1 // pred_check_branch
      %12 = sbr.rel (0) target = $region5
    $region4: #{_lambda_.43} parent=1 // pred_region
      %s14 = ssub.s32 256, 256
      %15 = vsyncadd [#allocation3], %s14
      %s16 = sshll.u32 [#allocation2], 4
      %s17 = int_to_ptr.vmem [resolvable:$true] %s16
      %22 = dma.hbm_to_vmem [thread:$0]  %s0, 256, %s17, [#allocation3], 64, 64, 4
    $region5: #{_lambda_.43} parent=1 // pred_fallthru
      _
    // Predicated region
    $region6: #{_lambda_.43} parent=1 // pred_check
      _
    $region7: #{_lambda_.43} parent=1 // pred_check_branch
      %24 = sbr.rel (0) target = $region9
    $region8: #{_lambda_.43} parent=1 // pred_region
      %s26 = ssub.s32 1024, 1024
      %27 = vsyncadd [#allocation6], %s26
      %s28 = sshll.u32 [#allocation5], 4
      %s29 = int_to_ptr.vmem [resolvable:$true] %s28
      %34 = dma.hbm_to_vmem [thread:$0]  %s1, 1024, %s29, [#allocation6], 64, 64, 4
    $region9: #{_lambda_.43} parent=1 // pred_fallthru
      _
    // Predicated region
    $region10: #{_lambda_.43} parent=1 // pred_check
      _
    $region11: #{_lambda_.43} parent=1 // pred_check_branch
      %36 = sbr.rel (0) target = $region13
    $region12: #{_lambda_.43} parent=1 // pred_region
      %s38 = ssub.s32 16, 16
      %39 = vsyncadd [#allocation6], %s38
      %s41 = sshll.u32 [#allocation7], 4
      %s42 = int_to_ptr.vmem [resolvable:$true] %s41
      %44 = dma.hbm_to_vmem [thread:$0]  %s2, 16, %s42, [#allocation6]
    $region13: #{_lambda_.43} parent=1 // pred_fallthru
      _
    // Predicated region
    $region14: #{_lambda_.43} parent=1 // pred_check
      _
    $region15: #{_lambda_.43} parent=1 // pred_check_branch
      %46 = sbr.rel (0) target = $region17
    $region16: #{_lambda_.43} parent=1 // pred_region
      %47 = dma.done [#allocation3], 256
    $region17: #{_lambda_.43} parent=1 // pred_fallthru
      _
    // Predicated region
    $region18: #{_lambda_.43} parent=1 // pred_check
      _
    $region19: #{_lambda_.43} parent=1 // pred_check_branch
      %49 = sbr.rel (0) target = $region21
    $region20: #{_lambda_.43} parent=1 // pred_region
      %50 = dma.done [#allocation6], 1024
    $region21: #{_lambda_.43} parent=1 // pred_fallthru
      _
    // Predicated region
    $region22: #{_lambda_.43} parent=1 // pred_check
      _
    $region23: #{_lambda_.43} parent=1 // pred_check_branch
      %52 = sbr.rel (0) target = $region25
    $region24: #{_lambda_.43} parent=1 // pred_region
      %53 = dma.done [#allocation6], 16
    $region25: #{_lambda_.43} parent=1 // pred_fallthru
      _
    %v55 = vld [vmem:[#allocation2] sm:$0xf]
    %v56 = vld [vmem:[#allocation2 + $0x4] sm:$0xf]
    %v57 = vld [vmem:[#allocation2 + $0x8] sm:$0xf]
    %v58 = vld [vmem:[#allocation2 + $0xc] sm:$0xf]
    %v59 = vld [vmem:[#allocation5] sm:$0xf]
    %v60 = vld [vmem:[#allocation5 + $0x4] sm:$0xf]
    %v61 = vld [vmem:[#allocation5 + $0x8] sm:$0xf]
    %v62 = vld [vmem:[#allocation5 + $0xc] sm:$0xf]
    %v63 = vld [vmem:[#allocation5 + $0x10] sm:$0xf]
    %v64 = vld [vmem:[#allocation5 + $0x14] sm:$0xf]
    %v65 = vld [vmem:[#allocation5 + $0x18] sm:$0xf]
    %v66 = vld [vmem:[#allocation5 + $0x1c] sm:$0xf]
    %v67 = vld [vmem:[#allocation5 + $0x20] sm:$0xf]
    %v68 = vld [vmem:[#allocation5 + $0x24] sm:$0xf]
    %v69 = vld [vmem:[#allocation5 + $0x28] sm:$0xf]
    %v70 = vld [vmem:[#allocation5 + $0x2c] sm:$0xf]
    %v71 = vld [vmem:[#allocation5 + $0x30] sm:$0xf]
    %v72 = vld [vmem:[#allocation5 + $0x34] sm:$0xf]
    %v73 = vld [vmem:[#allocation5 + $0x38] sm:$0xf]
    %v74 = vld [vmem:[#allocation5 + $0x3c] sm:$0xf]
    %v75 = vld [vmem:[#allocation7] sm:$0x1]
    %v77 = vlaneseq
    %v78 = vshrl.u32 %v77, 7
    %v79 = vsub.s32 0, %v78
    %v80 = vrot.slane %v75, %v79
    %v86 = vunpack.c.l.b16 %v55
    %v87 = vunpack.c.l.b16 %v56
    %v88 = vunpack.c.l.b16 %v57
    %v89 = vunpack.c.l.b16 %v58
    %v90 = vpack.c.b16 %v87, %v86
    %v91 = vpack.c.b16 %v89, %v88
    %v110 = vunpack.c.l.b16 %v59
    %v111 = vunpack.c.l.b16 %v60
    %v112 = vunpack.c.l.b16 %v61
    %v113 = vunpack.c.l.b16 %v62
    %v114 = vunpack.c.l.b16 %v63
    %v115 = vunpack.c.l.b16 %v64
    %v116 = vunpack.c.l.b16 %v65
    %v117 = vunpack.c.l.b16 %v66
    %v118 = vunpack.c.l.b16 %v67
    %v119 = vunpack.c.l.b16 %v68
    %v120 = vunpack.c.l.b16 %v69
    %v121 = vunpack.c.l.b16 %v70
    %v122 = vunpack.c.l.b16 %v71
    %v123 = vunpack.c.l.b16 %v72
    %v124 = vunpack.c.l.b16 %v73
    %v125 = vunpack.c.l.b16 %v74
    %v126 = vpack.c.b16 %v111, %v110
    %v127 = vpack.c.b16 %v113, %v112
    %v128 = vpack.c.b16 %v115, %v114
    %v129 = vpack.c.b16 %v117, %v116
    %v130 = vpack.c.b16 %v119, %v118
    %v131 = vpack.c.b16 %v121, %v120
    %v132 = vpack.c.b16 %v123, %v122
    %v133 = vpack.c.b16 %v125, %v124
    %142 = vmatprep.subr.bf16.mxu0 0
    %143 = vmatpush1.bf16.msra.mxu0 %v126
    %144 = vmatprep.subr.bf16.mxu0 0
    %145 = vmatpush1.bf16.msra.mxu0 %v127
    %146 = vmatprep.subr.bf16.mxu0 0
    %147 = vmatpush1.bf16.msra.mxu0 %v128
    %148 = vmatprep.subr.bf16.mxu0 0
    %149 = vmatpush1.bf16.msra.mxu0 %v129
    %150 = vmatprep.subr.bf16.mxu0 0
    %151 = vmatpush1.bf16.msra.mxu0 %v130
    %152 = vmatprep.subr.bf16.mxu0 0
    %153 = vmatpush1.bf16.msra.mxu0 %v131
    %154 = vmatprep.subr.bf16.mxu0 0
    %155 = vmatpush1.bf16.msra.mxu0 %v132
    %156 = vmatprep.subr.bf16.mxu0 0
    %157 = vmatpush1.bf16.msra.mxu0 %v133
    %158 = vmatprep.subr.bf16.mxu0 0
    %159 = vmatpush1.bf16.msra.mxu0 0
    %160 = vmatprep.subr.bf16.mxu0 0
    %161 = vmatpush1.bf16.msra.mxu0 0
    %162 = vmatprep.subr.bf16.mxu0 0
    %163 = vmatpush1.bf16.msra.mxu0 0
    %164 = vmatprep.subr.bf16.mxu0 0
    %165 = vmatpush1.bf16.msra.mxu0 0
    %166 = vmatprep.subr.bf16.mxu0 0
    %167 = vmatpush1.bf16.msra.mxu0 0
    %168 = vmatprep.subr.bf16.mxu0 0
    %169 = vmatpush1.bf16.msra.mxu0 0
    %170 = vmatprep.subr.bf16.mxu0 0
    %171 = vmatpush1.bf16.msra.mxu0 0
    %172 = vmatprep.subr.bf16.mxu0 0
    %173 = vmatpush1.bf16.msra.mxu0 0
    %174 = vmatprep.mubr.bf16.mxu0 0
    %175 = vmatmul.mubr.bf16.gmra.mrb[0].mxu0 %v90
    %v176 = vpop.f32.mrb[0].mxu0
    %v177 = vadd.f32 %v80, %v176
    %v178 = vpop.f32.mrb[0].mxu0
    %v179 = vpop.f32.mrb[0].mxu0
    %v180 = vadd.f32 %v80, %v179
    %v181 = vpop.f32.mrb[0].mxu0
    %182 = vmatprep.mubr.bf16.mxu0 0
    %183 = vmatmul.mubr.bf16.gmra.mrb[0].mxu0 %v91
    %v184 = vpop.f32.mrb[0].mxu0
    %v185 = vadd.f32 %v80, %v184
    %v186 = vpop.f32.mrb[0].mxu0
    %v187 = vpop.f32.mrb[0].mxu0
    %v188 = vadd.f32 %v80, %v187
    %v189 = vpop.f32.mrb[0].mxu0
    %190 = vdwg.mxu0
    %v191 = vpack.c.bf16 %v180, %v177
    %v192 = vpack.c.bf16 %v188, %v185
    %v195 = vunpack.c.l.b16 %v191
    %v196 = vunpack.c.h.b16 %v191
    %v197 = vunpack.c.l.b16 %v192
    %v198 = vunpack.c.h.b16 %v192
    %v199 = vpack.c.b16 %v195, %v195
    %v200 = vpack.c.b16 %v196, %v196
    %v201 = vpack.c.b16 %v197, %v197
    %v202 = vpack.c.b16 %v198, %v198
    %vm207 = vcmask 257024
    %208 = vst.msk [vmem:[#allocation8] sm:$0xf] %vm207, %v199
    %209 = vst.msk [vmem:[#allocation8 + $0x4] sm:$0xf] %vm207, %v200
    %210 = vst.msk [vmem:[#allocation8 + $0x8] sm:$0xf] %vm207, %v201
    %211 = vst.msk [vmem:[#allocation8 + $0xc] sm:$0xf] %vm207, %v202
    // Predicated region
    $region26: #{_lambda_.43} parent=1 // pred_check
      _
    $region27: #{_lambda_.43} parent=1 // pred_check_branch
      %213 = sbr.rel (0) target = $region29
    $region28: #{_lambda_.43} parent=1 // pred_region
      %s215 = ssub.s32 256, 256
      %216 = vsyncadd [#allocation4], %s215
      %s217 = sshll.u32 [#allocation8], 4
      %s218 = int_to_ptr.vmem [resolvable:$true] %s217
      %223 = dma.vmem_to_hbm [thread:$0]  %s218, 256, %s3, [#allocation4], 64, 64, 4
    $region29: #{_lambda_.43} parent=1 // pred_fallthru
      _
    // Predicated region
    $region30: #{_lambda_.43} parent=1 // pred_check
      _
    $region31: #{_lambda_.43} parent=1 // pred_check_branch
      %225 = sbr.rel (0) target = $region33
    $region32: #{_lambda_.43} parent=1 // pred_region
      %226 = dma.done [#allocation4], 256
    $region33: #{_lambda_.43} parent=1 // pred_fallthru
      _
    %227 = vsyncpa [#allocation3], 1
    %228 = vsyncpa [#allocation6], 1
    %229 = vsyncpa [#allocation4], 1

// kernel: _lambda_.51
$region0: #{_lambda_.51}
  #allocation0 [shape = 'u32[]', space=smem, size = 0x4, offset = 0x4, fixed_abs, tag = 'smem constant byte address 0x4 - core index']
  #allocation1 [shape = 'u32[144,128]{1,0:T(1,128)}', space=vmem, size = 0x12000, scoped, tag = 'internal scratch']
  %s0 = inlined_call_operand.hbm [shape: bf16[8,128], index: 0, kind: input, shape index: {}]
  %s1 = inlined_call_operand.hbm [shape: f32[1,128], index: 1, kind: input, shape index: {}]
  %s2 = inlined_call_operand.hbm [shape: f32[1,128], index: 2, kind: input, shape index: {}]
  %s3 = inlined_call_operand.hbm [shape: bf16[8,128], index: 3, kind: output, shape index: {}]
  %s4 = sld [smem:[#allocation0]]
  $region34: #{_lambda_.51} parent=0
    _
  %s6 = ssub.s32 1, %s4
  %s7 = scalar_select 0, %s6, %s4
  $region1: #{_lambda_.51} parent=0
    #allocation2 [shape = 'u8[2048]{0}', space=vmem, size = 0x800, scoped, tag = 'input window, operand 0, single buffered']
    #allocation3 [shape = 's32[1]{0}', space=sflag, size = 0x4, scoped, tag = 'scoped memory for _lambda_.51']
    #allocation4 [shape = 's32[1]{0}', space=sflag, size = 0x4, scoped, tag = 'scoped memory for _lambda_.51']
    #allocation5 [shape = 'u8[512]{0}', space=vmem, size = 0x400, scoped, tag = 'input window, operand 1, single buffered']
    #allocation6 [shape = 's32[1]{0}', space=sflag, size = 0x4, scoped, tag = 'scoped memory for _lambda_.51']
    #allocation7 [shape = 'u8[512]{0}', space=vmem, size = 0x400, scoped, tag = 'input window, operand 2, single buffered']
    #allocation8 [shape = 'u8[2048]{0}', space=vmem, size = 0x800, scoped, tag = 'output window, operand 0, single buffered']
    %8 = vsyncpa [#allocation3], 0
    %9 = vsyncpa [#allocation6], 0
    %10 = vsyncpa [#allocation4], 0
    // Predicated region
    $region2: #{_lambda_.51} parent=1 // pred_check
      _
    $region3: #{_lambda_.51} parent=1 // pred_check_branch
      %12 = sbr.rel (0) target = $region5
    $region4: #{_lambda_.51} parent=1 // pred_region
      %s14 = ssub.s32 64, 64
      %15 = vsyncadd [#allocation3], %s14
      %s17 = sshll.u32 [#allocation2], 4
      %s18 = int_to_ptr.vmem [resolvable:$true] %s17
      %20 = dma.hbm_to_vmem [thread:$0]  %s0, 64, %s18, [#allocation3]
    $region5: #{_lambda_.51} parent=1 // pred_fallthru
      _
    // Predicated region
    $region6: #{_lambda_.51} parent=1 // pred_check
      _
    $region7: #{_lambda_.51} parent=1 // pred_check_branch
      %22 = sbr.rel (0) target = $region9
    $region8: #{_lambda_.51} parent=1 // pred_region
      %s24 = ssub.s32 16, 16
      %25 = vsyncadd [#allocation6], %s24
      %s27 = sshll.u32 [#allocation5], 4
      %s28 = int_to_ptr.vmem [resolvable:$true] %s27
      %30 = dma.hbm_to_vmem [thread:$0]  %s1, 16, %s28, [#allocation6]
    $region9: #{_lambda_.51} parent=1 // pred_fallthru
      _
    // Predicated region
    $region10: #{_lambda_.51} parent=1 // pred_check
      _
    $region11: #{_lambda_.51} parent=1 // pred_check_branch
      %32 = sbr.rel (0) target = $region13
    $region12: #{_lambda_.51} parent=1 // pred_region
      %s34 = ssub.s32 16, 16
      %35 = vsyncadd [#allocation6], %s34
      %s37 = sshll.u32 [#allocation7], 4
      %s38 = int_to_ptr.vmem [resolvable:$true] %s37
      %40 = dma.hbm_to_vmem [thread:$0]  %s2, 16, %s38, [#allocation6]
    $region13: #{_lambda_.51} parent=1 // pred_fallthru
      _
    // Predicated region
    $region14: #{_lambda_.51} parent=1 // pred_check
      _
    $region15: #{_lambda_.51} parent=1 // pred_check_branch
      %42 = sbr.rel (0) target = $region17
    $region16: #{_lambda_.51} parent=1 // pred_region
      %43 = dma.done [#allocation3], 64
    $region17: #{_lambda_.51} parent=1 // pred_fallthru
      _
    // Predicated region
    $region18: #{_lambda_.51} parent=1 // pred_check
      _
    $region19: #{_lambda_.51} parent=1 // pred_check_branch
      %45 = sbr.rel (0) target = $region21
    $region20: #{_lambda_.51} parent=1 // pred_region
      %46 = dma.done [#allocation6], 16
    $region21: #{_lambda_.51} parent=1 // pred_fallthru
      _
    // Predicated region
    $region22: #{_lambda_.51} parent=1 // pred_check
      _
    $region23: #{_lambda_.51} parent=1 // pred_check_branch
      %48 = sbr.rel (0) target = $region25
    $region24: #{_lambda_.51} parent=1 // pred_region
      %49 = dma.done [#allocation6], 16
    $region25: #{_lambda_.51} parent=1 // pred_fallthru
      _
    %v50 = vld [vmem:[#allocation2] sm:$0xf]
    %v51 = vunpack.c.l.bf16 %v50
    %52 = vadd.xlane.f32.xlu0 %v51
    %v53 = vpop.xlane.xlu0 %52
    %v54 = vrcp.pop 128.0
    %v55 = vmul.f32 %v53, %v54
    %v56 = vsub.f32 %v51, %v55
    %v57 = vmul.f32 %v56, %v56
    %58 = vadd.xlane.f32.xlu0 %v57
    %v59 = vpop.xlane.xlu0 %58
    %v60 = vmul.f32 %v59, %v54
    %v61 = vadd.f32 %v60, 1e-05
    %v62 = vrsqrt.pop %v61
    %v63 = vmul.f32 %v56, %v62
    %v64 = vld [vmem:[#allocation5] sm:$0x1]
    %v66 = vlaneseq
    %v67 = vshrl.u32 %v66, 7
    %v68 = vsub.s32 0, %v67
    %v69 = vrot.slane %v64, %v68
    %v71 = vmul.f32 %v63, %v69
    %v72 = vld [vmem:[#allocation7] sm:$0x1]
    %v74 = vlaneseq
    %v75 = vshrl.u32 %v74, 7
    %v76 = vsub.s32 0, %v75
    %v77 = vrot.slane %v72, %v76
    %v79 = vadd.f32 %v71, %v77
    %v80 = vpack.c.bf16 %v79, %v79
    %81 = vst [vmem:[#allocation8] sm:$0xf] %v80
    // Predicated region
    $region26: #{_lambda_.51} parent=1 // pred_check
      _
    $region27: #{_lambda_.51} parent=1 // pred_check_branch
      %83 = sbr.rel (0) target = $region29
    $region28: #{_lambda_.51} parent=1 // pred_region
      %s85 = ssub.s32 64, 64
      %86 = vsyncadd [#allocation4], %s85
      %s88 = sshll.u32 [#allocation8], 4
      %s89 = int_to_ptr.vmem [resolvable:$true] %s88
      %91 = dma.vmem_to_hbm [thread:$0]  %s89, 64, %s3, [#allocation4]
    $region29: #{_lambda_.51} parent=1 // pred_fallthru
      _
    // Predicated region
    $region30: #{_lambda_.51} parent=1 // pred_check
      _
    $region31: #{_lambda_.51} parent=1 // pred_check_branch
      %93 = sbr.rel (0) target = $region33
    $region32: #{_lambda_.51} parent=1 // pred_region
      %94 = dma.done [#allocation4], 64
    $region33: #{_lambda_.51} parent=1 // pred_fallthru
      _
    %95 = vsyncpa [#allocation3], 1
    %96 = vsyncpa [#allocation6], 1
    %97 = vsyncpa [#allocation4], 1

// kernel: _lambda_.53
$region0: #{_lambda_.53}
  #allocation0 [shape = 'u32[]', space=smem, size = 0x4, offset = 0x4, fixed_abs, tag = 'smem constant byte address 0x4 - core index']
  #allocation1 [shape = 'u32[144,128]{1,0:T(1,128)}', space=vmem, size = 0x12000, scoped, tag = 'internal scratch']
  %s0 = inlined_call_operand.hbm [shape: bf16[8,64], index: 0, kind: input, shape index: {}]
  %s1 = inlined_call_operand.hbm [shape: f32[1,64], index: 1, kind: input, shape index: {}]
  %s2 = inlined_call_operand.hbm [shape: f32[1,64], index: 2, kind: input, shape index: {}]
  %s3 = inlined_call_operand.hbm [shape: bf16[8,64], index: 3, kind: output, shape index: {}]
  %s4 = sld [smem:[#allocation0]]
  $region34: #{_lambda_.53} parent=0
    _
  %s6 = ssub.s32 1, %s4
  %s7 = scalar_select 0, %s6, %s4
  $region1: #{_lambda_.53} parent=0
    #allocation2 [shape = 'u8[2048]{0}', space=vmem, size = 0x800, scoped, tag = 'input window, operand 0, single buffered']
    #allocation3 [shape = 's32[1]{0}', space=sflag, size = 0x4, scoped, tag = 'scoped memory for _lambda_.53']
    #allocation4 [shape = 's32[1]{0}', space=sflag, size = 0x4, scoped, tag = 'scoped memory for _lambda_.53']
    #allocation5 [shape = 'u8[512]{0}', space=vmem, size = 0x400, scoped, tag = 'input window, operand 1, single buffered']
    #allocation6 [shape = 's32[1]{0}', space=sflag, size = 0x4, scoped, tag = 'scoped memory for _lambda_.53']
    #allocation7 [shape = 'u8[512]{0}', space=vmem, size = 0x400, scoped, tag = 'input window, operand 2, single buffered']
    #allocation8 [shape = 'u8[2048]{0}', space=vmem, size = 0x800, scoped, tag = 'output window, operand 0, single buffered']
    %8 = vsyncpa [#allocation3], 0
    %9 = vsyncpa [#allocation6], 0
    %10 = vsyncpa [#allocation4], 0
    // Predicated region
    $region2: #{_lambda_.53} parent=1 // pred_check
      _
    $region3: #{_lambda_.53} parent=1 // pred_check_branch
      %12 = sbr.rel (0) target = $region5
    $region4: #{_lambda_.53} parent=1 // pred_region
      %s14 = ssub.s32 64, 64
      %15 = vsyncadd [#allocation3], %s14
      %s17 = sshll.u32 [#allocation2], 4
      %s18 = int_to_ptr.vmem [resolvable:$true] %s17
      %20 = dma.hbm_to_vmem [thread:$0]  %s0, 64, %s18, [#allocation3]
    $region5: #{_lambda_.53} parent=1 // pred_fallthru
      _
    // Predicated region
    $region6: #{_lambda_.53} parent=1 // pred_check
      _
    $region7: #{_lambda_.53} parent=1 // pred_check_branch
      %22 = sbr.rel (0) target = $region9
    $region8: #{_lambda_.53} parent=1 // pred_region
      %s24 = ssub.s32 16, 16
      %25 = vsyncadd [#allocation6], %s24
      %s27 = sshll.u32 [#allocation5], 4
      %s28 = int_to_ptr.vmem [resolvable:$true] %s27
      %30 = dma.hbm_to_vmem [thread:$0]  %s1, 16, %s28, [#allocation6]
    $region9: #{_lambda_.53} parent=1 // pred_fallthru
      _
    // Predicated region
    $region10: #{_lambda_.53} parent=1 // pred_check
      _
    $region11: #{_lambda_.53} parent=1 // pred_check_branch
      %32 = sbr.rel (0) target = $region13
    $region12: #{_lambda_.53} parent=1 // pred_region
      %s34 = ssub.s32 16, 16
      %35 = vsyncadd [#allocation6], %s34
      %s37 = sshll.u32 [#allocation7], 4
      %s38 = int_to_ptr.vmem [resolvable:$true] %s37
      %40 = dma.hbm_to_vmem [thread:$0]  %s2, 16, %s38, [#allocation6]
    $region13: #{_lambda_.53} parent=1 // pred_fallthru
      _
    // Predicated region
    $region14: #{_lambda_.53} parent=1 // pred_check
      _
    $region15: #{_lambda_.53} parent=1 // pred_check_branch
      %42 = sbr.rel (0) target = $region17
    $region16: #{_lambda_.53} parent=1 // pred_region
      %43 = dma.done [#allocation3], 64
    $region17: #{_lambda_.53} parent=1 // pred_fallthru
      _
    // Predicated region
    $region18: #{_lambda_.53} parent=1 // pred_check
      _
    $region19: #{_lambda_.53} parent=1 // pred_check_branch
      %45 = sbr.rel (0) target = $region21
    $region20: #{_lambda_.53} parent=1 // pred_region
      %46 = dma.done [#allocation6], 16
    $region21: #{_lambda_.53} parent=1 // pred_fallthru
      _
    // Predicated region
    $region22: #{_lambda_.53} parent=1 // pred_check
      _
    $region23: #{_lambda_.53} parent=1 // pred_check_branch
      %48 = sbr.rel (0) target = $region25
    $region24: #{_lambda_.53} parent=1 // pred_region
      %49 = dma.done [#allocation6], 16
    $region25: #{_lambda_.53} parent=1 // pred_fallthru
      _
    %v50 = vld [vmem:[#allocation2] sm:$0xf]
    %v51 = vunpack.c.l.bf16 %v50
    %vm52 = vcmask 523264
    %v53 = vsel %vm52, %v51, 0.0
    %54 = vadd.xlane.f32.xlu0 %v53
    %v55 = vpop.xlane.xlu0 %54
    %v56 = vrcp.pop 64.0
    %v57 = vmul.f32 %v55, %v56
    %v58 = vsub.f32 %v51, %v57
    %v59 = vmul.f32 %v58, %v58
    %v60 = vsel %vm52, %v59, 0.0
    %61 = vadd.xlane.f32.xlu0 %v60
    %v62 = vpop.xlane.xlu0 %61
    %v63 = vmul.f32 %v62, %v56
    %v64 = vadd.f32 %v63, 1e-05
    %v65 = vrsqrt.pop %v64
    %v66 = vmul.f32 %v58, %v65
    %v67 = vld [vmem:[#allocation5] sm:$0x1]
    %v69 = vlaneseq
    %v70 = vshrl.u32 %v69, 7
    %v71 = vsub.s32 0, %v70
    %v72 = vrot.slane %v67, %v71
    %v74 = vmul.f32 %v66, %v72
    %v75 = vld [vmem:[#allocation7] sm:$0x1]
    %v77 = vlaneseq
    %v78 = vshrl.u32 %v77, 7
    %v79 = vsub.s32 0, %v78
    %v80 = vrot.slane %v75, %v79
    %v82 = vadd.f32 %v74, %v80
    %v83 = vpack.c.bf16 %v82, %v82
    %vm84 = vcmask 519168
    %85 = vst.msk [vmem:[#allocation8] sm:$0xf] %vm84, %v83
    // Predicated region
    $region26: #{_lambda_.53} parent=1 // pred_check
      _
    $region27: #{_lambda_.53} parent=1 // pred_check_branch
      %87 = sbr.rel (0) target = $region29
    $region28: #{_lambda_.53} parent=1 // pred_region
      %s89 = ssub.s32 64, 64
      %90 = vsyncadd [#allocation4], %s89
      %s92 = sshll.u32 [#allocation8], 4
      %s93 = int_to_ptr.vmem [resolvable:$true] %s92
      %95 = dma.vmem_to_hbm [thread:$0]  %s93, 64, %s3, [#allocation4]
    $region29: #{_lambda_.53} parent=1 // pred_fallthru
      _
    // Predicated region
    $region30: #{_lambda_.53} parent=1 // pred_check
      _
    $region31: #{_lambda_.53} parent=1 // pred_check_branch
      %97 = sbr.rel (0) target = $region33
    $region32: #{_lambda_.53} parent=1 // pred_region
      %98 = dma.done [#allocation4], 64
    $region33: #{_lambda_.53} parent=1 // pred_fallthru
      _
    %99 = vsyncpa [#allocation3], 1
    %100 = vsyncpa [#allocation6], 1
    %101 = vsyncpa [#allocation4], 1

// kernel: _lambda_.52
$region0: #{_lambda_.52}
  #allocation0 [shape = 'u32[]', space=smem, size = 0x4, offset = 0x4, fixed_abs, tag = 'smem constant byte address 0x4 - core index']
  #allocation1 [shape = 'u32[144,128]{1,0:T(1,128)}', space=vmem, size = 0x12000, scoped, tag = 'internal scratch']
  %s0 = inlined_call_operand.hbm [shape: bf16[8,128], index: 0, kind: input, shape index: {}]
  %s1 = inlined_call_operand.hbm [shape: bf16[128,64], index: 1, kind: input, shape index: {}]
  %s2 = inlined_call_operand.hbm [shape: bf16[8,64], index: 2, kind: output, shape index: {}]
  %s3 = sld [smem:[#allocation0]]
  $region26: #{_lambda_.52} parent=0
    _
  %s5 = ssub.s32 1, %s3
  %s6 = scalar_select 0, %s5, %s3
  $region1: #{_lambda_.52} parent=0
    #allocation2 [shape = 'u8[2048]{0}', space=vmem, size = 0x800, scoped, tag = 'input window, operand 0, single buffered']
    #allocation3 [shape = 's32[1]{0}', space=sflag, size = 0x4, scoped, tag = 'scoped memory for _lambda_.52']
    #allocation4 [shape = 's32[1]{0}', space=sflag, size = 0x4, scoped, tag = 'scoped memory for _lambda_.52']
    #allocation5 [shape = 'u8[32768]{0}', space=vmem, size = 0x8000, scoped, tag = 'input window, operand 1, single buffered']
    #allocation6 [shape = 's32[1]{0}', space=sflag, size = 0x4, scoped, tag = 'scoped memory for _lambda_.52']
    #allocation7 [shape = 'u8[2048]{0}', space=vmem, size = 0x800, scoped, tag = 'output window, operand 0, single buffered']
    %7 = vsyncpa [#allocation3], 0
    %8 = vsyncpa [#allocation6], 0
    %9 = vsyncpa [#allocation4], 0
    // Predicated region
    $region2: #{_lambda_.52} parent=1 // pred_check
      _
    $region3: #{_lambda_.52} parent=1 // pred_check_branch
      %11 = sbr.rel (0) target = $region5
    $region4: #{_lambda_.52} parent=1 // pred_region
      %s13 = ssub.s32 64, 64
      %14 = vsyncadd [#allocation3], %s13
      %s16 = sshll.u32 [#allocation2], 4
      %s17 = int_to_ptr.vmem [resolvable:$true] %s16
      %19 = dma.hbm_to_vmem [thread:$0]  %s0, 64, %s17, [#allocation3]
    $region5: #{_lambda_.52} parent=1 // pred_fallthru
      _
    // Predicated region
    $region6: #{_lambda_.52} parent=1 // pred_check
      _
    $region7: #{_lambda_.52} parent=1 // pred_check_branch
      %21 = sbr.rel (0) target = $region9
    $region8: #{_lambda_.52} parent=1 // pred_region
      %s23 = ssub.s32 1024, 1024
      %24 = vsyncadd [#allocation6], %s23
      %s25 = sshll.u32 [#allocation5], 4
      %s26 = int_to_ptr.vmem [resolvable:$true] %s25
      %31 = dma.hbm_to_vmem [thread:$0]  %s1, 1024, %s26, [#allocation6], 64, 64, 4
    $region9: #{_lambda_.52} parent=1 // pred_fallthru
      _
    // Predicated region
    $region10: #{_lambda_.52} parent=1 // pred_check
      _
    $region11: #{_lambda_.52} parent=1 // pred_check_branch
      %33 = sbr.rel (0) target = $region13
    $region12: #{_lambda_.52} parent=1 // pred_region
      %34 = dma.done [#allocation3], 64
    $region13: #{_lambda_.52} parent=1 // pred_fallthru
      _
    // Predicated region
    $region14: #{_lambda_.52} parent=1 // pred_check
      _
    $region15: #{_lambda_.52} parent=1 // pred_check_branch
      %36 = sbr.rel (0) target = $region17
    $region16: #{_lambda_.52} parent=1 // pred_region
      %37 = dma.done [#allocation6], 1024
    $region17: #{_lambda_.52} parent=1 // pred_fallthru
      _
    %v39 = vld [vmem:[#allocation2] sm:$0xf]
    %v40 = vld [vmem:[#allocation5] sm:$0xf]
    %v41 = vld [vmem:[#allocation5 + $0x4] sm:$0xf]
    %v42 = vld [vmem:[#allocation5 + $0x8] sm:$0xf]
    %v43 = vld [vmem:[#allocation5 + $0xc] sm:$0xf]
    %v44 = vld [vmem:[#allocation5 + $0x10] sm:$0xf]
    %v45 = vld [vmem:[#allocation5 + $0x14] sm:$0xf]
    %v46 = vld [vmem:[#allocation5 + $0x18] sm:$0xf]
    %v47 = vld [vmem:[#allocation5 + $0x1c] sm:$0xf]
    %v48 = vld [vmem:[#allocation5 + $0x20] sm:$0xf]
    %v49 = vld [vmem:[#allocation5 + $0x24] sm:$0xf]
    %v50 = vld [vmem:[#allocation5 + $0x28] sm:$0xf]
    %v51 = vld [vmem:[#allocation5 + $0x2c] sm:$0xf]
    %v52 = vld [vmem:[#allocation5 + $0x30] sm:$0xf]
    %v53 = vld [vmem:[#allocation5 + $0x34] sm:$0xf]
    %v54 = vld [vmem:[#allocation5 + $0x38] sm:$0xf]
    %v55 = vld [vmem:[#allocation5 + $0x3c] sm:$0xf]
    %v72 = vunpack.c.l.b16 %v40
    %v73 = vunpack.c.l.b16 %v41
    %v74 = vunpack.c.l.b16 %v42
    %v75 = vunpack.c.l.b16 %v43
    %v76 = vunpack.c.l.b16 %v44
    %v77 = vunpack.c.l.b16 %v45
    %v78 = vunpack.c.l.b16 %v46
    %v79 = vunpack.c.l.b16 %v47
    %v80 = vunpack.c.l.b16 %v48
    %v81 = vunpack.c.l.b16 %v49
    %v82 = vunpack.c.l.b16 %v50
    %v83 = vunpack.c.l.b16 %v51
    %v84 = vunpack.c.l.b16 %v52
    %v85 = vunpack.c.l.b16 %v53
    %v86 = vunpack.c.l.b16 %v54
    %v87 = vunpack.c.l.b16 %v55
    %v88 = vpack.c.b16 %v73, %v72
    %v89 = vpack.c.b16 %v75, %v74
    %v90 = vpack.c.b16 %v77, %v76
    %v91 = vpack.c.b16 %v79, %v78
    %v92 = vpack.c.b16 %v81, %v80
    %v93 = vpack.c.b16 %v83, %v82
    %v94 = vpack.c.b16 %v85, %v84
    %v95 = vpack.c.b16 %v87, %v86
    %104 = vmatprep.subr.bf16.mxu0 0
    %105 = vmatpush1.bf16.msra.mxu0 %v88
    %106 = vmatprep.subr.bf16.mxu0 0
    %107 = vmatpush1.bf16.msra.mxu0 %v89
    %108 = vmatprep.subr.bf16.mxu0 0
    %109 = vmatpush1.bf16.msra.mxu0 %v90
    %110 = vmatprep.subr.bf16.mxu0 0
    %111 = vmatpush1.bf16.msra.mxu0 %v91
    %112 = vmatprep.subr.bf16.mxu0 0
    %113 = vmatpush1.bf16.msra.mxu0 %v92
    %114 = vmatprep.subr.bf16.mxu0 0
    %115 = vmatpush1.bf16.msra.mxu0 %v93
    %116 = vmatprep.subr.bf16.mxu0 0
    %117 = vmatpush1.bf16.msra.mxu0 %v94
    %118 = vmatprep.subr.bf16.mxu0 0
    %119 = vmatpush1.bf16.msra.mxu0 %v95
    %120 = vmatprep.subr.bf16.mxu0 0
    %121 = vmatpush1.bf16.msra.mxu0 0
    %122 = vmatprep.subr.bf16.mxu0 0
    %123 = vmatpush1.bf16.msra.mxu0 0
    %124 = vmatprep.subr.bf16.mxu0 0
    %125 = vmatpush1.bf16.msra.mxu0 0
    %126 = vmatprep.subr.bf16.mxu0 0
    %127 = vmatpush1.bf16.msra.mxu0 0
    %128 = vmatprep.subr.bf16.mxu0 0
    %129 = vmatpush1.bf16.msra.mxu0 0
    %130 = vmatprep.subr.bf16.mxu0 0
    %131 = vmatpush1.bf16.msra.mxu0 0
    %132 = vmatprep.subr.bf16.mxu0 0
    %133 = vmatpush1.bf16.msra.mxu0 0
    %134 = vmatprep.subr.bf16.mxu0 0
    %135 = vmatpush1.bf16.msra.mxu0 0
    %136 = vmatprep.mubr.bf16.mxu0 0
    %137 = vmatmul.mubr.bf16.gmra.mrb[0].mxu0 %v39
    %v138 = vpop.f32.mrb[0].mxu0
    %v139 = vadd.f32 0.0, %v138
    %v140 = vpop.f32.mrb[0].mxu0
    %v141 = vpop.f32.mrb[0].mxu0
    %v142 = vpop.f32.mrb[0].mxu0
    %143 = vdwg.mxu0
    %v144 = vpack.c.bf16 %v139, %v139
    %vm145 = vcmask 519168
    %146 = vst.msk [vmem:[#allocation7] sm:$0xf] %vm145, %v144
    // Predicated region
    $region18: #{_lambda_.52} parent=1 // pred_check
      _
    $region19: #{_lambda_.52} parent=1 // pred_check_branch
      %148 = sbr.rel (0) target = $region21
    $region20: #{_lambda_.52} parent=1 // pred_region
      %s150 = ssub.s32 64, 64
      %151 = vsyncadd [#allocation4], %s150
      %s153 = sshll.u32 [#allocation7], 4
      %s154 = int_to_ptr.vmem [resolvable:$true] %s153
      %156 = dma.vmem_to_hbm [thread:$0]  %s154, 64, %s2, [#allocation4]
    $region21: #{_lambda_.52} parent=1 // pred_fallthru
      _
    // Predicated region
    $region22: #{_lambda_.52} parent=1 // pred_check
      _
    $region23: #{_lambda_.52} parent=1 // pred_check_branch
      %158 = sbr.rel (0) target = $region25
    $region24: #{_lambda_.52} parent=1 // pred_region
      %159 = dma.done [#allocation4], 64
    $region25: #{_lambda_.52} parent=1 // pred_fallthru
      _
    %160 = vsyncpa [#allocation3], 1
    %161 = vsyncpa [#allocation6], 1
    %162 = vsyncpa [#allocation4], 1

// kernel: _lambda_.46
$region0: #{_lambda_.46}
  #allocation0 [shape = 'u32[]', space=smem, size = 0x4, offset = 0x4, fixed_abs, tag = 'smem constant byte address 0x4 - core index']
  #allocation1 [shape = 'u32[144,128]{1,0:T(1,128)}', space=vmem, size = 0x12000, scoped, tag = 'internal scratch']
  %s0 = inlined_call_operand.hbm [shape: bf16[8,4,96], index: 0, kind: input, shape index: {}]
  %s1 = inlined_call_operand.hbm [shape: f32[2,4,4,4], index: 1, kind: input, shape index: {}]
  %s2 = inlined_call_operand.hbm [shape: bf16[8,4,32], index: 2, kind: output, shape index: {}]
  %s3 = sld [smem:[#allocation0]]
  $region49: #{_lambda_.46} parent=0
    _
  %s5 = ssub.s32 1, %s3
  %s6 = scalar_select 0, %s5, %s3
  $region1: #{_lambda_.46} parent=0
    #allocation2 [shape = 'u8[8192]{0}', space=vmem, size = 0x2000, scoped, tag = 'input window, operand 0']
    #allocation3 [shape = 's32[2]{0}', space=sflag, size = 0x8, scoped, tag = 'scoped memory for _lambda_.46']
    #allocation4 [shape = 's32[2]{0}', space=sflag, size = 0x8, scoped, tag = 'scoped memory for _lambda_.46']
    #allocation5 [shape = 'u8[16384]{0}', space=vmem, size = 0x4000, scoped, tag = 'input window, operand 1, single buffered']
    #allocation6 [shape = 's32[1]{0}', space=sflag, size = 0x4, scoped, tag = 'scoped memory for _lambda_.46']
    #allocation7 [shape = 'u8[8192]{0}', space=vmem, size = 0x2000, scoped, tag = 'output window, operand 0']
    %7 = vsyncpa [#allocation3], 0
    %s8 = scalar_lea.sflag [#allocation3], 1
    %9 = vsyncpa %s8, 0
    %10 = vsyncpa [#allocation6], 0
    %11 = vsyncpa [#allocation4], 0
    %s12 = scalar_lea.sflag [#allocation4], 1
    %13 = vsyncpa %s12, 0
    loop: start=0, step=1, limit=4
    $region2: #{_lambda_.46} parent=1 // loop_pre_header
      _
    $region3: #{_lambda_.46} parent=1 // loop_header
      %s15 = sphi 0, %s19
      %p16 = scmp.ge.s32.totalorder %s15, 4
      %s25 = sphi 0, %s27
      %s28 = sphi 0, %s25
      %s29 = sphi 0, %s28
      %s45 = sphi 0, %s29
      %s49 = sphi 0, %s49
      %s51 = sphi 0, %s49
      %s52 = sphi 0, %s51
      %s66 = sphi 0, %s52
      %s72 = sphi 0, %s74
      %s75 = sphi 0, %s72
      %s76 = sphi 0, %s75
      %s92 = sphi 0, %s76
    $region4: #{_lambda_.46} parent=1 // loop_header_branch
      %18 = sbr.rel (%p16) target = $region8
    $region5: #{_lambda_.46} parent=1 // loop_body
      %s20 = ssub.s32 %s15, 1
      %s21 = ssub.s32 %s15, 2
      %s22 = sadd.s32 %s15, 1
      %s23 = ssub.s32 %s15, %s22
      %p24 = scmp.eq.s32.totalorder %s23, 0
      %s26 = sadd.s32 %s25, 1
      %s27 = scalar_select %p24, %s25, %s26
      %p30 = pneg %p24
      %p31 = scmp.eq.s32.totalorder %s15, 1
      %p32 = por %p30, %p31
      %p33 = scmp.ne.s32.totalorder %s25, %s28
      %p34 = scmp.eq.s32.totalorder %s15, 0
      %p35 = por %p33, %p34
      %p36 = scmp.ne.s32.totalorder %s25, %s28
      %p37 = scmp.eq.s32.totalorder %s20, 1
      %p38 = por %p36, %p37
      %p39 = scmp.ne.s32.totalorder %s28, %s29
      %p40 = scmp.eq.s32.totalorder %s20, 0
      %p41 = por %p39, %p40
      %p42 = scmp.ne.s32.totalorder %s28, %s29
      %p43 = scmp.eq.s32.totalorder %s21, 1
      %p44 = por %p42, %p43
      %p46 = scmp.ne.s32.totalorder %s29, %s45
      %p47 = scmp.eq.s32.totalorder %s21, 0
      %p48 = por %p46, %p47
      %s50 = sadd.s32 %s49, 1
      %p53 = scmp.eq.s32.totalorder %s15, 1
      %p54 = scmp.ne.s32.totalorder %s49, %s51
      %p55 = scmp.eq.s32.totalorder %s15, 0
      %p56 = por %p54, %p55
      %p57 = scmp.ne.s32.totalorder %s49, %s51
      %p58 = scmp.eq.s32.totalorder %s20, 1
      %p59 = por %p57, %p58
      %p60 = scmp.ne.s32.totalorder %s51, %s52
      %p61 = scmp.eq.s32.totalorder %s20, 0
      %p62 = por %p60, %p61
      %p63 = scmp.ne.s32.totalorder %s51, %s52
      %p64 = scmp.eq.s32.totalorder %s21, 1
      %p65 = por %p63, %p64
      %p67 = scmp.ne.s32.totalorder %s52, %s66
      %p68 = scmp.eq.s32.totalorder %s21, 0
      %p69 = por %p67, %p68
      %s70 = ssub.s32 %s15, %s22
      %p71 = scmp.eq.s32.totalorder %s70, 0
      %s73 = sadd.s32 %s72, 1
      %s74 = scalar_select %p71, %s72, %s73
      %p77 = pneg %p71
      %p78 = scmp.eq.s32.totalorder %s15, 1
      %p79 = por %p77, %p78
      %p80 = scmp.ne.s32.totalorder %s72, %s75
      %p81 = scmp.eq.s32.totalorder %s15, 0
      %p82 = por %p80, %p81
      %p83 = scmp.ne.s32.totalorder %s72, %s75
      %p84 = scmp.eq.s32.totalorder %s20, 1
      %p85 = por %p83, %p84
      %p86 = scmp.ne.s32.totalorder %s75, %s76
      %p87 = scmp.eq.s32.totalorder %s20, 0
      %p88 = por %p86, %p87
      %p89 = scmp.ne.s32.totalorder %s75, %s76
      %p90 = scmp.eq.s32.totalorder %s21, 1
      %p91 = por %p89, %p90
      %p93 = scmp.ne.s32.totalorder %s76, %s92
      %p94 = scmp.eq.s32.totalorder %s21, 0
      %p95 = por %p93, %p94
      %p96 = scmp.le.s32.totalorder 1, %s15
      %p97 = scmp.lt.s32.totalorder %s15, 3
      %p98 = pnand %p96, %p97
      %p99 = pneg %p98
      // Predicated region
      $region9: #{_lambda_.46} parent=5 // pred_check
        _
      $region10: #{_lambda_.46} parent=5 // pred_check_branch
        %101 = sbr.rel (%p98) target = $region12
      $region11: #{_lambda_.46} parent=5 // pred_region
        %s102 = ssub.s32 %s15, 1
        // Predicated region
        $region13: #{_lambda_.46} parent=11 // pred_check
          %p103 = pneg %p62
        $region14: #{_lambda_.46} parent=11 // pred_check_branch
          %105 = sbr.rel (%p103) target = $region16
        $region15: #{_lambda_.46} parent=11 // pred_region
          %s107 = ssub.s32 512, 512
          %108 = vsyncadd [#allocation6], %s107
          %s109 = sshll.u32 [#allocation5], 4
          %s110 = int_to_ptr.vmem [resolvable:$true] %s109
          %115 = dma.hbm_to_vmem [thread:$0]  %s1, 512, %s110, [#allocation6], 64, 64, 4
        $region16: #{_lambda_.46} parent=11 // pred_fallthru
          _
      $region12: #{_lambda_.46} parent=5 // pred_fallthru
        _
      %p116 = scmp.lt.s32.totalorder %s15, 2
      // Predicated region
      $region17: #{_lambda_.46} parent=5 // pred_check
        %p117 = pneg %p116
      $region18: #{_lambda_.46} parent=5 // pred_check_branch
        %119 = sbr.rel (%p117) target = $region20
      $region19: #{_lambda_.46} parent=5 // pred_region
        // Predicated region
        $region21: #{_lambda_.46} parent=19 // pred_check
          %p120 = pneg %p35
        $region22: #{_lambda_.46} parent=19 // pred_check_branch
          %122 = sbr.rel (%p120) target = $region24
        $region23: #{_lambda_.46} parent=19 // pred_region
          %s123 = sand.u32 %s25, 1
          %s124 = scalar_lea.sflag [#allocation3], %s123
          %s125 = sand.u32 %s25, 1
          %s126 = smul.addr %s125, 8
          %s127 = scalar_lea.vmem [#allocation2], %s126
          %s128 = smul.u32 4, %s15
          %s130 = ssub.s32 128, 128
          %131 = vsyncadd %s124, %s130
          %s132 = smul.addr %s128, 32
          %s133 = scalar_lea.hbm %s0, %s132
          %s134 = sshll.u32 %s127, 4
          %s135 = int_to_ptr.vmem [resolvable:$true] %s134
          %140 = dma.hbm_to_vmem [thread:$0]  %s133, 128, %s135, %s124, 32, 32, 2
        $region24: #{_lambda_.46} parent=19 // pred_fallthru
          _
      $region20: #{_lambda_.46} parent=5 // pred_fallthru
        _
      %p141 = scmp.le.s32.totalorder 1, %s15
      %p142 = scmp.lt.s32.totalorder %s15, 3
      %p143 = pnand %p141, %p142
      %p144 = pneg %p143
      // Predicated region
      $region25: #{_lambda_.46} parent=5 // pred_check
        _
      $region26: #{_lambda_.46} parent=5 // pred_check_branch
        %146 = sbr.rel (%p143) target = $region28
      $region27: #{_lambda_.46} parent=5 // pred_region
        %s147 = ssub.s32 %s15, 1
        %s148 = sand.u32 %s28, 1
        %s149 = scalar_lea.sflag [#allocation3], %s148
        %s150 = sand.u32 %s28, 1
        %s151 = smul.addr %s150, 8
        %s152 = scalar_lea.vmem [#allocation2], %s151
        // Predicated region
        $region29: #{_lambda_.46} parent=27 // pred_check
          %p153 = pneg %p41
        $region30: #{_lambda_.46} parent=27 // pred_check_branch
          %155 = sbr.rel (%p153) target = $region32
        $region31: #{_lambda_.46} parent=27 // pred_region
          %156 = dma.done %s149, 128
        $region32: #{_lambda_.46} parent=27 // pred_fallthru
          _
        // Predicated region
        $region33: #{_lambda_.46} parent=27 // pred_check
          %p157 = pneg %p62
        $region34: #{_lambda_.46} parent=27 // pred_check_branch
          %159 = sbr.rel (%p157) target = $region36
        $region35: #{_lambda_.46} parent=27 // pred_region
          %160 = dma.done [#allocation6], 512
        $region36: #{_lambda_.46} parent=27 // pred_fallthru
          _
        %s161 = sand.u32 %s28, 1
        %s162 = scalar_lea.sflag [#allocation3], %s161
        %s163 = sand.u32 %s28, 1
        %s164 = smul.addr %s163, 8
        %s165 = scalar_lea.vmem [#allocation2], %s164
        %p166 = pneg %p41
        %p167 = pneg %p38
        %p168 = pneg %p62
        %p169 = pneg %p59
        %p170 = pneg %p88
        %p171 = pneg %p85
        %s172 = sand.u32 %s75, 1
        %s173 = scalar_lea.sflag [#allocation4], %s172
        %s174 = sand.u32 %s75, 1
        %s175 = smul.addr %s174, 8
        %s176 = scalar_lea.vmem [#allocation7], %s175
        %s177 = smul.u32 4, %s20
        %s178 = smul.u32 4, %s20
        %v180 = vld [vmem:[%s152] sm:$0x3]
        %v181 = vld [vmem:[%s152 + $0x2] sm:$0x3]
        %v182 = vld [vmem:[%s152 + $0x4] sm:$0x3]
        %v183 = vld [vmem:[%s152 + $0x6] sm:$0x3]
        %v186 = vunpack.c.l.s4 1983009808
        %v187 = vunpack.c.0.s8 %v186
        %v188 = vlaneseq
        %v189 = vshrl.u32 %v188, 7
        %v190 = vsub.s32 %v187, %v189
        %v191 = vrot.slane %v180, %v190
        %192 = vrot.lane.b32.xlu0 %v191, 96
        %v193 = vpop.permute.xlu0 %192
        %vm194 = vcmask 130048
        %v196 = vsel %vm194, %v180, 0
        %v199 = vsel %vm194, %v193, 0
        %201 = vmatprep.subr.bf16.mxu0 0
        %202 = vmatpush1.bf16.xpose.msra.mxu0 %v199
        %203 = vmatprep.subr.bf16.mxu0 0
        %204 = vmatpush1.bf16.xpose.msra.mxu0 0
        %205 = vmatprep.subr.bf16.mxu0 0
        %206 = vmatpush1.bf16.xpose.msra.mxu0 0
        %207 = vmatprep.subr.bf16.mxu0 0
        %208 = vmatpush1.bf16.xpose.msra.mxu0 0
        %209 = vmatprep.subr.bf16.mxu0 0
        %210 = vmatpush1.bf16.xpose.msra.mxu0 0
        %211 = vmatprep.subr.bf16.mxu0 0
        %212 = vmatpush1.bf16.xpose.msra.mxu0 0
        %213 = vmatprep.subr.bf16.mxu0 0
        %214 = vmatpush1.bf16.xpose.msra.mxu0 0
        %215 = vmatprep.subr.bf16.mxu0 0
        %216 = vmatpush1.bf16.xpose.msra.mxu0 0
        %217 = vmatprep.subr.bf16.mxu0 0
        %218 = vmatpush1.bf16.xpose.msra.mxu0 0
        %219 = vmatprep.subr.bf16.mxu0 0
        %220 = vmatpush1.bf16.xpose.msra.mxu0 0
        %221 = vmatprep.subr.bf16.mxu0 0
        %222 = vmatpush1.bf16.xpose.msra.mxu0 0
        %223 = vmatprep.subr.bf16.mxu0 0
        %224 = vmatpush1.bf16.xpose.msra.mxu0 0
        %225 = vmatprep.subr.bf16.mxu0 0
        %226 = vmatpush1.bf16.xpose.msra.mxu0 0
        %227 = vmatprep.subr.bf16.mxu0 0
        %228 = vmatpush1.bf16.xpose.msra.mxu0 0
        %229 = vmatprep.subr.bf16.mxu0 0
        %230 = vmatpush1.bf16.xpose.msra.mxu0 0
        %231 = vmatprep.subr.bf16.mxu0 0
        %232 = vmatpush1.bf16.xpose.msra.mxu0 0
        %233 = vmatprep.mubr.bf16.mxu0 0
        %234 = vmatmul.mubr.bf16.gmra.mrb[0].mxu0 %v196
        %v235 = vpop.f32.mrb[0].mxu0
        %v236 = vadd.f32 0.0, %v235
        %v237 = vpop.f32.mrb[0].mxu0
        %v238 = vpop.f32.mrb[0].mxu0
        %v239 = vpop.f32.mrb[0].mxu0
        %240 = vdwg.mxu0
        %v243 = vunpack.c.l.s4 1983009808
        %v244 = vunpack.c.0.s8 %v243
        %v245 = vlaneseq
        %v246 = vshrl.u32 %v245, 7
        %v247 = vsub.s32 %v244, %v246
        %v248 = vrot.slane %v181, %v247
        %249 = vrot.lane.b32.xlu0 %v248, 96
        %v250 = vpop.permute.xlu0 %249
        %v252 = vsel %vm194, %v181, 0
        %v255 = vsel %vm194, %v250, 0
        %257 = vmatprep.subr.bf16.mxu0 0
        %258 = vmatpush1.bf16.xpose.msra.mxu0 %v255
        %259 = vmatprep.subr.bf16.mxu0 0
        %260 = vmatpush1.bf16.xpose.msra.mxu0 0
        %261 = vmatprep.subr.bf16.mxu0 0
        %262 = vmatpush1.bf16.xpose.msra.mxu0 0
        %263 = vmatprep.subr.bf16.mxu0 0
        %264 = vmatpush1.bf16.xpose.msra.mxu0 0
        %265 = vmatprep.subr.bf16.mxu0 0
        %266 = vmatpush1.bf16.xpose.msra.mxu0 0
        %267 = vmatprep.subr.bf16.mxu0 0
        %268 = vmatpush1.bf16.xpose.msra.mxu0 0
        %269 = vmatprep.subr.bf16.mxu0 0
        %270 = vmatpush1.bf16.xpose.msra.mxu0 0
        %271 = vmatprep.subr.bf16.mxu0 0
        %272 = vmatpush1.bf16.xpose.msra.mxu0 0
        %273 = vmatprep.subr.bf16.mxu0 0
        %274 = vmatpush1.bf16.xpose.msra.mxu0 0
        %275 = vmatprep.subr.bf16.mxu0 0
        %276 = vmatpush1.bf16.xpose.msra.mxu0 0
        %277 = vmatprep.subr.bf16.mxu0 0
        %278 = vmatpush1.bf16.xpose.msra.mxu0 0
        %279 = vmatprep.subr.bf16.mxu0 0
        %280 = vmatpush1.bf16.xpose.msra.mxu0 0
        %281 = vmatprep.subr.bf16.mxu0 0
        %282 = vmatpush1.bf16.xpose.msra.mxu0 0
        %283 = vmatprep.subr.bf16.mxu0 0
        %284 = vmatpush1.bf16.xpose.msra.mxu0 0
        %285 = vmatprep.subr.bf16.mxu0 0
        %286 = vmatpush1.bf16.xpose.msra.mxu0 0
        %287 = vmatprep.subr.bf16.mxu0 0
        %288 = vmatpush1.bf16.xpose.msra.mxu0 0
        %289 = vmatprep.mubr.bf16.mxu0 0
        %290 = vmatmul.mubr.bf16.gmra.mrb[0].mxu0 %v252
        %v291 = vpop.f32.mrb[0].mxu0
        %v292 = vadd.f32 0.0, %v291
        %v293 = vpop.f32.mrb[0].mxu0
        %v294 = vpop.f32.mrb[0].mxu0
        %v295 = vpop.f32.mrb[0].mxu0
        %296 = vdwg.mxu0
        %v299 = vunpack.c.l.s4 1983009808
        %v300 = vunpack.c.0.s8 %v299
        %v301 = vlaneseq
        %v302 = vshrl.u32 %v301, 7
        %v303 = vsub.s32 %v300, %v302
        %v304 = vrot.slane %v182, %v303
        %305 = vrot.lane.b32.xlu0 %v304, 96
        %v306 = vpop.permute.xlu0 %305
        %v308 = vsel %vm194, %v182, 0
        %v311 = vsel %vm194, %v306, 0
        %313 = vmatprep.subr.bf16.mxu0 0
        %314 = vmatpush1.bf16.xpose.msra.mxu0 %v311
        %315 = vmatprep.subr.bf16.mxu0 0
        %316 = vmatpush1.bf16.xpose.msra.mxu0 0
        %317 = vmatprep.subr.bf16.mxu0 0
        %318 = vmatpush1.bf16.xpose.msra.mxu0 0
        %319 = vmatprep.subr.bf16.mxu0 0
        %320 = vmatpush1.bf16.xpose.msra.mxu0 0
        %321 = vmatprep.subr.bf16.mxu0 0
        %322 = vmatpush1.bf16.xpose.msra.mxu0 0
        %323 = vmatprep.subr.bf16.mxu0 0
        %324 = vmatpush1.bf16.xpose.msra.mxu0 0
        %325 = vmatprep.subr.bf16.mxu0 0
        %326 = vmatpush1.bf16.xpose.msra.mxu0 0
        %327 = vmatprep.subr.bf16.mxu0 0
        %328 = vmatpush1.bf16.xpose.msra.mxu0 0
        %329 = vmatprep.subr.bf16.mxu0 0
        %330 = vmatpush1.bf16.xpose.msra.mxu0 0
        %331 = vmatprep.subr.bf16.mxu0 0
        %332 = vmatpush1.bf16.xpose.msra.mxu0 0
        %333 = vmatprep.subr.bf16.mxu0 0
        %334 = vmatpush1.bf16.xpose.msra.mxu0 0
        %335 = vmatprep.subr.bf16.mxu0 0
        %336 = vmatpush1.bf16.xpose.msra.mxu0 0
        %337 = vmatprep.subr.bf16.mxu0 0
        %338 = vmatpush1.bf16.xpose.msra.mxu0 0
        %339 = vmatprep.subr.bf16.mxu0 0
        %340 = vmatpush1.bf16.xpose.msra.mxu0 0
        %341 = vmatprep.subr.bf16.mxu0 0
        %342 = vmatpush1.bf16.xpose.msra.mxu0 0
        %343 = vmatprep.subr.bf16.mxu0 0
        %344 = vmatpush1.bf16.xpose.msra.mxu0 0
        %345 = vmatprep.mubr.bf16.mxu0 0
        %346 = vmatmul.mubr.bf16.gmra.mrb[0].mxu0 %v308
        %v347 = vpop.f32.mrb[0].mxu0
        %v348 = vadd.f32 0.0, %v347
        %v349 = vpop.f32.mrb[0].mxu0
        %v350 = vpop.f32.mrb[0].mxu0
        %v351 = vpop.f32.mrb[0].mxu0
        %352 = vdwg.mxu0
        %v355 = vunpack.c.l.s4 1983009808
        %v356 = vunpack.c.0.s8 %v355
        %v357 = vlaneseq
        %v358 = vshrl.u32 %v357, 7
        %v359 = vsub.s32 %v356, %v358
        %v360 = vrot.slane %v183, %v359
        %361 = vrot.lane.b32.xlu0 %v360, 96
        %v362 = vpop.permute.xlu0 %361
        %v364 = vsel %vm194, %v183, 0
        %v367 = vsel %vm194, %v362, 0
        %369 = vmatprep.subr.bf16.mxu0 0
        %370 = vmatpush1.bf16.xpose.msra.mxu0 %v367
        %371 = vmatprep.subr.bf16.mxu0 0
        %372 = vmatpush1.bf16.xpose.msra.mxu0 0
        %373 = vmatprep.subr.bf16.mxu0 0
        %374 = vmatpush1.bf16.xpose.msra.mxu0 0
        %375 = vmatprep.subr.bf16.mxu0 0
        %376 = vmatpush1.bf16.xpose.msra.mxu0 0
        %377 = vmatprep.subr.bf16.mxu0 0
        %378 = vmatpush1.bf16.xpose.msra.mxu0 0
        %379 = vmatprep.subr.bf16.mxu0 0
        %380 = vmatpush1.bf16.xpose.msra.mxu0 0
        %381 = vmatprep.subr.bf16.mxu0 0
        %382 = vmatpush1.bf16.xpose.msra.mxu0 0
        %383 = vmatprep.subr.bf16.mxu0 0
        %384 = vmatpush1.bf16.xpose.msra.mxu0 0
        %385 = vmatprep.subr.bf16.mxu0 0
        %386 = vmatpush1.bf16.xpose.msra.mxu0 0
        %387 = vmatprep.subr.bf16.mxu0 0
        %388 = vmatpush1.bf16.xpose.msra.mxu0 0
        %389 = vmatprep.subr.bf16.mxu0 0
        %390 = vmatpush1.bf16.xpose.msra.mxu0 0
        %391 = vmatprep.subr.bf16.mxu0 0
        %392 = vmatpush1.bf16.xpose.msra.mxu0 0
        %393 = vmatprep.subr.bf16.mxu0 0
        %394 = vmatpush1.bf16.xpose.msra.mxu0 0
        %395 = vmatprep.subr.bf16.mxu0 0
        %396 = vmatpush1.bf16.xpose.msra.mxu0 0
        %397 = vmatprep.subr.bf16.mxu0 0
        %398 = vmatpush1.bf16.xpose.msra.mxu0 0
        %399 = vmatprep.subr.bf16.mxu0 0
        %400 = vmatpush1.bf16.xpose.msra.mxu0 0
        %401 = vmatprep.mubr.bf16.mxu0 0
        %402 = vmatmul.mubr.bf16.gmra.mrb[0].mxu0 %v364
        %v403 = vpop.f32.mrb[0].mxu0
        %v404 = vadd.f32 0.0, %v403
        %v405 = vpop.f32.mrb[0].mxu0
        %v406 = vpop.f32.mrb[0].mxu0
        %v407 = vpop.f32.mrb[0].mxu0
        %408 = vdwg.mxu0
        %v409 = vmul.f32 %v236, 0.25
        %v410 = vmul.f32 %v292, 0.25
        %v411 = vmul.f32 %v348, 0.25
        %v412 = vmul.f32 %v404, 0.25
        %v413 = vld [vmem:[#allocation5] sm:$0xf]
        %v414 = vld [vmem:[#allocation5 + $0x4] sm:$0xf]
        %v415 = vld [vmem:[#allocation5 + $0x8] sm:$0xf]
        %v416 = vld [vmem:[#allocation5 + $0xc] sm:$0xf]
        %v417 = vadd.f32 %v409, %v413
        %v418 = vadd.f32 %v410, %v414
        %v419 = vadd.f32 %v411, %v415
        %v420 = vadd.f32 %v412, %v416
        %vm421 = vcmask 27648
        %v422 = vsel %vm421, %v417, -inf
        %423 = vmax.xlane.f32.xlu0 %v422
        %v424 = vpop.xlane.xlu0 %423
        %v425 = vsel %vm421, %v418, -inf
        %426 = vmax.xlane.f32.xlu0 %v425
        %v427 = vpop.xlane.xlu0 %426
        %v428 = vsel %vm421, %v419, -inf
        %429 = vmax.xlane.f32.xlu0 %v428
        %v430 = vpop.xlane.xlu0 %429
        %v431 = vsel %vm421, %v420, -inf
        %432 = vmax.xlane.f32.xlu0 %v431
        %v433 = vpop.xlane.xlu0 %432
        %v434 = vsub.f32 %v417, %v424
        %v435 = vsub.f32 %v418, %v427
        %v436 = vsub.f32 %v419, %v430
        %v437 = vsub.f32 %v420, %v433
        %v438 = vmul.f32 %v434, 1.442695
        %v439 = vpow.pop %v438
        %v440 = vmul.f32 %v435, 1.442695
        %v441 = vpow.pop %v440
        %v442 = vmul.f32 %v436, 1.442695
        %v443 = vpow.pop %v442
        %v444 = vmul.f32 %v437, 1.442695
        %v445 = vpow.pop %v444
        %v446 = vsel %vm421, %v439, 0.0
        %447 = vadd.xlane.f32.xlu0 %v446
        %v448 = vpop.xlane.xlu0 %447
        %v449 = vsel %vm421, %v441, 0.0
        %450 = vadd.xlane.f32.xlu0 %v449
        %v451 = vpop.xlane.xlu0 %450
        %v452 = vsel %vm421, %v443, 0.0
        %453 = vadd.xlane.f32.xlu0 %v452
        %v454 = vpop.xlane.xlu0 %453
        %v455 = vsel %vm421, %v445, 0.0
        %456 = vadd.xlane.f32.xlu0 %v455
        %v457 = vpop.xlane.xlu0 %456
        %v458 = vrcp.pop %v448
        %v459 = vrcp.pop %v451
        %v460 = vrcp.pop %v454
        %v461 = vrcp.pop %v457
        %v462 = vmul.f32 %v439, %v458
        %v463 = vmul.f32 %v441, %v459
        %v464 = vmul.f32 %v443, %v460
        %v465 = vmul.f32 %v445, %v461
        %v466 = vpack.c.bf16 %v462, %v462
        %v467 = vpack.c.bf16 %v463, %v463
        %v468 = vpack.c.bf16 %v464, %v464
        %v469 = vpack.c.bf16 %v465, %v465
        %470 = vrot.lane.b32.xlu0 %v191, 64
        %v471 = vpop.permute.xlu0 %470
        %vm472 = vcmask 31744
        %v474 = vsel %vm472, %v466, 0
        %vm476 = vcmask 1041408
        %v478 = vsel %vm476, %v471, 0
        %480 = vmatprep.subr.bf16.mxu0 0
        %481 = vmatpush1.bf16.msra.mxu0 %v478
        %482 = vmatprep.subr.bf16.mxu0 0
        %483 = vmatpush1.bf16.msra.mxu0 0
        %484 = vmatprep.subr.bf16.mxu0 0
        %485 = vmatpush1.bf16.msra.mxu0 0
        %486 = vmatprep.subr.bf16.mxu0 0
        %487 = vmatpush1.bf16.msra.mxu0 0
        %488 = vmatprep.subr.bf16.mxu0 0
        %489 = vmatpush1.bf16.msra.mxu0 0
        %490 = vmatprep.subr.bf16.mxu0 0
        %491 = vmatpush1.bf16.msra.mxu0 0
        %492 = vmatprep.subr.bf16.mxu0 0
        %493 = vmatpush1.bf16.msra.mxu0 0
        %494 = vmatprep.subr.bf16.mxu0 0
        %495 = vmatpush1.bf16.msra.mxu0 0
        %496 = vmatprep.subr.bf16.mxu0 0
        %497 = vmatpush1.bf16.msra.mxu0 0
        %498 = vmatprep.subr.bf16.mxu0 0
        %499 = vmatpush1.bf16.msra.mxu0 0
        %500 = vmatprep.subr.bf16.mxu0 0
        %501 = vmatpush1.bf16.msra.mxu0 0
        %502 = vmatprep.subr.bf16.mxu0 0
        %503 = vmatpush1.bf16.msra.mxu0 0
        %504 = vmatprep.subr.bf16.mxu0 0
        %505 = vmatpush1.bf16.msra.mxu0 0
        %506 = vmatprep.subr.bf16.mxu0 0
        %507 = vmatpush1.bf16.msra.mxu0 0
        %508 = vmatprep.subr.bf16.mxu0 0
        %509 = vmatpush1.bf16.msra.mxu0 0
        %510 = vmatprep.subr.bf16.mxu0 0
        %511 = vmatpush1.bf16.msra.mxu0 0
        %512 = vmatprep.mubr.bf16.mxu0 0
        %513 = vmatmul.mubr.bf16.gmra.mrb[0].mxu0 %v474
        %v514 = vpop.f32.mrb[0].mxu0
        %v515 = vadd.f32 0.0, %v514
        %v516 = vpop.f32.mrb[0].mxu0
        %v517 = vpop.f32.mrb[0].mxu0
        %v518 = vpop.f32.mrb[0].mxu0
        %519 = vdwg.mxu0
        %520 = vrot.lane.b32.xlu0 %v248, 64
        %v521 = vpop.permute.xlu0 %520
        %v523 = vsel %vm472, %v467, 0
        %v526 = vsel %vm476, %v521, 0
        %528 = vmatprep.subr.bf16.mxu0 0
        %529 = vmatpush1.bf16.msra.mxu0 %v526
        %530 = vmatprep.subr.bf16.mxu0 0
        %531 = vmatpush1.bf16.msra.mxu0 0
        %532 = vmatprep.subr.bf16.mxu0 0
        %533 = vmatpush1.bf16.msra.mxu0 0
        %534 = vmatprep.subr.bf16.mxu0 0
        %535 = vmatpush1.bf16.msra.mxu0 0
        %536 = vmatprep.subr.bf16.mxu0 0
        %537 = vmatpush1.bf16.msra.mxu0 0
        %538 = vmatprep.subr.bf16.mxu0 0
        %539 = vmatpush1.bf16.msra.mxu0 0
        %540 = vmatprep.subr.bf16.mxu0 0
        %541 = vmatpush1.bf16.msra.mxu0 0
        %542 = vmatprep.subr.bf16.mxu0 0
        %543 = vmatpush1.bf16.msra.mxu0 0
        %544 = vmatprep.subr.bf16.mxu0 0
        %545 = vmatpush1.bf16.msra.mxu0 0
        %546 = vmatprep.subr.bf16.mxu0 0
        %547 = vmatpush1.bf16.msra.mxu0 0
        %548 = vmatprep.subr.bf16.mxu0 0
        %549 = vmatpush1.bf16.msra.mxu0 0
        %550 = vmatprep.subr.bf16.mxu0 0
        %551 = vmatpush1.bf16.msra.mxu0 0
        %552 = vmatprep.subr.bf16.mxu0 0
        %553 = vmatpush1.bf16.msra.mxu0 0
        %554 = vmatprep.subr.bf16.mxu0 0
        %555 = vmatpush1.bf16.msra.mxu0 0
        %556 = vmatprep.subr.bf16.mxu0 0
        %557 = vmatpush1.bf16.msra.mxu0 0
        %558 = vmatprep.subr.bf16.mxu0 0
        %559 = vmatpush1.bf16.msra.mxu0 0
        %560 = vmatprep.mubr.bf16.mxu0 0
        %561 = vmatmul.mubr.bf16.gmra.mrb[0].mxu0 %v523
        %v562 = vpop.f32.mrb[0].mxu0
        %v563 = vadd.f32 0.0, %v562
        %v564 = vpop.f32.mrb[0].mxu0
        %v565 = vpop.f32.mrb[0].mxu0
        %v566 = vpop.f32.mrb[0].mxu0
        %567 = vdwg.mxu0
        %568 = vrot.lane.b32.xlu0 %v304, 64
        %v569 = vpop.permute.xlu0 %568
        %v571 = vsel %vm472, %v468, 0
        %v574 = vsel %vm476, %v569, 0
        %576 = vmatprep.subr.bf16.mxu0 0
        %577 = vmatpush1.bf16.msra.mxu0 %v574
        %578 = vmatprep.subr.bf16.mxu0 0
        %579 = vmatpush1.bf16.msra.mxu0 0
        %580 = vmatprep.subr.bf16.mxu0 0
        %581 = vmatpush1.bf16.msra.mxu0 0
        %582 = vmatprep.subr.bf16.mxu0 0
        %583 = vmatpush1.bf16.msra.mxu0 0
        %584 = vmatprep.subr.bf16.mxu0 0
        %585 = vmatpush1.bf16.msra.mxu0 0
        %586 = vmatprep.subr.bf16.mxu0 0
        %587 = vmatpush1.bf16.msra.mxu0 0
        %588 = vmatprep.subr.bf16.mxu0 0
        %589 = vmatpush1.bf16.msra.mxu0 0
        %590 = vmatprep.subr.bf16.mxu0 0
        %591 = vmatpush1.bf16.msra.mxu0 0
        %592 = vmatprep.subr.bf16.mxu0 0
        %593 = vmatpush1.bf16.msra.mxu0 0
        %594 = vmatprep.subr.bf16.mxu0 0
        %595 = vmatpush1.bf16.msra.mxu0 0
        %596 = vmatprep.subr.bf16.mxu0 0
        %597 = vmatpush1.bf16.msra.mxu0 0
        %598 = vmatprep.subr.bf16.mxu0 0
        %599 = vmatpush1.bf16.msra.mxu0 0
        %600 = vmatprep.subr.bf16.mxu0 0
        %601 = vmatpush1.bf16.msra.mxu0 0
        %602 = vmatprep.subr.bf16.mxu0 0
        %603 = vmatpush1.bf16.msra.mxu0 0
        %604 = vmatprep.subr.bf16.mxu0 0
        %605 = vmatpush1.bf16.msra.mxu0 0
        %606 = vmatprep.subr.bf16.mxu0 0
        %607 = vmatpush1.bf16.msra.mxu0 0
        %608 = vmatprep.mubr.bf16.mxu0 0
        %609 = vmatmul.mubr.bf16.gmra.mrb[0].mxu0 %v571
        %v610 = vpop.f32.mrb[0].mxu0
        %v611 = vadd.f32 0.0, %v610
        %v612 = vpop.f32.mrb[0].mxu0
        %v613 = vpop.f32.mrb[0].mxu0
        %v614 = vpop.f32.mrb[0].mxu0
        %615 = vdwg.mxu0
        %616 = vrot.lane.b32.xlu0 %v360, 64
        %v617 = vpop.permute.xlu0 %616
        %v619 = vsel %vm472, %v469, 0
        %v622 = vsel %vm476, %v617, 0
        %624 = vmatprep.subr.bf16.mxu0 0
        %625 = vmatpush1.bf16.msra.mxu0 %v622
        %626 = vmatprep.subr.bf16.mxu0 0
        %627 = vmatpush1.bf16.msra.mxu0 0
        %628 = vmatprep.subr.bf16.mxu0 0
        %629 = vmatpush1.bf16.msra.mxu0 0
        %630 = vmatprep.subr.bf16.mxu0 0
        %631 = vmatpush1.bf16.msra.mxu0 0
        %632 = vmatprep.subr.bf16.mxu0 0
        %633 = vmatpush1.bf16.msra.mxu0 0
        %634 = vmatprep.subr.bf16.mxu0 0
        %635 = vmatpush1.bf16.msra.mxu0 0
        %636 = vmatprep.subr.bf16.mxu0 0
        %637 = vmatpush1.bf16.msra.mxu0 0
        %638 = vmatprep.subr.bf16.mxu0 0
        %639 = vmatpush1.bf16.msra.mxu0 0
        %640 = vmatprep.subr.bf16.mxu0 0
        %641 = vmatpush1.bf16.msra.mxu0 0
        %642 = vmatprep.subr.bf16.mxu0 0
        %643 = vmatpush1.bf16.msra.mxu0 0
        %644 = vmatprep.subr.bf16.mxu0 0
        %645 = vmatpush1.bf16.msra.mxu0 0
        %646 = vmatprep.subr.bf16.mxu0 0
        %647 = vmatpush1.bf16.msra.mxu0 0
        %648 = vmatprep.subr.bf16.mxu0 0
        %649 = vmatpush1.bf16.msra.mxu0 0
        %650 = vmatprep.subr.bf16.mxu0 0
        %651 = vmatpush1.bf16.msra.mxu0 0
        %652 = vmatprep.subr.bf16.mxu0 0
        %653 = vmatpush1.bf16.msra.mxu0 0
        %654 = vmatprep.subr.bf16.mxu0 0
        %655 = vmatpush1.bf16.msra.mxu0 0
        %656 = vmatprep.mubr.bf16.mxu0 0
        %657 = vmatmul.mubr.bf16.gmra.mrb[0].mxu0 %v619
        %v658 = vpop.f32.mrb[0].mxu0
        %v659 = vadd.f32 0.0, %v658
        %v660 = vpop.f32.mrb[0].mxu0
        %v661 = vpop.f32.mrb[0].mxu0
        %v662 = vpop.f32.mrb[0].mxu0
        %663 = vdwg.mxu0
        %v664 = vpack.c.bf16 %v515, %v515
        %v665 = vpack.c.bf16 %v563, %v563
        %v666 = vpack.c.bf16 %v611, %v611
        %v667 = vpack.c.bf16 %v659, %v659
        %vm668 = vcmask 123904
        %669 = vst.msk [vmem:[%s176] sm:$0x3] %vm668, %v664
        %670 = vst.msk [vmem:[%s176 + $0x2] sm:$0x3] %vm668, %v665
        %671 = vst.msk [vmem:[%s176 + $0x4] sm:$0x3] %vm668, %v666
        %672 = vst.msk [vmem:[%s176 + $0x6] sm:$0x3] %vm668, %v667
        %v673 = vld [vmem:[%s152] sm:$0x3]
        %v674 = vld [vmem:[%s152 + $0x2] sm:$0x3]
        %v675 = vld [vmem:[%s152 + $0x4] sm:$0x3]
        %v676 = vld [vmem:[%s152 + $0x6] sm:$0x3]
        %v679 = vunpack.c.l.s4 1983009808
        %v680 = vunpack.c.0.s8 %v679
        %v681 = vlaneseq
        %v682 = vshrl.u32 %v681, 7
        %v683 = vsub.s32 %v680, %v682
        %v684 = vrot.slane %v673, %v683
        %685 = vrot.lane.b32.xlu0 %v684, 112
        %v686 = vpop.permute.xlu0 %685
        %687 = vrot.lane.b32.xlu0 %v684, 80
        %v688 = vpop.permute.xlu0 %687
        %v690 = vsel %vm194, %v686, 0
        %v693 = vsel %vm194, %v688, 0
        %695 = vmatprep.subr.bf16.mxu0 0
        %696 = vmatpush1.bf16.xpose.msra.mxu0 %v693
        %697 = vmatprep.subr.bf16.mxu0 0
        %698 = vmatpush1.bf16.xpose.msra.mxu0 0
        %699 = vmatprep.subr.bf16.mxu0 0
        %700 = vmatpush1.bf16.xpose.msra.mxu0 0
        %701 = vmatprep.subr.bf16.mxu0 0
        %702 = vmatpush1.bf16.xpose.msra.mxu0 0
        %703 = vmatprep.subr.bf16.mxu0 0
        %704 = vmatpush1.bf16.xpose.msra.mxu0 0
        %705 = vmatprep.subr.bf16.mxu0 0
        %706 = vmatpush1.bf16.xpose.msra.mxu0 0
        %707 = vmatprep.subr.bf16.mxu0 0
        %708 = vmatpush1.bf16.xpose.msra.mxu0 0
        %709 = vmatprep.subr.bf16.mxu0 0
        %710 = vmatpush1.bf16.xpose.msra.mxu0 0
        %711 = vmatprep.subr.bf16.mxu0 0
        %712 = vmatpush1.bf16.xpose.msra.mxu0 0
        %713 = vmatprep.subr.bf16.mxu0 0
        %714 = vmatpush1.bf16.xpose.msra.mxu0 0
        %715 = vmatprep.subr.bf16.mxu0 0
        %716 = vmatpush1.bf16.xpose.msra.mxu0 0
        %717 = vmatprep.subr.bf16.mxu0 0
        %718 = vmatpush1.bf16.xpose.msra.mxu0 0
        %719 = vmatprep.subr.bf16.mxu0 0
        %720 = vmatpush1.bf16.xpose.msra.mxu0 0
        %721 = vmatprep.subr.bf16.mxu0 0
        %722 = vmatpush1.bf16.xpose.msra.mxu0 0
        %723 = vmatprep.subr.bf16.mxu0 0
        %724 = vmatpush1.bf16.xpose.msra.mxu0 0
        %725 = vmatprep.subr.bf16.mxu0 0
        %726 = vmatpush1.bf16.xpose.msra.mxu0 0
        %727 = vmatprep.mubr.bf16.mxu0 0
        %728 = vmatmul.mubr.bf16.gmra.mrb[0].mxu0 %v690
        %v729 = vpop.f32.mrb[0].mxu0
        %v730 = vadd.f32 0.0, %v729
        %v731 = vpop.f32.mrb[0].mxu0
        %v732 = vpop.f32.mrb[0].mxu0
        %v733 = vpop.f32.mrb[0].mxu0
        %734 = vdwg.mxu0
        %v737 = vunpack.c.l.s4 1983009808
        %v738 = vunpack.c.0.s8 %v737
        %v739 = vlaneseq
        %v740 = vshrl.u32 %v739, 7
        %v741 = vsub.s32 %v738, %v740
        %v742 = vrot.slane %v674, %v741
        %743 = vrot.lane.b32.xlu0 %v742, 112
        %v744 = vpop.permute.xlu0 %743
        %745 = vrot.lane.b32.xlu0 %v742, 80
        %v746 = vpop.permute.xlu0 %745
        %v748 = vsel %vm194, %v744, 0
        %v751 = vsel %vm194, %v746, 0
        %753 = vmatprep.subr.bf16.mxu0 0
        %754 = vmatpush1.bf16.xpose.msra.mxu0 %v751
        %755 = vmatprep.subr.bf16.mxu0 0
        %756 = vmatpush1.bf16.xpose.msra.mxu0 0
        %757 = vmatprep.subr.bf16.mxu0 0
        %758 = vmatpush1.bf16.xpose.msra.mxu0 0
        %759 = vmatprep.subr.bf16.mxu0 0
        %760 = vmatpush1.bf16.xpose.msra.mxu0 0
        %761 = vmatprep.subr.bf16.mxu0 0
        %762 = vmatpush1.bf16.xpose.msra.mxu0 0
        %763 = vmatprep.subr.bf16.mxu0 0
        %764 = vmatpush1.bf16.xpose.msra.mxu0 0
        %765 = vmatprep.subr.bf16.mxu0 0
        %766 = vmatpush1.bf16.xpose.msra.mxu0 0
        %767 = vmatprep.subr.bf16.mxu0 0
        %768 = vmatpush1.bf16.xpose.msra.mxu0 0
        %769 = vmatprep.subr.bf16.mxu0 0
        %770 = vmatpush1.bf16.xpose.msra.mxu0 0
        %771 = vmatprep.subr.bf16.mxu0 0
        %772 = vmatpush1.bf16.xpose.msra.mxu0 0
        %773 = vmatprep.subr.bf16.mxu0 0
        %774 = vmatpush1.bf16.xpose.msra.mxu0 0
        %775 = vmatprep.subr.bf16.mxu0 0
        %776 = vmatpush1.bf16.xpose.msra.mxu0 0
        %777 = vmatprep.subr.bf16.mxu0 0
        %778 = vmatpush1.bf16.xpose.msra.mxu0 0
        %779 = vmatprep.subr.bf16.mxu0 0
        %780 = vmatpush1.bf16.xpose.msra.mxu0 0
        %781 = vmatprep.subr.bf16.mxu0 0
        %782 = vmatpush1.bf16.xpose.msra.mxu0 0
        %783 = vmatprep.subr.bf16.mxu0 0
        %784 = vmatpush1.bf16.xpose.msra.mxu0 0
        %785 = vmatprep.mubr.bf16.mxu0 0
        %786 = vmatmul.mubr.bf16.gmra.mrb[0].mxu0 %v748
        %v787 = vpop.f32.mrb[0].mxu0
        %v788 = vadd.f32 0.0, %v787
        %v789 = vpop.f32.mrb[0].mxu0
        %v790 = vpop.f32.mrb[0].mxu0
        %v791 = vpop.f32.mrb[0].mxu0
        %792 = vdwg.mxu0
        %v795 = vunpack.c.l.s4 1983009808
        %v796 = vunpack.c.0.s8 %v795
        %v797 = vlaneseq
        %v798 = vshrl.u32 %v797, 7
        %v799 = vsub.s32 %v796, %v798
        %v800 = vrot.slane %v675, %v799
        %801 = vrot.lane.b32.xlu0 %v800, 112
        %v802 = vpop.permute.xlu0 %801
        %803 = vrot.lane.b32.xlu0 %v800, 80
        %v804 = vpop.permute.xlu0 %803
        %v806 = vsel %vm194, %v802, 0
        %v809 = vsel %vm194, %v804, 0
        %811 = vmatprep.subr.bf16.mxu0 0
        %812 = vmatpush1.bf16.xpose.msra.mxu0 %v809
        %813 = vmatprep.subr.bf16.mxu0 0
        %814 = vmatpush1.bf16.xpose.msra.mxu0 0
        %815 = vmatprep.subr.bf16.mxu0 0
        %816 = vmatpush1.bf16.xpose.msra.mxu0 0
        %817 = vmatprep.subr.bf16.mxu0 0
        %818 = vmatpush1.bf16.xpose.msra.mxu0 0
        %819 = vmatprep.subr.bf16.mxu0 0
        %820 = vmatpush1.bf16.xpose.msra.mxu0 0
        %821 = vmatprep.subr.bf16.mxu0 0
        %822 = vmatpush1.bf16.xpose.msra.mxu0 0
        %823 = vmatprep.subr.bf16.mxu0 0
        %824 = vmatpush1.bf16.xpose.msra.mxu0 0
        %825 = vmatprep.subr.bf16.mxu0 0
        %826 = vmatpush1.bf16.xpose.msra.mxu0 0
        %827 = vmatprep.subr.bf16.mxu0 0
        %828 = vmatpush1.bf16.xpose.msra.mxu0 0
        %829 = vmatprep.subr.bf16.mxu0 0
        %830 = vmatpush1.bf16.xpose.msra.mxu0 0
        %831 = vmatprep.subr.bf16.mxu0 0
        %832 = vmatpush1.bf16.xpose.msra.mxu0 0
        %833 = vmatprep.subr.bf16.mxu0 0
        %834 = vmatpush1.bf16.xpose.msra.mxu0 0
        %835 = vmatprep.subr.bf16.mxu0 0
        %836 = vmatpush1.bf16.xpose.msra.mxu0 0
        %837 = vmatprep.subr.bf16.mxu0 0
        %838 = vmatpush1.bf16.xpose.msra.mxu0 0
        %839 = vmatprep.subr.bf16.mxu0 0
        %840 = vmatpush1.bf16.xpose.msra.mxu0 0
        %841 = vmatprep.subr.bf16.mxu0 0
        %842 = vmatpush1.bf16.xpose.msra.mxu0 0
        %843 = vmatprep.mubr.bf16.mxu0 0
        %844 = vmatmul.mubr.bf16.gmra.mrb[0].mxu0 %v806
        %v845 = vpop.f32.mrb[0].mxu0
        %v846 = vadd.f32 0.0, %v845
        %v847 = vpop.f32.mrb[0].mxu0
        %v848 = vpop.f32.mrb[0].mxu0
        %v849 = vpop.f32.mrb[0].mxu0
        %850 = vdwg.mxu0
        %v853 = vunpack.c.l.s4 1983009808
        %v854 = vunpack.c.0.s8 %v853
        %v855 = vlaneseq
        %v856 = vshrl.u32 %v855, 7
        %v857 = vsub.s32 %v854, %v856
        %v858 = vrot.slane %v676, %v857
        %859 = vrot.lane.b32.xlu0 %v858, 112
        %v860 = vpop.permute.xlu0 %859
        %861 = vrot.lane.b32.xlu0 %v858, 80
        %v862 = vpop.permute.xlu0 %861
        %v864 = vsel %vm194, %v860, 0
        %v867 = vsel %vm194, %v862, 0
        %869 = vmatprep.subr.bf16.mxu0 0
        %870 = vmatpush1.bf16.xpose.msra.mxu0 %v867
        %871 = vmatprep.subr.bf16.mxu0 0
        %872 = vmatpush1.bf16.xpose.msra.mxu0 0
        %873 = vmatprep.subr.bf16.mxu0 0
        %874 = vmatpush1.bf16.xpose.msra.mxu0 0
        %875 = vmatprep.subr.bf16.mxu0 0
        %876 = vmatpush1.bf16.xpose.msra.mxu0 0
        %877 = vmatprep.subr.bf16.mxu0 0
        %878 = vmatpush1.bf16.xpose.msra.mxu0 0
        %879 = vmatprep.subr.bf16.mxu0 0
        %880 = vmatpush1.bf16.xpose.msra.mxu0 0
        %881 = vmatprep.subr.bf16.mxu0 0
        %882 = vmatpush1.bf16.xpose.msra.mxu0 0
        %883 = vmatprep.subr.bf16.mxu0 0
        %884 = vmatpush1.bf16.xpose.msra.mxu0 0
        %885 = vmatprep.subr.bf16.mxu0 0
        %886 = vmatpush1.bf16.xpose.msra.mxu0 0
        %887 = vmatprep.subr.bf16.mxu0 0
        %888 = vmatpush1.bf16.xpose.msra.mxu0 0
        %889 = vmatprep.subr.bf16.mxu0 0
        %890 = vmatpush1.bf16.xpose.msra.mxu0 0
        %891 = vmatprep.subr.bf16.mxu0 0
        %892 = vmatpush1.bf16.xpose.msra.mxu0 0
        %893 = vmatprep.subr.bf16.mxu0 0
        %894 = vmatpush1.bf16.xpose.msra.mxu0 0
        %895 = vmatprep.subr.bf16.mxu0 0
        %896 = vmatpush1.bf16.xpose.msra.mxu0 0
        %897 = vmatprep.subr.bf16.mxu0 0
        %898 = vmatpush1.bf16.xpose.msra.mxu0 0
        %899 = vmatprep.subr.bf16.mxu0 0
        %900 = vmatpush1.bf16.xpose.msra.mxu0 0
        %901 = vmatprep.mubr.bf16.mxu0 0
        %902 = vmatmul.mubr.bf16.gmra.mrb[0].mxu0 %v864
        %v903 = vpop.f32.mrb[0].mxu0
        %v904 = vadd.f32 0.0, %v903
        %v905 = vpop.f32.mrb[0].mxu0
        %v906 = vpop.f32.mrb[0].mxu0
        %v907 = vpop.f32.mrb[0].mxu0
        %908 = vdwg.mxu0
        %v909 = vmul.f32 %v730, 0.25
        %v910 = vmul.f32 %v788, 0.25
        %v911 = vmul.f32 %v846, 0.25
        %v912 = vmul.f32 %v904, 0.25
        %s913 = scalar_lea.vmem [#allocation5], 16
        %v914 = vld [vmem:[%s913] sm:$0xf]
        %v915 = vld [vmem:[%s913 + $0x4] sm:$0xf]
        %v916 = vld [vmem:[%s913 + $0x8] sm:$0xf]
        %v917 = vld [vmem:[%s913 + $0xc] sm:$0xf]
        %v918 = vadd.f32 %v909, %v914
        %v919 = vadd.f32 %v910, %v915
        %v920 = vadd.f32 %v911, %v916
        %v921 = vadd.f32 %v912, %v917
        %v922 = vsel %vm421, %v918, -inf
        %923 = vmax.xlane.f32.xlu0 %v922
        %v924 = vpop.xlane.xlu0 %923
        %v925 = vsel %vm421, %v919, -inf
        %926 = vmax.xlane.f32.xlu0 %v925
        %v927 = vpop.xlane.xlu0 %926
        %v928 = vsel %vm421, %v920, -inf
        %929 = vmax.xlane.f32.xlu0 %v928
        %v930 = vpop.xlane.xlu0 %929
        %v931 = vsel %vm421, %v921, -inf
        %932 = vmax.xlane.f32.xlu0 %v931
        %v933 = vpop.xlane.xlu0 %932
        %v934 = vsub.f32 %v918, %v924
        %v935 = vsub.f32 %v919, %v927
        %v936 = vsub.f32 %v920, %v930
        %v937 = vsub.f32 %v921, %v933
        %v938 = vmul.f32 %v934, 1.442695
        %v939 = vpow.pop %v938
        %v940 = vmul.f32 %v935, 1.442695
        %v941 = vpow.pop %v940
        %v942 = vmul.f32 %v936, 1.442695
        %v943 = vpow.pop %v942
        %v944 = vmul.f32 %v937, 1.442695
        %v945 = vpow.pop %v944
        %v946 = vsel %vm421, %v939, 0.0
        %947 = vadd.xlane.f32.xlu0 %v946
        %v948 = vpop.xlane.xlu0 %947
        %v949 = vsel %vm421, %v941, 0.0
        %950 = vadd.xlane.f32.xlu0 %v949
        %v951 = vpop.xlane.xlu0 %950
        %v952 = vsel %vm421, %v943, 0.0
        %953 = vadd.xlane.f32.xlu0 %v952
        %v954 = vpop.xlane.xlu0 %953
        %v955 = vsel %vm421, %v945, 0.0
        %956 = vadd.xlane.f32.xlu0 %v955
        %v957 = vpop.xlane.xlu0 %956
        %v958 = vrcp.pop %v948
        %v959 = vrcp.pop %v951
        %v960 = vrcp.pop %v954
        %v961 = vrcp.pop %v957
        %v962 = vmul.f32 %v939, %v958
        %v963 = vmul.f32 %v941, %v959
        %v964 = vmul.f32 %v943, %v960
        %v965 = vmul.f32 %v945, %v961
        %v966 = vpack.c.bf16 %v962, %v962
        %v967 = vpack.c.bf16 %v963, %v963
        %v968 = vpack.c.bf16 %v964, %v964
        %v969 = vpack.c.bf16 %v965, %v965
        %970 = vrot.lane.b32.xlu0 %v684, 48
        %v971 = vpop.permute.xlu0 %970
        %v973 = vsel %vm472, %v966, 0
        %v976 = vsel %vm476, %v971, 0
        %978 = vmatprep.subr.bf16.mxu0 0
        %979 = vmatpush1.bf16.msra.mxu0 %v976
        %980 = vmatprep.subr.bf16.mxu0 0
        %981 = vmatpush1.bf16.msra.mxu0 0
        %982 = vmatprep.subr.bf16.mxu0 0
        %983 = vmatpush1.bf16.msra.mxu0 0
        %984 = vmatprep.subr.bf16.mxu0 0
        %985 = vmatpush1.bf16.msra.mxu0 0
        %986 = vmatprep.subr.bf16.mxu0 0
        %987 = vmatpush1.bf16.msra.mxu0 0
        %988 = vmatprep.subr.bf16.mxu0 0
        %989 = vmatpush1.bf16.msra.mxu0 0
        %990 = vmatprep.subr.bf16.mxu0 0
        %991 = vmatpush1.bf16.msra.mxu0 0
        %992 = vmatprep.subr.bf16.mxu0 0
        %993 = vmatpush1.bf16.msra.mxu0 0
        %994 = vmatprep.subr.bf16.mxu0 0
        %995 = vmatpush1.bf16.msra.mxu0 0
        %996 = vmatprep.subr.bf16.mxu0 0
        %997 = vmatpush1.bf16.msra.mxu0 0
        %998 = vmatprep.subr.bf16.mxu0 0
        %999 = vmatpush1.bf16.msra.mxu0 0
        %1000 = vmatprep.subr.bf16.mxu0 0
        %1001 = vmatpush1.bf16.msra.mxu0 0
        %1002 = vmatprep.subr.bf16.mxu0 0
        %1003 = vmatpush1.bf16.msra.mxu0 0
        %1004 = vmatprep.subr.bf16.mxu0 0
        %1005 = vmatpush1.bf16.msra.mxu0 0
        %1006 = vmatprep.subr.bf16.mxu0 0
        %1007 = vmatpush1.bf16.msra.mxu0 0
        %1008 = vmatprep.subr.bf16.mxu0 0
        %1009 = vmatpush1.bf16.msra.mxu0 0
        %1010 = vmatprep.mubr.bf16.mxu0 0
        %1011 = vmatmul.mubr.bf16.gmra.mrb[0].mxu0 %v973
        %v1012 = vpop.f32.mrb[0].mxu0
        %v1013 = vadd.f32 0.0, %v1012
        %v1014 = vpop.f32.mrb[0].mxu0
        %v1015 = vpop.f32.mrb[0].mxu0
        %v1016 = vpop.f32.mrb[0].mxu0
        %1017 = vdwg.mxu0
        %1018 = vrot.lane.b32.xlu0 %v742, 48
        %v1019 = vpop.permute.xlu0 %1018
        %v1021 = vsel %vm472, %v967, 0
        %v1024 = vsel %vm476, %v1019, 0
        %1026 = vmatprep.subr.bf16.mxu0 0
        %1027 = vmatpush1.bf16.msra.mxu0 %v1024
        %1028 = vmatprep.subr.bf16.mxu0 0
        %1029 = vmatpush1.bf16.msra.mxu0 0
        %1030 = vmatprep.subr.bf16.mxu0 0
        %1031 = vmatpush1.bf16.msra.mxu0 0
        %1032 = vmatprep.subr.bf16.mxu0 0
        %1033 = vmatpush1.bf16.msra.mxu0 0
        %1034 = vmatprep.subr.bf16.mxu0 0
        %1035 = vmatpush1.bf16.msra.mxu0 0
        %1036 = vmatprep.subr.bf16.mxu0 0
        %1037 = vmatpush1.bf16.msra.mxu0 0
        %1038 = vmatprep.subr.bf16.mxu0 0
        %1039 = vmatpush1.bf16.msra.mxu0 0
        %1040 = vmatprep.subr.bf16.mxu0 0
        %1041 = vmatpush1.bf16.msra.mxu0 0
        %1042 = vmatprep.subr.bf16.mxu0 0
        %1043 = vmatpush1.bf16.msra.mxu0 0
        %1044 = vmatprep.subr.bf16.mxu0 0
        %1045 = vmatpush1.bf16.msra.mxu0 0
        %1046 = vmatprep.subr.bf16.mxu0 0
        %1047 = vmatpush1.bf16.msra.mxu0 0
        %1048 = vmatprep.subr.bf16.mxu0 0
        %1049 = vmatpush1.bf16.msra.mxu0 0
        %1050 = vmatprep.subr.bf16.mxu0 0
        %1051 = vmatpush1.bf16.msra.mxu0 0
        %1052 = vmatprep.subr.bf16.mxu0 0
        %1053 = vmatpush1.bf16.msra.mxu0 0
        %1054 = vmatprep.subr.bf16.mxu0 0
        %1055 = vmatpush1.bf16.msra.mxu0 0
        %1056 = vmatprep.subr.bf16.mxu0 0
        %1057 = vmatpush1.bf16.msra.mxu0 0
        %1058 = vmatprep.mubr.bf16.mxu0 0
        %1059 = vmatmul.mubr.bf16.gmra.mrb[0].mxu0 %v1021
        %v1060 = vpop.f32.mrb[0].mxu0
        %v1061 = vadd.f32 0.0, %v1060
        %v1062 = vpop.f32.mrb[0].mxu0
        %v1063 = vpop.f32.mrb[0].mxu0
        %v1064 = vpop.f32.mrb[0].mxu0
        %1065 = vdwg.mxu0
        %1066 = vrot.lane.b32.xlu0 %v800, 48
        %v1067 = vpop.permute.xlu0 %1066
        %v1069 = vsel %vm472, %v968, 0
        %v1072 = vsel %vm476, %v1067, 0
        %1074 = vmatprep.subr.bf16.mxu0 0
        %1075 = vmatpush1.bf16.msra.mxu0 %v1072
        %1076 = vmatprep.subr.bf16.mxu0 0
        %1077 = vmatpush1.bf16.msra.mxu0 0
        %1078 = vmatprep.subr.bf16.mxu0 0
        %1079 = vmatpush1.bf16.msra.mxu0 0
        %1080 = vmatprep.subr.bf16.mxu0 0
        %1081 = vmatpush1.bf16.msra.mxu0 0
        %1082 = vmatprep.subr.bf16.mxu0 0
        %1083 = vmatpush1.bf16.msra.mxu0 0
        %1084 = vmatprep.subr.bf16.mxu0 0
        %1085 = vmatpush1.bf16.msra.mxu0 0
        %1086 = vmatprep.subr.bf16.mxu0 0
        %1087 = vmatpush1.bf16.msra.mxu0 0
        %1088 = vmatprep.subr.bf16.mxu0 0
        %1089 = vmatpush1.bf16.msra.mxu0 0
        %1090 = vmatprep.subr.bf16.mxu0 0
        %1091 = vmatpush1.bf16.msra.mxu0 0
        %1092 = vmatprep.subr.bf16.mxu0 0
        %1093 = vmatpush1.bf16.msra.mxu0 0
        %1094 = vmatprep.subr.bf16.mxu0 0
        %1095 = vmatpush1.bf16.msra.mxu0 0
        %1096 = vmatprep.subr.bf16.mxu0 0
        %1097 = vmatpush1.bf16.msra.mxu0 0
        %1098 = vmatprep.subr.bf16.mxu0 0
        %1099 = vmatpush1.bf16.msra.mxu0 0
        %1100 = vmatprep.subr.bf16.mxu0 0
        %1101 = vmatpush1.bf16.msra.mxu0 0
        %1102 = vmatprep.subr.bf16.mxu0 0
        %1103 = vmatpush1.bf16.msra.mxu0 0
        %1104 = vmatprep.subr.bf16.mxu0 0
        %1105 = vmatpush1.bf16.msra.mxu0 0
        %1106 = vmatprep.mubr.bf16.mxu0 0
        %1107 = vmatmul.mubr.bf16.gmra.mrb[0].mxu0 %v1069
        %v1108 = vpop.f32.mrb[0].mxu0
        %v1109 = vadd.f32 0.0, %v1108
        %v1110 = vpop.f32.mrb[0].mxu0
        %v1111 = vpop.f32.mrb[0].mxu0
        %v1112 = vpop.f32.mrb[0].mxu0
        %1113 = vdwg.mxu0
        %1114 = vrot.lane.b32.xlu0 %v858, 48
        %v1115 = vpop.permute.xlu0 %1114
        %v1117 = vsel %vm472, %v969, 0
        %v1120 = vsel %vm476, %v1115, 0
        %1122 = vmatprep.subr.bf16.mxu0 0
        %1123 = vmatpush1.bf16.msra.mxu0 %v1120
        %1124 = vmatprep.subr.bf16.mxu0 0
        %1125 = vmatpush1.bf16.msra.mxu0 0
        %1126 = vmatprep.subr.bf16.mxu0 0
        %1127 = vmatpush1.bf16.msra.mxu0 0
        %1128 = vmatprep.subr.bf16.mxu0 0
        %1129 = vmatpush1.bf16.msra.mxu0 0
        %1130 = vmatprep.subr.bf16.mxu0 0
        %1131 = vmatpush1.bf16.msra.mxu0 0
        %1132 = vmatprep.subr.bf16.mxu0 0
        %1133 = vmatpush1.bf16.msra.mxu0 0
        %1134 = vmatprep.subr.bf16.mxu0 0
        %1135 = vmatpush1.bf16.msra.mxu0 0
        %1136 = vmatprep.subr.bf16.mxu0 0
        %1137 = vmatpush1.bf16.msra.mxu0 0
        %1138 = vmatprep.subr.bf16.mxu0 0
        %1139 = vmatpush1.bf16.msra.mxu0 0
        %1140 = vmatprep.subr.bf16.mxu0 0
        %1141 = vmatpush1.bf16.msra.mxu0 0
        %1142 = vmatprep.subr.bf16.mxu0 0
        %1143 = vmatpush1.bf16.msra.mxu0 0
        %1144 = vmatprep.subr.bf16.mxu0 0
        %1145 = vmatpush1.bf16.msra.mxu0 0
        %1146 = vmatprep.subr.bf16.mxu0 0
        %1147 = vmatpush1.bf16.msra.mxu0 0
        %1148 = vmatprep.subr.bf16.mxu0 0
        %1149 = vmatpush1.bf16.msra.mxu0 0
        %1150 = vmatprep.subr.bf16.mxu0 0
        %1151 = vmatpush1.bf16.msra.mxu0 0
        %1152 = vmatprep.subr.bf16.mxu0 0
        %1153 = vmatpush1.bf16.msra.mxu0 0
        %1154 = vmatprep.mubr.bf16.mxu0 0
        %1155 = vmatmul.mubr.bf16.gmra.mrb[0].mxu0 %v1117
        %v1156 = vpop.f32.mrb[0].mxu0
        %v1157 = vadd.f32 0.0, %v1156
        %v1158 = vpop.f32.mrb[0].mxu0
        %v1159 = vpop.f32.mrb[0].mxu0
        %v1160 = vpop.f32.mrb[0].mxu0
        %1161 = vdwg.mxu0
        %v1162 = vpack.c.bf16 %v1013, %v1013
        %v1163 = vpack.c.bf16 %v1061, %v1061
        %v1164 = vpack.c.bf16 %v1109, %v1109
        %v1165 = vpack.c.bf16 %v1157, %v1157
        %v1171 = vunpack.c.l.s4 1983009808
        %v1172 = vunpack.c.0.s8 %v1171
        %v1173 = vlaneseq
        %v1174 = vshrl.u32 %v1173, 7
        %v1175 = vsub.s32 %v1172, %v1174
        %v1176 = vrot.slane %v1162, %v1175
        %v1178 = vunpack.c.l.s4 1983009808
        %v1179 = vunpack.c.0.s8 %v1178
        %v1180 = vlaneseq
        %v1181 = vshrl.u32 %v1180, 7
        %v1182 = vsub.s32 %v1179, %v1181
        %v1183 = vrot.slane %v1163, %v1182
        %v1185 = vunpack.c.l.s4 1983009808
        %v1186 = vunpack.c.0.s8 %v1185
        %v1187 = vlaneseq
        %v1188 = vshrl.u32 %v1187, 7
        %v1189 = vsub.s32 %v1186, %v1188
        %v1190 = vrot.slane %v1164, %v1189
        %v1192 = vunpack.c.l.s4 1983009808
        %v1193 = vunpack.c.0.s8 %v1192
        %v1194 = vlaneseq
        %v1195 = vshrl.u32 %v1194, 7
        %v1196 = vsub.s32 %v1193, %v1195
        %v1197 = vrot.slane %v1165, %v1196
        %1198 = vrot.lane.b32.xlu0 %v1176, 16
        %v1199 = vpop.permute.xlu0 %1198
        %1200 = vrot.lane.b32.xlu0 %v1183, 16
        %v1201 = vpop.permute.xlu0 %1200
        %1202 = vrot.lane.b32.xlu0 %v1190, 16
        %v1203 = vpop.permute.xlu0 %1202
        %1204 = vrot.lane.b32.xlu0 %v1197, 16
        %v1205 = vpop.permute.xlu0 %1204
        %vm1210 = vcmask 255104
        %1211 = vst.msk [vmem:[%s176] sm:$0x3] %vm1210, %v1199
        %1212 = vst.msk [vmem:[%s176 + $0x2] sm:$0x3] %vm1210, %v1201
        %1213 = vst.msk [vmem:[%s176 + $0x4] sm:$0x3] %vm1210, %v1203
        %1214 = vst.msk [vmem:[%s176 + $0x6] sm:$0x3] %vm1210, %v1205
        %s1215 = sand.u32 %s75, 1
        %s1216 = scalar_lea.sflag [#allocation4], %s1215
        %s1217 = sand.u32 %s75, 1
        %s1218 = smul.addr %s1217, 8
        %s1219 = scalar_lea.vmem [#allocation7], %s1218
        // Predicated region
        $region37: #{_lambda_.46} parent=27 // pred_check
          %p1220 = pneg %p85
        $region38: #{_lambda_.46} parent=27 // pred_check_branch
          %1222 = sbr.rel (%p1220) target = $region40
        $region39: #{_lambda_.46} parent=27 // pred_region
          %s1223 = smul.u32 4, %s20
          %s1225 = ssub.s32 128, 128
          %1226 = vsyncadd %s1216, %s1225
          %s1227 = smul.addr %s1223, 32
          %s1228 = scalar_lea.hbm %s2, %s1227
          %s1229 = sshll.u32 %s1219, 4
          %s1230 = int_to_ptr.vmem [resolvable:$true] %s1229
          %1235 = dma.vmem_to_hbm [thread:$0]  %s1230, 128, %s1228, %s1216, 32, 32, 2
        $region40: #{_lambda_.46} parent=27 // pred_fallthru
          _
      $region28: #{_lambda_.46} parent=5 // pred_fallthru
        _
      %p1236 = scmp.le.s32.totalorder 2, %s15
      // Predicated region
      $region41: #{_lambda_.46} parent=5 // pred_check
        %p1237 = pneg %p1236
      $region42: #{_lambda_.46} parent=5 // pred_check_branch
        %1239 = sbr.rel (%p1237) target = $region44
      $region43: #{_lambda_.46} parent=5 // pred_region
        %s1240 = ssub.s32 %s15, 2
        // Predicated region
        $region45: #{_lambda_.46} parent=43 // pred_check
          %p1241 = pneg %p91
        $region46: #{_lambda_.46} parent=43 // pred_check_branch
          %1243 = sbr.rel (%p1241) target = $region48
        $region47: #{_lambda_.46} parent=43 // pred_region
          %s1244 = sand.u32 %s76, 1
          %s1245 = scalar_lea.sflag [#allocation4], %s1244
          %s1246 = sand.u32 %s76, 1
          %s1247 = smul.addr %s1246, 8
          %s1248 = scalar_lea.vmem [#allocation7], %s1247
          %1249 = dma.done %s1245, 128
        $region48: #{_lambda_.46} parent=43 // pred_fallthru
          _
      $region44: #{_lambda_.46} parent=5 // pred_fallthru
        _
    $region6: #{_lambda_.46} parent=1 // loop_footer
      %s19 = sadd.s32 1, %s15
    $region7: #{_lambda_.46} parent=1 // loop_footer_branch
      %14 = sbr.rel target = $region3
    $region8: #{_lambda_.46} parent=1 // loop_exit
      _
    %1250 = vsyncpa [#allocation3], 1
    %s1251 = scalar_lea.sflag [#allocation3], 1
    %1252 = vsyncpa %s1251, 1
    %1253 = vsyncpa [#allocation6], 1
    %1254 = vsyncpa [#allocation4], 1
    %s1255 = scalar_lea.sflag [#allocation4], 1
    %1256 = vsyncpa %s1255, 1

// kernel: _lambda_.54
$region0: #{_lambda_.54}
  #allocation0 [shape = 'u32[]', space=smem, size = 0x4, offset = 0x4, fixed_abs, tag = 'smem constant byte address 0x4 - core index']
  #allocation1 [shape = 'u32[144,128]{1,0:T(1,128)}', space=vmem, size = 0x12000, scoped, tag = 'internal scratch']
  %s0 = inlined_call_operand.hbm [shape: bf16[8,64], index: 0, kind: input, shape index: {}]
  %s1 = inlined_call_operand.hbm [shape: bf16[64,192], index: 1, kind: input, shape index: {}]
  %s2 = inlined_call_operand.hbm [shape: f32[1,192], index: 2, kind: input, shape index: {}]
  %s3 = inlined_call_operand.hbm [shape: bf16[8,192], index: 3, kind: output, shape index: {}]
  %s4 = sld [smem:[#allocation0]]
  $region34: #{_lambda_.54} parent=0
    _
  %s6 = ssub.s32 1, %s4
  %s7 = scalar_select 0, %s6, %s4
  $region1: #{_lambda_.54} parent=0
    #allocation2 [shape = 'u8[2048]{0}', space=vmem, size = 0x800, scoped, tag = 'input window, operand 0, single buffered']
    #allocation3 [shape = 's32[1]{0}', space=sflag, size = 0x4, scoped, tag = 'scoped memory for _lambda_.54']
    #allocation4 [shape = 's32[1]{0}', space=sflag, size = 0x4, scoped, tag = 'scoped memory for _lambda_.54']
    #allocation5 [shape = 'u8[32768]{0}', space=vmem, size = 0x8000, scoped, tag = 'input window, operand 1, single buffered']
    #allocation6 [shape = 's32[1]{0}', space=sflag, size = 0x4, scoped, tag = 'scoped memory for _lambda_.54']
    #allocation7 [shape = 'u8[1024]{0}', space=vmem, size = 0x400, scoped, tag = 'input window, operand 2, single buffered']
    #allocation8 [shape = 'u8[4096]{0}', space=vmem, size = 0x1000, scoped, tag = 'output window, operand 0, single buffered']
    %8 = vsyncpa [#allocation3], 0
    %9 = vsyncpa [#allocation6], 0
    %10 = vsyncpa [#allocation4], 0
    // Predicated region
    $region2: #{_lambda_.54} parent=1 // pred_check
      _
    $region3: #{_lambda_.54} parent=1 // pred_check_branch
      %12 = sbr.rel (0) target = $region5
    $region4: #{_lambda_.54} parent=1 // pred_region
      %s14 = ssub.s32 64, 64
      %15 = vsyncadd [#allocation3], %s14
      %s17 = sshll.u32 [#allocation2], 4
      %s18 = int_to_ptr.vmem [resolvable:$true] %s17
      %20 = dma.hbm_to_vmem [thread:$0]  %s0, 64, %s18, [#allocation3]
    $region5: #{_lambda_.54} parent=1 // pred_fallthru
      _
    // Predicated region
    $region6: #{_lambda_.54} parent=1 // pred_check
      _
    $region7: #{_lambda_.54} parent=1 // pred_check_branch
      %22 = sbr.rel (0) target = $region9
    $region8: #{_lambda_.54} parent=1 // pred_region
      %s24 = ssub.s32 1024, 1024
      %25 = vsyncadd [#allocation6], %s24
      %s26 = sshll.u32 [#allocation5], 4
      %s27 = int_to_ptr.vmem [resolvable:$true] %s26
      %32 = dma.hbm_to_vmem [thread:$0]  %s1, 1024, %s27, [#allocation6], 128, 128, 8
    $region9: #{_lambda_.54} parent=1 // pred_fallthru
      _
    // Predicated region
    $region10: #{_lambda_.54} parent=1 // pred_check
      _
    $region11: #{_lambda_.54} parent=1 // pred_check_branch
      %34 = sbr.rel (0) target = $region13
    $region12: #{_lambda_.54} parent=1 // pred_region
      %s36 = ssub.s32 32, 32
      %37 = vsyncadd [#allocation6], %s36
      %s39 = sshll.u32 [#allocation7], 4
      %s40 = int_to_ptr.vmem [resolvable:$true] %s39
      %42 = dma.hbm_to_vmem [thread:$0]  %s2, 32, %s40, [#allocation6]
    $region13: #{_lambda_.54} parent=1 // pred_fallthru
      _
    // Predicated region
    $region14: #{_lambda_.54} parent=1 // pred_check
      _
    $region15: #{_lambda_.54} parent=1 // pred_check_branch
      %44 = sbr.rel (0) target = $region17
    $region16: #{_lambda_.54} parent=1 // pred_region
      %45 = dma.done [#allocation3], 64
    $region17: #{_lambda_.54} parent=1 // pred_fallthru
      _
    // Predicated region
    $region18: #{_lambda_.54} parent=1 // pred_check
      _
    $region19: #{_lambda_.54} parent=1 // pred_check_branch
      %47 = sbr.rel (0) target = $region21
    $region20: #{_lambda_.54} parent=1 // pred_region
      %48 = dma.done [#allocation6], 1024
    $region21: #{_lambda_.54} parent=1 // pred_fallthru
      _
    // Predicated region
    $region22: #{_lambda_.54} parent=1 // pred_check
      _
    $region23: #{_lambda_.54} parent=1 // pred_check_branch
      %50 = sbr.rel (0) target = $region25
    $region24: #{_lambda_.54} parent=1 // pred_region
      %51 = dma.done [#allocation6], 32
    $region25: #{_lambda_.54} parent=1 // pred_fallthru
      _
    %v53 = vld [vmem:[#allocation2] sm:$0xf]
    %v54 = vld [vmem:[#allocation5] sm:$0xff]
    %v55 = vld [vmem:[#allocation5 + $0x8] sm:$0xff]
    %v56 = vld [vmem:[#allocation5 + $0x10] sm:$0xff]
    %v57 = vld [vmem:[#allocation5 + $0x18] sm:$0xff]
    %v58 = vld [vmem:[#allocation5 + $0x20] sm:$0xff]
    %v59 = vld [vmem:[#allocation5 + $0x28] sm:$0xff]
    %v60 = vld [vmem:[#allocation5 + $0x30] sm:$0xff]
    %v61 = vld [vmem:[#allocation5 + $0x38] sm:$0xff]
    %v62 = vld [vmem:[#allocation7] sm:$0x3]
    %v64 = vlaneseq
    %v65 = vshrl.u32 %v64, 7
    %v66 = vsub.s32 0, %v65
    %v67 = vrot.slane %v62, %v66
    %v68 = vlaneseq
    %v69 = vshrl.u32 %v68, 7
    %v70 = vsub.s32 1, %v69
    %v71 = vrot.slane %v62, %v70
    %v82 = vunpack.c.l.b16 %v54
    %v83 = vunpack.c.h.b16 %v54
    %v84 = vunpack.c.l.b16 %v55
    %v85 = vunpack.c.h.b16 %v55
    %v86 = vunpack.c.l.b16 %v56
    %v87 = vunpack.c.h.b16 %v56
    %v88 = vunpack.c.l.b16 %v57
    %v89 = vunpack.c.h.b16 %v57
    %v90 = vunpack.c.l.b16 %v58
    %v91 = vunpack.c.h.b16 %v58
    %v92 = vunpack.c.l.b16 %v59
    %v93 = vunpack.c.h.b16 %v59
    %v94 = vunpack.c.l.b16 %v60
    %v95 = vunpack.c.h.b16 %v60
    %v96 = vunpack.c.l.b16 %v61
    %v97 = vunpack.c.h.b16 %v61
    %v98 = vpack.c.b16 %v84, %v82
    %v99 = vpack.c.b16 %v85, %v83
    %v100 = vpack.c.b16 %v88, %v86
    %v101 = vpack.c.b16 %v89, %v87
    %v102 = vpack.c.b16 %v92, %v90
    %v103 = vpack.c.b16 %v93, %v91
    %v104 = vpack.c.b16 %v96, %v94
    %v105 = vpack.c.b16 %v97, %v95
    %vm114 = vcmask 523264
    %v116 = vsel %vm114, %v53, 0
    %118 = vmatprep.subr.bf16.mxu0 %v99
    %119 = vmatpush1.bf16.msra.mxu0 %v98
    %120 = vmatprep.subr.bf16.mxu0 %v101
    %121 = vmatpush1.bf16.msra.mxu0 %v100
    %122 = vmatprep.subr.bf16.mxu0 %v103
    %123 = vmatpush1.bf16.msra.mxu0 %v102
    %124 = vmatprep.subr.bf16.mxu0 %v105
    %125 = vmatpush1.bf16.msra.mxu0 %v104
    %126 = vmatprep.subr.bf16.mxu0 0
    %127 = vmatpush1.bf16.msra.mxu0 0
    %128 = vmatprep.subr.bf16.mxu0 0
    %129 = vmatpush1.bf16.msra.mxu0 0
    %130 = vmatprep.subr.bf16.mxu0 0
    %131 = vmatpush1.bf16.msra.mxu0 0
    %132 = vmatprep.subr.bf16.mxu0 0
    %133 = vmatpush1.bf16.msra.mxu0 0
    %134 = vmatprep.subr.bf16.mxu0 0
    %135 = vmatpush1.bf16.msra.mxu0 0
    %136 = vmatprep.subr.bf16.mxu0 0
    %137 = vmatpush1.bf16.msra.mxu0 0
    %138 = vmatprep.subr.bf16.mxu0 0
    %139 = vmatpush1.bf16.msra.mxu0 0
    %140 = vmatprep.subr.bf16.mxu0 0
    %141 = vmatpush1.bf16.msra.mxu0 0
    %142 = vmatprep.subr.bf16.mxu0 0
    %143 = vmatpush1.bf16.msra.mxu0 0
    %144 = vmatprep.subr.bf16.mxu0 0
    %145 = vmatpush1.bf16.msra.mxu0 0
    %146 = vmatprep.subr.bf16.mxu0 0
    %147 = vmatpush1.bf16.msra.mxu0 0
    %148 = vmatprep.subr.bf16.mxu0 0
    %149 = vmatpush1.bf16.msra.mxu0 0
    %150 = vmatprep.mubr.bf16.mxu0 0
    %151 = vmatmul.mubr.bf16.gmra.mrb[0].mxu0 %v116
    %v152 = vpop.f32.mrb[0].mxu0
    %v153 = vadd.f32 %v67, %v152
    %v154 = vpop.f32.mrb[0].mxu0
    %v155 = vadd.f32 %v71, %v154
    %v156 = vpop.f32.mrb[0].mxu0
    %v157 = vpop.f32.mrb[0].mxu0
    %158 = vdwg.mxu0
    %v159 = vpack.c.bf16 %v153, %v153
    %v160 = vpack.c.bf16 %v155, %v155
    %v163 = vunpack.c.l.b16 %v159
    %v164 = vunpack.c.l.b16 %v160
    %v165 = vpack.c.b16 %v164, %v163
    %vm167 = vcmask 1043456
    %vm168 = vcmask 523268
    %vm169 = vmor %vm168, %vm167
    %170 = vst.msk [vmem:[#allocation8] sm:$0xff] %vm169, %v165
    // Predicated region
    $region26: #{_lambda_.54} parent=1 // pred_check
      _
    $region27: #{_lambda_.54} parent=1 // pred_check_branch
      %172 = sbr.rel (0) target = $region29
    $region28: #{_lambda_.54} parent=1 // pred_region
      %s174 = ssub.s32 128, 128
      %175 = vsyncadd [#allocation4], %s174
      %s177 = sshll.u32 [#allocation8], 4
      %s178 = int_to_ptr.vmem [resolvable:$true] %s177
      %180 = dma.vmem_to_hbm [thread:$0]  %s178, 128, %s3, [#allocation4]
    $region29: #{_lambda_.54} parent=1 // pred_fallthru
      _
    // Predicated region
    $region30: #{_lambda_.54} parent=1 // pred_check
      _
    $region31: #{_lambda_.54} parent=1 // pred_check_branch
      %182 = sbr.rel (0) target = $region33
    $region32: #{_lambda_.54} parent=1 // pred_region
      %183 = dma.done [#allocation4], 128
    $region33: #{_lambda_.54} parent=1 // pred_fallthru
      _
    %184 = vsyncpa [#allocation3], 1
    %185 = vsyncpa [#allocation6], 1
    %186 = vsyncpa [#allocation4], 1

// kernel: _lambda_.55
$region0: #{_lambda_.55}
  #allocation0 [shape = 'u32[]', space=smem, size = 0x4, offset = 0x4, fixed_abs, tag = 'smem constant byte address 0x4 - core index']
  #allocation1 [shape = 'u32[144,128]{1,0:T(1,128)}', space=vmem, size = 0x12000, scoped, tag = 'internal scratch']
  %s0 = inlined_call_operand.hbm [shape: bf16[2,4,192], index: 0, kind: input, shape index: {}]
  %s1 = inlined_call_operand.hbm [shape: f32[4,1,4,4], index: 1, kind: input, shape index: {}]
  %s2 = inlined_call_operand.hbm [shape: bf16[2,4,64], index: 2, kind: output, shape index: {}]
  %s3 = sld [smem:[#allocation0]]
  $region49: #{_lambda_.55} parent=0
    _
  %s5 = ssub.s32 1, %s3
  %s6 = scalar_select 0, %s5, %s3
  $region1: #{_lambda_.55} parent=0
    #allocation2 [shape = 'u8[4096]{0}', space=vmem, size = 0x1000, scoped, tag = 'input window, operand 0']
    #allocation3 [shape = 's32[2]{0}', space=sflag, size = 0x8, scoped, tag = 'scoped memory for _lambda_.55']
    #allocation4 [shape = 's32[2]{0}', space=sflag, size = 0x8, scoped, tag = 'scoped memory for _lambda_.55']
    #allocation5 [shape = 'u8[8192]{0}', space=vmem, size = 0x2000, scoped, tag = 'input window, operand 1, single buffered']
    #allocation6 [shape = 's32[1]{0}', space=sflag, size = 0x4, scoped, tag = 'scoped memory for _lambda_.55']
    #allocation7 [shape = 'u8[2048]{0}', space=vmem, size = 0x800, scoped, tag = 'output window, operand 0']
    %7 = vsyncpa [#allocation3], 0
    %s8 = scalar_lea.sflag [#allocation3], 1
    %9 = vsyncpa %s8, 0
    %10 = vsyncpa [#allocation6], 0
    %11 = vsyncpa [#allocation4], 0
    %s12 = scalar_lea.sflag [#allocation4], 1
    %13 = vsyncpa %s12, 0
    loop: start=0, step=1, limit=4
    $region2: #{_lambda_.55} parent=1 // loop_pre_header
      _
    $region3: #{_lambda_.55} parent=1 // loop_header
      %s15 = sphi 0, %s19
      %p16 = scmp.ge.s32.totalorder %s15, 4
      %s25 = sphi 0, %s27
      %s28 = sphi 0, %s25
      %s29 = sphi 0, %s28
      %s45 = sphi 0, %s29
      %s49 = sphi 0, %s49
      %s51 = sphi 0, %s49
      %s52 = sphi 0, %s51
      %s66 = sphi 0, %s52
      %s72 = sphi 0, %s74
      %s75 = sphi 0, %s72
      %s76 = sphi 0, %s75
      %s92 = sphi 0, %s76
    $region4: #{_lambda_.55} parent=1 // loop_header_branch
      %18 = sbr.rel (%p16) target = $region8
    $region5: #{_lambda_.55} parent=1 // loop_body
      %s20 = ssub.s32 %s15, 1
      %s21 = ssub.s32 %s15, 2
      %s22 = sadd.s32 %s15, 1
      %s23 = ssub.s32 %s15, %s22
      %p24 = scmp.eq.s32.totalorder %s23, 0
      %s26 = sadd.s32 %s25, 1
      %s27 = scalar_select %p24, %s25, %s26
      %p30 = pneg %p24
      %p31 = scmp.eq.s32.totalorder %s15, 1
      %p32 = por %p30, %p31
      %p33 = scmp.ne.s32.totalorder %s25, %s28
      %p34 = scmp.eq.s32.totalorder %s15, 0
      %p35 = por %p33, %p34
      %p36 = scmp.ne.s32.totalorder %s25, %s28
      %p37 = scmp.eq.s32.totalorder %s20, 1
      %p38 = por %p36, %p37
      %p39 = scmp.ne.s32.totalorder %s28, %s29
      %p40 = scmp.eq.s32.totalorder %s20, 0
      %p41 = por %p39, %p40
      %p42 = scmp.ne.s32.totalorder %s28, %s29
      %p43 = scmp.eq.s32.totalorder %s21, 1
      %p44 = por %p42, %p43
      %p46 = scmp.ne.s32.totalorder %s29, %s45
      %p47 = scmp.eq.s32.totalorder %s21, 0
      %p48 = por %p46, %p47
      %s50 = sadd.s32 %s49, 1
      %p53 = scmp.eq.s32.totalorder %s15, 1
      %p54 = scmp.ne.s32.totalorder %s49, %s51
      %p55 = scmp.eq.s32.totalorder %s15, 0
      %p56 = por %p54, %p55
      %p57 = scmp.ne.s32.totalorder %s49, %s51
      %p58 = scmp.eq.s32.totalorder %s20, 1
      %p59 = por %p57, %p58
      %p60 = scmp.ne.s32.totalorder %s51, %s52
      %p61 = scmp.eq.s32.totalorder %s20, 0
      %p62 = por %p60, %p61
      %p63 = scmp.ne.s32.totalorder %s51, %s52
      %p64 = scmp.eq.s32.totalorder %s21, 1
      %p65 = por %p63, %p64
      %p67 = scmp.ne.s32.totalorder %s52, %s66
      %p68 = scmp.eq.s32.totalorder %s21, 0
      %p69 = por %p67, %p68
      %s70 = ssub.s32 %s15, %s22
      %p71 = scmp.eq.s32.totalorder %s70, 0
      %s73 = sadd.s32 %s72, 1
      %s74 = scalar_select %p71, %s72, %s73
      %p77 = pneg %p71
      %p78 = scmp.eq.s32.totalorder %s15, 1
      %p79 = por %p77, %p78
      %p80 = scmp.ne.s32.totalorder %s72, %s75
      %p81 = scmp.eq.s32.totalorder %s15, 0
      %p82 = por %p80, %p81
      %p83 = scmp.ne.s32.totalorder %s72, %s75
      %p84 = scmp.eq.s32.totalorder %s20, 1
      %p85 = por %p83, %p84
      %p86 = scmp.ne.s32.totalorder %s75, %s76
      %p87 = scmp.eq.s32.totalorder %s20, 0
      %p88 = por %p86, %p87
      %p89 = scmp.ne.s32.totalorder %s75, %s76
      %p90 = scmp.eq.s32.totalorder %s21, 1
      %p91 = por %p89, %p90
      %p93 = scmp.ne.s32.totalorder %s76, %s92
      %p94 = scmp.eq.s32.totalorder %s21, 0
      %p95 = por %p93, %p94
      %p96 = scmp.le.s32.totalorder 1, %s15
      %p97 = scmp.lt.s32.totalorder %s15, 3
      %p98 = pnand %p96, %p97
      %p99 = pneg %p98
      // Predicated region
      $region9: #{_lambda_.55} parent=5 // pred_check
        _
      $region10: #{_lambda_.55} parent=5 // pred_check_branch
        %101 = sbr.rel (%p98) target = $region12
      $region11: #{_lambda_.55} parent=5 // pred_region
        %s102 = ssub.s32 %s15, 1
        // Predicated region
        $region13: #{_lambda_.55} parent=11 // pred_check
          %p103 = pneg %p62
        $region14: #{_lambda_.55} parent=11 // pred_check_branch
          %105 = sbr.rel (%p103) target = $region16
        $region15: #{_lambda_.55} parent=11 // pred_region
          %s107 = ssub.s32 256, 256
          %108 = vsyncadd [#allocation6], %s107
          %s109 = sshll.u32 [#allocation5], 4
          %s110 = int_to_ptr.vmem [resolvable:$true] %s109
          %115 = dma.hbm_to_vmem [thread:$0]  %s1, 256, %s110, [#allocation6], 64, 64, 4
        $region16: #{_lambda_.55} parent=11 // pred_fallthru
          _
      $region12: #{_lambda_.55} parent=5 // pred_fallthru
        _
      %p116 = scmp.lt.s32.totalorder %s15, 2
      // Predicated region
      $region17: #{_lambda_.55} parent=5 // pred_check
        %p117 = pneg %p116
      $region18: #{_lambda_.55} parent=5 // pred_check_branch
        %119 = sbr.rel (%p117) target = $region20
      $region19: #{_lambda_.55} parent=5 // pred_region
        // Predicated region
        $region21: #{_lambda_.55} parent=19 // pred_check
          %p120 = pneg %p35
        $region22: #{_lambda_.55} parent=19 // pred_check_branch
          %122 = sbr.rel (%p120) target = $region24
        $region23: #{_lambda_.55} parent=19 // pred_region
          %s123 = sand.u32 %s25, 1
          %s124 = scalar_lea.sflag [#allocation3], %s123
          %s125 = sand.u32 %s25, 1
          %s126 = smul.addr %s125, 4
          %s127 = scalar_lea.vmem [#allocation2], %s126
          %s129 = ssub.s32 64, 64
          %130 = vsyncadd %s124, %s129
          %s131 = smul.addr %s15, 2
          %s132 = smul.addr %s131, 32
          %s133 = scalar_lea.hbm %s0, %s132
          %s135 = sshll.u32 %s127, 4
          %s136 = int_to_ptr.vmem [resolvable:$true] %s135
          %138 = dma.hbm_to_vmem [thread:$0]  %s133, 64, %s136, %s124
        $region24: #{_lambda_.55} parent=19 // pred_fallthru
          _
      $region20: #{_lambda_.55} parent=5 // pred_fallthru
        _
      %p139 = scmp.le.s32.totalorder 1, %s15
      %p140 = scmp.lt.s32.totalorder %s15, 3
      %p141 = pnand %p139, %p140
      %p142 = pneg %p141
      // Predicated region
      $region25: #{_lambda_.55} parent=5 // pred_check
        _
      $region26: #{_lambda_.55} parent=5 // pred_check_branch
        %144 = sbr.rel (%p141) target = $region28
      $region27: #{_lambda_.55} parent=5 // pred_region
        %s145 = ssub.s32 %s15, 1
        %s146 = sand.u32 %s28, 1
        %s147 = scalar_lea.sflag [#allocation3], %s146
        %s148 = sand.u32 %s28, 1
        %s149 = smul.addr %s148, 4
        %s150 = scalar_lea.vmem [#allocation2], %s149
        // Predicated region
        $region29: #{_lambda_.55} parent=27 // pred_check
          %p151 = pneg %p41
        $region30: #{_lambda_.55} parent=27 // pred_check_branch
          %153 = sbr.rel (%p151) target = $region32
        $region31: #{_lambda_.55} parent=27 // pred_region
          %154 = dma.done %s147, 64
        $region32: #{_lambda_.55} parent=27 // pred_fallthru
          _
        // Predicated region
        $region33: #{_lambda_.55} parent=27 // pred_check
          %p155 = pneg %p62
        $region34: #{_lambda_.55} parent=27 // pred_check_branch
          %157 = sbr.rel (%p155) target = $region36
        $region35: #{_lambda_.55} parent=27 // pred_region
          %158 = dma.done [#allocation6], 256
        $region36: #{_lambda_.55} parent=27 // pred_fallthru
          _
        %s159 = sand.u32 %s28, 1
        %s160 = scalar_lea.sflag [#allocation3], %s159
        %s161 = sand.u32 %s28, 1
        %s162 = smul.addr %s161, 4
        %s163 = scalar_lea.vmem [#allocation2], %s162
        %p164 = pneg %p41
        %p165 = pneg %p38
        %p166 = pneg %p62
        %p167 = pneg %p59
        %p168 = pneg %p88
        %p169 = pneg %p85
        %s170 = sand.u32 %s75, 1
        %s171 = scalar_lea.sflag [#allocation4], %s170
        %s172 = sand.u32 %s75, 1
        %s173 = smul.addr %s172, 2
        %s174 = scalar_lea.vmem [#allocation7], %s173
        %v176 = vld [vmem:[%s150] sm:$0x3]
        %v177 = vld [vmem:[%s150 + $0x2] sm:$0x3]
        %v180 = vunpack.c.l.s4 1983009808
        %v181 = vunpack.c.0.s8 %v180
        %v182 = vlaneseq
        %v183 = vshrl.u32 %v182, 7
        %v184 = vsub.s32 %v181, %v183
        %v185 = vrot.slane %v176, %v184
        %186 = vrot.lane.b32.xlu0 %v185, 64
        %v187 = vpop.permute.xlu0 %186
        %vm188 = vcmask 130048
        %v190 = vsel %vm188, %v176, 0
        %v193 = vsel %vm188, %v187, 0
        %195 = vmatprep.subr.bf16.mxu0 0
        %196 = vmatpush1.bf16.xpose.msra.mxu0 %v193
        %197 = vmatprep.subr.bf16.mxu0 0
        %198 = vmatpush1.bf16.xpose.msra.mxu0 0
        %199 = vmatprep.subr.bf16.mxu0 0
        %200 = vmatpush1.bf16.xpose.msra.mxu0 0
        %201 = vmatprep.subr.bf16.mxu0 0
        %202 = vmatpush1.bf16.xpose.msra.mxu0 0
        %203 = vmatprep.subr.bf16.mxu0 0
        %204 = vmatpush1.bf16.xpose.msra.mxu0 0
        %205 = vmatprep.subr.bf16.mxu0 0
        %206 = vmatpush1.bf16.xpose.msra.mxu0 0
        %207 = vmatprep.subr.bf16.mxu0 0
        %208 = vmatpush1.bf16.xpose.msra.mxu0 0
        %209 = vmatprep.subr.bf16.mxu0 0
        %210 = vmatpush1.bf16.xpose.msra.mxu0 0
        %211 = vmatprep.subr.bf16.mxu0 0
        %212 = vmatpush1.bf16.xpose.msra.mxu0 0
        %213 = vmatprep.subr.bf16.mxu0 0
        %214 = vmatpush1.bf16.xpose.msra.mxu0 0
        %215 = vmatprep.subr.bf16.mxu0 0
        %216 = vmatpush1.bf16.xpose.msra.mxu0 0
        %217 = vmatprep.subr.bf16.mxu0 0
        %218 = vmatpush1.bf16.xpose.msra.mxu0 0
        %219 = vmatprep.subr.bf16.mxu0 0
        %220 = vmatpush1.bf16.xpose.msra.mxu0 0
        %221 = vmatprep.subr.bf16.mxu0 0
        %222 = vmatpush1.bf16.xpose.msra.mxu0 0
        %223 = vmatprep.subr.bf16.mxu0 0
        %224 = vmatpush1.bf16.xpose.msra.mxu0 0
        %225 = vmatprep.subr.bf16.mxu0 0
        %226 = vmatpush1.bf16.xpose.msra.mxu0 0
        %227 = vmatprep.mubr.bf16.mxu0 0
        %228 = vmatmul.mubr.bf16.gmra.mrb[0].mxu0 %v190
        %v229 = vpop.f32.mrb[0].mxu0
        %v230 = vadd.f32 0.0, %v229
        %v231 = vpop.f32.mrb[0].mxu0
        %v232 = vpop.f32.mrb[0].mxu0
        %v233 = vpop.f32.mrb[0].mxu0
        %234 = vdwg.mxu0
        %v235 = vmul.f32 %v230, 0.25
        %v236 = vld [vmem:[#allocation5] sm:$0xf]
        %v237 = vadd.f32 %v235, %v236
        %vm238 = vcmask 27648
        %v239 = vsel %vm238, %v237, -inf
        %240 = vmax.xlane.f32.xlu0 %v239
        %v241 = vpop.xlane.xlu0 %240
        %v242 = vsub.f32 %v237, %v241
        %v243 = vmul.f32 %v242, 1.442695
        %v244 = vpow.pop %v243
        %v245 = vsel %vm238, %v244, 0.0
        %246 = vadd.xlane.f32.xlu0 %v245
        %v247 = vpop.xlane.xlu0 %246
        %v248 = vrcp.pop %v247
        %v249 = vmul.f32 %v244, %v248
        %v250 = vpack.c.bf16 %v249, %v249
        %vm251 = vcmask 31744
        %v253 = vsel %vm251, %v250, 0
        %vm255 = vcmask 1041408
        %v257 = vsel %vm255, %v177, 0
        %259 = vmatprep.subr.bf16.mxu0 0
        %260 = vmatpush1.bf16.msra.mxu0 %v257
        %261 = vmatprep.subr.bf16.mxu0 0
        %262 = vmatpush1.bf16.msra.mxu0 0
        %263 = vmatprep.subr.bf16.mxu0 0
        %264 = vmatpush1.bf16.msra.mxu0 0
        %265 = vmatprep.subr.bf16.mxu0 0
        %266 = vmatpush1.bf16.msra.mxu0 0
        %267 = vmatprep.subr.bf16.mxu0 0
        %268 = vmatpush1.bf16.msra.mxu0 0
        %269 = vmatprep.subr.bf16.mxu0 0
        %270 = vmatpush1.bf16.msra.mxu0 0
        %271 = vmatprep.subr.bf16.mxu0 0
        %272 = vmatpush1.bf16.msra.mxu0 0
        %273 = vmatprep.subr.bf16.mxu0 0
        %274 = vmatpush1.bf16.msra.mxu0 0
        %275 = vmatprep.subr.bf16.mxu0 0
        %276 = vmatpush1.bf16.msra.mxu0 0
        %277 = vmatprep.subr.bf16.mxu0 0
        %278 = vmatpush1.bf16.msra.mxu0 0
        %279 = vmatprep.subr.bf16.mxu0 0
        %280 = vmatpush1.bf16.msra.mxu0 0
        %281 = vmatprep.subr.bf16.mxu0 0
        %282 = vmatpush1.bf16.msra.mxu0 0
        %283 = vmatprep.subr.bf16.mxu0 0
        %284 = vmatpush1.bf16.msra.mxu0 0
        %285 = vmatprep.subr.bf16.mxu0 0
        %286 = vmatpush1.bf16.msra.mxu0 0
        %287 = vmatprep.subr.bf16.mxu0 0
        %288 = vmatpush1.bf16.msra.mxu0 0
        %289 = vmatprep.subr.bf16.mxu0 0
        %290 = vmatpush1.bf16.msra.mxu0 0
        %291 = vmatprep.mubr.bf16.mxu0 0
        %292 = vmatmul.mubr.bf16.gmra.mrb[0].mxu0 %v253
        %v293 = vpop.f32.mrb[0].mxu0
        %v294 = vadd.f32 0.0, %v293
        %v295 = vpop.f32.mrb[0].mxu0
        %v296 = vpop.f32.mrb[0].mxu0
        %v297 = vpop.f32.mrb[0].mxu0
        %298 = vdwg.mxu0
        %v299 = vpack.c.bf16 %v294, %v294
        %vm300 = vcmask 123904
        %301 = vst.msk [vmem:[%s174] sm:$0x3] %vm300, %v299
        %v302 = vld [vmem:[%s150] sm:$0x3]
        %v303 = vld [vmem:[%s150 + $0x2] sm:$0x3]
        %v306 = vunpack.c.l.s4 1983009808
        %v307 = vunpack.c.0.s8 %v306
        %v308 = vlaneseq
        %v309 = vshrl.u32 %v308, 7
        %v310 = vsub.s32 %v307, %v309
        %v311 = vrot.slane %v302, %v310
        %312 = vrot.lane.b32.xlu0 %v311, 112
        %v313 = vpop.permute.xlu0 %312
        %314 = vrot.lane.b32.xlu0 %v311, 48
        %v315 = vpop.permute.xlu0 %314
        %v317 = vsel %vm188, %v313, 0
        %v320 = vsel %vm188, %v315, 0
        %322 = vmatprep.subr.bf16.mxu0 0
        %323 = vmatpush1.bf16.xpose.msra.mxu0 %v320
        %324 = vmatprep.subr.bf16.mxu0 0
        %325 = vmatpush1.bf16.xpose.msra.mxu0 0
        %326 = vmatprep.subr.bf16.mxu0 0
        %327 = vmatpush1.bf16.xpose.msra.mxu0 0
        %328 = vmatprep.subr.bf16.mxu0 0
        %329 = vmatpush1.bf16.xpose.msra.mxu0 0
        %330 = vmatprep.subr.bf16.mxu0 0
        %331 = vmatpush1.bf16.xpose.msra.mxu0 0
        %332 = vmatprep.subr.bf16.mxu0 0
        %333 = vmatpush1.bf16.xpose.msra.mxu0 0
        %334 = vmatprep.subr.bf16.mxu0 0
        %335 = vmatpush1.bf16.xpose.msra.mxu0 0
        %336 = vmatprep.subr.bf16.mxu0 0
        %337 = vmatpush1.bf16.xpose.msra.mxu0 0
        %338 = vmatprep.subr.bf16.mxu0 0
        %339 = vmatpush1.bf16.xpose.msra.mxu0 0
        %340 = vmatprep.subr.bf16.mxu0 0
        %341 = vmatpush1.bf16.xpose.msra.mxu0 0
        %342 = vmatprep.subr.bf16.mxu0 0
        %343 = vmatpush1.bf16.xpose.msra.mxu0 0
        %344 = vmatprep.subr.bf16.mxu0 0
        %345 = vmatpush1.bf16.xpose.msra.mxu0 0
        %346 = vmatprep.subr.bf16.mxu0 0
        %347 = vmatpush1.bf16.xpose.msra.mxu0 0
        %348 = vmatprep.subr.bf16.mxu0 0
        %349 = vmatpush1.bf16.xpose.msra.mxu0 0
        %350 = vmatprep.subr.bf16.mxu0 0
        %351 = vmatpush1.bf16.xpose.msra.mxu0 0
        %352 = vmatprep.subr.bf16.mxu0 0
        %353 = vmatpush1.bf16.xpose.msra.mxu0 0
        %354 = vmatprep.mubr.bf16.mxu0 0
        %355 = vmatmul.mubr.bf16.gmra.mrb[0].mxu0 %v317
        %v356 = vpop.f32.mrb[0].mxu0
        %v357 = vadd.f32 0.0, %v356
        %v358 = vpop.f32.mrb[0].mxu0
        %v359 = vpop.f32.mrb[0].mxu0
        %v360 = vpop.f32.mrb[0].mxu0
        %361 = vdwg.mxu0
        %v362 = vmul.f32 %v357, 0.25
        %s363 = scalar_lea.vmem [#allocation5], 4
        %v364 = vld [vmem:[%s363] sm:$0xf]
        %v365 = vadd.f32 %v362, %v364
        %v366 = vsel %vm238, %v365, -inf
        %367 = vmax.xlane.f32.xlu0 %v366
        %v368 = vpop.xlane.xlu0 %367
        %v369 = vsub.f32 %v365, %v368
        %v370 = vmul.f32 %v369, 1.442695
        %v371 = vpow.pop %v370
        %v372 = vsel %vm238, %v371, 0.0
        %373 = vadd.xlane.f32.xlu0 %v372
        %v374 = vpop.xlane.xlu0 %373
        %v375 = vrcp.pop %v374
        %v376 = vmul.f32 %v371, %v375
        %v377 = vpack.c.bf16 %v376, %v376
        %v380 = vunpack.c.l.s4 1983009808
        %v381 = vunpack.c.0.s8 %v380
        %v382 = vlaneseq
        %v383 = vshrl.u32 %v382, 7
        %v384 = vsub.s32 %v381, %v383
        %v385 = vrot.slane %v303, %v384
        %386 = vrot.lane.b32.xlu0 %v385, 112
        %v387 = vpop.permute.xlu0 %386
        %v389 = vsel %vm251, %v377, 0
        %v392 = vsel %vm255, %v387, 0
        %394 = vmatprep.subr.bf16.mxu0 0
        %395 = vmatpush1.bf16.msra.mxu0 %v392
        %396 = vmatprep.subr.bf16.mxu0 0
        %397 = vmatpush1.bf16.msra.mxu0 0
        %398 = vmatprep.subr.bf16.mxu0 0
        %399 = vmatpush1.bf16.msra.mxu0 0
        %400 = vmatprep.subr.bf16.mxu0 0
        %401 = vmatpush1.bf16.msra.mxu0 0
        %402 = vmatprep.subr.bf16.mxu0 0
        %403 = vmatpush1.bf16.msra.mxu0 0
        %404 = vmatprep.subr.bf16.mxu0 0
        %405 = vmatpush1.bf16.msra.mxu0 0
        %406 = vmatprep.subr.bf16.mxu0 0
        %407 = vmatpush1.bf16.msra.mxu0 0
        %408 = vmatprep.subr.bf16.mxu0 0
        %409 = vmatpush1.bf16.msra.mxu0 0
        %410 = vmatprep.subr.bf16.mxu0 0
        %411 = vmatpush1.bf16.msra.mxu0 0
        %412 = vmatprep.subr.bf16.mxu0 0
        %413 = vmatpush1.bf16.msra.mxu0 0
        %414 = vmatprep.subr.bf16.mxu0 0
        %415 = vmatpush1.bf16.msra.mxu0 0
        %416 = vmatprep.subr.bf16.mxu0 0
        %417 = vmatpush1.bf16.msra.mxu0 0
        %418 = vmatprep.subr.bf16.mxu0 0
        %419 = vmatpush1.bf16.msra.mxu0 0
        %420 = vmatprep.subr.bf16.mxu0 0
        %421 = vmatpush1.bf16.msra.mxu0 0
        %422 = vmatprep.subr.bf16.mxu0 0
        %423 = vmatpush1.bf16.msra.mxu0 0
        %424 = vmatprep.subr.bf16.mxu0 0
        %425 = vmatpush1.bf16.msra.mxu0 0
        %426 = vmatprep.mubr.bf16.mxu0 0
        %427 = vmatmul.mubr.bf16.gmra.mrb[0].mxu0 %v389
        %v428 = vpop.f32.mrb[0].mxu0
        %v429 = vadd.f32 0.0, %v428
        %v430 = vpop.f32.mrb[0].mxu0
        %v431 = vpop.f32.mrb[0].mxu0
        %v432 = vpop.f32.mrb[0].mxu0
        %433 = vdwg.mxu0
        %v434 = vpack.c.bf16 %v429, %v429
        %v437 = vunpack.c.l.s4 1983009808
        %v438 = vunpack.c.0.s8 %v437
        %v439 = vlaneseq
        %v440 = vshrl.u32 %v439, 7
        %v441 = vsub.s32 %v438, %v440
        %v442 = vrot.slane %v434, %v441
        %443 = vrot.lane.b32.xlu0 %v442, 16
        %v444 = vpop.permute.xlu0 %443
        %vm446 = vcmask 255104
        %447 = vst.msk [vmem:[%s174] sm:$0x3] %vm446, %v444
        %v448 = vld [vmem:[%s150] sm:$0x3]
        %v449 = vld [vmem:[%s150 + $0x2] sm:$0x3]
        %v452 = vunpack.c.l.s4 1983009808
        %v453 = vunpack.c.0.s8 %v452
        %v454 = vlaneseq
        %v455 = vshrl.u32 %v454, 7
        %v456 = vsub.s32 %v453, %v455
        %v457 = vrot.slane %v448, %v456
        %458 = vrot.lane.b32.xlu0 %v457, 96
        %v459 = vpop.permute.xlu0 %458
        %460 = vrot.lane.b32.xlu0 %v457, 32
        %v461 = vpop.permute.xlu0 %460
        %v463 = vsel %vm188, %v459, 0
        %v466 = vsel %vm188, %v461, 0
        %468 = vmatprep.subr.bf16.mxu0 0
        %469 = vmatpush1.bf16.xpose.msra.mxu0 %v466
        %470 = vmatprep.subr.bf16.mxu0 0
        %471 = vmatpush1.bf16.xpose.msra.mxu0 0
        %472 = vmatprep.subr.bf16.mxu0 0
        %473 = vmatpush1.bf16.xpose.msra.mxu0 0
        %474 = vmatprep.subr.bf16.mxu0 0
        %475 = vmatpush1.bf16.xpose.msra.mxu0 0
        %476 = vmatprep.subr.bf16.mxu0 0
        %477 = vmatpush1.bf16.xpose.msra.mxu0 0
        %478 = vmatprep.subr.bf16.mxu0 0
        %479 = vmatpush1.bf16.xpose.msra.mxu0 0
        %480 = vmatprep.subr.bf16.mxu0 0
        %481 = vmatpush1.bf16.xpose.msra.mxu0 0
        %482 = vmatprep.subr.bf16.mxu0 0
        %483 = vmatpush1.bf16.xpose.msra.mxu0 0
        %484 = vmatprep.subr.bf16.mxu0 0
        %485 = vmatpush1.bf16.xpose.msra.mxu0 0
        %486 = vmatprep.subr.bf16.mxu0 0
        %487 = vmatpush1.bf16.xpose.msra.mxu0 0
        %488 = vmatprep.subr.bf16.mxu0 0
        %489 = vmatpush1.bf16.xpose.msra.mxu0 0
        %490 = vmatprep.subr.bf16.mxu0 0
        %491 = vmatpush1.bf16.xpose.msra.mxu0 0
        %492 = vmatprep.subr.bf16.mxu0 0
        %493 = vmatpush1.bf16.xpose.msra.mxu0 0
        %494 = vmatprep.subr.bf16.mxu0 0
        %495 = vmatpush1.bf16.xpose.msra.mxu0 0
        %496 = vmatprep.subr.bf16.mxu0 0
        %497 = vmatpush1.bf16.xpose.msra.mxu0 0
        %498 = vmatprep.subr.bf16.mxu0 0
        %499 = vmatpush1.bf16.xpose.msra.mxu0 0
        %500 = vmatprep.mubr.bf16.mxu0 0
        %501 = vmatmul.mubr.bf16.gmra.mrb[0].mxu0 %v463
        %v502 = vpop.f32.mrb[0].mxu0
        %v503 = vadd.f32 0.0, %v502
        %v504 = vpop.f32.mrb[0].mxu0
        %v505 = vpop.f32.mrb[0].mxu0
        %v506 = vpop.f32.mrb[0].mxu0
        %507 = vdwg.mxu0
        %v508 = vmul.f32 %v503, 0.25
        %s509 = scalar_lea.vmem [#allocation5], 8
        %v510 = vld [vmem:[%s509] sm:$0xf]
        %v511 = vadd.f32 %v508, %v510
        %v512 = vsel %vm238, %v511, -inf
        %513 = vmax.xlane.f32.xlu0 %v512
        %v514 = vpop.xlane.xlu0 %513
        %v515 = vsub.f32 %v511, %v514
        %v516 = vmul.f32 %v515, 1.442695
        %v517 = vpow.pop %v516
        %v518 = vsel %vm238, %v517, 0.0
        %519 = vadd.xlane.f32.xlu0 %v518
        %v520 = vpop.xlane.xlu0 %519
        %v521 = vrcp.pop %v520
        %v522 = vmul.f32 %v517, %v521
        %v523 = vpack.c.bf16 %v522, %v522
        %v526 = vunpack.c.l.s4 1983009808
        %v527 = vunpack.c.0.s8 %v526
        %v528 = vlaneseq
        %v529 = vshrl.u32 %v528, 7
        %v530 = vsub.s32 %v527, %v529
        %v531 = vrot.slane %v449, %v530
        %532 = vrot.lane.b32.xlu0 %v531, 96
        %v533 = vpop.permute.xlu0 %532
        %v535 = vsel %vm251, %v523, 0
        %v538 = vsel %vm255, %v533, 0
        %540 = vmatprep.subr.bf16.mxu0 0
        %541 = vmatpush1.bf16.msra.mxu0 %v538
        %542 = vmatprep.subr.bf16.mxu0 0
        %543 = vmatpush1.bf16.msra.mxu0 0
        %544 = vmatprep.subr.bf16.mxu0 0
        %545 = vmatpush1.bf16.msra.mxu0 0
        %546 = vmatprep.subr.bf16.mxu0 0
        %547 = vmatpush1.bf16.msra.mxu0 0
        %548 = vmatprep.subr.bf16.mxu0 0
        %549 = vmatpush1.bf16.msra.mxu0 0
        %550 = vmatprep.subr.bf16.mxu0 0
        %551 = vmatpush1.bf16.msra.mxu0 0
        %552 = vmatprep.subr.bf16.mxu0 0
        %553 = vmatpush1.bf16.msra.mxu0 0
        %554 = vmatprep.subr.bf16.mxu0 0
        %555 = vmatpush1.bf16.msra.mxu0 0
        %556 = vmatprep.subr.bf16.mxu0 0
        %557 = vmatpush1.bf16.msra.mxu0 0
        %558 = vmatprep.subr.bf16.mxu0 0
        %559 = vmatpush1.bf16.msra.mxu0 0
        %560 = vmatprep.subr.bf16.mxu0 0
        %561 = vmatpush1.bf16.msra.mxu0 0
        %562 = vmatprep.subr.bf16.mxu0 0
        %563 = vmatpush1.bf16.msra.mxu0 0
        %564 = vmatprep.subr.bf16.mxu0 0
        %565 = vmatpush1.bf16.msra.mxu0 0
        %566 = vmatprep.subr.bf16.mxu0 0
        %567 = vmatpush1.bf16.msra.mxu0 0
        %568 = vmatprep.subr.bf16.mxu0 0
        %569 = vmatpush1.bf16.msra.mxu0 0
        %570 = vmatprep.subr.bf16.mxu0 0
        %571 = vmatpush1.bf16.msra.mxu0 0
        %572 = vmatprep.mubr.bf16.mxu0 0
        %573 = vmatmul.mubr.bf16.gmra.mrb[0].mxu0 %v535
        %v574 = vpop.f32.mrb[0].mxu0
        %v575 = vadd.f32 0.0, %v574
        %v576 = vpop.f32.mrb[0].mxu0
        %v577 = vpop.f32.mrb[0].mxu0
        %v578 = vpop.f32.mrb[0].mxu0
        %579 = vdwg.mxu0
        %v580 = vpack.c.bf16 %v575, %v575
        %v583 = vunpack.c.l.s4 1983009808
        %v584 = vunpack.c.0.s8 %v583
        %v585 = vlaneseq
        %v586 = vshrl.u32 %v585, 7
        %v587 = vsub.s32 %v584, %v586
        %v588 = vrot.slane %v580, %v587
        %589 = vrot.lane.b32.xlu0 %v588, 32
        %v590 = vpop.permute.xlu0 %589
        %vm592 = vcmask 386304
        %593 = vst.msk [vmem:[%s174] sm:$0x3] %vm592, %v590
        %v594 = vld [vmem:[%s150] sm:$0x3]
        %v595 = vld [vmem:[%s150 + $0x2] sm:$0x3]
        %v598 = vunpack.c.l.s4 1983009808
        %v599 = vunpack.c.0.s8 %v598
        %v600 = vlaneseq
        %v601 = vshrl.u32 %v600, 7
        %v602 = vsub.s32 %v599, %v601
        %v603 = vrot.slane %v594, %v602
        %604 = vrot.lane.b32.xlu0 %v603, 80
        %v605 = vpop.permute.xlu0 %604
        %606 = vrot.lane.b32.xlu0 %v603, 16
        %v607 = vpop.permute.xlu0 %606
        %v609 = vsel %vm188, %v605, 0
        %v612 = vsel %vm188, %v607, 0
        %614 = vmatprep.subr.bf16.mxu0 0
        %615 = vmatpush1.bf16.xpose.msra.mxu0 %v612
        %616 = vmatprep.subr.bf16.mxu0 0
        %617 = vmatpush1.bf16.xpose.msra.mxu0 0
        %618 = vmatprep.subr.bf16.mxu0 0
        %619 = vmatpush1.bf16.xpose.msra.mxu0 0
        %620 = vmatprep.subr.bf16.mxu0 0
        %621 = vmatpush1.bf16.xpose.msra.mxu0 0
        %622 = vmatprep.subr.bf16.mxu0 0
        %623 = vmatpush1.bf16.xpose.msra.mxu0 0
        %624 = vmatprep.subr.bf16.mxu0 0
        %625 = vmatpush1.bf16.xpose.msra.mxu0 0
        %626 = vmatprep.subr.bf16.mxu0 0
        %627 = vmatpush1.bf16.xpose.msra.mxu0 0
        %628 = vmatprep.subr.bf16.mxu0 0
        %629 = vmatpush1.bf16.xpose.msra.mxu0 0
        %630 = vmatprep.subr.bf16.mxu0 0
        %631 = vmatpush1.bf16.xpose.msra.mxu0 0
        %632 = vmatprep.subr.bf16.mxu0 0
        %633 = vmatpush1.bf16.xpose.msra.mxu0 0
        %634 = vmatprep.subr.bf16.mxu0 0
        %635 = vmatpush1.bf16.xpose.msra.mxu0 0
        %636 = vmatprep.subr.bf16.mxu0 0
        %637 = vmatpush1.bf16.xpose.msra.mxu0 0
        %638 = vmatprep.subr.bf16.mxu0 0
        %639 = vmatpush1.bf16.xpose.msra.mxu0 0
        %640 = vmatprep.subr.bf16.mxu0 0
        %641 = vmatpush1.bf16.xpose.msra.mxu0 0
        %642 = vmatprep.subr.bf16.mxu0 0
        %643 = vmatpush1.bf16.xpose.msra.mxu0 0
        %644 = vmatprep.subr.bf16.mxu0 0
        %645 = vmatpush1.bf16.xpose.msra.mxu0 0
        %646 = vmatprep.mubr.bf16.mxu0 0
        %647 = vmatmul.mubr.bf16.gmra.mrb[0].mxu0 %v609
        %v648 = vpop.f32.mrb[0].mxu0
        %v649 = vadd.f32 0.0, %v648
        %v650 = vpop.f32.mrb[0].mxu0
        %v651 = vpop.f32.mrb[0].mxu0
        %v652 = vpop.f32.mrb[0].mxu0
        %653 = vdwg.mxu0
        %v654 = vmul.f32 %v649, 0.25
        %s655 = scalar_lea.vmem [#allocation5], 12
        %v656 = vld [vmem:[%s655] sm:$0xf]
        %v657 = vadd.f32 %v654, %v656
        %v658 = vsel %vm238, %v657, -inf
        %659 = vmax.xlane.f32.xlu0 %v658
        %v660 = vpop.xlane.xlu0 %659
        %v661 = vsub.f32 %v657, %v660
        %v662 = vmul.f32 %v661, 1.442695
        %v663 = vpow.pop %v662
        %v664 = vsel %vm238, %v663, 0.0
        %665 = vadd.xlane.f32.xlu0 %v664
        %v666 = vpop.xlane.xlu0 %665
        %v667 = vrcp.pop %v666
        %v668 = vmul.f32 %v663, %v667
        %v669 = vpack.c.bf16 %v668, %v668
        %v672 = vunpack.c.l.s4 1983009808
        %v673 = vunpack.c.0.s8 %v672
        %v674 = vlaneseq
        %v675 = vshrl.u32 %v674, 7
        %v676 = vsub.s32 %v673, %v675
        %v677 = vrot.slane %v595, %v676
        %678 = vrot.lane.b32.xlu0 %v677, 80
        %v679 = vpop.permute.xlu0 %678
        %v681 = vsel %vm251, %v669, 0
        %v684 = vsel %vm255, %v679, 0
        %686 = vmatprep.subr.bf16.mxu0 0
        %687 = vmatpush1.bf16.msra.mxu0 %v684
        %688 = vmatprep.subr.bf16.mxu0 0
        %689 = vmatpush1.bf16.msra.mxu0 0
        %690 = vmatprep.subr.bf16.mxu0 0
        %691 = vmatpush1.bf16.msra.mxu0 0
        %692 = vmatprep.subr.bf16.mxu0 0
        %693 = vmatpush1.bf16.msra.mxu0 0
        %694 = vmatprep.subr.bf16.mxu0 0
        %695 = vmatpush1.bf16.msra.mxu0 0
        %696 = vmatprep.subr.bf16.mxu0 0
        %697 = vmatpush1.bf16.msra.mxu0 0
        %698 = vmatprep.subr.bf16.mxu0 0
        %699 = vmatpush1.bf16.msra.mxu0 0
        %700 = vmatprep.subr.bf16.mxu0 0
        %701 = vmatpush1.bf16.msra.mxu0 0
        %702 = vmatprep.subr.bf16.mxu0 0
        %703 = vmatpush1.bf16.msra.mxu0 0
        %704 = vmatprep.subr.bf16.mxu0 0
        %705 = vmatpush1.bf16.msra.mxu0 0
        %706 = vmatprep.subr.bf16.mxu0 0
        %707 = vmatpush1.bf16.msra.mxu0 0
        %708 = vmatprep.subr.bf16.mxu0 0
        %709 = vmatpush1.bf16.msra.mxu0 0
        %710 = vmatprep.subr.bf16.mxu0 0
        %711 = vmatpush1.bf16.msra.mxu0 0
        %712 = vmatprep.subr.bf16.mxu0 0
        %713 = vmatpush1.bf16.msra.mxu0 0
        %714 = vmatprep.subr.bf16.mxu0 0
        %715 = vmatpush1.bf16.msra.mxu0 0
        %716 = vmatprep.subr.bf16.mxu0 0
        %717 = vmatpush1.bf16.msra.mxu0 0
        %718 = vmatprep.mubr.bf16.mxu0 0
        %719 = vmatmul.mubr.bf16.gmra.mrb[0].mxu0 %v681
        %v720 = vpop.f32.mrb[0].mxu0
        %v721 = vadd.f32 0.0, %v720
        %v722 = vpop.f32.mrb[0].mxu0
        %v723 = vpop.f32.mrb[0].mxu0
        %v724 = vpop.f32.mrb[0].mxu0
        %725 = vdwg.mxu0
        %v726 = vpack.c.bf16 %v721, %v721
        %v729 = vunpack.c.l.s4 1983009808
        %v730 = vunpack.c.0.s8 %v729
        %v731 = vlaneseq
        %v732 = vshrl.u32 %v731, 7
        %v733 = vsub.s32 %v730, %v732
        %v734 = vrot.slane %v726, %v733
        %735 = vrot.lane.b32.xlu0 %v734, 48
        %v736 = vpop.permute.xlu0 %735
        %vm738 = vcmask 517504
        %739 = vst.msk [vmem:[%s174] sm:$0x3] %vm738, %v736
        %s740 = sand.u32 %s75, 1
        %s741 = scalar_lea.sflag [#allocation4], %s740
        %s742 = sand.u32 %s75, 1
        %s743 = smul.addr %s742, 2
        %s744 = scalar_lea.vmem [#allocation7], %s743
        // Predicated region
        $region37: #{_lambda_.55} parent=27 // pred_check
          %p745 = pneg %p85
        $region38: #{_lambda_.55} parent=27 // pred_check_branch
          %747 = sbr.rel (%p745) target = $region40
        $region39: #{_lambda_.55} parent=27 // pred_region
          %s749 = ssub.s32 32, 32
          %750 = vsyncadd %s741, %s749
          %s751 = smul.addr %s20, 32
          %s752 = scalar_lea.hbm %s2, %s751
          %s754 = sshll.u32 %s744, 4
          %s755 = int_to_ptr.vmem [resolvable:$true] %s754
          %757 = dma.vmem_to_hbm [thread:$0]  %s755, 32, %s752, %s741
        $region40: #{_lambda_.55} parent=27 // pred_fallthru
          _
      $region28: #{_lambda_.55} parent=5 // pred_fallthru
        _
      %p758 = scmp.le.s32.totalorder 2, %s15
      // Predicated region
      $region41: #{_lambda_.55} parent=5 // pred_check
        %p759 = pneg %p758
      $region42: #{_lambda_.55} parent=5 // pred_check_branch
        %761 = sbr.rel (%p759) target = $region44
      $region43: #{_lambda_.55} parent=5 // pred_region
        %s762 = ssub.s32 %s15, 2
        // Predicated region
        $region45: #{_lambda_.55} parent=43 // pred_check
          %p763 = pneg %p91
        $region46: #{_lambda_.55} parent=43 // pred_check_branch
          %765 = sbr.rel (%p763) target = $region48
        $region47: #{_lambda_.55} parent=43 // pred_region
          %s766 = sand.u32 %s76, 1
          %s767 = scalar_lea.sflag [#allocation4], %s766
          %s768 = sand.u32 %s76, 1
          %s769 = smul.addr %s768, 2
          %s770 = scalar_lea.vmem [#allocation7], %s769
          %771 = dma.done %s767, 32
        $region48: #{_lambda_.55} parent=43 // pred_fallthru
          _
      $region44: #{_lambda_.55} parent=5 // pred_fallthru
        _
    $region6: #{_lambda_.55} parent=1 // loop_footer
      %s19 = sadd.s32 1, %s15
    $region7: #{_lambda_.55} parent=1 // loop_footer_branch
      %14 = sbr.rel target = $region3
    $region8: #{_lambda_.55} parent=1 // loop_exit
      _
    %772 = vsyncpa [#allocation3], 1
    %s773 = scalar_lea.sflag [#allocation3], 1
    %774 = vsyncpa %s773, 1
    %775 = vsyncpa [#allocation6], 1
    %776 = vsyncpa [#allocation4], 1
    %s777 = scalar_lea.sflag [#allocation4], 1
    %778 = vsyncpa %s777, 1

// kernel: _lambda_.56
$region0: #{_lambda_.56}
  #allocation0 [shape = 'u32[]', space=smem, size = 0x4, offset = 0x4, fixed_abs, tag = 'smem constant byte address 0x4 - core index']
  #allocation1 [shape = 'u32[144,128]{1,0:T(1,128)}', space=vmem, size = 0x12000, scoped, tag = 'internal scratch']
  %s0 = inlined_call_operand.hbm [shape: bf16[8,64], index: 0, kind: input, shape index: {}]
  %s1 = inlined_call_operand.hbm [shape: bf16[64,64], index: 1, kind: input, shape index: {}]
  %s2 = inlined_call_operand.hbm [shape: f32[1,64], index: 2, kind: input, shape index: {}]
  %s3 = inlined_call_operand.hbm [shape: bf16[8,64], index: 3, kind: output, shape index: {}]
  %s4 = sld [smem:[#allocation0]]
  $region34: #{_lambda_.56} parent=0
    _
  %s6 = ssub.s32 1, %s4
  %s7 = scalar_select 0, %s6, %s4
  $region1: #{_lambda_.56} parent=0
    #allocation2 [shape = 'u8[2048]{0}', space=vmem, size = 0x800, scoped, tag = 'input window, operand 0, single buffered']
    #allocation3 [shape = 's32[1]{0}', space=sflag, size = 0x4, scoped, tag = 'scoped memory for _lambda_.56']
    #allocation4 [shape = 's32[1]{0}', space=sflag, size = 0x4, scoped, tag = 'scoped memory for _lambda_.56']
    #allocation5 [shape = 'u8[16384]{0}', space=vmem, size = 0x4000, scoped, tag = 'input window, operand 1, single buffered']
    #allocation6 [shape = 's32[1]{0}', space=sflag, size = 0x4, scoped, tag = 'scoped memory for _lambda_.56']
    #allocation7 [shape = 'u8[512]{0}', space=vmem, size = 0x400, scoped, tag = 'input window, operand 2, single buffered']
    #allocation8 [shape = 'u8[2048]{0}', space=vmem, size = 0x800, scoped, tag = 'output window, operand 0, single buffered']
    %8 = vsyncpa [#allocation3], 0
    %9 = vsyncpa [#allocation6], 0
    %10 = vsyncpa [#allocation4], 0
    // Predicated region
    $region2: #{_lambda_.56} parent=1 // pred_check
      _
    $region3: #{_lambda_.56} parent=1 // pred_check_branch
      %12 = sbr.rel (0) target = $region5
    $region4: #{_lambda_.56} parent=1 // pred_region
      %s14 = ssub.s32 64, 64
      %15 = vsyncadd [#allocation3], %s14
      %s17 = sshll.u32 [#allocation2], 4
      %s18 = int_to_ptr.vmem [resolvable:$true] %s17
      %20 = dma.hbm_to_vmem [thread:$0]  %s0, 64, %s18, [#allocation3]
    $region5: #{_lambda_.56} parent=1 // pred_fallthru
      _
    // Predicated region
    $region6: #{_lambda_.56} parent=1 // pred_check
      _
    $region7: #{_lambda_.56} parent=1 // pred_check_branch
      %22 = sbr.rel (0) target = $region9
    $region8: #{_lambda_.56} parent=1 // pred_region
      %s24 = ssub.s32 512, 512
      %25 = vsyncadd [#allocation6], %s24
      %s26 = sshll.u32 [#allocation5], 4
      %s27 = int_to_ptr.vmem [resolvable:$true] %s26
      %32 = dma.hbm_to_vmem [thread:$0]  %s1, 512, %s27, [#allocation6], 64, 64, 4
    $region9: #{_lambda_.56} parent=1 // pred_fallthru
      _
    // Predicated region
    $region10: #{_lambda_.56} parent=1 // pred_check
      _
    $region11: #{_lambda_.56} parent=1 // pred_check_branch
      %34 = sbr.rel (0) target = $region13
    $region12: #{_lambda_.56} parent=1 // pred_region
      %s36 = ssub.s32 16, 16
      %37 = vsyncadd [#allocation6], %s36
      %s39 = sshll.u32 [#allocation7], 4
      %s40 = int_to_ptr.vmem [resolvable:$true] %s39
      %42 = dma.hbm_to_vmem [thread:$0]  %s2, 16, %s40, [#allocation6]
    $region13: #{_lambda_.56} parent=1 // pred_fallthru
      _
    // Predicated region
    $region14: #{_lambda_.56} parent=1 // pred_check
      _
    $region15: #{_lambda_.56} parent=1 // pred_check_branch
      %44 = sbr.rel (0) target = $region17
    $region16: #{_lambda_.56} parent=1 // pred_region
      %45 = dma.done [#allocation3], 64
    $region17: #{_lambda_.56} parent=1 // pred_fallthru
      _
    // Predicated region
    $region18: #{_lambda_.56} parent=1 // pred_check
      _
    $region19: #{_lambda_.56} parent=1 // pred_check_branch
      %47 = sbr.rel (0) target = $region21
    $region20: #{_lambda_.56} parent=1 // pred_region
      %48 = dma.done [#allocation6], 512
    $region21: #{_lambda_.56} parent=1 // pred_fallthru
      _
    // Predicated region
    $region22: #{_lambda_.56} parent=1 // pred_check
      _
    $region23: #{_lambda_.56} parent=1 // pred_check_branch
      %50 = sbr.rel (0) target = $region25
    $region24: #{_lambda_.56} parent=1 // pred_region
      %51 = dma.done [#allocation6], 16
    $region25: #{_lambda_.56} parent=1 // pred_fallthru
      _
    %v53 = vld [vmem:[#allocation2] sm:$0xf]
    %v54 = vld [vmem:[#allocation5] sm:$0xf]
    %v55 = vld [vmem:[#allocation5 + $0x4] sm:$0xf]
    %v56 = vld [vmem:[#allocation5 + $0x8] sm:$0xf]
    %v57 = vld [vmem:[#allocation5 + $0xc] sm:$0xf]
    %v58 = vld [vmem:[#allocation5 + $0x10] sm:$0xf]
    %v59 = vld [vmem:[#allocation5 + $0x14] sm:$0xf]
    %v60 = vld [vmem:[#allocation5 + $0x18] sm:$0xf]
    %v61 = vld [vmem:[#allocation5 + $0x1c] sm:$0xf]
    %v62 = vld [vmem:[#allocation7] sm:$0x1]
    %v64 = vlaneseq
    %v65 = vshrl.u32 %v64, 7
    %v66 = vsub.s32 0, %v65
    %v67 = vrot.slane %v62, %v66
    %v77 = vunpack.c.l.b16 %v54
    %v78 = vunpack.c.l.b16 %v55
    %v79 = vunpack.c.l.b16 %v56
    %v80 = vunpack.c.l.b16 %v57
    %v81 = vunpack.c.l.b16 %v58
    %v82 = vunpack.c.l.b16 %v59
    %v83 = vunpack.c.l.b16 %v60
    %v84 = vunpack.c.l.b16 %v61
    %v85 = vpack.c.b16 %v78, %v77
    %v86 = vpack.c.b16 %v80, %v79
    %v87 = vpack.c.b16 %v82, %v81
    %v88 = vpack.c.b16 %v84, %v83
    %vm93 = vcmask 523264
    %v95 = vsel %vm93, %v53, 0
    %97 = vmatprep.subr.bf16.mxu0 0
    %98 = vmatpush1.bf16.msra.mxu0 %v85
    %99 = vmatprep.subr.bf16.mxu0 0
    %100 = vmatpush1.bf16.msra.mxu0 %v86
    %101 = vmatprep.subr.bf16.mxu0 0
    %102 = vmatpush1.bf16.msra.mxu0 %v87
    %103 = vmatprep.subr.bf16.mxu0 0
    %104 = vmatpush1.bf16.msra.mxu0 %v88
    %105 = vmatprep.subr.bf16.mxu0 0
    %106 = vmatpush1.bf16.msra.mxu0 0
    %107 = vmatprep.subr.bf16.mxu0 0
    %108 = vmatpush1.bf16.msra.mxu0 0
    %109 = vmatprep.subr.bf16.mxu0 0
    %110 = vmatpush1.bf16.msra.mxu0 0
    %111 = vmatprep.subr.bf16.mxu0 0
    %112 = vmatpush1.bf16.msra.mxu0 0
    %113 = vmatprep.subr.bf16.mxu0 0
    %114 = vmatpush1.bf16.msra.mxu0 0
    %115 = vmatprep.subr.bf16.mxu0 0
    %116 = vmatpush1.bf16.msra.mxu0 0
    %117 = vmatprep.subr.bf16.mxu0 0
    %118 = vmatpush1.bf16.msra.mxu0 0
    %119 = vmatprep.subr.bf16.mxu0 0
    %120 = vmatpush1.bf16.msra.mxu0 0
    %121 = vmatprep.subr.bf16.mxu0 0
    %122 = vmatpush1.bf16.msra.mxu0 0
    %123 = vmatprep.subr.bf16.mxu0 0
    %124 = vmatpush1.bf16.msra.mxu0 0
    %125 = vmatprep.subr.bf16.mxu0 0
    %126 = vmatpush1.bf16.msra.mxu0 0
    %127 = vmatprep.subr.bf16.mxu0 0
    %128 = vmatpush1.bf16.msra.mxu0 0
    %129 = vmatprep.mubr.bf16.mxu0 0
    %130 = vmatmul.mubr.bf16.gmra.mrb[0].mxu0 %v95
    %v131 = vpop.f32.mrb[0].mxu0
    %v132 = vadd.f32 %v67, %v131
    %v133 = vpop.f32.mrb[0].mxu0
    %v134 = vpop.f32.mrb[0].mxu0
    %v135 = vpop.f32.mrb[0].mxu0
    %136 = vdwg.mxu0
    %v137 = vpack.c.bf16 %v132, %v132
    %vm138 = vcmask 519168
    %139 = vst.msk [vmem:[#allocation8] sm:$0xf] %vm138, %v137
    // Predicated region
    $region26: #{_lambda_.56} parent=1 // pred_check
      _
    $region27: #{_lambda_.56} parent=1 // pred_check_branch
      %141 = sbr.rel (0) target = $region29
    $region28: #{_lambda_.56} parent=1 // pred_region
      %s143 = ssub.s32 64, 64
      %144 = vsyncadd [#allocation4], %s143
      %s146 = sshll.u32 [#allocation8], 4
      %s147 = int_to_ptr.vmem [resolvable:$true] %s146
      %149 = dma.vmem_to_hbm [thread:$0]  %s147, 64, %s3, [#allocation4]
    $region29: #{_lambda_.56} parent=1 // pred_fallthru
      _
    // Predicated region
    $region30: #{_lambda_.56} parent=1 // pred_check
      _
    $region31: #{_lambda_.56} parent=1 // pred_check_branch
      %151 = sbr.rel (0) target = $region33
    $region32: #{_lambda_.56} parent=1 // pred_region
      %152 = dma.done [#allocation4], 64
    $region33: #{_lambda_.56} parent=1 // pred_fallthru
      _
    %153 = vsyncpa [#allocation3], 1
    %154 = vsyncpa [#allocation6], 1
    %155 = vsyncpa [#allocation4], 1

// kernel: _lambda_.59
$region0: #{_lambda_.59}
  #allocation0 [shape = 'u32[]', space=smem, size = 0x4, offset = 0x4, fixed_abs, tag = 'smem constant byte address 0x4 - core index']
  #allocation1 [shape = 'u32[144,128]{1,0:T(1,128)}', space=vmem, size = 0x12000, scoped, tag = 'internal scratch']
  %s0 = inlined_call_operand.hbm [shape: bf16[8,256], index: 0, kind: input, shape index: {}]
  %s1 = inlined_call_operand.hbm [shape: bf16[256,64], index: 1, kind: input, shape index: {}]
  %s2 = inlined_call_operand.hbm [shape: f32[1,64], index: 2, kind: input, shape index: {}]
  %s3 = inlined_call_operand.hbm [shape: bf16[8,64], index: 3, kind: output, shape index: {}]
  %s4 = sld [smem:[#allocation0]]
  $region34: #{_lambda_.59} parent=0
    _
  %s6 = ssub.s32 1, %s4
  %s7 = scalar_select 0, %s6, %s4
  $region1: #{_lambda_.59} parent=0
    #allocation2 [shape = 'u8[4096]{0}', space=vmem, size = 0x1000, scoped, tag = 'input window, operand 0, single buffered']
    #allocation3 [shape = 's32[1]{0}', space=sflag, size = 0x4, scoped, tag = 'scoped memory for _lambda_.59']
    #allocation4 [shape = 's32[1]{0}', space=sflag, size = 0x4, scoped, tag = 'scoped memory for _lambda_.59']
    #allocation5 [shape = 'u8[65536]{0}', space=vmem, size = 0x10000, scoped, tag = 'input window, operand 1, single buffered']
    #allocation6 [shape = 's32[1]{0}', space=sflag, size = 0x4, scoped, tag = 'scoped memory for _lambda_.59']
    #allocation7 [shape = 'u8[512]{0}', space=vmem, size = 0x400, scoped, tag = 'input window, operand 2, single buffered']
    #allocation8 [shape = 'u8[2048]{0}', space=vmem, size = 0x800, scoped, tag = 'output window, operand 0, single buffered']
    %8 = vsyncpa [#allocation3], 0
    %9 = vsyncpa [#allocation6], 0
    %10 = vsyncpa [#allocation4], 0
    // Predicated region
    $region2: #{_lambda_.59} parent=1 // pred_check
      _
    $region3: #{_lambda_.59} parent=1 // pred_check_branch
      %12 = sbr.rel (0) target = $region5
    $region4: #{_lambda_.59} parent=1 // pred_region
      %s14 = ssub.s32 128, 128
      %15 = vsyncadd [#allocation3], %s14
      %s17 = sshll.u32 [#allocation2], 4
      %s18 = int_to_ptr.vmem [resolvable:$true] %s17
      %20 = dma.hbm_to_vmem [thread:$0]  %s0, 128, %s18, [#allocation3]
    $region5: #{_lambda_.59} parent=1 // pred_fallthru
      _
    // Predicated region
    $region6: #{_lambda_.59} parent=1 // pred_check
      _
    $region7: #{_lambda_.59} parent=1 // pred_check_branch
      %22 = sbr.rel (0) target = $region9
    $region8: #{_lambda_.59} parent=1 // pred_region
      %s24 = ssub.s32 2048, 2048
      %25 = vsyncadd [#allocation6], %s24
      %s26 = sshll.u32 [#allocation5], 4
      %s27 = int_to_ptr.vmem [resolvable:$true] %s26
      %32 = dma.hbm_to_vmem [thread:$0]  %s1, 2048, %s27, [#allocation6], 64, 64, 4
    $region9: #{_lambda_.59} parent=1 // pred_fallthru
      _
    // Predicated region
    $region10: #{_lambda_.59} parent=1 // pred_check
      _
    $region11: #{_lambda_.59} parent=1 // pred_check_branch
      %34 = sbr.rel (0) target = $region13
    $region12: #{_lambda_.59} parent=1 // pred_region
      %s36 = ssub.s32 16, 16
      %37 = vsyncadd [#allocation6], %s36
      %s39 = sshll.u32 [#allocation7], 4
      %s40 = int_to_ptr.vmem [resolvable:$true] %s39
      %42 = dma.hbm_to_vmem [thread:$0]  %s2, 16, %s40, [#allocation6]
    $region13: #{_lambda_.59} parent=1 // pred_fallthru
      _
    // Predicated region
    $region14: #{_lambda_.59} parent=1 // pred_check
      _
    $region15: #{_lambda_.59} parent=1 // pred_check_branch
      %44 = sbr.rel (0) target = $region17
    $region16: #{_lambda_.59} parent=1 // pred_region
      %45 = dma.done [#allocation3], 128
    $region17: #{_lambda_.59} parent=1 // pred_fallthru
      _
    // Predicated region
    $region18: #{_lambda_.59} parent=1 // pred_check
      _
    $region19: #{_lambda_.59} parent=1 // pred_check_branch
      %47 = sbr.rel (0) target = $region21
    $region20: #{_lambda_.59} parent=1 // pred_region
      %48 = dma.done [#allocation6], 2048
    $region21: #{_lambda_.59} parent=1 // pred_fallthru
      _
    // Predicated region
    $region22: #{_lambda_.59} parent=1 // pred_check
      _
    $region23: #{_lambda_.59} parent=1 // pred_check_branch
      %50 = sbr.rel (0) target = $region25
    $region24: #{_lambda_.59} parent=1 // pred_region
      %51 = dma.done [#allocation6], 16
    $region25: #{_lambda_.59} parent=1 // pred_fallthru
      _
    %v53 = vld [vmem:[#allocation2] sm:$0xff]
    %v54 = vld [vmem:[#allocation5] sm:$0xf]
    %v55 = vld [vmem:[#allocation5 + $0x4] sm:$0xf]
    %v56 = vld [vmem:[#allocation5 + $0x8] sm:$0xf]
    %v57 = vld [vmem:[#allocation5 + $0xc] sm:$0xf]
    %v58 = vld [vmem:[#allocation5 + $0x10] sm:$0xf]
    %v59 = vld [vmem:[#allocation5 + $0x14] sm:$0xf]
    %v60 = vld [vmem:[#allocation5 + $0x18] sm:$0xf]
    %v61 = vld [vmem:[#allocation5 + $0x1c] sm:$0xf]
    %v62 = vld [vmem:[#allocation5 + $0x20] sm:$0xf]
    %v63 = vld [vmem:[#allocation5 + $0x24] sm:$0xf]
    %v64 = vld [vmem:[#allocation5 + $0x28] sm:$0xf]
    %v65 = vld [vmem:[#allocation5 + $0x2c] sm:$0xf]
    %v66 = vld [vmem:[#allocation5 + $0x30] sm:$0xf]
    %v67 = vld [vmem:[#allocation5 + $0x34] sm:$0xf]
    %v68 = vld [vmem:[#allocation5 + $0x38] sm:$0xf]
    %v69 = vld [vmem:[#allocation5 + $0x3c] sm:$0xf]
    %v70 = vld [vmem:[#allocation5 + $0x40] sm:$0xf]
    %v71 = vld [vmem:[#allocation5 + $0x44] sm:$0xf]
    %v72 = vld [vmem:[#allocation5 + $0x48] sm:$0xf]
    %v73 = vld [vmem:[#allocation5 + $0x4c] sm:$0xf]
    %v74 = vld [vmem:[#allocation5 + $0x50] sm:$0xf]
    %v75 = vld [vmem:[#allocation5 + $0x54] sm:$0xf]
    %v76 = vld [vmem:[#allocation5 + $0x58] sm:$0xf]
    %v77 = vld [vmem:[#allocation5 + $0x5c] sm:$0xf]
    %v78 = vld [vmem:[#allocation5 + $0x60] sm:$0xf]
    %v79 = vld [vmem:[#allocation5 + $0x64] sm:$0xf]
    %v80 = vld [vmem:[#allocation5 + $0x68] sm:$0xf]
    %v81 = vld [vmem:[#allocation5 + $0x6c] sm:$0xf]
    %v82 = vld [vmem:[#allocation5 + $0x70] sm:$0xf]
    %v83 = vld [vmem:[#allocation5 + $0x74] sm:$0xf]
    %v84 = vld [vmem:[#allocation5 + $0x78] sm:$0xf]
    %v85 = vld [vmem:[#allocation5 + $0x7c] sm:$0xf]
    %v86 = vld [vmem:[#allocation7] sm:$0x1]
    %v88 = vlaneseq
    %v89 = vshrl.u32 %v88, 7
    %v90 = vsub.s32 0, %v89
    %v91 = vrot.slane %v86, %v90
    %v94 = vunpack.c.l.b16 %v53
    %v95 = vunpack.c.h.b16 %v53
    %v96 = vpack.c.b16 %v94, %v94
    %v97 = vpack.c.b16 %v95, %v95
    %v132 = vunpack.c.l.b16 %v54
    %v133 = vunpack.c.l.b16 %v55
    %v134 = vunpack.c.l.b16 %v56
    %v135 = vunpack.c.l.b16 %v57
    %v136 = vunpack.c.l.b16 %v58
    %v137 = vunpack.c.l.b16 %v59
    %v138 = vunpack.c.l.b16 %v60
    %v139 = vunpack.c.l.b16 %v61
    %v140 = vunpack.c.l.b16 %v62
    %v141 = vunpack.c.l.b16 %v63
    %v142 = vunpack.c.l.b16 %v64
    %v143 = vunpack.c.l.b16 %v65
    %v144 = vunpack.c.l.b16 %v66
    %v145 = vunpack.c.l.b16 %v67
    %v146 = vunpack.c.l.b16 %v68
    %v147 = vunpack.c.l.b16 %v69
    %v148 = vunpack.c.l.b16 %v70
    %v149 = vunpack.c.l.b16 %v71
    %v150 = vunpack.c.l.b16 %v72
    %v151 = vunpack.c.l.b16 %v73
    %v152 = vunpack.c.l.b16 %v74
    %v153 = vunpack.c.l.b16 %v75
    %v154 = vunpack.c.l.b16 %v76
    %v155 = vunpack.c.l.b16 %v77
    %v156 = vunpack.c.l.b16 %v78
    %v157 = vunpack.c.l.b16 %v79
    %v158 = vunpack.c.l.b16 %v80
    %v159 = vunpack.c.l.b16 %v81
    %v160 = vunpack.c.l.b16 %v82
    %v161 = vunpack.c.l.b16 %v83
    %v162 = vunpack.c.l.b16 %v84
    %v163 = vunpack.c.l.b16 %v85
    %v164 = vpack.c.b16 %v133, %v132
    %v165 = vpack.c.b16 %v135, %v134
    %v166 = vpack.c.b16 %v137, %v136
    %v167 = vpack.c.b16 %v139, %v138
    %v168 = vpack.c.b16 %v141, %v140
    %v169 = vpack.c.b16 %v143, %v142
    %v170 = vpack.c.b16 %v145, %v144
    %v171 = vpack.c.b16 %v147, %v146
    %v172 = vpack.c.b16 %v149, %v148
    %v173 = vpack.c.b16 %v151, %v150
    %v174 = vpack.c.b16 %v153, %v152
    %v175 = vpack.c.b16 %v155, %v154
    %v176 = vpack.c.b16 %v157, %v156
    %v177 = vpack.c.b16 %v159, %v158
    %v178 = vpack.c.b16 %v161, %v160
    %v179 = vpack.c.b16 %v163, %v162
    %196 = vmatprep.subr.bf16.mxu0 0
    %197 = vmatpush1.bf16.msra.mxu0 %v164
    %198 = vmatprep.subr.bf16.mxu0 0
    %199 = vmatpush1.bf16.msra.mxu0 %v165
    %200 = vmatprep.subr.bf16.mxu0 0
    %201 = vmatpush1.bf16.msra.mxu0 %v166
    %202 = vmatprep.subr.bf16.mxu0 0
    %203 = vmatpush1.bf16.msra.mxu0 %v167
    %204 = vmatprep.subr.bf16.mxu0 0
    %205 = vmatpush1.bf16.msra.mxu0 %v168
    %206 = vmatprep.subr.bf16.mxu0 0
    %207 = vmatpush1.bf16.msra.mxu0 %v169
    %208 = vmatprep.subr.bf16.mxu0 0
    %209 = vmatpush1.bf16.msra.mxu0 %v170
    %210 = vmatprep.subr.bf16.mxu0 0
    %211 = vmatpush1.bf16.msra.mxu0 %v171
    %212 = vmatprep.subr.bf16.mxu0 0
    %213 = vmatpush1.bf16.msra.mxu0 %v172
    %214 = vmatprep.subr.bf16.mxu0 0
    %215 = vmatpush1.bf16.msra.mxu0 %v173
    %216 = vmatprep.subr.bf16.mxu0 0
    %217 = vmatpush1.bf16.msra.mxu0 %v174
    %218 = vmatprep.subr.bf16.mxu0 0
    %219 = vmatpush1.bf16.msra.mxu0 %v175
    %220 = vmatprep.subr.bf16.mxu0 0
    %221 = vmatpush1.bf16.msra.mxu0 %v176
    %222 = vmatprep.subr.bf16.mxu0 0
    %223 = vmatpush1.bf16.msra.mxu0 %v177
    %224 = vmatprep.subr.bf16.mxu0 0
    %225 = vmatpush1.bf16.msra.mxu0 %v178
    %226 = vmatprep.subr.bf16.mxu0 0
    %227 = vmatpush1.bf16.msra.mxu0 %v179
    %228 = vmatprep.mubr.bf16.mxu0 %v97
    %229 = vmatmul.mubr.bf16.gmra.mrb[0].mxu0 %v96
    %v230 = vpop.f32.mrb[0].mxu0
    %v231 = vadd.f32 %v91, %v230
    %v232 = vpop.f32.mrb[0].mxu0
    %v233 = vpop.f32.mrb[0].mxu0
    %v234 = vpop.f32.mrb[0].mxu0
    %235 = vdwg.mxu0
    %v236 = vpack.c.bf16 %v231, %v231
    %vm237 = vcmask 519168
    %238 = vst.msk [vmem:[#allocation8] sm:$0xf] %vm237, %v236
    // Predicated region
    $region26: #{_lambda_.59} parent=1 // pred_check
      _
    $region27: #{_lambda_.59} parent=1 // pred_check_branch
      %240 = sbr.rel (0) target = $region29
    $region28: #{_lambda_.59} parent=1 // pred_region
      %s242 = ssub.s32 64, 64
      %243 = vsyncadd [#allocation4], %s242
      %s245 = sshll.u32 [#allocation8], 4
      %s246 = int_to_ptr.vmem [resolvable:$true] %s245
      %248 = dma.vmem_to_hbm [thread:$0]  %s246, 64, %s3, [#allocation4]
    $region29: #{_lambda_.59} parent=1 // pred_fallthru
      _
    // Predicated region
    $region30: #{_lambda_.59} parent=1 // pred_check
      _
    $region31: #{_lambda_.59} parent=1 // pred_check_branch
      %250 = sbr.rel (0) target = $region33
    $region32: #{_lambda_.59} parent=1 // pred_region
      %251 = dma.done [#allocation4], 64
    $region33: #{_lambda_.59} parent=1 // pred_fallthru
      _
    %252 = vsyncpa [#allocation3], 1
    %253 = vsyncpa [#allocation6], 1
    %254 = vsyncpa [#allocation4], 1

// kernel: _lambda_.58
$region0: #{_lambda_.58}
  #allocation0 [shape = 'u32[]', space=smem, size = 0x4, offset = 0x4, fixed_abs, tag = 'smem constant byte address 0x4 - core index']
  #allocation1 [shape = 'u32[144,128]{1,0:T(1,128)}', space=vmem, size = 0x12000, scoped, tag = 'internal scratch']
  %s0 = inlined_call_operand.hbm [shape: bf16[8,64], index: 0, kind: input, shape index: {}]
  %s1 = inlined_call_operand.hbm [shape: bf16[64,256], index: 1, kind: input, shape index: {}]
  %s2 = inlined_call_operand.hbm [shape: f32[1,256], index: 2, kind: input, shape index: {}]
  %s3 = inlined_call_operand.hbm [shape: bf16[8,256], index: 3, kind: output, shape index: {}]
  %s4 = sld [smem:[#allocation0]]
  $region34: #{_lambda_.58} parent=0
    _
  %s6 = ssub.s32 1, %s4
  %s7 = scalar_select 0, %s6, %s4
  $region1: #{_lambda_.58} parent=0
    #allocation2 [shape = 'u8[2048]{0}', space=vmem, size = 0x800, scoped, tag = 'input window, operand 0, single buffered']
    #allocation3 [shape = 's32[1]{0}', space=sflag, size = 0x4, scoped, tag = 'scoped memory for _lambda_.58']
    #allocation4 [shape = 's32[1]{0}', space=sflag, size = 0x4, scoped, tag = 'scoped memory for _lambda_.58']
    #allocation5 [shape = 'u8[32768]{0}', space=vmem, size = 0x8000, scoped, tag = 'input window, operand 1, single buffered']
    #allocation6 [shape = 's32[1]{0}', space=sflag, size = 0x4, scoped, tag = 'scoped memory for _lambda_.58']
    #allocation7 [shape = 'u8[1024]{0}', space=vmem, size = 0x400, scoped, tag = 'input window, operand 2, single buffered']
    #allocation8 [shape = 'u8[4096]{0}', space=vmem, size = 0x1000, scoped, tag = 'output window, operand 0, single buffered']
    %8 = vsyncpa [#allocation3], 0
    %9 = vsyncpa [#allocation6], 0
    %10 = vsyncpa [#allocation4], 0
    // Predicated region
    $region2: #{_lambda_.58} parent=1 // pred_check
      _
    $region3: #{_lambda_.58} parent=1 // pred_check_branch
      %12 = sbr.rel (0) target = $region5
    $region4: #{_lambda_.58} parent=1 // pred_region
      %s14 = ssub.s32 64, 64
      %15 = vsyncadd [#allocation3], %s14
      %s17 = sshll.u32 [#allocation2], 4
      %s18 = int_to_ptr.vmem [resolvable:$true] %s17
      %20 = dma.hbm_to_vmem [thread:$0]  %s0, 64, %s18, [#allocation3]
    $region5: #{_lambda_.58} parent=1 // pred_fallthru
      _
    // Predicated region
    $region6: #{_lambda_.58} parent=1 // pred_check
      _
    $region7: #{_lambda_.58} parent=1 // pred_check_branch
      %22 = sbr.rel (0) target = $region9
    $region8: #{_lambda_.58} parent=1 // pred_region
      %s24 = ssub.s32 1024, 1024
      %25 = vsyncadd [#allocation6], %s24
      %s26 = sshll.u32 [#allocation5], 4
      %s27 = int_to_ptr.vmem [resolvable:$true] %s26
      %32 = dma.hbm_to_vmem [thread:$0]  %s1, 1024, %s27, [#allocation6], 128, 128, 8
    $region9: #{_lambda_.58} parent=1 // pred_fallthru
      _
    // Predicated region
    $region10: #{_lambda_.58} parent=1 // pred_check
      _
    $region11: #{_lambda_.58} parent=1 // pred_check_branch
      %34 = sbr.rel (0) target = $region13
    $region12: #{_lambda_.58} parent=1 // pred_region
      %s36 = ssub.s32 32, 32
      %37 = vsyncadd [#allocation6], %s36
      %s39 = sshll.u32 [#allocation7], 4
      %s40 = int_to_ptr.vmem [resolvable:$true] %s39
      %42 = dma.hbm_to_vmem [thread:$0]  %s2, 32, %s40, [#allocation6]
    $region13: #{_lambda_.58} parent=1 // pred_fallthru
      _
    // Predicated region
    $region14: #{_lambda_.58} parent=1 // pred_check
      _
    $region15: #{_lambda_.58} parent=1 // pred_check_branch
      %44 = sbr.rel (0) target = $region17
    $region16: #{_lambda_.58} parent=1 // pred_region
      %45 = dma.done [#allocation3], 64
    $region17: #{_lambda_.58} parent=1 // pred_fallthru
      _
    // Predicated region
    $region18: #{_lambda_.58} parent=1 // pred_check
      _
    $region19: #{_lambda_.58} parent=1 // pred_check_branch
      %47 = sbr.rel (0) target = $region21
    $region20: #{_lambda_.58} parent=1 // pred_region
      %48 = dma.done [#allocation6], 1024
    $region21: #{_lambda_.58} parent=1 // pred_fallthru
      _
    // Predicated region
    $region22: #{_lambda_.58} parent=1 // pred_check
      _
    $region23: #{_lambda_.58} parent=1 // pred_check_branch
      %50 = sbr.rel (0) target = $region25
    $region24: #{_lambda_.58} parent=1 // pred_region
      %51 = dma.done [#allocation6], 32
    $region25: #{_lambda_.58} parent=1 // pred_fallthru
      _
    %v53 = vld [vmem:[#allocation2] sm:$0xf]
    %v54 = vld [vmem:[#allocation5] sm:$0xff]
    %v55 = vld [vmem:[#allocation5 + $0x8] sm:$0xff]
    %v56 = vld [vmem:[#allocation5 + $0x10] sm:$0xff]
    %v57 = vld [vmem:[#allocation5 + $0x18] sm:$0xff]
    %v58 = vld [vmem:[#allocation5 + $0x20] sm:$0xff]
    %v59 = vld [vmem:[#allocation5 + $0x28] sm:$0xff]
    %v60 = vld [vmem:[#allocation5 + $0x30] sm:$0xff]
    %v61 = vld [vmem:[#allocation5 + $0x38] sm:$0xff]
    %v62 = vld [vmem:[#allocation7] sm:$0x3]
    %v64 = vlaneseq
    %v65 = vshrl.u32 %v64, 7
    %v66 = vsub.s32 0, %v65
    %v67 = vrot.slane %v62, %v66
    %v68 = vlaneseq
    %v69 = vshrl.u32 %v68, 7
    %v70 = vsub.s32 1, %v69
    %v71 = vrot.slane %v62, %v70
    %v82 = vunpack.c.l.b16 %v54
    %v83 = vunpack.c.h.b16 %v54
    %v84 = vunpack.c.l.b16 %v55
    %v85 = vunpack.c.h.b16 %v55
    %v86 = vunpack.c.l.b16 %v56
    %v87 = vunpack.c.h.b16 %v56
    %v88 = vunpack.c.l.b16 %v57
    %v89 = vunpack.c.h.b16 %v57
    %v90 = vunpack.c.l.b16 %v58
    %v91 = vunpack.c.h.b16 %v58
    %v92 = vunpack.c.l.b16 %v59
    %v93 = vunpack.c.h.b16 %v59
    %v94 = vunpack.c.l.b16 %v60
    %v95 = vunpack.c.h.b16 %v60
    %v96 = vunpack.c.l.b16 %v61
    %v97 = vunpack.c.h.b16 %v61
    %v98 = vpack.c.b16 %v84, %v82
    %v99 = vpack.c.b16 %v85, %v83
    %v100 = vpack.c.b16 %v88, %v86
    %v101 = vpack.c.b16 %v89, %v87
    %v102 = vpack.c.b16 %v92, %v90
    %v103 = vpack.c.b16 %v93, %v91
    %v104 = vpack.c.b16 %v96, %v94
    %v105 = vpack.c.b16 %v97, %v95
    %vm114 = vcmask 523264
    %v116 = vsel %vm114, %v53, 0
    %118 = vmatprep.subr.bf16.mxu0 %v99
    %119 = vmatpush1.bf16.msra.mxu0 %v98
    %120 = vmatprep.subr.bf16.mxu0 %v101
    %121 = vmatpush1.bf16.msra.mxu0 %v100
    %122 = vmatprep.subr.bf16.mxu0 %v103
    %123 = vmatpush1.bf16.msra.mxu0 %v102
    %124 = vmatprep.subr.bf16.mxu0 %v105
    %125 = vmatpush1.bf16.msra.mxu0 %v104
    %126 = vmatprep.subr.bf16.mxu0 0
    %127 = vmatpush1.bf16.msra.mxu0 0
    %128 = vmatprep.subr.bf16.mxu0 0
    %129 = vmatpush1.bf16.msra.mxu0 0
    %130 = vmatprep.subr.bf16.mxu0 0
    %131 = vmatpush1.bf16.msra.mxu0 0
    %132 = vmatprep.subr.bf16.mxu0 0
    %133 = vmatpush1.bf16.msra.mxu0 0
    %134 = vmatprep.subr.bf16.mxu0 0
    %135 = vmatpush1.bf16.msra.mxu0 0
    %136 = vmatprep.subr.bf16.mxu0 0
    %137 = vmatpush1.bf16.msra.mxu0 0
    %138 = vmatprep.subr.bf16.mxu0 0
    %139 = vmatpush1.bf16.msra.mxu0 0
    %140 = vmatprep.subr.bf16.mxu0 0
    %141 = vmatpush1.bf16.msra.mxu0 0
    %142 = vmatprep.subr.bf16.mxu0 0
    %143 = vmatpush1.bf16.msra.mxu0 0
    %144 = vmatprep.subr.bf16.mxu0 0
    %145 = vmatpush1.bf16.msra.mxu0 0
    %146 = vmatprep.subr.bf16.mxu0 0
    %147 = vmatpush1.bf16.msra.mxu0 0
    %148 = vmatprep.subr.bf16.mxu0 0
    %149 = vmatpush1.bf16.msra.mxu0 0
    %150 = vmatprep.mubr.bf16.mxu0 0
    %151 = vmatmul.mubr.bf16.gmra.mrb[0].mxu0 %v116
    %v152 = vpop.f32.mrb[0].mxu0
    %v153 = vadd.f32 %v67, %v152
    %v154 = vpop.f32.mrb[0].mxu0
    %v155 = vadd.f32 %v71, %v154
    %v156 = vpop.f32.mrb[0].mxu0
    %v157 = vpop.f32.mrb[0].mxu0
    %158 = vdwg.mxu0
    %v159 = vmul.f32 %v153, 0.5
    %v160 = vmul.f32 %v155, 0.5
    %v161 = vmul.f32 %v153, 0.044715
    %v162 = vmul.f32 %v155, 0.044715
    %v163 = vmul.f32 %v161, %v153
    %v164 = vmul.f32 %v162, %v155
    %v165 = vmul.f32 %v163, %v153
    %v166 = vmul.f32 %v164, %v155
    %v167 = vadd.f32 %v153, %v165
    %v168 = vadd.f32 %v155, %v166
    %v169 = vmul.f32 %v167, 0.7978846
    %v170 = vmul.f32 %v168, 0.7978846
    %v171 = vtanh.pop %v169
    %v172 = vtanh.pop %v170
    %v173 = vadd.f32 %v171, 1.0
    %v174 = vadd.f32 %v172, 1.0
    %v175 = vmul.f32 %v159, %v173
    %v176 = vmul.f32 %v160, %v174
    %v177 = vpack.c.bf16 %v175, %v175
    %v178 = vpack.c.bf16 %v176, %v176
    %v181 = vunpack.c.l.b16 %v177
    %v182 = vunpack.c.l.b16 %v178
    %v183 = vpack.c.b16 %v182, %v181
    %185 = vst [vmem:[#allocation8] sm:$0xff] %v183
    // Predicated region
    $region26: #{_lambda_.58} parent=1 // pred_check
      _
    $region27: #{_lambda_.58} parent=1 // pred_check_branch
      %187 = sbr.rel (0) target = $region29
    $region28: #{_lambda_.58} parent=1 // pred_region
      %s189 = ssub.s32 128, 128
      %190 = vsyncadd [#allocation4], %s189
      %s192 = sshll.u32 [#allocation8], 4
      %s193 = int_to_ptr.vmem [resolvable:$true] %s192
      %195 = dma.vmem_to_hbm [thread:$0]  %s193, 128, %s3, [#allocation4]
    $region29: #{_lambda_.58} parent=1 // pred_fallthru
      _
    // Predicated region
    $region30: #{_lambda_.58} parent=1 // pred_check
      _
    $region31: #{_lambda_.58} parent=1 // pred_check_branch
      %197 = sbr.rel (0) target = $region33
    $region32: #{_lambda_.58} parent=1 // pred_region
      %198 = dma.done [#allocation4], 128
    $region33: #{_lambda_.58} parent=1 // pred_fallthru
      _
    %199 = vsyncpa [#allocation3], 1
    %200 = vsyncpa [#allocation6], 1
    %201 = vsyncpa [#allocation4], 1

// kernel: _lambda_.68
$region0: #{_lambda_.68}
  #allocation0 [shape = 'u32[]', space=smem, size = 0x4, offset = 0x4, fixed_abs, tag = 'smem constant byte address 0x4 - core index']
  #allocation1 [shape = 'u32[144,128]{1,0:T(1,128)}', space=vmem, size = 0x12000, scoped, tag = 'internal scratch']
  %s0 = inlined_call_operand.hbm [shape: bf16[2,4,64], index: 0, kind: input, shape index: {}]
  %s1 = inlined_call_operand.hbm [shape: f32[2,1,64], index: 1, kind: output, shape index: {}]
  %s2 = sld [smem:[#allocation0]]
  $region41: #{_lambda_.68} parent=0
    _
  %s4 = ssub.s32 1, %s2
  %s5 = scalar_select 0, %s4, %s2
  $region1: #{_lambda_.68} parent=0
    #allocation2 [shape = 'u8[2048]{0}', space=vmem, size = 0x800, scoped, tag = 'input window, operand 0']
    #allocation3 [shape = 's32[2]{0}', space=sflag, size = 0x8, scoped, tag = 'scoped memory for _lambda_.68']
    #allocation4 [shape = 's32[2]{0}', space=sflag, size = 0x8, scoped, tag = 'scoped memory for _lambda_.68']
    #allocation5 [shape = 'u8[1024]{0}', space=vmem, size = 0x400, scoped, tag = 'output window, operand 0']
    %6 = vsyncpa [#allocation3], 0
    %s7 = scalar_lea.sflag [#allocation3], 1
    %8 = vsyncpa %s7, 0
    %9 = vsyncpa [#allocation4], 0
    %s10 = scalar_lea.sflag [#allocation4], 1
    %11 = vsyncpa %s10, 0
    loop: start=0, step=1, limit=4
    $region2: #{_lambda_.68} parent=1 // loop_pre_header
      _
    $region3: #{_lambda_.68} parent=1 // loop_header
      %s13 = sphi 0, %s17
      %p14 = scmp.ge.s32.totalorder %s13, 4
      %s23 = sphi 0, %s25
      %s26 = sphi 0, %s23
      %s27 = sphi 0, %s26
      %s43 = sphi 0, %s27
      %s49 = sphi 0, %s51
      %s52 = sphi 0, %s49
      %s53 = sphi 0, %s52
      %s69 = sphi 0, %s53
    $region4: #{_lambda_.68} parent=1 // loop_header_branch
      %16 = sbr.rel (%p14) target = $region8
    $region5: #{_lambda_.68} parent=1 // loop_body
      %s18 = ssub.s32 %s13, 1
      %s19 = ssub.s32 %s13, 2
      %s20 = sadd.s32 %s13, 1
      %s21 = ssub.s32 %s13, %s20
      %p22 = scmp.eq.s32.totalorder %s21, 0
      %s24 = sadd.s32 %s23, 1
      %s25 = scalar_select %p22, %s23, %s24
      %p28 = pneg %p22
      %p29 = scmp.eq.s32.totalorder %s13, 1
      %p30 = por %p28, %p29
      %p31 = scmp.ne.s32.totalorder %s23, %s26
      %p32 = scmp.eq.s32.totalorder %s13, 0
      %p33 = por %p31, %p32
      %p34 = scmp.ne.s32.totalorder %s23, %s26
      %p35 = scmp.eq.s32.totalorder %s18, 1
      %p36 = por %p34, %p35
      %p37 = scmp.ne.s32.totalorder %s26, %s27
      %p38 = scmp.eq.s32.totalorder %s18, 0
      %p39 = por %p37, %p38
      %p40 = scmp.ne.s32.totalorder %s26, %s27
      %p41 = scmp.eq.s32.totalorder %s19, 1
      %p42 = por %p40, %p41
      %p44 = scmp.ne.s32.totalorder %s27, %s43
      %p45 = scmp.eq.s32.totalorder %s19, 0
      %p46 = por %p44, %p45
      %s47 = ssub.s32 %s13, %s20
      %p48 = scmp.eq.s32.totalorder %s47, 0
      %s50 = sadd.s32 %s49, 1
      %s51 = scalar_select %p48, %s49, %s50
      %p54 = pneg %p48
      %p55 = scmp.eq.s32.totalorder %s13, 1
      %p56 = por %p54, %p55
      %p57 = scmp.ne.s32.totalorder %s49, %s52
      %p58 = scmp.eq.s32.totalorder %s13, 0
      %p59 = por %p57, %p58
      %p60 = scmp.ne.s32.totalorder %s49, %s52
      %p61 = scmp.eq.s32.totalorder %s18, 1
      %p62 = por %p60, %p61
      %p63 = scmp.ne.s32.totalorder %s52, %s53
      %p64 = scmp.eq.s32.totalorder %s18, 0
      %p65 = por %p63, %p64
      %p66 = scmp.ne.s32.totalorder %s52, %s53
      %p67 = scmp.eq.s32.totalorder %s19, 1
      %p68 = por %p66, %p67
      %p70 = scmp.ne.s32.totalorder %s53, %s69
      %p71 = scmp.eq.s32.totalorder %s19, 0
      %p72 = por %p70, %p71
      %p73 = scmp.le.s32.totalorder 1, %s13
      %p74 = scmp.lt.s32.totalorder %s13, 3
      %p75 = pnand %p73, %p74
      %p76 = pneg %p75
      // Predicated region
      $region9: #{_lambda_.68} parent=5 // pred_check
        _
      $region10: #{_lambda_.68} parent=5 // pred_check_branch
        %78 = sbr.rel (%p75) target = $region12
      $region11: #{_lambda_.68} parent=5 // pred_region
        %s79 = ssub.s32 %s13, 1
      $region12: #{_lambda_.68} parent=5 // pred_fallthru
        _
      %p80 = scmp.lt.s32.totalorder %s13, 2
      // Predicated region
      $region13: #{_lambda_.68} parent=5 // pred_check
        %p81 = pneg %p80
      $region14: #{_lambda_.68} parent=5 // pred_check_branch
        %83 = sbr.rel (%p81) target = $region16
      $region15: #{_lambda_.68} parent=5 // pred_region
        // Predicated region
        $region17: #{_lambda_.68} parent=15 // pred_check
          %p84 = pneg %p33
        $region18: #{_lambda_.68} parent=15 // pred_check_branch
          %86 = sbr.rel (%p84) target = $region20
        $region19: #{_lambda_.68} parent=15 // pred_region
          %s87 = sand.u32 %s23, 1
          %s88 = scalar_lea.sflag [#allocation3], %s87
          %s89 = sand.u32 %s23, 1
          %s90 = smul.addr %s89, 2
          %s91 = scalar_lea.vmem [#allocation2], %s90
          %s93 = ssub.s32 32, 32
          %94 = vsyncadd %s88, %s93
          %s95 = smul.addr %s13, 32
          %s96 = scalar_lea.hbm %s0, %s95
          %s98 = sshll.u32 %s91, 4
          %s99 = int_to_ptr.vmem [resolvable:$true] %s98
          %101 = dma.hbm_to_vmem [thread:$0]  %s96, 32, %s99, %s88
        $region20: #{_lambda_.68} parent=15 // pred_fallthru
          _
      $region16: #{_lambda_.68} parent=5 // pred_fallthru
        _
      %p102 = scmp.le.s32.totalorder 1, %s13
      %p103 = scmp.lt.s32.totalorder %s13, 3
      %p104 = pnand %p102, %p103
      %p105 = pneg %p104
      // Predicated region
      $region21: #{_lambda_.68} parent=5 // pred_check
        _
      $region22: #{_lambda_.68} parent=5 // pred_check_branch
        %107 = sbr.rel (%p104) target = $region24
      $region23: #{_lambda_.68} parent=5 // pred_region
        %s108 = ssub.s32 %s13, 1
        %s109 = sand.u32 %s26, 1
        %s110 = scalar_lea.sflag [#allocation3], %s109
        %s111 = sand.u32 %s26, 1
        %s112 = smul.addr %s111, 2
        %s113 = scalar_lea.vmem [#allocation2], %s112
        // Predicated region
        $region25: #{_lambda_.68} parent=23 // pred_check
          %p114 = pneg %p39
        $region26: #{_lambda_.68} parent=23 // pred_check_branch
          %116 = sbr.rel (%p114) target = $region28
        $region27: #{_lambda_.68} parent=23 // pred_region
          %117 = dma.done %s110, 32
        $region28: #{_lambda_.68} parent=23 // pred_fallthru
          _
        %s118 = sand.u32 %s26, 1
        %s119 = scalar_lea.sflag [#allocation3], %s118
        %s120 = sand.u32 %s26, 1
        %s121 = smul.addr %s120, 2
        %s122 = scalar_lea.vmem [#allocation2], %s121
        %p123 = pneg %p39
        %p124 = pneg %p36
        %p125 = pneg %p65
        %p126 = pneg %p62
        %s127 = sand.u32 %s52, 1
        %s128 = scalar_lea.sflag [#allocation4], %s127
        %s129 = sand.u32 %s52, 1
        %s130 = scalar_lea.vmem [#allocation5], %s129
        %v131 = vld [vmem:[%s113] sm:$0x3]
        %v132 = vunpack.c.l.bf16 %v131
        %vm133 = vcmask 519168
        %v134 = vsel %vm133, %v132, 0.0
        %v135 = vrot.slane %v134, 4
        %v136 = vadd.f32 %v134, %v135
        %v137 = vrot.slane %v136, 2
        %v138 = vadd.f32 %v136, %v137
        %v139 = vrot.slane %v138, 1
        %v140 = vadd.f32 %v138, %v139
        %v141 = vrcp.pop 4.0
        %v142 = vmul.f32 %v140, %v141
        %vm143 = vcmask 516096
        %144 = vst.msk [vmem:[%s130] sm:$0x1] %vm143, %v142
        %s145 = sand.u32 %s52, 1
        %s146 = scalar_lea.sflag [#allocation4], %s145
        %s147 = sand.u32 %s52, 1
        %s148 = scalar_lea.vmem [#allocation5], %s147
        // Predicated region
        $region29: #{_lambda_.68} parent=23 // pred_check
          %p149 = pneg %p62
        $region30: #{_lambda_.68} parent=23 // pred_check_branch
          %151 = sbr.rel (%p149) target = $region32
        $region31: #{_lambda_.68} parent=23 // pred_region
          %s153 = ssub.s32 16, 16
          %154 = vsyncadd %s146, %s153
          %s155 = smul.addr %s18, 16
          %s156 = scalar_lea.hbm %s1, %s155
          %s158 = sshll.u32 %s148, 4
          %s159 = int_to_ptr.vmem [resolvable:$true] %s158
          %161 = dma.vmem_to_hbm [thread:$0]  %s159, 16, %s156, %s146
        $region32: #{_lambda_.68} parent=23 // pred_fallthru
          _
      $region24: #{_lambda_.68} parent=5 // pred_fallthru
        _
      %p162 = scmp.le.s32.totalorder 2, %s13
      // Predicated region
      $region33: #{_lambda_.68} parent=5 // pred_check
        %p163 = pneg %p162
      $region34: #{_lambda_.68} parent=5 // pred_check_branch
        %165 = sbr.rel (%p163) target = $region36
      $region35: #{_lambda_.68} parent=5 // pred_region
        %s166 = ssub.s32 %s13, 2
        // Predicated region
        $region37: #{_lambda_.68} parent=35 // pred_check
          %p167 = pneg %p68
        $region38: #{_lambda_.68} parent=35 // pred_check_branch
          %169 = sbr.rel (%p167) target = $region40
        $region39: #{_lambda_.68} parent=35 // pred_region
          %s170 = sand.u32 %s53, 1
          %s171 = scalar_lea.sflag [#allocation4], %s170
          %s172 = sand.u32 %s53, 1
          %s173 = scalar_lea.vmem [#allocation5], %s172
          %174 = dma.done %s171, 16
        $region40: #{_lambda_.68} parent=35 // pred_fallthru
          _
      $region36: #{_lambda_.68} parent=5 // pred_fallthru
        _
    $region6: #{_lambda_.68} parent=1 // loop_footer
      %s17 = sadd.s32 1, %s13
    $region7: #{_lambda_.68} parent=1 // loop_footer_branch
      %12 = sbr.rel target = $region3
    $region8: #{_lambda_.68} parent=1 // loop_exit
      _
    %175 = vsyncpa [#allocation3], 1
    %s176 = scalar_lea.sflag [#allocation3], 1
    %177 = vsyncpa %s176, 1
    %178 = vsyncpa [#allocation4], 1
    %s179 = scalar_lea.sflag [#allocation4], 1
    %180 = vsyncpa %s179, 1

// kernel: _lambda_.69
$region0: #{_lambda_.69}
  #allocation0 [shape = 'u32[]', space=smem, size = 0x4, offset = 0x4, fixed_abs, tag = 'smem constant byte address 0x4 - core index']
  #allocation1 [shape = 'u32[144,128]{1,0:T(1,128)}', space=vmem, size = 0x12000, scoped, tag = 'internal scratch']
  %s0 = inlined_call_operand.hbm [shape: f32[2,64], index: 0, kind: input, shape index: {}]
  %s1 = inlined_call_operand.hbm [shape: bf16[64,8], index: 1, kind: input, shape index: {}]
  %s2 = inlined_call_operand.hbm [shape: f32[1,8], index: 2, kind: input, shape index: {}]
  %s3 = inlined_call_operand.hbm [shape: f32[2,8], index: 3, kind: output, shape index: {}]
  %s4 = sld [smem:[#allocation0]]
  $region34: #{_lambda_.69} parent=0
    _
  %s6 = ssub.s32 1, %s4
  %s7 = scalar_select 0, %s6, %s4
  $region1: #{_lambda_.69} parent=0
    #allocation2 [shape = 'u8[1024]{0}', space=vmem, size = 0x400, scoped, tag = 'input window, operand 0, single buffered']
    #allocation3 [shape = 's32[1]{0}', space=sflag, size = 0x4, scoped, tag = 'scoped memory for _lambda_.69']
    #allocation4 [shape = 's32[1]{0}', space=sflag, size = 0x4, scoped, tag = 'scoped memory for _lambda_.69']
    #allocation5 [shape = 'u8[16384]{0}', space=vmem, size = 0x4000, scoped, tag = 'input window, operand 1, single buffered']
    #allocation6 [shape = 's32[1]{0}', space=sflag, size = 0x4, scoped, tag = 'scoped memory for _lambda_.69']
    #allocation7 [shape = 'u8[512]{0}', space=vmem, size = 0x400, scoped, tag = 'input window, operand 2, single buffered']
    #allocation8 [shape = 'u8[1024]{0}', space=vmem, size = 0x400, scoped, tag = 'output window, operand 0, single buffered']
    %8 = vsyncpa [#allocation3], 0
    %9 = vsyncpa [#allocation6], 0
    %10 = vsyncpa [#allocation4], 0
    // Predicated region
    $region2: #{_lambda_.69} parent=1 // pred_check
      _
    $region3: #{_lambda_.69} parent=1 // pred_check_branch
      %12 = sbr.rel (0) target = $region5
    $region4: #{_lambda_.69} parent=1 // pred_region
      %s14 = ssub.s32 32, 32
      %15 = vsyncadd [#allocation3], %s14
      %s17 = sshll.u32 [#allocation2], 4
      %s18 = int_to_ptr.vmem [resolvable:$true] %s17
      %20 = dma.hbm_to_vmem [thread:$0]  %s0, 32, %s18, [#allocation3]
    $region5: #{_lambda_.69} parent=1 // pred_fallthru
      _
    // Predicated region
    $region6: #{_lambda_.69} parent=1 // pred_check
      _
    $region7: #{_lambda_.69} parent=1 // pred_check_branch
      %22 = sbr.rel (0) target = $region9
    $region8: #{_lambda_.69} parent=1 // pred_region
      %s24 = ssub.s32 512, 512
      %25 = vsyncadd [#allocation6], %s24
      %s26 = sshll.u32 [#allocation5], 4
      %s27 = int_to_ptr.vmem [resolvable:$true] %s26
      %32 = dma.hbm_to_vmem [thread:$0]  %s1, 512, %s27, [#allocation6], 64, 64, 4
    $region9: #{_lambda_.69} parent=1 // pred_fallthru
      _
    // Predicated region
    $region10: #{_lambda_.69} parent=1 // pred_check
      _
    $region11: #{_lambda_.69} parent=1 // pred_check_branch
      %34 = sbr.rel (0) target = $region13
    $region12: #{_lambda_.69} parent=1 // pred_region
      %s36 = ssub.s32 16, 16
      %37 = vsyncadd [#allocation6], %s36
      %s39 = sshll.u32 [#allocation7], 4
      %s40 = int_to_ptr.vmem [resolvable:$true] %s39
      %42 = dma.hbm_to_vmem [thread:$0]  %s2, 16, %s40, [#allocation6]
    $region13: #{_lambda_.69} parent=1 // pred_fallthru
      _
    // Predicated region
    $region14: #{_lambda_.69} parent=1 // pred_check
      _
    $region15: #{_lambda_.69} parent=1 // pred_check_branch
      %44 = sbr.rel (0) target = $region17
    $region16: #{_lambda_.69} parent=1 // pred_region
      %45 = dma.done [#allocation3], 32
    $region17: #{_lambda_.69} parent=1 // pred_fallthru
      _
    // Predicated region
    $region18: #{_lambda_.69} parent=1 // pred_check
      _
    $region19: #{_lambda_.69} parent=1 // pred_check_branch
      %47 = sbr.rel (0) target = $region21
    $region20: #{_lambda_.69} parent=1 // pred_region
      %48 = dma.done [#allocation6], 512
    $region21: #{_lambda_.69} parent=1 // pred_fallthru
      _
    // Predicated region
    $region22: #{_lambda_.69} parent=1 // pred_check
      _
    $region23: #{_lambda_.69} parent=1 // pred_check_branch
      %50 = sbr.rel (0) target = $region25
    $region24: #{_lambda_.69} parent=1 // pred_region
      %51 = dma.done [#allocation6], 16
    $region25: #{_lambda_.69} parent=1 // pred_fallthru
      _
    %v53 = vld [vmem:[#allocation2] sm:$0x3]
    %v54 = vpack.c.bf16 %v53, %v53
    %v55 = vld [vmem:[#allocation5] sm:$0xf]
    %v56 = vld [vmem:[#allocation5 + $0x4] sm:$0xf]
    %v57 = vld [vmem:[#allocation5 + $0x8] sm:$0xf]
    %v58 = vld [vmem:[#allocation5 + $0xc] sm:$0xf]
    %v59 = vld [vmem:[#allocation5 + $0x10] sm:$0xf]
    %v60 = vld [vmem:[#allocation5 + $0x14] sm:$0xf]
    %v61 = vld [vmem:[#allocation5 + $0x18] sm:$0xf]
    %v62 = vld [vmem:[#allocation5 + $0x1c] sm:$0xf]
    %v63 = vld [vmem:[#allocation7] sm:$0x1]
    %v65 = vlaneseq
    %v66 = vshrl.u32 %v65, 7
    %v67 = vsub.s32 0, %v66
    %v68 = vrot.slane %v63, %v67
    %v78 = vunpack.c.l.b16 %v55
    %v79 = vunpack.c.l.b16 %v56
    %v80 = vunpack.c.l.b16 %v57
    %v81 = vunpack.c.l.b16 %v58
    %v82 = vunpack.c.l.b16 %v59
    %v83 = vunpack.c.l.b16 %v60
    %v84 = vunpack.c.l.b16 %v61
    %v85 = vunpack.c.l.b16 %v62
    %v86 = vpack.c.b16 %v79, %v78
    %v87 = vpack.c.b16 %v81, %v80
    %v88 = vpack.c.b16 %v83, %v82
    %v89 = vpack.c.b16 %v85, %v84
    %vm94 = vcmask 523264
    %v96 = vsel %vm94, %v54, 0
    %98 = vmatprep.subr.bf16.mxu0 0
    %99 = vmatpush1.bf16.msra.mxu0 %v86
    %100 = vmatprep.subr.bf16.mxu0 0
    %101 = vmatpush1.bf16.msra.mxu0 %v87
    %102 = vmatprep.subr.bf16.mxu0 0
    %103 = vmatpush1.bf16.msra.mxu0 %v88
    %104 = vmatprep.subr.bf16.mxu0 0
    %105 = vmatpush1.bf16.msra.mxu0 %v89
    %106 = vmatprep.subr.bf16.mxu0 0
    %107 = vmatpush1.bf16.msra.mxu0 0
    %108 = vmatprep.subr.bf16.mxu0 0
    %109 = vmatpush1.bf16.msra.mxu0 0
    %110 = vmatprep.subr.bf16.mxu0 0
    %111 = vmatpush1.bf16.msra.mxu0 0
    %112 = vmatprep.subr.bf16.mxu0 0
    %113 = vmatpush1.bf16.msra.mxu0 0
    %114 = vmatprep.subr.bf16.mxu0 0
    %115 = vmatpush1.bf16.msra.mxu0 0
    %116 = vmatprep.subr.bf16.mxu0 0
    %117 = vmatpush1.bf16.msra.mxu0 0
    %118 = vmatprep.subr.bf16.mxu0 0
    %119 = vmatpush1.bf16.msra.mxu0 0
    %120 = vmatprep.subr.bf16.mxu0 0
    %121 = vmatpush1.bf16.msra.mxu0 0
    %122 = vmatprep.subr.bf16.mxu0 0
    %123 = vmatpush1.bf16.msra.mxu0 0
    %124 = vmatprep.subr.bf16.mxu0 0
    %125 = vmatpush1.bf16.msra.mxu0 0
    %126 = vmatprep.subr.bf16.mxu0 0
    %127 = vmatpush1.bf16.msra.mxu0 0
    %128 = vmatprep.subr.bf16.mxu0 0
    %129 = vmatpush1.bf16.msra.mxu0 0
    %130 = vmatprep.mubr.bf16.mxu0 0
    %131 = vmatmul.mubr.bf16.gmra.mrb[0].mxu0 %v96
    %v132 = vpop.f32.mrb[0].mxu0
    %v133 = vadd.f32 %v68, %v132
    %v134 = vpop.f32.mrb[0].mxu0
    %v135 = vpop.f32.mrb[0].mxu0
    %v136 = vpop.f32.mrb[0].mxu0
    %137 = vdwg.mxu0
    %vm138 = vcmask 58368
    %139 = vst.msk [vmem:[#allocation8] sm:$0x3] %vm138, %v133
    // Predicated region
    $region26: #{_lambda_.69} parent=1 // pred_check
      _
    $region27: #{_lambda_.69} parent=1 // pred_check_branch
      %141 = sbr.rel (0) target = $region29
    $region28: #{_lambda_.69} parent=1 // pred_region
      %s143 = ssub.s32 32, 32
      %144 = vsyncadd [#allocation4], %s143
      %s146 = sshll.u32 [#allocation8], 4
      %s147 = int_to_ptr.vmem [resolvable:$true] %s146
      %149 = dma.vmem_to_hbm [thread:$0]  %s147, 32, %s3, [#allocation4]
    $region29: #{_lambda_.69} parent=1 // pred_fallthru
      _
    // Predicated region
    $region30: #{_lambda_.69} parent=1 // pred_check
      _
    $region31: #{_lambda_.69} parent=1 // pred_check_branch
      %151 = sbr.rel (0) target = $region33
    $region32: #{_lambda_.69} parent=1 // pred_region
      %152 = dma.done [#allocation4], 32
    $region33: #{_lambda_.69} parent=1 // pred_fallthru
      _
    %153 = vsyncpa [#allocation3], 1
    %154 = vsyncpa [#allocation6], 1
    %155 = vsyncpa [#allocation4], 1

</llo_original>
